<compile_context>
chip_gen: v6e
topology: v6e:2x2x1
jax: 0.10.0
libtpu: 0.0.40
codegen_flags: <defaults>
</compile_context>

<pallas_src>
import math
import functools

import jax
import jax.numpy as jnp
from jax.experimental import pallas as pl
from jax.experimental.pallas import tpu as pltpu

D_IN = 256
D_HID = 1024
EPS = 1e-5
_INV_SQRT2 = 0.7071067811865476  # 1/sqrt(2)


def _mlp_kernel(x_ref, g_ref, b_ref, w1_ref, b1_ref, w2_ref, b2_ref, o_ref):
    # x_ref: (tm, 256) f32 tile of rows.
    x = x_ref[...]

    # --- LayerNorm over last dim (256), elementwise affine, in f32 ---
    # Variance via E[x^2] - E[x]^2: the two reductions are independent and
    # can overlap on the XLU.
    mean = jnp.mean(x, axis=-1, keepdims=True)
    mean_sq = jnp.mean(x * x, axis=-1, keepdims=True)
    var = mean_sq - mean * mean
    inv_std = jax.lax.rsqrt(var + EPS)
    y = (x - mean) * inv_std * g_ref[...] + b_ref[...]
    y_bf = y.astype(jnp.bfloat16)          # bf16 MXU input, f32 accumulation

    # --- Linear(256->1024) -> GELU(exact) -> Linear(1024->256), unchunked ---
    # The full (tm, 1024) f32 activation is ~1.6 MiB: it lives in VMEM/vregs
    # for one pass, no accumulator scratch needed.
    h = jnp.dot(y_bf, w1_ref[...], preferred_element_type=jnp.float32)
    h = h + b1_ref[...]
    # exact GELU (approximate='none'): 0.5*x*(1 + erf(x/sqrt(2)))
    # TODO(synk): tanh-based GELU would move this onto the EUP (faster on
    # v5e/v6e) but changes results by ~1e-3 vs. the PyTorch reference.
    h = 0.5 * h * (1.0 + jax.lax.erf(h * _INV_SQRT2))

    out = jnp.dot(h.astype(jnp.bfloat16), w2_ref[...],
                  preferred_element_type=jnp.float32)

    # Dropout(p=0.0) is the identity -> no-op.
    o_ref[...] = (out + b2_ref[...]).astype(o_ref.dtype)


@functools.partial(jax.jit, static_argnames=("tm",))
def mlp_block(x, gamma, beta, w1_bf, b1, w2_bf, b2, *, tm=400):
    """x: [..., 256] float32 (e.g. [N, H, W, 256]). Returns same shape.

    w1_bf / w2_bf are expected to already be bf16 (cast once by the caller,
    outside the per-call path).
    """
    orig_shape = x.shape
    assert orig_shape[-1] == D_IN
    rows = math.prod(orig_shape[:-1])
    x2 = x.reshape(rows, D_IN)

    # Pad rows to a multiple of tm (pad rows are cropped; LayerNorm of a zero
    # row is finite thanks to EPS, so padding is harmless).
    padded_rows = pl.cdiv(rows, tm) * tm
    if padded_rows != rows:
        x2 = jnp.pad(x2, ((0, padded_rows - rows), (0, 0)))

    # 2-D broadcastable views of the per-feature params (kept in f32).
    gamma2 = gamma.reshape(1, D_IN)
    beta2 = beta.reshape(1, D_IN)
    b1_2 = b1.reshape(1, D_HID)
    b2_2 = b2.reshape(1, D_IN)

    grid = (padded_rows // tm,)

    # Note: constant-index inputs (weights/biases) could use
    # pipeline_mode=pl.Buffered(1) to save duplicate VMEM buffers, but at a
    # ~5 MiB total footprint that headroom is not needed; kept default to
    # stay on the well-trodden lowering path.
    out = pl.pallas_call(
        _mlp_kernel,
        out_shape=jax.ShapeDtypeStruct((padded_rows, D_IN), x.dtype),
        grid_spec=pltpu.PrefetchScalarGridSpec(
            num_scalar_prefetch=0,
            grid=grid,
            in_specs=[
                pl.BlockSpec((tm, D_IN), lambda i: (i, 0)),        # x tile
                pl.BlockSpec((1, D_IN), lambda i: (0, 0)),         # gamma
                pl.BlockSpec((1, D_IN), lambda i: (0, 0)),         # beta
                pl.BlockSpec((D_IN, D_HID), lambda i: (0, 0)),     # W1^T (bf16)
                pl.BlockSpec((1, D_HID), lambda i: (0, 0)),        # b1
                pl.BlockSpec((D_HID, D_IN), lambda i: (0, 0)),     # W2^T (bf16)
                pl.BlockSpec((1, D_IN), lambda i: (0, 0)),         # b2
            ],
            out_specs=pl.BlockSpec((tm, D_IN), lambda i: (i, 0)),
        ),
        compiler_params=pltpu.CompilerParams(
            dimension_semantics=("parallel",),
        ),
    )(x2, gamma2, beta2, w1_bf, b1_2, w2_bf, b2_2)

    if padded_rows != rows:
        out = out[:rows]
    return out.reshape(orig_shape)


def init_params(key):
    """Deterministic parameter init matching the module's shapes.

    PyTorch Linear stores weight as (out, in); we store the transposed
    (in, out) version directly so the kernel computes x @ W^T as x @ w.
    """
    k1, k2, k3, k4 = jax.random.split(key, 4)
    gamma = jnp.ones((D_IN,), jnp.float32)
    beta = jnp.zeros((D_IN,), jnp.float32)
    lim1 = 1.0 / math.sqrt(D_IN)
    w1 = jax.random.uniform(k1, (D_IN, D_HID), jnp.float32, -lim1, lim1)
    b1 = jax.random.uniform(k2, (D_HID,), jnp.float32, -lim1, lim1)
    lim2 = 1.0 / math.sqrt(D_HID)
    w2 = jax.random.uniform(k3, (D_HID, D_IN), jnp.float32, -lim2, lim2)
    b2 = jax.random.uniform(k4, (D_IN,), jnp.float32, -lim2, lim2)
    return gamma, beta, w1, b1, w2, b2


def _reference(x, gamma, beta, w1, b1, w2, b2):
    mean = jnp.mean(x, axis=-1, keepdims=True)
    var = jnp.mean((x - mean) ** 2, axis=-1, keepdims=True)
    xn = (x - mean) / jnp.sqrt(var + EPS)
    y = xn * gamma + beta
    h = y @ w1 + b1
    h = 0.5 * h * (1.0 + jax.lax.erf(h * _INV_SQRT2))
    return h @ w2 + b2


if __name__ == "__main__":
    key = jax.random.PRNGKey(0)
    kx, kp = jax.random.split(key)

    x = jax.random.normal(kx, (1, 28, 28, D_IN), jnp.float32)
    gamma, beta, w1, b1, w2, b2 = init_params(kp)

    # Cast weights to bf16 ONCE (outside the per-call path); these cached
    # bf16 copies are what every kernel invocation consumes.
    w1_bf = jax.device_put(w1.astype(jnp.bfloat16))
    w2_bf = jax.device_put(w2.astype(jnp.bfloat16))

    out = mlp_block(x, gamma, beta, w1_bf, b1, w2_bf, b2)
    out = jax.block_until_ready(out)

    ref = _reference(x, gamma, beta, w1, b1, w2, b2)
    assert out.shape == x.shape
    # bf16 matmul inputs with f32 accumulation -> slightly relaxed tolerance.
    assert jnp.allclose(out, ref, atol=2e-2, rtol=2e-2), float(
        jnp.max(jnp.abs(out - ref)))

    print("KERNEL_OK")
</pallas_src>

<mosaic_0001>
module attributes {stable_mosaic.version = 11 : i64} {
  func.func @_mlp_kernel(%arg0: i32, %arg1: memref<400x256xf32, #tpu.memory_space<vmem>>, %arg2: memref<1x256xf32, #tpu.memory_space<vmem>>, %arg3: memref<1x256xf32, #tpu.memory_space<vmem>>, %arg4: memref<256x1024xbf16, #tpu.memory_space<vmem>>, %arg5: memref<1x1024xf32, #tpu.memory_space<vmem>>, %arg6: memref<1024x256xbf16, #tpu.memory_space<vmem>>, %arg7: memref<1x256xf32, #tpu.memory_space<vmem>>, %arg8: memref<400x256xf32, #tpu.memory_space<vmem>>) attributes {dimension_semantics = [#tpu.dimension_semantics<parallel>], iteration_bounds = array<i64: 2>, scalar_prefetch = 0 : i64, scratch_operands = 0 : i64, tpu.core_type = #tpu.core_type<tc>, window_params = [{transform_indices = @transform_0, window_bounds = array<i64: 400, 256>}, {pipeline_mode = #tpu.pipeline_mode<synchronous>, transform_indices = @transform_1, window_bounds = array<i64: 1, 256>}, {pipeline_mode = #tpu.pipeline_mode<synchronous>, transform_indices = @transform_2, window_bounds = array<i64: 1, 256>}, {pipeline_mode = #tpu.pipeline_mode<synchronous>, transform_indices = @transform_3, window_bounds = array<i64: 256, 1024>}, {pipeline_mode = #tpu.pipeline_mode<synchronous>, transform_indices = @transform_4, window_bounds = array<i64: 1, 1024>}, {pipeline_mode = #tpu.pipeline_mode<synchronous>, transform_indices = @transform_5, window_bounds = array<i64: 1024, 256>}, {pipeline_mode = #tpu.pipeline_mode<synchronous>, transform_indices = @transform_6, window_bounds = array<i64: 1, 256>}, {transform_indices = @transform_7, window_bounds = array<i64: 400, 256>}]} {
    %c0 = arith.constant 0 : index
    %c0_0 = arith.constant 0 : index
    %0 = vector.load %arg1[%c0, %c0_0] : memref<400x256xf32, #tpu.memory_space<vmem>>, vector<400x256xf32>
    %cst = arith.constant dense<0.000000e+00> : vector<400xf32>
    %1 = vector.multi_reduction <add>, %0, %cst [1] : vector<400x256xf32> to vector<400xf32>
    %2 = vector.shape_cast %1 : vector<400xf32> to vector<400x1xf32>
    %cst_1 = arith.constant 2.560000e+02 : f32
    %3 = vector.broadcast %cst_1 : f32 to vector<400x1xf32>
    %4 = arith.divf %2, %3 : vector<400x1xf32>
    %5 = arith.mulf %0, %0 : vector<400x256xf32>
    %cst_2 = arith.constant dense<0.000000e+00> : vector<400xf32>
    %6 = vector.multi_reduction <add>, %5, %cst_2 [1] : vector<400x256xf32> to vector<400xf32>
    %7 = vector.shape_cast %6 : vector<400xf32> to vector<400x1xf32>
    %cst_3 = arith.constant 2.560000e+02 : f32
    %8 = vector.broadcast %cst_3 : f32 to vector<400x1xf32>
    %9 = arith.divf %7, %8 : vector<400x1xf32>
    %10 = arith.mulf %4, %4 : vector<400x1xf32>
    %11 = arith.subf %9, %10 : vector<400x1xf32>
    %cst_4 = arith.constant 9.99999974E-6 : f32
    %12 = vector.broadcast %cst_4 : f32 to vector<400x1xf32>
    %13 = arith.addf %11, %12 : vector<400x1xf32>
    %14 = math.rsqrt %13 : vector<400x1xf32>
    %15 = vector.broadcast %4 : vector<400x1xf32> to vector<400x256xf32>
    %16 = arith.subf %0, %15 : vector<400x256xf32>
    %17 = vector.broadcast %14 : vector<400x1xf32> to vector<400x256xf32>
    %18 = arith.mulf %16, %17 : vector<400x256xf32>
    %c0_5 = arith.constant 0 : index
    %c0_6 = arith.constant 0 : index
    %19 = vector.load %arg2[%c0_5, %c0_6] : memref<1x256xf32, #tpu.memory_space<vmem>>, vector<1x256xf32>
    %20 = vector.broadcast %19 : vector<1x256xf32> to vector<400x256xf32>
    %21 = arith.mulf %18, %20 : vector<400x256xf32>
    %c0_7 = arith.constant 0 : index
    %c0_8 = arith.constant 0 : index
    %22 = vector.load %arg3[%c0_7, %c0_8] : memref<1x256xf32, #tpu.memory_space<vmem>>, vector<1x256xf32>
    %23 = vector.broadcast %22 : vector<1x256xf32> to vector<400x256xf32>
    %24 = arith.addf %21, %23 : vector<400x256xf32>
    %25 = arith.truncf %24 : vector<400x256xf32> to vector<400x256xbf16>
    %c0_9 = arith.constant 0 : index
    %c0_10 = arith.constant 0 : index
    %26 = vector.load %arg4[%c0_9, %c0_10] : memref<256x1024xbf16, #tpu.memory_space<vmem>>, vector<256x1024xbf16>
    %cst_11 = arith.constant dense<0.000000e+00> : vector<400x1024xf32>
    %27 = tpu.matmul %25, %26, %cst_11 {dimension_numbers = #tpu.dot_dimension_numbers<[1], [0], [0], [1], [0, 0, 1, 1], [], []>} : vector<400x256xbf16>, vector<256x1024xbf16>, vector<400x1024xf32> -> vector<400x1024xf32>
    %c0_12 = arith.constant 0 : index
    %c0_13 = arith.constant 0 : index
    %28 = vector.load %arg5[%c0_12, %c0_13] : memref<1x1024xf32, #tpu.memory_space<vmem>>, vector<1x1024xf32>
    %29 = vector.broadcast %28 : vector<1x1024xf32> to vector<400x1024xf32>
    %30 = arith.addf %27, %29 : vector<400x1024xf32>
    %cst_14 = arith.constant 5.000000e-01 : f32
    %31 = vector.broadcast %cst_14 : f32 to vector<400x1024xf32>
    %32 = arith.mulf %31, %30 : vector<400x1024xf32>
    %cst_15 = arith.constant 0.707106769 : f32
    %33 = vector.broadcast %cst_15 : f32 to vector<400x1024xf32>
    %34 = arith.mulf %30, %33 : vector<400x1024xf32>
    %35 = math.erf %34 : vector<400x1024xf32>
    %cst_16 = arith.constant 1.000000e+00 : f32
    %36 = vector.broadcast %cst_16 : f32 to vector<400x1024xf32>
    %37 = arith.addf %36, %35 : vector<400x1024xf32>
    %38 = arith.mulf %32, %37 : vector<400x1024xf32>
    %39 = arith.truncf %38 : vector<400x1024xf32> to vector<400x1024xbf16>
    %c0_17 = arith.constant 0 : index
    %c0_18 = arith.constant 0 : index
    %40 = vector.load %arg6[%c0_17, %c0_18] : memref<1024x256xbf16, #tpu.memory_space<vmem>>, vector<1024x256xbf16>
    %cst_19 = arith.constant dense<0.000000e+00> : vector<400x256xf32>
    %41 = tpu.matmul %39, %40, %cst_19 {dimension_numbers = #tpu.dot_dimension_numbers<[1], [0], [0], [1], [0, 0, 1, 1], [], []>} : vector<400x1024xbf16>, vector<1024x256xbf16>, vector<400x256xf32> -> vector<400x256xf32>
    %c0_20 = arith.constant 0 : index
    %c0_21 = arith.constant 0 : index
    %42 = vector.load %arg7[%c0_20, %c0_21] : memref<1x256xf32, #tpu.memory_space<vmem>>, vector<1x256xf32>
    %43 = vector.broadcast %42 : vector<1x256xf32> to vector<400x256xf32>
    %44 = arith.addf %41, %43 : vector<400x256xf32>
    %c0_22 = arith.constant 0 : index
    %c0_23 = arith.constant 0 : index
    %45 = vector.load %arg8[%c0_22, %c0_23] : memref<400x256xf32, #tpu.memory_space<vmem>>, vector<400x256xf32>
    tpu.vector_store %arg8[%c0_22, %c0_23], %44 {strides = array<i32>} : memref<400x256xf32, #tpu.memory_space<vmem>>, vector<400x256xf32>,
    return
  }
  func.func @transform_0(%arg0: i32) -> (i32, i32) {
    %c0_i32 = arith.constant 0 : i32
    %c0_i32_0 = arith.constant 0 : i32
    return %arg0, %c0_i32 : i32, i32
  }
  func.func @transform_1(%arg0: i32) -> (i32, i32) {
    %c0_i32 = arith.constant 0 : i32
    %c0_i32_0 = arith.constant 0 : i32
    %c0_i32_1 = arith.constant 0 : i32
    return %c0_i32, %c0_i32_0 : i32, i32
  }
  func.func @transform_2(%arg0: i32) -> (i32, i32) {
    %c0_i32 = arith.constant 0 : i32
    %c0_i32_0 = arith.constant 0 : i32
    %c0_i32_1 = arith.constant 0 : i32
    return %c0_i32, %c0_i32_0 : i32, i32
  }
  func.func @transform_3(%arg0: i32) -> (i32, i32) {
    %c0_i32 = arith.constant 0 : i32
    %c0_i32_0 = arith.constant 0 : i32
    %c0_i32_1 = arith.constant 0 : i32
    return %c0_i32, %c0_i32_0 : i32, i32
  }
  func.func @transform_4(%arg0: i32) -> (i32, i32) {
    %c0_i32 = arith.constant 0 : i32
    %c0_i32_0 = arith.constant 0 : i32
    %c0_i32_1 = arith.constant 0 : i32
    return %c0_i32, %c0_i32_0 : i32, i32
  }
  func.func @transform_5(%arg0: i32) -> (i32, i32) {
    %c0_i32 = arith.constant 0 : i32
    %c0_i32_0 = arith.constant 0 : i32
    %c0_i32_1 = arith.constant 0 : i32
    return %c0_i32, %c0_i32_0 : i32, i32
  }
  func.func @transform_6(%arg0: i32) -> (i32, i32) {
    %c0_i32 = arith.constant 0 : i32
    %c0_i32_0 = arith.constant 0 : i32
    %c0_i32_1 = arith.constant 0 : i32
    return %c0_i32, %c0_i32_0 : i32, i32
  }
  func.func @transform_7(%arg0: i32) -> (i32, i32) {
    %c0_i32 = arith.constant 0 : i32
    %c0_i32_0 = arith.constant 0 : i32
    return %arg0, %c0_i32 : i32, i32
  }
}

</mosaic_0001>

<llo_original>
// kernel: mlp_block.1
$region0: #{mlp_block.1}
  #allocation0 [shape = 'u32[]', space=smem, size = 0x4, offset = 0x4, fixed_abs, tag = 'smem constant byte address 0x4 - core index']
  #allocation1 [shape = 'u32[144,128]{1,0:T(1,128)}', space=vmem, size = 0x12000, scoped, tag = 'internal scratch']
  %s0 = inlined_call_operand.vmem [shape: f32[800,256], index: 0, kind: input, shape index: {}]
  %s1 = inlined_call_operand.vmem [shape: f32[1,256], index: 1, kind: input, shape index: {}]
  %s2 = inlined_call_operand.vmem [shape: f32[1,256], index: 2, kind: input, shape index: {}]
  %s3 = inlined_call_operand.vmem [shape: bf16[256,1024], index: 3, kind: input, shape index: {}]
  %s4 = inlined_call_operand.vmem [shape: f32[1,1024], index: 4, kind: input, shape index: {}]
  %s5 = inlined_call_operand.vmem [shape: bf16[1024,256], index: 5, kind: input, shape index: {}]
  %s6 = inlined_call_operand.vmem [shape: f32[1,256], index: 6, kind: input, shape index: {}]
  %s7 = inlined_call_operand.vmem [shape: f32[800,256], index: 7, kind: output, shape index: {}]
  %s8 = sld [smem:[#allocation0]]
  $region61: #{mlp_block.1} parent=0
    _
  %s10 = ssub.s32 1, %s8
  %s11 = scalar_select 0, %s10, %s8
  loop: start=0, step=1, limit=4
  $region2: #{mlp_block.1} parent=0 // loop_pre_header
    _
  $region3: #{mlp_block.1} parent=0 // loop_header
    %s13 = sphi 0, %s17
    %p14 = scmp.ge.s32.totalorder %s13, 4
    %s23 = sphi 0, %s25
    %s26 = sphi 0, %s23
    %s27 = sphi 0, %s26
    %s43 = sphi 0, %s27
    %s47 = sphi 0, %s47
    %s49 = sphi 0, %s47
    %s50 = sphi 0, %s49
    %s64 = sphi 0, %s50
    %s68 = sphi 0, %s68
    %s70 = sphi 0, %s68
    %s71 = sphi 0, %s70
    %s85 = sphi 0, %s71
    %s89 = sphi 0, %s89
    %s91 = sphi 0, %s89
    %s92 = sphi 0, %s91
    %s106 = sphi 0, %s92
    %s110 = sphi 0, %s110
    %s112 = sphi 0, %s110
    %s113 = sphi 0, %s112
    %s127 = sphi 0, %s113
    %s131 = sphi 0, %s131
    %s133 = sphi 0, %s131
    %s134 = sphi 0, %s133
    %s148 = sphi 0, %s134
    %s152 = sphi 0, %s152
    %s154 = sphi 0, %s152
    %s155 = sphi 0, %s154
    %s169 = sphi 0, %s155
    %s175 = sphi 0, %s177
    %s178 = sphi 0, %s175
    %s179 = sphi 0, %s178
    %s195 = sphi 0, %s179
  $region4: #{mlp_block.1} parent=0 // loop_header_branch
    %16 = sbr.rel (%p14) target = $region8
  $region5: #{mlp_block.1} parent=0 // loop_body
    %s18 = ssub.s32 %s13, 1
    %s19 = ssub.s32 %s13, 2
    %s20 = sadd.s32 %s13, 1
    %s21 = ssub.s32 %s13, %s20
    %p22 = scmp.eq.s32.totalorder %s21, 0
    %s24 = sadd.s32 %s23, 1
    %s25 = scalar_select %p22, %s23, %s24
    %p28 = pneg %p22
    %p29 = scmp.eq.s32.totalorder %s13, 1
    %p30 = por %p28, %p29
    %p31 = scmp.ne.s32.totalorder %s23, %s26
    %p32 = scmp.eq.s32.totalorder %s13, 0
    %p33 = por %p31, %p32
    %p34 = scmp.ne.s32.totalorder %s23, %s26
    %p35 = scmp.eq.s32.totalorder %s18, 1
    %p36 = por %p34, %p35
    %p37 = scmp.ne.s32.totalorder %s26, %s27
    %p38 = scmp.eq.s32.totalorder %s18, 0
    %p39 = por %p37, %p38
    %p40 = scmp.ne.s32.totalorder %s26, %s27
    %p41 = scmp.eq.s32.totalorder %s19, 1
    %p42 = por %p40, %p41
    %p44 = scmp.ne.s32.totalorder %s27, %s43
    %p45 = scmp.eq.s32.totalorder %s19, 0
    %p46 = por %p44, %p45
    %s48 = sadd.s32 %s47, 1
    %p51 = scmp.eq.s32.totalorder %s13, 1
    %p52 = scmp.ne.s32.totalorder %s47, %s49
    %p53 = scmp.eq.s32.totalorder %s13, 0
    %p54 = por %p52, %p53
    %p55 = scmp.ne.s32.totalorder %s47, %s49
    %p56 = scmp.eq.s32.totalorder %s18, 1
    %p57 = por %p55, %p56
    %p58 = scmp.ne.s32.totalorder %s49, %s50
    %p59 = scmp.eq.s32.totalorder %s18, 0
    %p60 = por %p58, %p59
    %p61 = scmp.ne.s32.totalorder %s49, %s50
    %p62 = scmp.eq.s32.totalorder %s19, 1
    %p63 = por %p61, %p62
    %p65 = scmp.ne.s32.totalorder %s50, %s64
    %p66 = scmp.eq.s32.totalorder %s19, 0
    %p67 = por %p65, %p66
    %s69 = sadd.s32 %s68, 1
    %p72 = scmp.eq.s32.totalorder %s13, 1
    %p73 = scmp.ne.s32.totalorder %s68, %s70
    %p74 = scmp.eq.s32.totalorder %s13, 0
    %p75 = por %p73, %p74
    %p76 = scmp.ne.s32.totalorder %s68, %s70
    %p77 = scmp.eq.s32.totalorder %s18, 1
    %p78 = por %p76, %p77
    %p79 = scmp.ne.s32.totalorder %s70, %s71
    %p80 = scmp.eq.s32.totalorder %s18, 0
    %p81 = por %p79, %p80
    %p82 = scmp.ne.s32.totalorder %s70, %s71
    %p83 = scmp.eq.s32.totalorder %s19, 1
    %p84 = por %p82, %p83
    %p86 = scmp.ne.s32.totalorder %s71, %s85
    %p87 = scmp.eq.s32.totalorder %s19, 0
    %p88 = por %p86, %p87
    %s90 = sadd.s32 %s89, 1
    %p93 = scmp.eq.s32.totalorder %s13, 1
    %p94 = scmp.ne.s32.totalorder %s89, %s91
    %p95 = scmp.eq.s32.totalorder %s13, 0
    %p96 = por %p94, %p95
    %p97 = scmp.ne.s32.totalorder %s89, %s91
    %p98 = scmp.eq.s32.totalorder %s18, 1
    %p99 = por %p97, %p98
    %p100 = scmp.ne.s32.totalorder %s91, %s92
    %p101 = scmp.eq.s32.totalorder %s18, 0
    %p102 = por %p100, %p101
    %p103 = scmp.ne.s32.totalorder %s91, %s92
    %p104 = scmp.eq.s32.totalorder %s19, 1
    %p105 = por %p103, %p104
    %p107 = scmp.ne.s32.totalorder %s92, %s106
    %p108 = scmp.eq.s32.totalorder %s19, 0
    %p109 = por %p107, %p108
    %s111 = sadd.s32 %s110, 1
    %p114 = scmp.eq.s32.totalorder %s13, 1
    %p115 = scmp.ne.s32.totalorder %s110, %s112
    %p116 = scmp.eq.s32.totalorder %s13, 0
    %p117 = por %p115, %p116
    %p118 = scmp.ne.s32.totalorder %s110, %s112
    %p119 = scmp.eq.s32.totalorder %s18, 1
    %p120 = por %p118, %p119
    %p121 = scmp.ne.s32.totalorder %s112, %s113
    %p122 = scmp.eq.s32.totalorder %s18, 0
    %p123 = por %p121, %p122
    %p124 = scmp.ne.s32.totalorder %s112, %s113
    %p125 = scmp.eq.s32.totalorder %s19, 1
    %p126 = por %p124, %p125
    %p128 = scmp.ne.s32.totalorder %s113, %s127
    %p129 = scmp.eq.s32.totalorder %s19, 0
    %p130 = por %p128, %p129
    %s132 = sadd.s32 %s131, 1
    %p135 = scmp.eq.s32.totalorder %s13, 1
    %p136 = scmp.ne.s32.totalorder %s131, %s133
    %p137 = scmp.eq.s32.totalorder %s13, 0
    %p138 = por %p136, %p137
    %p139 = scmp.ne.s32.totalorder %s131, %s133
    %p140 = scmp.eq.s32.totalorder %s18, 1
    %p141 = por %p139, %p140
    %p142 = scmp.ne.s32.totalorder %s133, %s134
    %p143 = scmp.eq.s32.totalorder %s18, 0
    %p144 = por %p142, %p143
    %p145 = scmp.ne.s32.totalorder %s133, %s134
    %p146 = scmp.eq.s32.totalorder %s19, 1
    %p147 = por %p145, %p146
    %p149 = scmp.ne.s32.totalorder %s134, %s148
    %p150 = scmp.eq.s32.totalorder %s19, 0
    %p151 = por %p149, %p150
    %s153 = sadd.s32 %s152, 1
    %p156 = scmp.eq.s32.totalorder %s13, 1
    %p157 = scmp.ne.s32.totalorder %s152, %s154
    %p158 = scmp.eq.s32.totalorder %s13, 0
    %p159 = por %p157, %p158
    %p160 = scmp.ne.s32.totalorder %s152, %s154
    %p161 = scmp.eq.s32.totalorder %s18, 1
    %p162 = por %p160, %p161
    %p163 = scmp.ne.s32.totalorder %s154, %s155
    %p164 = scmp.eq.s32.totalorder %s18, 0
    %p165 = por %p163, %p164
    %p166 = scmp.ne.s32.totalorder %s154, %s155
    %p167 = scmp.eq.s32.totalorder %s19, 1
    %p168 = por %p166, %p167
    %p170 = scmp.ne.s32.totalorder %s155, %s169
    %p171 = scmp.eq.s32.totalorder %s19, 0
    %p172 = por %p170, %p171
    %s173 = ssub.s32 %s13, %s20
    %p174 = scmp.eq.s32.totalorder %s173, 0
    %s176 = sadd.s32 %s175, 1
    %s177 = scalar_select %p174, %s175, %s176
    %p180 = pneg %p174
    %p181 = scmp.eq.s32.totalorder %s13, 1
    %p182 = por %p180, %p181
    %p183 = scmp.ne.s32.totalorder %s175, %s178
    %p184 = scmp.eq.s32.totalorder %s13, 0
    %p185 = por %p183, %p184
    %p186 = scmp.ne.s32.totalorder %s175, %s178
    %p187 = scmp.eq.s32.totalorder %s18, 1
    %p188 = por %p186, %p187
    %p189 = scmp.ne.s32.totalorder %s178, %s179
    %p190 = scmp.eq.s32.totalorder %s18, 0
    %p191 = por %p189, %p190
    %p192 = scmp.ne.s32.totalorder %s178, %s179
    %p193 = scmp.eq.s32.totalorder %s19, 1
    %p194 = por %p192, %p193
    %p196 = scmp.ne.s32.totalorder %s179, %s195
    %p197 = scmp.eq.s32.totalorder %s19, 0
    %p198 = por %p196, %p197
    %p199 = scmp.le.s32.totalorder 1, %s13
    %p200 = scmp.lt.s32.totalorder %s13, 3
    %p201 = pnand %p199, %p200
    %p202 = pneg %p201
    // Predicated region
    $region9: #{mlp_block.1} parent=5 // pred_check
      _
    $region10: #{mlp_block.1} parent=5 // pred_check_branch
      %204 = sbr.rel (%p201) target = $region12
    $region11: #{mlp_block.1} parent=5 // pred_region
      %s205 = ssub.s32 %s13, 1
      // Predicated region
      $region13: #{mlp_block.1} parent=11 // pred_check
        %p206 = pneg %p60
      $region14: #{mlp_block.1} parent=11 // pred_check_branch
        %208 = sbr.rel (%p206) target = $region16
      $region15: #{mlp_block.1} parent=11 // pred_region
        _
      $region16: #{mlp_block.1} parent=11 // pred_fallthru
        _
      // Predicated region
      $region17: #{mlp_block.1} parent=11 // pred_check
        %p209 = pneg %p81
      $region18: #{mlp_block.1} parent=11 // pred_check_branch
        %211 = sbr.rel (%p209) target = $region20
      $region19: #{mlp_block.1} parent=11 // pred_region
        _
      $region20: #{mlp_block.1} parent=11 // pred_fallthru
        _
      // Predicated region
      $region21: #{mlp_block.1} parent=11 // pred_check
        %p212 = pneg %p102
      $region22: #{mlp_block.1} parent=11 // pred_check_branch
        %214 = sbr.rel (%p212) target = $region24
      $region23: #{mlp_block.1} parent=11 // pred_region
        _
      $region24: #{mlp_block.1} parent=11 // pred_fallthru
        _
      // Predicated region
      $region25: #{mlp_block.1} parent=11 // pred_check
        %p215 = pneg %p123
      $region26: #{mlp_block.1} parent=11 // pred_check_branch
        %217 = sbr.rel (%p215) target = $region28
      $region27: #{mlp_block.1} parent=11 // pred_region
        _
      $region28: #{mlp_block.1} parent=11 // pred_fallthru
        _
      // Predicated region
      $region29: #{mlp_block.1} parent=11 // pred_check
        %p218 = pneg %p144
      $region30: #{mlp_block.1} parent=11 // pred_check_branch
        %220 = sbr.rel (%p218) target = $region32
      $region31: #{mlp_block.1} parent=11 // pred_region
        _
      $region32: #{mlp_block.1} parent=11 // pred_fallthru
        _
      // Predicated region
      $region33: #{mlp_block.1} parent=11 // pred_check
        %p221 = pneg %p165
      $region34: #{mlp_block.1} parent=11 // pred_check_branch
        %223 = sbr.rel (%p221) target = $region36
      $region35: #{mlp_block.1} parent=11 // pred_region
        _
      $region36: #{mlp_block.1} parent=11 // pred_fallthru
        _
    $region12: #{mlp_block.1} parent=5 // pred_fallthru
      _
    %p224 = scmp.lt.s32.totalorder %s13, 2
    // Predicated region
    $region37: #{mlp_block.1} parent=5 // pred_check
      %p225 = pneg %p224
    $region38: #{mlp_block.1} parent=5 // pred_check_branch
      %227 = sbr.rel (%p225) target = $region40
    $region39: #{mlp_block.1} parent=5 // pred_region
      // Predicated region
      $region41: #{mlp_block.1} parent=39 // pred_check
        %p228 = pneg %p33
      $region42: #{mlp_block.1} parent=39 // pred_check_branch
        %230 = sbr.rel (%p228) target = $region44
      $region43: #{mlp_block.1} parent=39 // pred_region
        %s231 = smul.u32 50, %s13
        %p232 = scmp.lt.s32.totalorder %s231, 99
        %s233 = scalar_select %p232, %s231, 99
        %s234 = smul.addr %s233, 2
        %s235 = smul.addr %s234, 8
        %s236 = scalar_lea.vmem %s0, %s235
        %s237 = smul.u32 50, %s13
      $region44: #{mlp_block.1} parent=39 // pred_fallthru
        _
    $region40: #{mlp_block.1} parent=5 // pred_fallthru
      _
    %p238 = scmp.le.s32.totalorder 1, %s13
    %p239 = scmp.lt.s32.totalorder %s13, 3
    %p240 = pnand %p238, %p239
    %p241 = pneg %p240
    // Predicated region
    $region45: #{mlp_block.1} parent=5 // pred_check
      _
    $region46: #{mlp_block.1} parent=5 // pred_check_branch
      %243 = sbr.rel (%p240) target = $region48
    $region47: #{mlp_block.1} parent=5 // pred_region
      %s244 = ssub.s32 %s13, 1
      %s245 = smul.u32 50, %s18
      %p246 = scmp.lt.s32.totalorder %s245, 99
      %s247 = scalar_select %p246, %s245, 99
      %s248 = smul.addr %s247, 2
      %s249 = smul.addr %s248, 8
      %s250 = scalar_lea.vmem %s0, %s249
      %p251 = pneg %p39
      %p252 = pneg %p36
      %p253 = pneg %p60
      %p254 = pneg %p57
      %p255 = pneg %p81
      %p256 = pneg %p78
      %p257 = pneg %p102
      %p258 = pneg %p99
      %p259 = pneg %p123
      %p260 = pneg %p120
      %p261 = pneg %p144
      %p262 = pneg %p141
      %p263 = pneg %p165
      %p264 = pneg %p162
      %p265 = pneg %p191
      %p266 = pneg %p188
      %s267 = smul.u32 50, %s18
      %p268 = scmp.lt.s32.totalorder %s267, 99
      %s269 = scalar_select %p268, %s267, 99
      %s270 = smul.addr %s269, 2
      %s271 = smul.addr %s270, 8
      %s272 = scalar_lea.vmem %s7, %s271
      %s273 = smul.u32 50, %s18
      %p274 = scmp.lt.s32.totalorder %s273, 99
      %s275 = scalar_select %p274, %s273, 99
      %s276 = smul.addr %s275, 2
      %s277 = smul.addr %s276, 8
      %s278 = scalar_lea.vmem %s0, %s277
      %s279 = smul.u32 50, %s18
      %s280 = smul.u32 50, %s18
      %p281 = scmp.lt.s32.totalorder %s280, 99
      %s282 = scalar_select %p281, %s280, 99
      %s283 = smul.addr %s282, 2
      %s284 = smul.addr %s283, 8
      %s285 = scalar_lea.vmem %s7, %s284
      %s286 = smul.u32 50, %s18
      %v287 = vld [vmem:[%s278] sm:$0xff]
      %v288 = vld [vmem:[%s278 + $0x8] sm:$0xff]
      %v289 = vld [vmem:[%s278 + $0x10] sm:$0xff]
      %v290 = vld [vmem:[%s278 + $0x18] sm:$0xff]
      %v291 = vld [vmem:[%s278 + $0x20] sm:$0xff]
      %v292 = vld [vmem:[%s278 + $0x28] sm:$0xff]
      %v293 = vld [vmem:[%s278 + $0x30] sm:$0xff]
      %v294 = vld [vmem:[%s278 + $0x38] sm:$0xff]
      %v295 = vld [vmem:[%s278 + $0x40] sm:$0xff]
      %v296 = vld [vmem:[%s278 + $0x48] sm:$0xff]
      %v297 = vld [vmem:[%s278 + $0x50] sm:$0xff]
      %v298 = vld [vmem:[%s278 + $0x58] sm:$0xff]
      %v299 = vld [vmem:[%s278 + $0x60] sm:$0xff]
      %v300 = vld [vmem:[%s278 + $0x68] sm:$0xff]
      %v301 = vld [vmem:[%s278 + $0x70] sm:$0xff]
      %v302 = vld [vmem:[%s278 + $0x78] sm:$0xff]
      %v303 = vld [vmem:[%s278 + $0x80] sm:$0xff]
      %v304 = vld [vmem:[%s278 + $0x88] sm:$0xff]
      %v305 = vld [vmem:[%s278 + $0x90] sm:$0xff]
      %v306 = vld [vmem:[%s278 + $0x98] sm:$0xff]
      %v307 = vld [vmem:[%s278 + $0xa0] sm:$0xff]
      %v308 = vld [vmem:[%s278 + $0xa8] sm:$0xff]
      %v309 = vld [vmem:[%s278 + $0xb0] sm:$0xff]
      %v310 = vld [vmem:[%s278 + $0xb8] sm:$0xff]
      %v311 = vld [vmem:[%s278 + $0xc0] sm:$0xff]
      %v312 = vld [vmem:[%s278 + $0xc8] sm:$0xff]
      %v313 = vld [vmem:[%s278 + $0xd0] sm:$0xff]
      %v314 = vld [vmem:[%s278 + $0xd8] sm:$0xff]
      %v315 = vld [vmem:[%s278 + $0xe0] sm:$0xff]
      %v316 = vld [vmem:[%s278 + $0xe8] sm:$0xff]
      %v317 = vld [vmem:[%s278 + $0xf0] sm:$0xff]
      %v318 = vld [vmem:[%s278 + $0xf8] sm:$0xff]
      %v319 = vld [vmem:[%s278 + $0x100] sm:$0xff]
      %v320 = vld [vmem:[%s278 + $0x108] sm:$0xff]
      %v321 = vld [vmem:[%s278 + $0x110] sm:$0xff]
      %v322 = vld [vmem:[%s278 + $0x118] sm:$0xff]
      %v323 = vld [vmem:[%s278 + $0x120] sm:$0xff]
      %v324 = vld [vmem:[%s278 + $0x128] sm:$0xff]
      %v325 = vld [vmem:[%s278 + $0x130] sm:$0xff]
      %v326 = vld [vmem:[%s278 + $0x138] sm:$0xff]
      %v327 = vld [vmem:[%s278 + $0x140] sm:$0xff]
      %v328 = vld [vmem:[%s278 + $0x148] sm:$0xff]
      %v329 = vld [vmem:[%s278 + $0x150] sm:$0xff]
      %v330 = vld [vmem:[%s278 + $0x158] sm:$0xff]
      %v331 = vld [vmem:[%s278 + $0x160] sm:$0xff]
      %v332 = vld [vmem:[%s278 + $0x168] sm:$0xff]
      %v333 = vld [vmem:[%s278 + $0x170] sm:$0xff]
      %v334 = vld [vmem:[%s278 + $0x178] sm:$0xff]
      %v335 = vld [vmem:[%s278 + $0x180] sm:$0xff]
      %v336 = vld [vmem:[%s278 + $0x188] sm:$0xff]
      %v337 = vld [vmem:[%s278 + $0x190] sm:$0xff]
      %v338 = vld [vmem:[%s278 + $0x198] sm:$0xff]
      %v339 = vld [vmem:[%s278 + $0x1a0] sm:$0xff]
      %v340 = vld [vmem:[%s278 + $0x1a8] sm:$0xff]
      %v341 = vld [vmem:[%s278 + $0x1b0] sm:$0xff]
      %v342 = vld [vmem:[%s278 + $0x1b8] sm:$0xff]
      %v343 = vld [vmem:[%s278 + $0x1c0] sm:$0xff]
      %v344 = vld [vmem:[%s278 + $0x1c8] sm:$0xff]
      %v345 = vld [vmem:[%s278 + $0x1d0] sm:$0xff]
      %v346 = vld [vmem:[%s278 + $0x1d8] sm:$0xff]
      %v347 = vld [vmem:[%s278 + $0x1e0] sm:$0xff]
      %v348 = vld [vmem:[%s278 + $0x1e8] sm:$0xff]
      %v349 = vld [vmem:[%s278 + $0x1f0] sm:$0xff]
      %v350 = vld [vmem:[%s278 + $0x1f8] sm:$0xff]
      %v351 = vld [vmem:[%s278 + $0x200] sm:$0xff]
      %v352 = vld [vmem:[%s278 + $0x208] sm:$0xff]
      %v353 = vld [vmem:[%s278 + $0x210] sm:$0xff]
      %v354 = vld [vmem:[%s278 + $0x218] sm:$0xff]
      %v355 = vld [vmem:[%s278 + $0x220] sm:$0xff]
      %v356 = vld [vmem:[%s278 + $0x228] sm:$0xff]
      %v357 = vld [vmem:[%s278 + $0x230] sm:$0xff]
      %v358 = vld [vmem:[%s278 + $0x238] sm:$0xff]
      %v359 = vld [vmem:[%s278 + $0x240] sm:$0xff]
      %v360 = vld [vmem:[%s278 + $0x248] sm:$0xff]
      %v361 = vld [vmem:[%s278 + $0x250] sm:$0xff]
      %v362 = vld [vmem:[%s278 + $0x258] sm:$0xff]
      %v363 = vld [vmem:[%s278 + $0x260] sm:$0xff]
      %v364 = vld [vmem:[%s278 + $0x268] sm:$0xff]
      %v365 = vld [vmem:[%s278 + $0x270] sm:$0xff]
      %v366 = vld [vmem:[%s278 + $0x278] sm:$0xff]
      %v367 = vld [vmem:[%s278 + $0x280] sm:$0xff]
      %v368 = vld [vmem:[%s278 + $0x288] sm:$0xff]
      %v369 = vld [vmem:[%s278 + $0x290] sm:$0xff]
      %v370 = vld [vmem:[%s278 + $0x298] sm:$0xff]
      %v371 = vld [vmem:[%s278 + $0x2a0] sm:$0xff]
      %v372 = vld [vmem:[%s278 + $0x2a8] sm:$0xff]
      %v373 = vld [vmem:[%s278 + $0x2b0] sm:$0xff]
      %v374 = vld [vmem:[%s278 + $0x2b8] sm:$0xff]
      %v375 = vld [vmem:[%s278 + $0x2c0] sm:$0xff]
      %v376 = vld [vmem:[%s278 + $0x2c8] sm:$0xff]
      %v377 = vld [vmem:[%s278 + $0x2d0] sm:$0xff]
      %v378 = vld [vmem:[%s278 + $0x2d8] sm:$0xff]
      %v379 = vld [vmem:[%s278 + $0x2e0] sm:$0xff]
      %v380 = vld [vmem:[%s278 + $0x2e8] sm:$0xff]
      %v381 = vld [vmem:[%s278 + $0x2f0] sm:$0xff]
      %v382 = vld [vmem:[%s278 + $0x2f8] sm:$0xff]
      %v383 = vld [vmem:[%s278 + $0x300] sm:$0xff]
      %v384 = vld [vmem:[%s278 + $0x308] sm:$0xff]
      %v385 = vld [vmem:[%s278 + $0x310] sm:$0xff]
      %v386 = vld [vmem:[%s278 + $0x318] sm:$0xff]
      %v387 = vadd.f32 %v287, %v288
      %388 = vadd.xlane.f32.xlu0 %v387
      %v389 = vpop.xlane.xlu0 %388
      %v390 = vadd.f32 %v289, %v290
      %391 = vadd.xlane.f32.xlu0 %v390
      %v392 = vpop.xlane.xlu0 %391
      %v393 = vadd.f32 %v291, %v292
      %394 = vadd.xlane.f32.xlu0 %v393
      %v395 = vpop.xlane.xlu0 %394
      %v396 = vadd.f32 %v293, %v294
      %397 = vadd.xlane.f32.xlu0 %v396
      %v398 = vpop.xlane.xlu0 %397
      %v399 = vadd.f32 %v295, %v296
      %400 = vadd.xlane.f32.xlu0 %v399
      %v401 = vpop.xlane.xlu0 %400
      %v402 = vadd.f32 %v297, %v298
      %403 = vadd.xlane.f32.xlu0 %v402
      %v404 = vpop.xlane.xlu0 %403
      %v405 = vadd.f32 %v299, %v300
      %406 = vadd.xlane.f32.xlu0 %v405
      %v407 = vpop.xlane.xlu0 %406
      %v408 = vadd.f32 %v301, %v302
      %409 = vadd.xlane.f32.xlu0 %v408
      %v410 = vpop.xlane.xlu0 %409
      %v411 = vadd.f32 %v303, %v304
      %412 = vadd.xlane.f32.xlu0 %v411
      %v413 = vpop.xlane.xlu0 %412
      %v414 = vadd.f32 %v305, %v306
      %415 = vadd.xlane.f32.xlu0 %v414
      %v416 = vpop.xlane.xlu0 %415
      %v417 = vadd.f32 %v307, %v308
      %418 = vadd.xlane.f32.xlu0 %v417
      %v419 = vpop.xlane.xlu0 %418
      %v420 = vadd.f32 %v309, %v310
      %421 = vadd.xlane.f32.xlu0 %v420
      %v422 = vpop.xlane.xlu0 %421
      %v423 = vadd.f32 %v311, %v312
      %424 = vadd.xlane.f32.xlu0 %v423
      %v425 = vpop.xlane.xlu0 %424
      %v426 = vadd.f32 %v313, %v314
      %427 = vadd.xlane.f32.xlu0 %v426
      %v428 = vpop.xlane.xlu0 %427
      %v429 = vadd.f32 %v315, %v316
      %430 = vadd.xlane.f32.xlu0 %v429
      %v431 = vpop.xlane.xlu0 %430
      %v432 = vadd.f32 %v317, %v318
      %433 = vadd.xlane.f32.xlu0 %v432
      %v434 = vpop.xlane.xlu0 %433
      %v435 = vadd.f32 %v319, %v320
      %436 = vadd.xlane.f32.xlu0 %v435
      %v437 = vpop.xlane.xlu0 %436
      %v438 = vadd.f32 %v321, %v322
      %439 = vadd.xlane.f32.xlu0 %v438
      %v440 = vpop.xlane.xlu0 %439
      %v441 = vadd.f32 %v323, %v324
      %442 = vadd.xlane.f32.xlu0 %v441
      %v443 = vpop.xlane.xlu0 %442
      %v444 = vadd.f32 %v325, %v326
      %445 = vadd.xlane.f32.xlu0 %v444
      %v446 = vpop.xlane.xlu0 %445
      %v447 = vadd.f32 %v327, %v328
      %448 = vadd.xlane.f32.xlu0 %v447
      %v449 = vpop.xlane.xlu0 %448
      %v450 = vadd.f32 %v329, %v330
      %451 = vadd.xlane.f32.xlu0 %v450
      %v452 = vpop.xlane.xlu0 %451
      %v453 = vadd.f32 %v331, %v332
      %454 = vadd.xlane.f32.xlu0 %v453
      %v455 = vpop.xlane.xlu0 %454
      %v456 = vadd.f32 %v333, %v334
      %457 = vadd.xlane.f32.xlu0 %v456
      %v458 = vpop.xlane.xlu0 %457
      %v459 = vadd.f32 %v335, %v336
      %460 = vadd.xlane.f32.xlu0 %v459
      %v461 = vpop.xlane.xlu0 %460
      %v462 = vadd.f32 %v337, %v338
      %463 = vadd.xlane.f32.xlu0 %v462
      %v464 = vpop.xlane.xlu0 %463
      %v465 = vadd.f32 %v339, %v340
      %466 = vadd.xlane.f32.xlu0 %v465
      %v467 = vpop.xlane.xlu0 %466
      %v468 = vadd.f32 %v341, %v342
      %469 = vadd.xlane.f32.xlu0 %v468
      %v470 = vpop.xlane.xlu0 %469
      %v471 = vadd.f32 %v343, %v344
      %472 = vadd.xlane.f32.xlu0 %v471
      %v473 = vpop.xlane.xlu0 %472
      %v474 = vadd.f32 %v345, %v346
      %475 = vadd.xlane.f32.xlu0 %v474
      %v476 = vpop.xlane.xlu0 %475
      %v477 = vadd.f32 %v347, %v348
      %478 = vadd.xlane.f32.xlu0 %v477
      %v479 = vpop.xlane.xlu0 %478
      %v480 = vadd.f32 %v349, %v350
      %481 = vadd.xlane.f32.xlu0 %v480
      %v482 = vpop.xlane.xlu0 %481
      %v483 = vadd.f32 %v351, %v352
      %484 = vadd.xlane.f32.xlu0 %v483
      %v485 = vpop.xlane.xlu0 %484
      %v486 = vadd.f32 %v353, %v354
      %487 = vadd.xlane.f32.xlu0 %v486
      %v488 = vpop.xlane.xlu0 %487
      %v489 = vadd.f32 %v355, %v356
      %490 = vadd.xlane.f32.xlu0 %v489
      %v491 = vpop.xlane.xlu0 %490
      %v492 = vadd.f32 %v357, %v358
      %493 = vadd.xlane.f32.xlu0 %v492
      %v494 = vpop.xlane.xlu0 %493
      %v495 = vadd.f32 %v359, %v360
      %496 = vadd.xlane.f32.xlu0 %v495
      %v497 = vpop.xlane.xlu0 %496
      %v498 = vadd.f32 %v361, %v362
      %499 = vadd.xlane.f32.xlu0 %v498
      %v500 = vpop.xlane.xlu0 %499
      %v501 = vadd.f32 %v363, %v364
      %502 = vadd.xlane.f32.xlu0 %v501
      %v503 = vpop.xlane.xlu0 %502
      %v504 = vadd.f32 %v365, %v366
      %505 = vadd.xlane.f32.xlu0 %v504
      %v506 = vpop.xlane.xlu0 %505
      %v507 = vadd.f32 %v367, %v368
      %508 = vadd.xlane.f32.xlu0 %v507
      %v509 = vpop.xlane.xlu0 %508
      %v510 = vadd.f32 %v369, %v370
      %511 = vadd.xlane.f32.xlu0 %v510
      %v512 = vpop.xlane.xlu0 %511
      %v513 = vadd.f32 %v371, %v372
      %514 = vadd.xlane.f32.xlu0 %v513
      %v515 = vpop.xlane.xlu0 %514
      %v516 = vadd.f32 %v373, %v374
      %517 = vadd.xlane.f32.xlu0 %v516
      %v518 = vpop.xlane.xlu0 %517
      %v519 = vadd.f32 %v375, %v376
      %520 = vadd.xlane.f32.xlu0 %v519
      %v521 = vpop.xlane.xlu0 %520
      %v522 = vadd.f32 %v377, %v378
      %523 = vadd.xlane.f32.xlu0 %v522
      %v524 = vpop.xlane.xlu0 %523
      %v525 = vadd.f32 %v379, %v380
      %526 = vadd.xlane.f32.xlu0 %v525
      %v527 = vpop.xlane.xlu0 %526
      %v528 = vadd.f32 %v381, %v382
      %529 = vadd.xlane.f32.xlu0 %v528
      %v530 = vpop.xlane.xlu0 %529
      %v531 = vadd.f32 %v383, %v384
      %532 = vadd.xlane.f32.xlu0 %v531
      %v533 = vpop.xlane.xlu0 %532
      %v534 = vadd.f32 %v385, %v386
      %535 = vadd.xlane.f32.xlu0 %v534
      %v536 = vpop.xlane.xlu0 %535
      %v537 = vrcp.pop 256.0
      %v538 = vmul.f32 %v389, %v537
      %v539 = vmul.f32 %v392, %v537
      %v540 = vmul.f32 %v395, %v537
      %v541 = vmul.f32 %v398, %v537
      %v542 = vmul.f32 %v401, %v537
      %v543 = vmul.f32 %v404, %v537
      %v544 = vmul.f32 %v407, %v537
      %v545 = vmul.f32 %v410, %v537
      %v546 = vmul.f32 %v413, %v537
      %v547 = vmul.f32 %v416, %v537
      %v548 = vmul.f32 %v419, %v537
      %v549 = vmul.f32 %v422, %v537
      %v550 = vmul.f32 %v425, %v537
      %v551 = vmul.f32 %v428, %v537
      %v552 = vmul.f32 %v431, %v537
      %v553 = vmul.f32 %v434, %v537
      %v554 = vmul.f32 %v437, %v537
      %v555 = vmul.f32 %v440, %v537
      %v556 = vmul.f32 %v443, %v537
      %v557 = vmul.f32 %v446, %v537
      %v558 = vmul.f32 %v449, %v537
      %v559 = vmul.f32 %v452, %v537
      %v560 = vmul.f32 %v455, %v537
      %v561 = vmul.f32 %v458, %v537
      %v562 = vmul.f32 %v461, %v537
      %v563 = vmul.f32 %v464, %v537
      %v564 = vmul.f32 %v467, %v537
      %v565 = vmul.f32 %v470, %v537
      %v566 = vmul.f32 %v473, %v537
      %v567 = vmul.f32 %v476, %v537
      %v568 = vmul.f32 %v479, %v537
      %v569 = vmul.f32 %v482, %v537
      %v570 = vmul.f32 %v485, %v537
      %v571 = vmul.f32 %v488, %v537
      %v572 = vmul.f32 %v491, %v537
      %v573 = vmul.f32 %v494, %v537
      %v574 = vmul.f32 %v497, %v537
      %v575 = vmul.f32 %v500, %v537
      %v576 = vmul.f32 %v503, %v537
      %v577 = vmul.f32 %v506, %v537
      %v578 = vmul.f32 %v509, %v537
      %v579 = vmul.f32 %v512, %v537
      %v580 = vmul.f32 %v515, %v537
      %v581 = vmul.f32 %v518, %v537
      %v582 = vmul.f32 %v521, %v537
      %v583 = vmul.f32 %v524, %v537
      %v584 = vmul.f32 %v527, %v537
      %v585 = vmul.f32 %v530, %v537
      %v586 = vmul.f32 %v533, %v537
      %v587 = vmul.f32 %v536, %v537
      %v588 = vmul.f32 %v287, %v287
      %v589 = vmul.f32 %v288, %v288
      %v590 = vmul.f32 %v289, %v289
      %v591 = vmul.f32 %v290, %v290
      %v592 = vmul.f32 %v291, %v291
      %v593 = vmul.f32 %v292, %v292
      %v594 = vmul.f32 %v293, %v293
      %v595 = vmul.f32 %v294, %v294
      %v596 = vmul.f32 %v295, %v295
      %v597 = vmul.f32 %v296, %v296
      %v598 = vmul.f32 %v297, %v297
      %v599 = vmul.f32 %v298, %v298
      %v600 = vmul.f32 %v299, %v299
      %v601 = vmul.f32 %v300, %v300
      %v602 = vmul.f32 %v301, %v301
      %v603 = vmul.f32 %v302, %v302
      %v604 = vmul.f32 %v303, %v303
      %v605 = vmul.f32 %v304, %v304
      %v606 = vmul.f32 %v305, %v305
      %v607 = vmul.f32 %v306, %v306
      %v608 = vmul.f32 %v307, %v307
      %v609 = vmul.f32 %v308, %v308
      %v610 = vmul.f32 %v309, %v309
      %v611 = vmul.f32 %v310, %v310
      %v612 = vmul.f32 %v311, %v311
      %v613 = vmul.f32 %v312, %v312
      %v614 = vmul.f32 %v313, %v313
      %v615 = vmul.f32 %v314, %v314
      %v616 = vmul.f32 %v315, %v315
      %v617 = vmul.f32 %v316, %v316
      %v618 = vmul.f32 %v317, %v317
      %v619 = vmul.f32 %v318, %v318
      %v620 = vmul.f32 %v319, %v319
      %v621 = vmul.f32 %v320, %v320
      %v622 = vmul.f32 %v321, %v321
      %v623 = vmul.f32 %v322, %v322
      %v624 = vmul.f32 %v323, %v323
      %v625 = vmul.f32 %v324, %v324
      %v626 = vmul.f32 %v325, %v325
      %v627 = vmul.f32 %v326, %v326
      %v628 = vmul.f32 %v327, %v327
      %v629 = vmul.f32 %v328, %v328
      %v630 = vmul.f32 %v329, %v329
      %v631 = vmul.f32 %v330, %v330
      %v632 = vmul.f32 %v331, %v331
      %v633 = vmul.f32 %v332, %v332
      %v634 = vmul.f32 %v333, %v333
      %v635 = vmul.f32 %v334, %v334
      %v636 = vmul.f32 %v335, %v335
      %v637 = vmul.f32 %v336, %v336
      %v638 = vmul.f32 %v337, %v337
      %v639 = vmul.f32 %v338, %v338
      %v640 = vmul.f32 %v339, %v339
      %v641 = vmul.f32 %v340, %v340
      %v642 = vmul.f32 %v341, %v341
      %v643 = vmul.f32 %v342, %v342
      %v644 = vmul.f32 %v343, %v343
      %v645 = vmul.f32 %v344, %v344
      %v646 = vmul.f32 %v345, %v345
      %v647 = vmul.f32 %v346, %v346
      %v648 = vmul.f32 %v347, %v347
      %v649 = vmul.f32 %v348, %v348
      %v650 = vmul.f32 %v349, %v349
      %v651 = vmul.f32 %v350, %v350
      %v652 = vmul.f32 %v351, %v351
      %v653 = vmul.f32 %v352, %v352
      %v654 = vmul.f32 %v353, %v353
      %v655 = vmul.f32 %v354, %v354
      %v656 = vmul.f32 %v355, %v355
      %v657 = vmul.f32 %v356, %v356
      %v658 = vmul.f32 %v357, %v357
      %v659 = vmul.f32 %v358, %v358
      %v660 = vmul.f32 %v359, %v359
      %v661 = vmul.f32 %v360, %v360
      %v662 = vmul.f32 %v361, %v361
      %v663 = vmul.f32 %v362, %v362
      %v664 = vmul.f32 %v363, %v363
      %v665 = vmul.f32 %v364, %v364
      %v666 = vmul.f32 %v365, %v365
      %v667 = vmul.f32 %v366, %v366
      %v668 = vmul.f32 %v367, %v367
      %v669 = vmul.f32 %v368, %v368
      %v670 = vmul.f32 %v369, %v369
      %v671 = vmul.f32 %v370, %v370
      %v672 = vmul.f32 %v371, %v371
      %v673 = vmul.f32 %v372, %v372
      %v674 = vmul.f32 %v373, %v373
      %v675 = vmul.f32 %v374, %v374
      %v676 = vmul.f32 %v375, %v375
      %v677 = vmul.f32 %v376, %v376
      %v678 = vmul.f32 %v377, %v377
      %v679 = vmul.f32 %v378, %v378
      %v680 = vmul.f32 %v379, %v379
      %v681 = vmul.f32 %v380, %v380
      %v682 = vmul.f32 %v381, %v381
      %v683 = vmul.f32 %v382, %v382
      %v684 = vmul.f32 %v383, %v383
      %v685 = vmul.f32 %v384, %v384
      %v686 = vmul.f32 %v385, %v385
      %v687 = vmul.f32 %v386, %v386
      %v688 = vadd.f32 %v588, %v589
      %689 = vadd.xlane.f32.xlu0 %v688
      %v690 = vpop.xlane.xlu0 %689
      %v691 = vadd.f32 %v590, %v591
      %692 = vadd.xlane.f32.xlu0 %v691
      %v693 = vpop.xlane.xlu0 %692
      %v694 = vadd.f32 %v592, %v593
      %695 = vadd.xlane.f32.xlu0 %v694
      %v696 = vpop.xlane.xlu0 %695
      %v697 = vadd.f32 %v594, %v595
      %698 = vadd.xlane.f32.xlu0 %v697
      %v699 = vpop.xlane.xlu0 %698
      %v700 = vadd.f32 %v596, %v597
      %701 = vadd.xlane.f32.xlu0 %v700
      %v702 = vpop.xlane.xlu0 %701
      %v703 = vadd.f32 %v598, %v599
      %704 = vadd.xlane.f32.xlu0 %v703
      %v705 = vpop.xlane.xlu0 %704
      %v706 = vadd.f32 %v600, %v601
      %707 = vadd.xlane.f32.xlu0 %v706
      %v708 = vpop.xlane.xlu0 %707
      %v709 = vadd.f32 %v602, %v603
      %710 = vadd.xlane.f32.xlu0 %v709
      %v711 = vpop.xlane.xlu0 %710
      %v712 = vadd.f32 %v604, %v605
      %713 = vadd.xlane.f32.xlu0 %v712
      %v714 = vpop.xlane.xlu0 %713
      %v715 = vadd.f32 %v606, %v607
      %716 = vadd.xlane.f32.xlu0 %v715
      %v717 = vpop.xlane.xlu0 %716
      %v718 = vadd.f32 %v608, %v609
      %719 = vadd.xlane.f32.xlu0 %v718
      %v720 = vpop.xlane.xlu0 %719
      %v721 = vadd.f32 %v610, %v611
      %722 = vadd.xlane.f32.xlu0 %v721
      %v723 = vpop.xlane.xlu0 %722
      %v724 = vadd.f32 %v612, %v613
      %725 = vadd.xlane.f32.xlu0 %v724
      %v726 = vpop.xlane.xlu0 %725
      %v727 = vadd.f32 %v614, %v615
      %728 = vadd.xlane.f32.xlu0 %v727
      %v729 = vpop.xlane.xlu0 %728
      %v730 = vadd.f32 %v616, %v617
      %731 = vadd.xlane.f32.xlu0 %v730
      %v732 = vpop.xlane.xlu0 %731
      %v733 = vadd.f32 %v618, %v619
      %734 = vadd.xlane.f32.xlu0 %v733
      %v735 = vpop.xlane.xlu0 %734
      %v736 = vadd.f32 %v620, %v621
      %737 = vadd.xlane.f32.xlu0 %v736
      %v738 = vpop.xlane.xlu0 %737
      %v739 = vadd.f32 %v622, %v623
      %740 = vadd.xlane.f32.xlu0 %v739
      %v741 = vpop.xlane.xlu0 %740
      %v742 = vadd.f32 %v624, %v625
      %743 = vadd.xlane.f32.xlu0 %v742
      %v744 = vpop.xlane.xlu0 %743
      %v745 = vadd.f32 %v626, %v627
      %746 = vadd.xlane.f32.xlu0 %v745
      %v747 = vpop.xlane.xlu0 %746
      %v748 = vadd.f32 %v628, %v629
      %749 = vadd.xlane.f32.xlu0 %v748
      %v750 = vpop.xlane.xlu0 %749
      %v751 = vadd.f32 %v630, %v631
      %752 = vadd.xlane.f32.xlu0 %v751
      %v753 = vpop.xlane.xlu0 %752
      %v754 = vadd.f32 %v632, %v633
      %755 = vadd.xlane.f32.xlu0 %v754
      %v756 = vpop.xlane.xlu0 %755
      %v757 = vadd.f32 %v634, %v635
      %758 = vadd.xlane.f32.xlu0 %v757
      %v759 = vpop.xlane.xlu0 %758
      %v760 = vadd.f32 %v636, %v637
      %761 = vadd.xlane.f32.xlu0 %v760
      %v762 = vpop.xlane.xlu0 %761
      %v763 = vadd.f32 %v638, %v639
      %764 = vadd.xlane.f32.xlu0 %v763
      %v765 = vpop.xlane.xlu0 %764
      %v766 = vadd.f32 %v640, %v641
      %767 = vadd.xlane.f32.xlu0 %v766
      %v768 = vpop.xlane.xlu0 %767
      %v769 = vadd.f32 %v642, %v643
      %770 = vadd.xlane.f32.xlu0 %v769
      %v771 = vpop.xlane.xlu0 %770
      %v772 = vadd.f32 %v644, %v645
      %773 = vadd.xlane.f32.xlu0 %v772
      %v774 = vpop.xlane.xlu0 %773
      %v775 = vadd.f32 %v646, %v647
      %776 = vadd.xlane.f32.xlu0 %v775
      %v777 = vpop.xlane.xlu0 %776
      %v778 = vadd.f32 %v648, %v649
      %779 = vadd.xlane.f32.xlu0 %v778
      %v780 = vpop.xlane.xlu0 %779
      %v781 = vadd.f32 %v650, %v651
      %782 = vadd.xlane.f32.xlu0 %v781
      %v783 = vpop.xlane.xlu0 %782
      %v784 = vadd.f32 %v652, %v653
      %785 = vadd.xlane.f32.xlu0 %v784
      %v786 = vpop.xlane.xlu0 %785
      %v787 = vadd.f32 %v654, %v655
      %788 = vadd.xlane.f32.xlu0 %v787
      %v789 = vpop.xlane.xlu0 %788
      %v790 = vadd.f32 %v656, %v657
      %791 = vadd.xlane.f32.xlu0 %v790
      %v792 = vpop.xlane.xlu0 %791
      %v793 = vadd.f32 %v658, %v659
      %794 = vadd.xlane.f32.xlu0 %v793
      %v795 = vpop.xlane.xlu0 %794
      %v796 = vadd.f32 %v660, %v661
      %797 = vadd.xlane.f32.xlu0 %v796
      %v798 = vpop.xlane.xlu0 %797
      %v799 = vadd.f32 %v662, %v663
      %800 = vadd.xlane.f32.xlu0 %v799
      %v801 = vpop.xlane.xlu0 %800
      %v802 = vadd.f32 %v664, %v665
      %803 = vadd.xlane.f32.xlu0 %v802
      %v804 = vpop.xlane.xlu0 %803
      %v805 = vadd.f32 %v666, %v667
      %806 = vadd.xlane.f32.xlu0 %v805
      %v807 = vpop.xlane.xlu0 %806
      %v808 = vadd.f32 %v668, %v669
      %809 = vadd.xlane.f32.xlu0 %v808
      %v810 = vpop.xlane.xlu0 %809
      %v811 = vadd.f32 %v670, %v671
      %812 = vadd.xlane.f32.xlu0 %v811
      %v813 = vpop.xlane.xlu0 %812
      %v814 = vadd.f32 %v672, %v673
      %815 = vadd.xlane.f32.xlu0 %v814
      %v816 = vpop.xlane.xlu0 %815
      %v817 = vadd.f32 %v674, %v675
      %818 = vadd.xlane.f32.xlu0 %v817
      %v819 = vpop.xlane.xlu0 %818
      %v820 = vadd.f32 %v676, %v677
      %821 = vadd.xlane.f32.xlu0 %v820
      %v822 = vpop.xlane.xlu0 %821
      %v823 = vadd.f32 %v678, %v679
      %824 = vadd.xlane.f32.xlu0 %v823
      %v825 = vpop.xlane.xlu0 %824
      %v826 = vadd.f32 %v680, %v681
      %827 = vadd.xlane.f32.xlu0 %v826
      %v828 = vpop.xlane.xlu0 %827
      %v829 = vadd.f32 %v682, %v683
      %830 = vadd.xlane.f32.xlu0 %v829
      %v831 = vpop.xlane.xlu0 %830
      %v832 = vadd.f32 %v684, %v685
      %833 = vadd.xlane.f32.xlu0 %v832
      %v834 = vpop.xlane.xlu0 %833
      %v835 = vadd.f32 %v686, %v687
      %836 = vadd.xlane.f32.xlu0 %v835
      %v837 = vpop.xlane.xlu0 %836
      %v838 = vmul.f32 %v690, %v537
      %v839 = vmul.f32 %v693, %v537
      %v840 = vmul.f32 %v696, %v537
      %v841 = vmul.f32 %v699, %v537
      %v842 = vmul.f32 %v702, %v537
      %v843 = vmul.f32 %v705, %v537
      %v844 = vmul.f32 %v708, %v537
      %v845 = vmul.f32 %v711, %v537
      %v846 = vmul.f32 %v714, %v537
      %v847 = vmul.f32 %v717, %v537
      %v848 = vmul.f32 %v720, %v537
      %v849 = vmul.f32 %v723, %v537
      %v850 = vmul.f32 %v726, %v537
      %v851 = vmul.f32 %v729, %v537
      %v852 = vmul.f32 %v732, %v537
      %v853 = vmul.f32 %v735, %v537
      %v854 = vmul.f32 %v738, %v537
      %v855 = vmul.f32 %v741, %v537
      %v856 = vmul.f32 %v744, %v537
      %v857 = vmul.f32 %v747, %v537
      %v858 = vmul.f32 %v750, %v537
      %v859 = vmul.f32 %v753, %v537
      %v860 = vmul.f32 %v756, %v537
      %v861 = vmul.f32 %v759, %v537
      %v862 = vmul.f32 %v762, %v537
      %v863 = vmul.f32 %v765, %v537
      %v864 = vmul.f32 %v768, %v537
      %v865 = vmul.f32 %v771, %v537
      %v866 = vmul.f32 %v774, %v537
      %v867 = vmul.f32 %v777, %v537
      %v868 = vmul.f32 %v780, %v537
      %v869 = vmul.f32 %v783, %v537
      %v870 = vmul.f32 %v786, %v537
      %v871 = vmul.f32 %v789, %v537
      %v872 = vmul.f32 %v792, %v537
      %v873 = vmul.f32 %v795, %v537
      %v874 = vmul.f32 %v798, %v537
      %v875 = vmul.f32 %v801, %v537
      %v876 = vmul.f32 %v804, %v537
      %v877 = vmul.f32 %v807, %v537
      %v878 = vmul.f32 %v810, %v537
      %v879 = vmul.f32 %v813, %v537
      %v880 = vmul.f32 %v816, %v537
      %v881 = vmul.f32 %v819, %v537
      %v882 = vmul.f32 %v822, %v537
      %v883 = vmul.f32 %v825, %v537
      %v884 = vmul.f32 %v828, %v537
      %v885 = vmul.f32 %v831, %v537
      %v886 = vmul.f32 %v834, %v537
      %v887 = vmul.f32 %v837, %v537
      %v888 = vmul.f32 %v538, %v538
      %v889 = vmul.f32 %v539, %v539
      %v890 = vmul.f32 %v540, %v540
      %v891 = vmul.f32 %v541, %v541
      %v892 = vmul.f32 %v542, %v542
      %v893 = vmul.f32 %v543, %v543
      %v894 = vmul.f32 %v544, %v544
      %v895 = vmul.f32 %v545, %v545
      %v896 = vmul.f32 %v546, %v546
      %v897 = vmul.f32 %v547, %v547
      %v898 = vmul.f32 %v548, %v548
      %v899 = vmul.f32 %v549, %v549
      %v900 = vmul.f32 %v550, %v550
      %v901 = vmul.f32 %v551, %v551
      %v902 = vmul.f32 %v552, %v552
      %v903 = vmul.f32 %v553, %v553
      %v904 = vmul.f32 %v554, %v554
      %v905 = vmul.f32 %v555, %v555
      %v906 = vmul.f32 %v556, %v556
      %v907 = vmul.f32 %v557, %v557
      %v908 = vmul.f32 %v558, %v558
      %v909 = vmul.f32 %v559, %v559
      %v910 = vmul.f32 %v560, %v560
      %v911 = vmul.f32 %v561, %v561
      %v912 = vmul.f32 %v562, %v562
      %v913 = vmul.f32 %v563, %v563
      %v914 = vmul.f32 %v564, %v564
      %v915 = vmul.f32 %v565, %v565
      %v916 = vmul.f32 %v566, %v566
      %v917 = vmul.f32 %v567, %v567
      %v918 = vmul.f32 %v568, %v568
      %v919 = vmul.f32 %v569, %v569
      %v920 = vmul.f32 %v570, %v570
      %v921 = vmul.f32 %v571, %v571
      %v922 = vmul.f32 %v572, %v572
      %v923 = vmul.f32 %v573, %v573
      %v924 = vmul.f32 %v574, %v574
      %v925 = vmul.f32 %v575, %v575
      %v926 = vmul.f32 %v576, %v576
      %v927 = vmul.f32 %v577, %v577
      %v928 = vmul.f32 %v578, %v578
      %v929 = vmul.f32 %v579, %v579
      %v930 = vmul.f32 %v580, %v580
      %v931 = vmul.f32 %v581, %v581
      %v932 = vmul.f32 %v582, %v582
      %v933 = vmul.f32 %v583, %v583
      %v934 = vmul.f32 %v584, %v584
      %v935 = vmul.f32 %v585, %v585
      %v936 = vmul.f32 %v586, %v586
      %v937 = vmul.f32 %v587, %v587
      %v938 = vsub.f32 %v838, %v888
      %v939 = vsub.f32 %v839, %v889
      %v940 = vsub.f32 %v840, %v890
      %v941 = vsub.f32 %v841, %v891
      %v942 = vsub.f32 %v842, %v892
      %v943 = vsub.f32 %v843, %v893
      %v944 = vsub.f32 %v844, %v894
      %v945 = vsub.f32 %v845, %v895
      %v946 = vsub.f32 %v846, %v896
      %v947 = vsub.f32 %v847, %v897
      %v948 = vsub.f32 %v848, %v898
      %v949 = vsub.f32 %v849, %v899
      %v950 = vsub.f32 %v850, %v900
      %v951 = vsub.f32 %v851, %v901
      %v952 = vsub.f32 %v852, %v902
      %v953 = vsub.f32 %v853, %v903
      %v954 = vsub.f32 %v854, %v904
      %v955 = vsub.f32 %v855, %v905
      %v956 = vsub.f32 %v856, %v906
      %v957 = vsub.f32 %v857, %v907
      %v958 = vsub.f32 %v858, %v908
      %v959 = vsub.f32 %v859, %v909
      %v960 = vsub.f32 %v860, %v910
      %v961 = vsub.f32 %v861, %v911
      %v962 = vsub.f32 %v862, %v912
      %v963 = vsub.f32 %v863, %v913
      %v964 = vsub.f32 %v864, %v914
      %v965 = vsub.f32 %v865, %v915
      %v966 = vsub.f32 %v866, %v916
      %v967 = vsub.f32 %v867, %v917
      %v968 = vsub.f32 %v868, %v918
      %v969 = vsub.f32 %v869, %v919
      %v970 = vsub.f32 %v870, %v920
      %v971 = vsub.f32 %v871, %v921
      %v972 = vsub.f32 %v872, %v922
      %v973 = vsub.f32 %v873, %v923
      %v974 = vsub.f32 %v874, %v924
      %v975 = vsub.f32 %v875, %v925
      %v976 = vsub.f32 %v876, %v926
      %v977 = vsub.f32 %v877, %v927
      %v978 = vsub.f32 %v878, %v928
      %v979 = vsub.f32 %v879, %v929
      %v980 = vsub.f32 %v880, %v930
      %v981 = vsub.f32 %v881, %v931
      %v982 = vsub.f32 %v882, %v932
      %v983 = vsub.f32 %v883, %v933
      %v984 = vsub.f32 %v884, %v934
      %v985 = vsub.f32 %v885, %v935
      %v986 = vsub.f32 %v886, %v936
      %v987 = vsub.f32 %v887, %v937
      %v988 = vadd.f32 %v938, 1e-05
      %v989 = vadd.f32 %v939, 1e-05
      %v990 = vadd.f32 %v940, 1e-05
      %v991 = vadd.f32 %v941, 1e-05
      %v992 = vadd.f32 %v942, 1e-05
      %v993 = vadd.f32 %v943, 1e-05
      %v994 = vadd.f32 %v944, 1e-05
      %v995 = vadd.f32 %v945, 1e-05
      %v996 = vadd.f32 %v946, 1e-05
      %v997 = vadd.f32 %v947, 1e-05
      %v998 = vadd.f32 %v948, 1e-05
      %v999 = vadd.f32 %v949, 1e-05
      %v1000 = vadd.f32 %v950, 1e-05
      %v1001 = vadd.f32 %v951, 1e-05
      %v1002 = vadd.f32 %v952, 1e-05
      %v1003 = vadd.f32 %v953, 1e-05
      %v1004 = vadd.f32 %v954, 1e-05
      %v1005 = vadd.f32 %v955, 1e-05
      %v1006 = vadd.f32 %v956, 1e-05
      %v1007 = vadd.f32 %v957, 1e-05
      %v1008 = vadd.f32 %v958, 1e-05
      %v1009 = vadd.f32 %v959, 1e-05
      %v1010 = vadd.f32 %v960, 1e-05
      %v1011 = vadd.f32 %v961, 1e-05
      %v1012 = vadd.f32 %v962, 1e-05
      %v1013 = vadd.f32 %v963, 1e-05
      %v1014 = vadd.f32 %v964, 1e-05
      %v1015 = vadd.f32 %v965, 1e-05
      %v1016 = vadd.f32 %v966, 1e-05
      %v1017 = vadd.f32 %v967, 1e-05
      %v1018 = vadd.f32 %v968, 1e-05
      %v1019 = vadd.f32 %v969, 1e-05
      %v1020 = vadd.f32 %v970, 1e-05
      %v1021 = vadd.f32 %v971, 1e-05
      %v1022 = vadd.f32 %v972, 1e-05
      %v1023 = vadd.f32 %v973, 1e-05
      %v1024 = vadd.f32 %v974, 1e-05
      %v1025 = vadd.f32 %v975, 1e-05
      %v1026 = vadd.f32 %v976, 1e-05
      %v1027 = vadd.f32 %v977, 1e-05
      %v1028 = vadd.f32 %v978, 1e-05
      %v1029 = vadd.f32 %v979, 1e-05
      %v1030 = vadd.f32 %v980, 1e-05
      %v1031 = vadd.f32 %v981, 1e-05
      %v1032 = vadd.f32 %v982, 1e-05
      %v1033 = vadd.f32 %v983, 1e-05
      %v1034 = vadd.f32 %v984, 1e-05
      %v1035 = vadd.f32 %v985, 1e-05
      %v1036 = vadd.f32 %v986, 1e-05
      %v1037 = vadd.f32 %v987, 1e-05
      %v1038 = vrsqrt.pop %v988
      %v1039 = vrsqrt.pop %v989
      %v1040 = vrsqrt.pop %v990
      %v1041 = vrsqrt.pop %v991
      %v1042 = vrsqrt.pop %v992
      %v1043 = vrsqrt.pop %v993
      %v1044 = vrsqrt.pop %v994
      %v1045 = vrsqrt.pop %v995
      %v1046 = vrsqrt.pop %v996
      %v1047 = vrsqrt.pop %v997
      %v1048 = vrsqrt.pop %v998
      %v1049 = vrsqrt.pop %v999
      %v1050 = vrsqrt.pop %v1000
      %v1051 = vrsqrt.pop %v1001
      %v1052 = vrsqrt.pop %v1002
      %v1053 = vrsqrt.pop %v1003
      %v1054 = vrsqrt.pop %v1004
      %v1055 = vrsqrt.pop %v1005
      %v1056 = vrsqrt.pop %v1006
      %v1057 = vrsqrt.pop %v1007
      %v1058 = vrsqrt.pop %v1008
      %v1059 = vrsqrt.pop %v1009
      %v1060 = vrsqrt.pop %v1010
      %v1061 = vrsqrt.pop %v1011
      %v1062 = vrsqrt.pop %v1012
      %v1063 = vrsqrt.pop %v1013
      %v1064 = vrsqrt.pop %v1014
      %v1065 = vrsqrt.pop %v1015
      %v1066 = vrsqrt.pop %v1016
      %v1067 = vrsqrt.pop %v1017
      %v1068 = vrsqrt.pop %v1018
      %v1069 = vrsqrt.pop %v1019
      %v1070 = vrsqrt.pop %v1020
      %v1071 = vrsqrt.pop %v1021
      %v1072 = vrsqrt.pop %v1022
      %v1073 = vrsqrt.pop %v1023
      %v1074 = vrsqrt.pop %v1024
      %v1075 = vrsqrt.pop %v1025
      %v1076 = vrsqrt.pop %v1026
      %v1077 = vrsqrt.pop %v1027
      %v1078 = vrsqrt.pop %v1028
      %v1079 = vrsqrt.pop %v1029
      %v1080 = vrsqrt.pop %v1030
      %v1081 = vrsqrt.pop %v1031
      %v1082 = vrsqrt.pop %v1032
      %v1083 = vrsqrt.pop %v1033
      %v1084 = vrsqrt.pop %v1034
      %v1085 = vrsqrt.pop %v1035
      %v1086 = vrsqrt.pop %v1036
      %v1087 = vrsqrt.pop %v1037
      %v1088 = vsub.f32 %v287, %v538
      %v1089 = vsub.f32 %v288, %v538
      %v1090 = vsub.f32 %v289, %v539
      %v1091 = vsub.f32 %v290, %v539
      %v1092 = vsub.f32 %v291, %v540
      %v1093 = vsub.f32 %v292, %v540
      %v1094 = vsub.f32 %v293, %v541
      %v1095 = vsub.f32 %v294, %v541
      %v1096 = vsub.f32 %v295, %v542
      %v1097 = vsub.f32 %v296, %v542
      %v1098 = vsub.f32 %v297, %v543
      %v1099 = vsub.f32 %v298, %v543
      %v1100 = vsub.f32 %v299, %v544
      %v1101 = vsub.f32 %v300, %v544
      %v1102 = vsub.f32 %v301, %v545
      %v1103 = vsub.f32 %v302, %v545
      %v1104 = vsub.f32 %v303, %v546
      %v1105 = vsub.f32 %v304, %v546
      %v1106 = vsub.f32 %v305, %v547
      %v1107 = vsub.f32 %v306, %v547
      %v1108 = vsub.f32 %v307, %v548
      %v1109 = vsub.f32 %v308, %v548
      %v1110 = vsub.f32 %v309, %v549
      %v1111 = vsub.f32 %v310, %v549
      %v1112 = vsub.f32 %v311, %v550
      %v1113 = vsub.f32 %v312, %v550
      %v1114 = vsub.f32 %v313, %v551
      %v1115 = vsub.f32 %v314, %v551
      %v1116 = vsub.f32 %v315, %v552
      %v1117 = vsub.f32 %v316, %v552
      %v1118 = vsub.f32 %v317, %v553
      %v1119 = vsub.f32 %v318, %v553
      %v1120 = vsub.f32 %v319, %v554
      %v1121 = vsub.f32 %v320, %v554
      %v1122 = vsub.f32 %v321, %v555
      %v1123 = vsub.f32 %v322, %v555
      %v1124 = vsub.f32 %v323, %v556
      %v1125 = vsub.f32 %v324, %v556
      %v1126 = vsub.f32 %v325, %v557
      %v1127 = vsub.f32 %v326, %v557
      %v1128 = vsub.f32 %v327, %v558
      %v1129 = vsub.f32 %v328, %v558
      %v1130 = vsub.f32 %v329, %v559
      %v1131 = vsub.f32 %v330, %v559
      %v1132 = vsub.f32 %v331, %v560
      %v1133 = vsub.f32 %v332, %v560
      %v1134 = vsub.f32 %v333, %v561
      %v1135 = vsub.f32 %v334, %v561
      %v1136 = vsub.f32 %v335, %v562
      %v1137 = vsub.f32 %v336, %v562
      %v1138 = vsub.f32 %v337, %v563
      %v1139 = vsub.f32 %v338, %v563
      %v1140 = vsub.f32 %v339, %v564
      %v1141 = vsub.f32 %v340, %v564
      %v1142 = vsub.f32 %v341, %v565
      %v1143 = vsub.f32 %v342, %v565
      %v1144 = vsub.f32 %v343, %v566
      %v1145 = vsub.f32 %v344, %v566
      %v1146 = vsub.f32 %v345, %v567
      %v1147 = vsub.f32 %v346, %v567
      %v1148 = vsub.f32 %v347, %v568
      %v1149 = vsub.f32 %v348, %v568
      %v1150 = vsub.f32 %v349, %v569
      %v1151 = vsub.f32 %v350, %v569
      %v1152 = vsub.f32 %v351, %v570
      %v1153 = vsub.f32 %v352, %v570
      %v1154 = vsub.f32 %v353, %v571
      %v1155 = vsub.f32 %v354, %v571
      %v1156 = vsub.f32 %v355, %v572
      %v1157 = vsub.f32 %v356, %v572
      %v1158 = vsub.f32 %v357, %v573
      %v1159 = vsub.f32 %v358, %v573
      %v1160 = vsub.f32 %v359, %v574
      %v1161 = vsub.f32 %v360, %v574
      %v1162 = vsub.f32 %v361, %v575
      %v1163 = vsub.f32 %v362, %v575
      %v1164 = vsub.f32 %v363, %v576
      %v1165 = vsub.f32 %v364, %v576
      %v1166 = vsub.f32 %v365, %v577
      %v1167 = vsub.f32 %v366, %v577
      %v1168 = vsub.f32 %v367, %v578
      %v1169 = vsub.f32 %v368, %v578
      %v1170 = vsub.f32 %v369, %v579
      %v1171 = vsub.f32 %v370, %v579
      %v1172 = vsub.f32 %v371, %v580
      %v1173 = vsub.f32 %v372, %v580
      %v1174 = vsub.f32 %v373, %v581
      %v1175 = vsub.f32 %v374, %v581
      %v1176 = vsub.f32 %v375, %v582
      %v1177 = vsub.f32 %v376, %v582
      %v1178 = vsub.f32 %v377, %v583
      %v1179 = vsub.f32 %v378, %v583
      %v1180 = vsub.f32 %v379, %v584
      %v1181 = vsub.f32 %v380, %v584
      %v1182 = vsub.f32 %v381, %v585
      %v1183 = vsub.f32 %v382, %v585
      %v1184 = vsub.f32 %v383, %v586
      %v1185 = vsub.f32 %v384, %v586
      %v1186 = vsub.f32 %v385, %v587
      %v1187 = vsub.f32 %v386, %v587
      %v1188 = vmul.f32 %v1088, %v1038
      %v1189 = vmul.f32 %v1089, %v1038
      %v1190 = vmul.f32 %v1090, %v1039
      %v1191 = vmul.f32 %v1091, %v1039
      %v1192 = vmul.f32 %v1092, %v1040
      %v1193 = vmul.f32 %v1093, %v1040
      %v1194 = vmul.f32 %v1094, %v1041
      %v1195 = vmul.f32 %v1095, %v1041
      %v1196 = vmul.f32 %v1096, %v1042
      %v1197 = vmul.f32 %v1097, %v1042
      %v1198 = vmul.f32 %v1098, %v1043
      %v1199 = vmul.f32 %v1099, %v1043
      %v1200 = vmul.f32 %v1100, %v1044
      %v1201 = vmul.f32 %v1101, %v1044
      %v1202 = vmul.f32 %v1102, %v1045
      %v1203 = vmul.f32 %v1103, %v1045
      %v1204 = vmul.f32 %v1104, %v1046
      %v1205 = vmul.f32 %v1105, %v1046
      %v1206 = vmul.f32 %v1106, %v1047
      %v1207 = vmul.f32 %v1107, %v1047
      %v1208 = vmul.f32 %v1108, %v1048
      %v1209 = vmul.f32 %v1109, %v1048
      %v1210 = vmul.f32 %v1110, %v1049
      %v1211 = vmul.f32 %v1111, %v1049
      %v1212 = vmul.f32 %v1112, %v1050
      %v1213 = vmul.f32 %v1113, %v1050
      %v1214 = vmul.f32 %v1114, %v1051
      %v1215 = vmul.f32 %v1115, %v1051
      %v1216 = vmul.f32 %v1116, %v1052
      %v1217 = vmul.f32 %v1117, %v1052
      %v1218 = vmul.f32 %v1118, %v1053
      %v1219 = vmul.f32 %v1119, %v1053
      %v1220 = vmul.f32 %v1120, %v1054
      %v1221 = vmul.f32 %v1121, %v1054
      %v1222 = vmul.f32 %v1122, %v1055
      %v1223 = vmul.f32 %v1123, %v1055
      %v1224 = vmul.f32 %v1124, %v1056
      %v1225 = vmul.f32 %v1125, %v1056
      %v1226 = vmul.f32 %v1126, %v1057
      %v1227 = vmul.f32 %v1127, %v1057
      %v1228 = vmul.f32 %v1128, %v1058
      %v1229 = vmul.f32 %v1129, %v1058
      %v1230 = vmul.f32 %v1130, %v1059
      %v1231 = vmul.f32 %v1131, %v1059
      %v1232 = vmul.f32 %v1132, %v1060
      %v1233 = vmul.f32 %v1133, %v1060
      %v1234 = vmul.f32 %v1134, %v1061
      %v1235 = vmul.f32 %v1135, %v1061
      %v1236 = vmul.f32 %v1136, %v1062
      %v1237 = vmul.f32 %v1137, %v1062
      %v1238 = vmul.f32 %v1138, %v1063
      %v1239 = vmul.f32 %v1139, %v1063
      %v1240 = vmul.f32 %v1140, %v1064
      %v1241 = vmul.f32 %v1141, %v1064
      %v1242 = vmul.f32 %v1142, %v1065
      %v1243 = vmul.f32 %v1143, %v1065
      %v1244 = vmul.f32 %v1144, %v1066
      %v1245 = vmul.f32 %v1145, %v1066
      %v1246 = vmul.f32 %v1146, %v1067
      %v1247 = vmul.f32 %v1147, %v1067
      %v1248 = vmul.f32 %v1148, %v1068
      %v1249 = vmul.f32 %v1149, %v1068
      %v1250 = vmul.f32 %v1150, %v1069
      %v1251 = vmul.f32 %v1151, %v1069
      %v1252 = vmul.f32 %v1152, %v1070
      %v1253 = vmul.f32 %v1153, %v1070
      %v1254 = vmul.f32 %v1154, %v1071
      %v1255 = vmul.f32 %v1155, %v1071
      %v1256 = vmul.f32 %v1156, %v1072
      %v1257 = vmul.f32 %v1157, %v1072
      %v1258 = vmul.f32 %v1158, %v1073
      %v1259 = vmul.f32 %v1159, %v1073
      %v1260 = vmul.f32 %v1160, %v1074
      %v1261 = vmul.f32 %v1161, %v1074
      %v1262 = vmul.f32 %v1162, %v1075
      %v1263 = vmul.f32 %v1163, %v1075
      %v1264 = vmul.f32 %v1164, %v1076
      %v1265 = vmul.f32 %v1165, %v1076
      %v1266 = vmul.f32 %v1166, %v1077
      %v1267 = vmul.f32 %v1167, %v1077
      %v1268 = vmul.f32 %v1168, %v1078
      %v1269 = vmul.f32 %v1169, %v1078
      %v1270 = vmul.f32 %v1170, %v1079
      %v1271 = vmul.f32 %v1171, %v1079
      %v1272 = vmul.f32 %v1172, %v1080
      %v1273 = vmul.f32 %v1173, %v1080
      %v1274 = vmul.f32 %v1174, %v1081
      %v1275 = vmul.f32 %v1175, %v1081
      %v1276 = vmul.f32 %v1176, %v1082
      %v1277 = vmul.f32 %v1177, %v1082
      %v1278 = vmul.f32 %v1178, %v1083
      %v1279 = vmul.f32 %v1179, %v1083
      %v1280 = vmul.f32 %v1180, %v1084
      %v1281 = vmul.f32 %v1181, %v1084
      %v1282 = vmul.f32 %v1182, %v1085
      %v1283 = vmul.f32 %v1183, %v1085
      %v1284 = vmul.f32 %v1184, %v1086
      %v1285 = vmul.f32 %v1185, %v1086
      %v1286 = vmul.f32 %v1186, %v1087
      %v1287 = vmul.f32 %v1187, %v1087
      %v1288 = vld [vmem:[%s1] sm:$0x3]
      %v1290 = vlaneseq
      %v1291 = vshrl.u32 %v1290, 7
      %v1292 = vsub.s32 0, %v1291
      %v1293 = vrot.slane %v1288, %v1292
      %v1294 = vlaneseq
      %v1295 = vshrl.u32 %v1294, 7
      %v1296 = vsub.s32 1, %v1295
      %v1297 = vrot.slane %v1288, %v1296
      %v1300 = vmul.f32 %v1188, %v1293
      %v1301 = vmul.f32 %v1189, %v1297
      %v1302 = vmul.f32 %v1190, %v1293
      %v1303 = vmul.f32 %v1191, %v1297
      %v1304 = vmul.f32 %v1192, %v1293
      %v1305 = vmul.f32 %v1193, %v1297
      %v1306 = vmul.f32 %v1194, %v1293
      %v1307 = vmul.f32 %v1195, %v1297
      %v1308 = vmul.f32 %v1196, %v1293
      %v1309 = vmul.f32 %v1197, %v1297
      %v1310 = vmul.f32 %v1198, %v1293
      %v1311 = vmul.f32 %v1199, %v1297
      %v1312 = vmul.f32 %v1200, %v1293
      %v1313 = vmul.f32 %v1201, %v1297
      %v1314 = vmul.f32 %v1202, %v1293
      %v1315 = vmul.f32 %v1203, %v1297
      %v1316 = vmul.f32 %v1204, %v1293
      %v1317 = vmul.f32 %v1205, %v1297
      %v1318 = vmul.f32 %v1206, %v1293
      %v1319 = vmul.f32 %v1207, %v1297
      %v1320 = vmul.f32 %v1208, %v1293
      %v1321 = vmul.f32 %v1209, %v1297
      %v1322 = vmul.f32 %v1210, %v1293
      %v1323 = vmul.f32 %v1211, %v1297
      %v1324 = vmul.f32 %v1212, %v1293
      %v1325 = vmul.f32 %v1213, %v1297
      %v1326 = vmul.f32 %v1214, %v1293
      %v1327 = vmul.f32 %v1215, %v1297
      %v1328 = vmul.f32 %v1216, %v1293
      %v1329 = vmul.f32 %v1217, %v1297
      %v1330 = vmul.f32 %v1218, %v1293
      %v1331 = vmul.f32 %v1219, %v1297
      %v1332 = vmul.f32 %v1220, %v1293
      %v1333 = vmul.f32 %v1221, %v1297
      %v1334 = vmul.f32 %v1222, %v1293
      %v1335 = vmul.f32 %v1223, %v1297
      %v1336 = vmul.f32 %v1224, %v1293
      %v1337 = vmul.f32 %v1225, %v1297
      %v1338 = vmul.f32 %v1226, %v1293
      %v1339 = vmul.f32 %v1227, %v1297
      %v1340 = vmul.f32 %v1228, %v1293
      %v1341 = vmul.f32 %v1229, %v1297
      %v1342 = vmul.f32 %v1230, %v1293
      %v1343 = vmul.f32 %v1231, %v1297
      %v1344 = vmul.f32 %v1232, %v1293
      %v1345 = vmul.f32 %v1233, %v1297
      %v1346 = vmul.f32 %v1234, %v1293
      %v1347 = vmul.f32 %v1235, %v1297
      %v1348 = vmul.f32 %v1236, %v1293
      %v1349 = vmul.f32 %v1237, %v1297
      %v1350 = vmul.f32 %v1238, %v1293
      %v1351 = vmul.f32 %v1239, %v1297
      %v1352 = vmul.f32 %v1240, %v1293
      %v1353 = vmul.f32 %v1241, %v1297
      %v1354 = vmul.f32 %v1242, %v1293
      %v1355 = vmul.f32 %v1243, %v1297
      %v1356 = vmul.f32 %v1244, %v1293
      %v1357 = vmul.f32 %v1245, %v1297
      %v1358 = vmul.f32 %v1246, %v1293
      %v1359 = vmul.f32 %v1247, %v1297
      %v1360 = vmul.f32 %v1248, %v1293
      %v1361 = vmul.f32 %v1249, %v1297
      %v1362 = vmul.f32 %v1250, %v1293
      %v1363 = vmul.f32 %v1251, %v1297
      %v1364 = vmul.f32 %v1252, %v1293
      %v1365 = vmul.f32 %v1253, %v1297
      %v1366 = vmul.f32 %v1254, %v1293
      %v1367 = vmul.f32 %v1255, %v1297
      %v1368 = vmul.f32 %v1256, %v1293
      %v1369 = vmul.f32 %v1257, %v1297
      %v1370 = vmul.f32 %v1258, %v1293
      %v1371 = vmul.f32 %v1259, %v1297
      %v1372 = vmul.f32 %v1260, %v1293
      %v1373 = vmul.f32 %v1261, %v1297
      %v1374 = vmul.f32 %v1262, %v1293
      %v1375 = vmul.f32 %v1263, %v1297
      %v1376 = vmul.f32 %v1264, %v1293
      %v1377 = vmul.f32 %v1265, %v1297
      %v1378 = vmul.f32 %v1266, %v1293
      %v1379 = vmul.f32 %v1267, %v1297
      %v1380 = vmul.f32 %v1268, %v1293
      %v1381 = vmul.f32 %v1269, %v1297
      %v1382 = vmul.f32 %v1270, %v1293
      %v1383 = vmul.f32 %v1271, %v1297
      %v1384 = vmul.f32 %v1272, %v1293
      %v1385 = vmul.f32 %v1273, %v1297
      %v1386 = vmul.f32 %v1274, %v1293
      %v1387 = vmul.f32 %v1275, %v1297
      %v1388 = vmul.f32 %v1276, %v1293
      %v1389 = vmul.f32 %v1277, %v1297
      %v1390 = vmul.f32 %v1278, %v1293
      %v1391 = vmul.f32 %v1279, %v1297
      %v1392 = vmul.f32 %v1280, %v1293
      %v1393 = vmul.f32 %v1281, %v1297
      %v1394 = vmul.f32 %v1282, %v1293
      %v1395 = vmul.f32 %v1283, %v1297
      %v1396 = vmul.f32 %v1284, %v1293
      %v1397 = vmul.f32 %v1285, %v1297
      %v1398 = vmul.f32 %v1286, %v1293
      %v1399 = vmul.f32 %v1287, %v1297
      %v1400 = vld [vmem:[%s2] sm:$0x3]
      %v1402 = vlaneseq
      %v1403 = vshrl.u32 %v1402, 7
      %v1404 = vsub.s32 0, %v1403
      %v1405 = vrot.slane %v1400, %v1404
      %v1406 = vlaneseq
      %v1407 = vshrl.u32 %v1406, 7
      %v1408 = vsub.s32 1, %v1407
      %v1409 = vrot.slane %v1400, %v1408
      %v1412 = vadd.f32 %v1300, %v1405
      %v1413 = vadd.f32 %v1301, %v1409
      %v1414 = vadd.f32 %v1302, %v1405
      %v1415 = vadd.f32 %v1303, %v1409
      %v1416 = vadd.f32 %v1304, %v1405
      %v1417 = vadd.f32 %v1305, %v1409
      %v1418 = vadd.f32 %v1306, %v1405
      %v1419 = vadd.f32 %v1307, %v1409
      %v1420 = vadd.f32 %v1308, %v1405
      %v1421 = vadd.f32 %v1309, %v1409
      %v1422 = vadd.f32 %v1310, %v1405
      %v1423 = vadd.f32 %v1311, %v1409
      %v1424 = vadd.f32 %v1312, %v1405
      %v1425 = vadd.f32 %v1313, %v1409
      %v1426 = vadd.f32 %v1314, %v1405
      %v1427 = vadd.f32 %v1315, %v1409
      %v1428 = vadd.f32 %v1316, %v1405
      %v1429 = vadd.f32 %v1317, %v1409
      %v1430 = vadd.f32 %v1318, %v1405
      %v1431 = vadd.f32 %v1319, %v1409
      %v1432 = vadd.f32 %v1320, %v1405
      %v1433 = vadd.f32 %v1321, %v1409
      %v1434 = vadd.f32 %v1322, %v1405
      %v1435 = vadd.f32 %v1323, %v1409
      %v1436 = vadd.f32 %v1324, %v1405
      %v1437 = vadd.f32 %v1325, %v1409
      %v1438 = vadd.f32 %v1326, %v1405
      %v1439 = vadd.f32 %v1327, %v1409
      %v1440 = vadd.f32 %v1328, %v1405
      %v1441 = vadd.f32 %v1329, %v1409
      %v1442 = vadd.f32 %v1330, %v1405
      %v1443 = vadd.f32 %v1331, %v1409
      %v1444 = vadd.f32 %v1332, %v1405
      %v1445 = vadd.f32 %v1333, %v1409
      %v1446 = vadd.f32 %v1334, %v1405
      %v1447 = vadd.f32 %v1335, %v1409
      %v1448 = vadd.f32 %v1336, %v1405
      %v1449 = vadd.f32 %v1337, %v1409
      %v1450 = vadd.f32 %v1338, %v1405
      %v1451 = vadd.f32 %v1339, %v1409
      %v1452 = vadd.f32 %v1340, %v1405
      %v1453 = vadd.f32 %v1341, %v1409
      %v1454 = vadd.f32 %v1342, %v1405
      %v1455 = vadd.f32 %v1343, %v1409
      %v1456 = vadd.f32 %v1344, %v1405
      %v1457 = vadd.f32 %v1345, %v1409
      %v1458 = vadd.f32 %v1346, %v1405
      %v1459 = vadd.f32 %v1347, %v1409
      %v1460 = vadd.f32 %v1348, %v1405
      %v1461 = vadd.f32 %v1349, %v1409
      %v1462 = vadd.f32 %v1350, %v1405
      %v1463 = vadd.f32 %v1351, %v1409
      %v1464 = vadd.f32 %v1352, %v1405
      %v1465 = vadd.f32 %v1353, %v1409
      %v1466 = vadd.f32 %v1354, %v1405
      %v1467 = vadd.f32 %v1355, %v1409
      %v1468 = vadd.f32 %v1356, %v1405
      %v1469 = vadd.f32 %v1357, %v1409
      %v1470 = vadd.f32 %v1358, %v1405
      %v1471 = vadd.f32 %v1359, %v1409
      %v1472 = vadd.f32 %v1360, %v1405
      %v1473 = vadd.f32 %v1361, %v1409
      %v1474 = vadd.f32 %v1362, %v1405
      %v1475 = vadd.f32 %v1363, %v1409
      %v1476 = vadd.f32 %v1364, %v1405
      %v1477 = vadd.f32 %v1365, %v1409
      %v1478 = vadd.f32 %v1366, %v1405
      %v1479 = vadd.f32 %v1367, %v1409
      %v1480 = vadd.f32 %v1368, %v1405
      %v1481 = vadd.f32 %v1369, %v1409
      %v1482 = vadd.f32 %v1370, %v1405
      %v1483 = vadd.f32 %v1371, %v1409
      %v1484 = vadd.f32 %v1372, %v1405
      %v1485 = vadd.f32 %v1373, %v1409
      %v1486 = vadd.f32 %v1374, %v1405
      %v1487 = vadd.f32 %v1375, %v1409
      %v1488 = vadd.f32 %v1376, %v1405
      %v1489 = vadd.f32 %v1377, %v1409
      %v1490 = vadd.f32 %v1378, %v1405
      %v1491 = vadd.f32 %v1379, %v1409
      %v1492 = vadd.f32 %v1380, %v1405
      %v1493 = vadd.f32 %v1381, %v1409
      %v1494 = vadd.f32 %v1382, %v1405
      %v1495 = vadd.f32 %v1383, %v1409
      %v1496 = vadd.f32 %v1384, %v1405
      %v1497 = vadd.f32 %v1385, %v1409
      %v1498 = vadd.f32 %v1386, %v1405
      %v1499 = vadd.f32 %v1387, %v1409
      %v1500 = vadd.f32 %v1388, %v1405
      %v1501 = vadd.f32 %v1389, %v1409
      %v1502 = vadd.f32 %v1390, %v1405
      %v1503 = vadd.f32 %v1391, %v1409
      %v1504 = vadd.f32 %v1392, %v1405
      %v1505 = vadd.f32 %v1393, %v1409
      %v1506 = vadd.f32 %v1394, %v1405
      %v1507 = vadd.f32 %v1395, %v1409
      %v1508 = vadd.f32 %v1396, %v1405
      %v1509 = vadd.f32 %v1397, %v1409
      %v1510 = vadd.f32 %v1398, %v1405
      %v1511 = vadd.f32 %v1399, %v1409
      %v1512 = vpack.c.bf16 %v1414, %v1412
      %v1513 = vpack.c.bf16 %v1415, %v1413
      %v1514 = vpack.c.bf16 %v1418, %v1416
      %v1515 = vpack.c.bf16 %v1419, %v1417
      %v1516 = vpack.c.bf16 %v1422, %v1420
      %v1517 = vpack.c.bf16 %v1423, %v1421
      %v1518 = vpack.c.bf16 %v1426, %v1424
      %v1519 = vpack.c.bf16 %v1427, %v1425
      %v1520 = vpack.c.bf16 %v1430, %v1428
      %v1521 = vpack.c.bf16 %v1431, %v1429
      %v1522 = vpack.c.bf16 %v1434, %v1432
      %v1523 = vpack.c.bf16 %v1435, %v1433
      %v1524 = vpack.c.bf16 %v1438, %v1436
      %v1525 = vpack.c.bf16 %v1439, %v1437
      %v1526 = vpack.c.bf16 %v1442, %v1440
      %v1527 = vpack.c.bf16 %v1443, %v1441
      %v1528 = vpack.c.bf16 %v1446, %v1444
      %v1529 = vpack.c.bf16 %v1447, %v1445
      %v1530 = vpack.c.bf16 %v1450, %v1448
      %v1531 = vpack.c.bf16 %v1451, %v1449
      %v1532 = vpack.c.bf16 %v1454, %v1452
      %v1533 = vpack.c.bf16 %v1455, %v1453
      %v1534 = vpack.c.bf16 %v1458, %v1456
      %v1535 = vpack.c.bf16 %v1459, %v1457
      %v1536 = vpack.c.bf16 %v1462, %v1460
      %v1537 = vpack.c.bf16 %v1463, %v1461
      %v1538 = vpack.c.bf16 %v1466, %v1464
      %v1539 = vpack.c.bf16 %v1467, %v1465
      %v1540 = vpack.c.bf16 %v1470, %v1468
      %v1541 = vpack.c.bf16 %v1471, %v1469
      %v1542 = vpack.c.bf16 %v1474, %v1472
      %v1543 = vpack.c.bf16 %v1475, %v1473
      %v1544 = vpack.c.bf16 %v1478, %v1476
      %v1545 = vpack.c.bf16 %v1479, %v1477
      %v1546 = vpack.c.bf16 %v1482, %v1480
      %v1547 = vpack.c.bf16 %v1483, %v1481
      %v1548 = vpack.c.bf16 %v1486, %v1484
      %v1549 = vpack.c.bf16 %v1487, %v1485
      %v1550 = vpack.c.bf16 %v1490, %v1488
      %v1551 = vpack.c.bf16 %v1491, %v1489
      %v1552 = vpack.c.bf16 %v1494, %v1492
      %v1553 = vpack.c.bf16 %v1495, %v1493
      %v1554 = vpack.c.bf16 %v1498, %v1496
      %v1555 = vpack.c.bf16 %v1499, %v1497
      %v1556 = vpack.c.bf16 %v1502, %v1500
      %v1557 = vpack.c.bf16 %v1503, %v1501
      %v1558 = vpack.c.bf16 %v1506, %v1504
      %v1559 = vpack.c.bf16 %v1507, %v1505
      %v1560 = vpack.c.bf16 %v1510, %v1508
      %v1561 = vpack.c.bf16 %v1511, %v1509
      %v1562 = vld [vmem:[%s3] sm:$0xff]
      %v1563 = vld [vmem:[%s3 + $0x8] sm:$0xff]
      %v1564 = vld [vmem:[%s3 + $0x10] sm:$0xff]
      %v1565 = vld [vmem:[%s3 + $0x18] sm:$0xff]
      %v1566 = vld [vmem:[%s3 + $0x20] sm:$0xff]
      %v1567 = vld [vmem:[%s3 + $0x28] sm:$0xff]
      %v1568 = vld [vmem:[%s3 + $0x30] sm:$0xff]
      %v1569 = vld [vmem:[%s3 + $0x38] sm:$0xff]
      %v1570 = vld [vmem:[%s3 + $0x40] sm:$0xff]
      %v1571 = vld [vmem:[%s3 + $0x48] sm:$0xff]
      %v1572 = vld [vmem:[%s3 + $0x50] sm:$0xff]
      %v1573 = vld [vmem:[%s3 + $0x58] sm:$0xff]
      %v1574 = vld [vmem:[%s3 + $0x60] sm:$0xff]
      %v1575 = vld [vmem:[%s3 + $0x68] sm:$0xff]
      %v1576 = vld [vmem:[%s3 + $0x70] sm:$0xff]
      %v1577 = vld [vmem:[%s3 + $0x78] sm:$0xff]
      %v1578 = vld [vmem:[%s3 + $0x80] sm:$0xff]
      %v1579 = vld [vmem:[%s3 + $0x88] sm:$0xff]
      %v1580 = vld [vmem:[%s3 + $0x90] sm:$0xff]
      %v1581 = vld [vmem:[%s3 + $0x98] sm:$0xff]
      %v1582 = vld [vmem:[%s3 + $0xa0] sm:$0xff]
      %v1583 = vld [vmem:[%s3 + $0xa8] sm:$0xff]
      %v1584 = vld [vmem:[%s3 + $0xb0] sm:$0xff]
      %v1585 = vld [vmem:[%s3 + $0xb8] sm:$0xff]
      %v1586 = vld [vmem:[%s3 + $0xc0] sm:$0xff]
      %v1587 = vld [vmem:[%s3 + $0xc8] sm:$0xff]
      %v1588 = vld [vmem:[%s3 + $0xd0] sm:$0xff]
      %v1589 = vld [vmem:[%s3 + $0xd8] sm:$0xff]
      %v1590 = vld [vmem:[%s3 + $0xe0] sm:$0xff]
      %v1591 = vld [vmem:[%s3 + $0xe8] sm:$0xff]
      %v1592 = vld [vmem:[%s3 + $0xf0] sm:$0xff]
      %v1593 = vld [vmem:[%s3 + $0xf8] sm:$0xff]
      %v1594 = vld [vmem:[%s3 + $0x100] sm:$0xff]
      %v1595 = vld [vmem:[%s3 + $0x108] sm:$0xff]
      %v1596 = vld [vmem:[%s3 + $0x110] sm:$0xff]
      %v1597 = vld [vmem:[%s3 + $0x118] sm:$0xff]
      %v1598 = vld [vmem:[%s3 + $0x120] sm:$0xff]
      %v1599 = vld [vmem:[%s3 + $0x128] sm:$0xff]
      %v1600 = vld [vmem:[%s3 + $0x130] sm:$0xff]
      %v1601 = vld [vmem:[%s3 + $0x138] sm:$0xff]
      %v1602 = vld [vmem:[%s3 + $0x140] sm:$0xff]
      %v1603 = vld [vmem:[%s3 + $0x148] sm:$0xff]
      %v1604 = vld [vmem:[%s3 + $0x150] sm:$0xff]
      %v1605 = vld [vmem:[%s3 + $0x158] sm:$0xff]
      %v1606 = vld [vmem:[%s3 + $0x160] sm:$0xff]
      %v1607 = vld [vmem:[%s3 + $0x168] sm:$0xff]
      %v1608 = vld [vmem:[%s3 + $0x170] sm:$0xff]
      %v1609 = vld [vmem:[%s3 + $0x178] sm:$0xff]
      %v1610 = vld [vmem:[%s3 + $0x180] sm:$0xff]
      %v1611 = vld [vmem:[%s3 + $0x188] sm:$0xff]
      %v1612 = vld [vmem:[%s3 + $0x190] sm:$0xff]
      %v1613 = vld [vmem:[%s3 + $0x198] sm:$0xff]
      %v1614 = vld [vmem:[%s3 + $0x1a0] sm:$0xff]
      %v1615 = vld [vmem:[%s3 + $0x1a8] sm:$0xff]
      %v1616 = vld [vmem:[%s3 + $0x1b0] sm:$0xff]
      %v1617 = vld [vmem:[%s3 + $0x1b8] sm:$0xff]
      %v1618 = vld [vmem:[%s3 + $0x1c0] sm:$0xff]
      %v1619 = vld [vmem:[%s3 + $0x1c8] sm:$0xff]
      %v1620 = vld [vmem:[%s3 + $0x1d0] sm:$0xff]
      %v1621 = vld [vmem:[%s3 + $0x1d8] sm:$0xff]
      %v1622 = vld [vmem:[%s3 + $0x1e0] sm:$0xff]
      %v1623 = vld [vmem:[%s3 + $0x1e8] sm:$0xff]
      %v1624 = vld [vmem:[%s3 + $0x1f0] sm:$0xff]
      %v1625 = vld [vmem:[%s3 + $0x1f8] sm:$0xff]
      %v1626 = vld [vmem:[%s3 + $0x200] sm:$0xff]
      %v1627 = vld [vmem:[%s3 + $0x208] sm:$0xff]
      %v1628 = vld [vmem:[%s3 + $0x210] sm:$0xff]
      %v1629 = vld [vmem:[%s3 + $0x218] sm:$0xff]
      %v1630 = vld [vmem:[%s3 + $0x220] sm:$0xff]
      %v1631 = vld [vmem:[%s3 + $0x228] sm:$0xff]
      %v1632 = vld [vmem:[%s3 + $0x230] sm:$0xff]
      %v1633 = vld [vmem:[%s3 + $0x238] sm:$0xff]
      %v1634 = vld [vmem:[%s3 + $0x240] sm:$0xff]
      %v1635 = vld [vmem:[%s3 + $0x248] sm:$0xff]
      %v1636 = vld [vmem:[%s3 + $0x250] sm:$0xff]
      %v1637 = vld [vmem:[%s3 + $0x258] sm:$0xff]
      %v1638 = vld [vmem:[%s3 + $0x260] sm:$0xff]
      %v1639 = vld [vmem:[%s3 + $0x268] sm:$0xff]
      %v1640 = vld [vmem:[%s3 + $0x270] sm:$0xff]
      %v1641 = vld [vmem:[%s3 + $0x278] sm:$0xff]
      %v1642 = vld [vmem:[%s3 + $0x280] sm:$0xff]
      %v1643 = vld [vmem:[%s3 + $0x288] sm:$0xff]
      %v1644 = vld [vmem:[%s3 + $0x290] sm:$0xff]
      %v1645 = vld [vmem:[%s3 + $0x298] sm:$0xff]
      %v1646 = vld [vmem:[%s3 + $0x2a0] sm:$0xff]
      %v1647 = vld [vmem:[%s3 + $0x2a8] sm:$0xff]
      %v1648 = vld [vmem:[%s3 + $0x2b0] sm:$0xff]
      %v1649 = vld [vmem:[%s3 + $0x2b8] sm:$0xff]
      %v1650 = vld [vmem:[%s3 + $0x2c0] sm:$0xff]
      %v1651 = vld [vmem:[%s3 + $0x2c8] sm:$0xff]
      %v1652 = vld [vmem:[%s3 + $0x2d0] sm:$0xff]
      %v1653 = vld [vmem:[%s3 + $0x2d8] sm:$0xff]
      %v1654 = vld [vmem:[%s3 + $0x2e0] sm:$0xff]
      %v1655 = vld [vmem:[%s3 + $0x2e8] sm:$0xff]
      %v1656 = vld [vmem:[%s3 + $0x2f0] sm:$0xff]
      %v1657 = vld [vmem:[%s3 + $0x2f8] sm:$0xff]
      %v1658 = vld [vmem:[%s3 + $0x300] sm:$0xff]
      %v1659 = vld [vmem:[%s3 + $0x308] sm:$0xff]
      %v1660 = vld [vmem:[%s3 + $0x310] sm:$0xff]
      %v1661 = vld [vmem:[%s3 + $0x318] sm:$0xff]
      %v1662 = vld [vmem:[%s3 + $0x320] sm:$0xff]
      %v1663 = vld [vmem:[%s3 + $0x328] sm:$0xff]
      %v1664 = vld [vmem:[%s3 + $0x330] sm:$0xff]
      %v1665 = vld [vmem:[%s3 + $0x338] sm:$0xff]
      %v1666 = vld [vmem:[%s3 + $0x340] sm:$0xff]
      %v1667 = vld [vmem:[%s3 + $0x348] sm:$0xff]
      %v1668 = vld [vmem:[%s3 + $0x350] sm:$0xff]
      %v1669 = vld [vmem:[%s3 + $0x358] sm:$0xff]
      %v1670 = vld [vmem:[%s3 + $0x360] sm:$0xff]
      %v1671 = vld [vmem:[%s3 + $0x368] sm:$0xff]
      %v1672 = vld [vmem:[%s3 + $0x370] sm:$0xff]
      %v1673 = vld [vmem:[%s3 + $0x378] sm:$0xff]
      %v1674 = vld [vmem:[%s3 + $0x380] sm:$0xff]
      %v1675 = vld [vmem:[%s3 + $0x388] sm:$0xff]
      %v1676 = vld [vmem:[%s3 + $0x390] sm:$0xff]
      %v1677 = vld [vmem:[%s3 + $0x398] sm:$0xff]
      %v1678 = vld [vmem:[%s3 + $0x3a0] sm:$0xff]
      %v1679 = vld [vmem:[%s3 + $0x3a8] sm:$0xff]
      %v1680 = vld [vmem:[%s3 + $0x3b0] sm:$0xff]
      %v1681 = vld [vmem:[%s3 + $0x3b8] sm:$0xff]
      %v1682 = vld [vmem:[%s3 + $0x3c0] sm:$0xff]
      %v1683 = vld [vmem:[%s3 + $0x3c8] sm:$0xff]
      %v1684 = vld [vmem:[%s3 + $0x3d0] sm:$0xff]
      %v1685 = vld [vmem:[%s3 + $0x3d8] sm:$0xff]
      %v1686 = vld [vmem:[%s3 + $0x3e0] sm:$0xff]
      %v1687 = vld [vmem:[%s3 + $0x3e8] sm:$0xff]
      %v1688 = vld [vmem:[%s3 + $0x3f0] sm:$0xff]
      %v1689 = vld [vmem:[%s3 + $0x3f8] sm:$0xff]
      %v1690 = vld [vmem:[%s4] sm:$0xff]
      %v1692 = vlaneseq
      %v1693 = vshrl.u32 %v1692, 7
      %v1694 = vsub.s32 0, %v1693
      %v1695 = vrot.slane %v1690, %v1694
      %v1696 = vlaneseq
      %v1697 = vshrl.u32 %v1696, 7
      %v1698 = vsub.s32 1, %v1697
      %v1699 = vrot.slane %v1690, %v1698
      %v1700 = vlaneseq
      %v1701 = vshrl.u32 %v1700, 7
      %v1702 = vsub.s32 2, %v1701
      %v1703 = vrot.slane %v1690, %v1702
      %v1704 = vlaneseq
      %v1705 = vshrl.u32 %v1704, 7
      %v1706 = vsub.s32 3, %v1705
      %v1707 = vrot.slane %v1690, %v1706
      %v1708 = vlaneseq
      %v1709 = vshrl.u32 %v1708, 7
      %v1710 = vsub.s32 4, %v1709
      %v1711 = vrot.slane %v1690, %v1710
      %v1712 = vlaneseq
      %v1713 = vshrl.u32 %v1712, 7
      %v1714 = vsub.s32 5, %v1713
      %v1715 = vrot.slane %v1690, %v1714
      %v1716 = vlaneseq
      %v1717 = vshrl.u32 %v1716, 7
      %v1718 = vsub.s32 6, %v1717
      %v1719 = vrot.slane %v1690, %v1718
      %v1720 = vlaneseq
      %v1721 = vshrl.u32 %v1720, 7
      %v1722 = vsub.s32 7, %v1721
      %v1723 = vrot.slane %v1690, %v1722
      %v1860 = vunpack.c.l.b16 %v1562
      %v1861 = vunpack.c.h.b16 %v1562
      %v1862 = vunpack.c.l.b16 %v1563
      %v1863 = vunpack.c.h.b16 %v1563
      %v1864 = vunpack.c.l.b16 %v1564
      %v1865 = vunpack.c.h.b16 %v1564
      %v1866 = vunpack.c.l.b16 %v1565
      %v1867 = vunpack.c.h.b16 %v1565
      %v1868 = vunpack.c.l.b16 %v1566
      %v1869 = vunpack.c.h.b16 %v1566
      %v1870 = vunpack.c.l.b16 %v1567
      %v1871 = vunpack.c.h.b16 %v1567
      %v1872 = vunpack.c.l.b16 %v1568
      %v1873 = vunpack.c.h.b16 %v1568
      %v1874 = vunpack.c.l.b16 %v1569
      %v1875 = vunpack.c.h.b16 %v1569
      %v1876 = vunpack.c.l.b16 %v1570
      %v1877 = vunpack.c.h.b16 %v1570
      %v1878 = vunpack.c.l.b16 %v1571
      %v1879 = vunpack.c.h.b16 %v1571
      %v1880 = vunpack.c.l.b16 %v1572
      %v1881 = vunpack.c.h.b16 %v1572
      %v1882 = vunpack.c.l.b16 %v1573
      %v1883 = vunpack.c.h.b16 %v1573
      %v1884 = vunpack.c.l.b16 %v1574
      %v1885 = vunpack.c.h.b16 %v1574
      %v1886 = vunpack.c.l.b16 %v1575
      %v1887 = vunpack.c.h.b16 %v1575
      %v1888 = vunpack.c.l.b16 %v1576
      %v1889 = vunpack.c.h.b16 %v1576
      %v1890 = vunpack.c.l.b16 %v1577
      %v1891 = vunpack.c.h.b16 %v1577
      %v1892 = vunpack.c.l.b16 %v1578
      %v1893 = vunpack.c.h.b16 %v1578
      %v1894 = vunpack.c.l.b16 %v1579
      %v1895 = vunpack.c.h.b16 %v1579
      %v1896 = vunpack.c.l.b16 %v1580
      %v1897 = vunpack.c.h.b16 %v1580
      %v1898 = vunpack.c.l.b16 %v1581
      %v1899 = vunpack.c.h.b16 %v1581
      %v1900 = vunpack.c.l.b16 %v1582
      %v1901 = vunpack.c.h.b16 %v1582
      %v1902 = vunpack.c.l.b16 %v1583
      %v1903 = vunpack.c.h.b16 %v1583
      %v1904 = vunpack.c.l.b16 %v1584
      %v1905 = vunpack.c.h.b16 %v1584
      %v1906 = vunpack.c.l.b16 %v1585
      %v1907 = vunpack.c.h.b16 %v1585
      %v1908 = vunpack.c.l.b16 %v1586
      %v1909 = vunpack.c.h.b16 %v1586
      %v1910 = vunpack.c.l.b16 %v1587
      %v1911 = vunpack.c.h.b16 %v1587
      %v1912 = vunpack.c.l.b16 %v1588
      %v1913 = vunpack.c.h.b16 %v1588
      %v1914 = vunpack.c.l.b16 %v1589
      %v1915 = vunpack.c.h.b16 %v1589
      %v1916 = vunpack.c.l.b16 %v1590
      %v1917 = vunpack.c.h.b16 %v1590
      %v1918 = vunpack.c.l.b16 %v1591
      %v1919 = vunpack.c.h.b16 %v1591
      %v1920 = vunpack.c.l.b16 %v1592
      %v1921 = vunpack.c.h.b16 %v1592
      %v1922 = vunpack.c.l.b16 %v1593
      %v1923 = vunpack.c.h.b16 %v1593
      %v1924 = vunpack.c.l.b16 %v1594
      %v1925 = vunpack.c.h.b16 %v1594
      %v1926 = vunpack.c.l.b16 %v1595
      %v1927 = vunpack.c.h.b16 %v1595
      %v1928 = vunpack.c.l.b16 %v1596
      %v1929 = vunpack.c.h.b16 %v1596
      %v1930 = vunpack.c.l.b16 %v1597
      %v1931 = vunpack.c.h.b16 %v1597
      %v1932 = vunpack.c.l.b16 %v1598
      %v1933 = vunpack.c.h.b16 %v1598
      %v1934 = vunpack.c.l.b16 %v1599
      %v1935 = vunpack.c.h.b16 %v1599
      %v1936 = vunpack.c.l.b16 %v1600
      %v1937 = vunpack.c.h.b16 %v1600
      %v1938 = vunpack.c.l.b16 %v1601
      %v1939 = vunpack.c.h.b16 %v1601
      %v1940 = vunpack.c.l.b16 %v1602
      %v1941 = vunpack.c.h.b16 %v1602
      %v1942 = vunpack.c.l.b16 %v1603
      %v1943 = vunpack.c.h.b16 %v1603
      %v1944 = vunpack.c.l.b16 %v1604
      %v1945 = vunpack.c.h.b16 %v1604
      %v1946 = vunpack.c.l.b16 %v1605
      %v1947 = vunpack.c.h.b16 %v1605
      %v1948 = vunpack.c.l.b16 %v1606
      %v1949 = vunpack.c.h.b16 %v1606
      %v1950 = vunpack.c.l.b16 %v1607
      %v1951 = vunpack.c.h.b16 %v1607
      %v1952 = vunpack.c.l.b16 %v1608
      %v1953 = vunpack.c.h.b16 %v1608
      %v1954 = vunpack.c.l.b16 %v1609
      %v1955 = vunpack.c.h.b16 %v1609
      %v1956 = vunpack.c.l.b16 %v1610
      %v1957 = vunpack.c.h.b16 %v1610
      %v1958 = vunpack.c.l.b16 %v1611
      %v1959 = vunpack.c.h.b16 %v1611
      %v1960 = vunpack.c.l.b16 %v1612
      %v1961 = vunpack.c.h.b16 %v1612
      %v1962 = vunpack.c.l.b16 %v1613
      %v1963 = vunpack.c.h.b16 %v1613
      %v1964 = vunpack.c.l.b16 %v1614
      %v1965 = vunpack.c.h.b16 %v1614
      %v1966 = vunpack.c.l.b16 %v1615
      %v1967 = vunpack.c.h.b16 %v1615
      %v1968 = vunpack.c.l.b16 %v1616
      %v1969 = vunpack.c.h.b16 %v1616
      %v1970 = vunpack.c.l.b16 %v1617
      %v1971 = vunpack.c.h.b16 %v1617
      %v1972 = vunpack.c.l.b16 %v1618
      %v1973 = vunpack.c.h.b16 %v1618
      %v1974 = vunpack.c.l.b16 %v1619
      %v1975 = vunpack.c.h.b16 %v1619
      %v1976 = vunpack.c.l.b16 %v1620
      %v1977 = vunpack.c.h.b16 %v1620
      %v1978 = vunpack.c.l.b16 %v1621
      %v1979 = vunpack.c.h.b16 %v1621
      %v1980 = vunpack.c.l.b16 %v1622
      %v1981 = vunpack.c.h.b16 %v1622
      %v1982 = vunpack.c.l.b16 %v1623
      %v1983 = vunpack.c.h.b16 %v1623
      %v1984 = vunpack.c.l.b16 %v1624
      %v1985 = vunpack.c.h.b16 %v1624
      %v1986 = vunpack.c.l.b16 %v1625
      %v1987 = vunpack.c.h.b16 %v1625
      %v1988 = vunpack.c.l.b16 %v1626
      %v1989 = vunpack.c.h.b16 %v1626
      %v1990 = vunpack.c.l.b16 %v1627
      %v1991 = vunpack.c.h.b16 %v1627
      %v1992 = vunpack.c.l.b16 %v1628
      %v1993 = vunpack.c.h.b16 %v1628
      %v1994 = vunpack.c.l.b16 %v1629
      %v1995 = vunpack.c.h.b16 %v1629
      %v1996 = vunpack.c.l.b16 %v1630
      %v1997 = vunpack.c.h.b16 %v1630
      %v1998 = vunpack.c.l.b16 %v1631
      %v1999 = vunpack.c.h.b16 %v1631
      %v2000 = vunpack.c.l.b16 %v1632
      %v2001 = vunpack.c.h.b16 %v1632
      %v2002 = vunpack.c.l.b16 %v1633
      %v2003 = vunpack.c.h.b16 %v1633
      %v2004 = vunpack.c.l.b16 %v1634
      %v2005 = vunpack.c.h.b16 %v1634
      %v2006 = vunpack.c.l.b16 %v1635
      %v2007 = vunpack.c.h.b16 %v1635
      %v2008 = vunpack.c.l.b16 %v1636
      %v2009 = vunpack.c.h.b16 %v1636
      %v2010 = vunpack.c.l.b16 %v1637
      %v2011 = vunpack.c.h.b16 %v1637
      %v2012 = vunpack.c.l.b16 %v1638
      %v2013 = vunpack.c.h.b16 %v1638
      %v2014 = vunpack.c.l.b16 %v1639
      %v2015 = vunpack.c.h.b16 %v1639
      %v2016 = vunpack.c.l.b16 %v1640
      %v2017 = vunpack.c.h.b16 %v1640
      %v2018 = vunpack.c.l.b16 %v1641
      %v2019 = vunpack.c.h.b16 %v1641
      %v2020 = vunpack.c.l.b16 %v1642
      %v2021 = vunpack.c.h.b16 %v1642
      %v2022 = vunpack.c.l.b16 %v1643
      %v2023 = vunpack.c.h.b16 %v1643
      %v2024 = vunpack.c.l.b16 %v1644
      %v2025 = vunpack.c.h.b16 %v1644
      %v2026 = vunpack.c.l.b16 %v1645
      %v2027 = vunpack.c.h.b16 %v1645
      %v2028 = vunpack.c.l.b16 %v1646
      %v2029 = vunpack.c.h.b16 %v1646
      %v2030 = vunpack.c.l.b16 %v1647
      %v2031 = vunpack.c.h.b16 %v1647
      %v2032 = vunpack.c.l.b16 %v1648
      %v2033 = vunpack.c.h.b16 %v1648
      %v2034 = vunpack.c.l.b16 %v1649
      %v2035 = vunpack.c.h.b16 %v1649
      %v2036 = vunpack.c.l.b16 %v1650
      %v2037 = vunpack.c.h.b16 %v1650
      %v2038 = vunpack.c.l.b16 %v1651
      %v2039 = vunpack.c.h.b16 %v1651
      %v2040 = vunpack.c.l.b16 %v1652
      %v2041 = vunpack.c.h.b16 %v1652
      %v2042 = vunpack.c.l.b16 %v1653
      %v2043 = vunpack.c.h.b16 %v1653
      %v2044 = vunpack.c.l.b16 %v1654
      %v2045 = vunpack.c.h.b16 %v1654
      %v2046 = vunpack.c.l.b16 %v1655
      %v2047 = vunpack.c.h.b16 %v1655
      %v2048 = vunpack.c.l.b16 %v1656
      %v2049 = vunpack.c.h.b16 %v1656
      %v2050 = vunpack.c.l.b16 %v1657
      %v2051 = vunpack.c.h.b16 %v1657
      %v2052 = vunpack.c.l.b16 %v1658
      %v2053 = vunpack.c.h.b16 %v1658
      %v2054 = vunpack.c.l.b16 %v1659
      %v2055 = vunpack.c.h.b16 %v1659
      %v2056 = vunpack.c.l.b16 %v1660
      %v2057 = vunpack.c.h.b16 %v1660
      %v2058 = vunpack.c.l.b16 %v1661
      %v2059 = vunpack.c.h.b16 %v1661
      %v2060 = vunpack.c.l.b16 %v1662
      %v2061 = vunpack.c.h.b16 %v1662
      %v2062 = vunpack.c.l.b16 %v1663
      %v2063 = vunpack.c.h.b16 %v1663
      %v2064 = vunpack.c.l.b16 %v1664
      %v2065 = vunpack.c.h.b16 %v1664
      %v2066 = vunpack.c.l.b16 %v1665
      %v2067 = vunpack.c.h.b16 %v1665
      %v2068 = vunpack.c.l.b16 %v1666
      %v2069 = vunpack.c.h.b16 %v1666
      %v2070 = vunpack.c.l.b16 %v1667
      %v2071 = vunpack.c.h.b16 %v1667
      %v2072 = vunpack.c.l.b16 %v1668
      %v2073 = vunpack.c.h.b16 %v1668
      %v2074 = vunpack.c.l.b16 %v1669
      %v2075 = vunpack.c.h.b16 %v1669
      %v2076 = vunpack.c.l.b16 %v1670
      %v2077 = vunpack.c.h.b16 %v1670
      %v2078 = vunpack.c.l.b16 %v1671
      %v2079 = vunpack.c.h.b16 %v1671
      %v2080 = vunpack.c.l.b16 %v1672
      %v2081 = vunpack.c.h.b16 %v1672
      %v2082 = vunpack.c.l.b16 %v1673
      %v2083 = vunpack.c.h.b16 %v1673
      %v2084 = vunpack.c.l.b16 %v1674
      %v2085 = vunpack.c.h.b16 %v1674
      %v2086 = vunpack.c.l.b16 %v1675
      %v2087 = vunpack.c.h.b16 %v1675
      %v2088 = vunpack.c.l.b16 %v1676
      %v2089 = vunpack.c.h.b16 %v1676
      %v2090 = vunpack.c.l.b16 %v1677
      %v2091 = vunpack.c.h.b16 %v1677
      %v2092 = vunpack.c.l.b16 %v1678
      %v2093 = vunpack.c.h.b16 %v1678
      %v2094 = vunpack.c.l.b16 %v1679
      %v2095 = vunpack.c.h.b16 %v1679
      %v2096 = vunpack.c.l.b16 %v1680
      %v2097 = vunpack.c.h.b16 %v1680
      %v2098 = vunpack.c.l.b16 %v1681
      %v2099 = vunpack.c.h.b16 %v1681
      %v2100 = vunpack.c.l.b16 %v1682
      %v2101 = vunpack.c.h.b16 %v1682
      %v2102 = vunpack.c.l.b16 %v1683
      %v2103 = vunpack.c.h.b16 %v1683
      %v2104 = vunpack.c.l.b16 %v1684
      %v2105 = vunpack.c.h.b16 %v1684
      %v2106 = vunpack.c.l.b16 %v1685
      %v2107 = vunpack.c.h.b16 %v1685
      %v2108 = vunpack.c.l.b16 %v1686
      %v2109 = vunpack.c.h.b16 %v1686
      %v2110 = vunpack.c.l.b16 %v1687
      %v2111 = vunpack.c.h.b16 %v1687
      %v2112 = vunpack.c.l.b16 %v1688
      %v2113 = vunpack.c.h.b16 %v1688
      %v2114 = vunpack.c.l.b16 %v1689
      %v2115 = vunpack.c.h.b16 %v1689
      %v2116 = vpack.c.b16 %v1868, %v1860
      %v2117 = vpack.c.b16 %v1869, %v1861
      %v2118 = vpack.c.b16 %v1870, %v1862
      %v2119 = vpack.c.b16 %v1871, %v1863
      %v2120 = vpack.c.b16 %v1872, %v1864
      %v2121 = vpack.c.b16 %v1873, %v1865
      %v2122 = vpack.c.b16 %v1874, %v1866
      %v2123 = vpack.c.b16 %v1875, %v1867
      %v2124 = vpack.c.b16 %v1884, %v1876
      %v2125 = vpack.c.b16 %v1885, %v1877
      %v2126 = vpack.c.b16 %v1886, %v1878
      %v2127 = vpack.c.b16 %v1887, %v1879
      %v2128 = vpack.c.b16 %v1888, %v1880
      %v2129 = vpack.c.b16 %v1889, %v1881
      %v2130 = vpack.c.b16 %v1890, %v1882
      %v2131 = vpack.c.b16 %v1891, %v1883
      %v2132 = vpack.c.b16 %v1900, %v1892
      %v2133 = vpack.c.b16 %v1901, %v1893
      %v2134 = vpack.c.b16 %v1902, %v1894
      %v2135 = vpack.c.b16 %v1903, %v1895
      %v2136 = vpack.c.b16 %v1904, %v1896
      %v2137 = vpack.c.b16 %v1905, %v1897
      %v2138 = vpack.c.b16 %v1906, %v1898
      %v2139 = vpack.c.b16 %v1907, %v1899
      %v2140 = vpack.c.b16 %v1916, %v1908
      %v2141 = vpack.c.b16 %v1917, %v1909
      %v2142 = vpack.c.b16 %v1918, %v1910
      %v2143 = vpack.c.b16 %v1919, %v1911
      %v2144 = vpack.c.b16 %v1920, %v1912
      %v2145 = vpack.c.b16 %v1921, %v1913
      %v2146 = vpack.c.b16 %v1922, %v1914
      %v2147 = vpack.c.b16 %v1923, %v1915
      %v2148 = vpack.c.b16 %v1932, %v1924
      %v2149 = vpack.c.b16 %v1933, %v1925
      %v2150 = vpack.c.b16 %v1934, %v1926
      %v2151 = vpack.c.b16 %v1935, %v1927
      %v2152 = vpack.c.b16 %v1936, %v1928
      %v2153 = vpack.c.b16 %v1937, %v1929
      %v2154 = vpack.c.b16 %v1938, %v1930
      %v2155 = vpack.c.b16 %v1939, %v1931
      %v2156 = vpack.c.b16 %v1948, %v1940
      %v2157 = vpack.c.b16 %v1949, %v1941
      %v2158 = vpack.c.b16 %v1950, %v1942
      %v2159 = vpack.c.b16 %v1951, %v1943
      %v2160 = vpack.c.b16 %v1952, %v1944
      %v2161 = vpack.c.b16 %v1953, %v1945
      %v2162 = vpack.c.b16 %v1954, %v1946
      %v2163 = vpack.c.b16 %v1955, %v1947
      %v2164 = vpack.c.b16 %v1964, %v1956
      %v2165 = vpack.c.b16 %v1965, %v1957
      %v2166 = vpack.c.b16 %v1966, %v1958
      %v2167 = vpack.c.b16 %v1967, %v1959
      %v2168 = vpack.c.b16 %v1968, %v1960
      %v2169 = vpack.c.b16 %v1969, %v1961
      %v2170 = vpack.c.b16 %v1970, %v1962
      %v2171 = vpack.c.b16 %v1971, %v1963
      %v2172 = vpack.c.b16 %v1980, %v1972
      %v2173 = vpack.c.b16 %v1981, %v1973
      %v2174 = vpack.c.b16 %v1982, %v1974
      %v2175 = vpack.c.b16 %v1983, %v1975
      %v2176 = vpack.c.b16 %v1984, %v1976
      %v2177 = vpack.c.b16 %v1985, %v1977
      %v2178 = vpack.c.b16 %v1986, %v1978
      %v2179 = vpack.c.b16 %v1987, %v1979
      %v2180 = vpack.c.b16 %v1996, %v1988
      %v2181 = vpack.c.b16 %v1997, %v1989
      %v2182 = vpack.c.b16 %v1998, %v1990
      %v2183 = vpack.c.b16 %v1999, %v1991
      %v2184 = vpack.c.b16 %v2000, %v1992
      %v2185 = vpack.c.b16 %v2001, %v1993
      %v2186 = vpack.c.b16 %v2002, %v1994
      %v2187 = vpack.c.b16 %v2003, %v1995
      %v2188 = vpack.c.b16 %v2012, %v2004
      %v2189 = vpack.c.b16 %v2013, %v2005
      %v2190 = vpack.c.b16 %v2014, %v2006
      %v2191 = vpack.c.b16 %v2015, %v2007
      %v2192 = vpack.c.b16 %v2016, %v2008
      %v2193 = vpack.c.b16 %v2017, %v2009
      %v2194 = vpack.c.b16 %v2018, %v2010
      %v2195 = vpack.c.b16 %v2019, %v2011
      %v2196 = vpack.c.b16 %v2028, %v2020
      %v2197 = vpack.c.b16 %v2029, %v2021
      %v2198 = vpack.c.b16 %v2030, %v2022
      %v2199 = vpack.c.b16 %v2031, %v2023
      %v2200 = vpack.c.b16 %v2032, %v2024
      %v2201 = vpack.c.b16 %v2033, %v2025
      %v2202 = vpack.c.b16 %v2034, %v2026
      %v2203 = vpack.c.b16 %v2035, %v2027
      %v2204 = vpack.c.b16 %v2044, %v2036
      %v2205 = vpack.c.b16 %v2045, %v2037
      %v2206 = vpack.c.b16 %v2046, %v2038
      %v2207 = vpack.c.b16 %v2047, %v2039
      %v2208 = vpack.c.b16 %v2048, %v2040
      %v2209 = vpack.c.b16 %v2049, %v2041
      %v2210 = vpack.c.b16 %v2050, %v2042
      %v2211 = vpack.c.b16 %v2051, %v2043
      %v2212 = vpack.c.b16 %v2060, %v2052
      %v2213 = vpack.c.b16 %v2061, %v2053
      %v2214 = vpack.c.b16 %v2062, %v2054
      %v2215 = vpack.c.b16 %v2063, %v2055
      %v2216 = vpack.c.b16 %v2064, %v2056
      %v2217 = vpack.c.b16 %v2065, %v2057
      %v2218 = vpack.c.b16 %v2066, %v2058
      %v2219 = vpack.c.b16 %v2067, %v2059
      %v2220 = vpack.c.b16 %v2076, %v2068
      %v2221 = vpack.c.b16 %v2077, %v2069
      %v2222 = vpack.c.b16 %v2078, %v2070
      %v2223 = vpack.c.b16 %v2079, %v2071
      %v2224 = vpack.c.b16 %v2080, %v2072
      %v2225 = vpack.c.b16 %v2081, %v2073
      %v2226 = vpack.c.b16 %v2082, %v2074
      %v2227 = vpack.c.b16 %v2083, %v2075
      %v2228 = vpack.c.b16 %v2092, %v2084
      %v2229 = vpack.c.b16 %v2093, %v2085
      %v2230 = vpack.c.b16 %v2094, %v2086
      %v2231 = vpack.c.b16 %v2095, %v2087
      %v2232 = vpack.c.b16 %v2096, %v2088
      %v2233 = vpack.c.b16 %v2097, %v2089
      %v2234 = vpack.c.b16 %v2098, %v2090
      %v2235 = vpack.c.b16 %v2099, %v2091
      %v2236 = vpack.c.b16 %v2108, %v2100
      %v2237 = vpack.c.b16 %v2109, %v2101
      %v2238 = vpack.c.b16 %v2110, %v2102
      %v2239 = vpack.c.b16 %v2111, %v2103
      %v2240 = vpack.c.b16 %v2112, %v2104
      %v2241 = vpack.c.b16 %v2113, %v2105
      %v2242 = vpack.c.b16 %v2114, %v2106
      %v2243 = vpack.c.b16 %v2115, %v2107
      %2372 = vmatprep.subr.bf16.mxu0 %v2173
      %2373 = vmatpush1.bf16.msra.mxu0 %v2172
      %2374 = vmatprep.subr.bf16.mxu0 %v2165
      %2375 = vmatpush1.bf16.msra.mxu0 %v2164
      %2376 = vmatprep.subr.bf16.mxu0 %v2157
      %2377 = vmatpush1.bf16.msra.mxu0 %v2156
      %2378 = vmatprep.subr.bf16.mxu0 %v2149
      %2379 = vmatpush1.bf16.msra.mxu0 %v2148
      %2380 = vmatprep.subr.bf16.mxu0 %v2141
      %2381 = vmatpush1.bf16.msra.mxu0 %v2140
      %2382 = vmatprep.subr.bf16.mxu0 %v2133
      %2383 = vmatpush1.bf16.msra.mxu0 %v2132
      %2384 = vmatprep.subr.bf16.mxu0 %v2125
      %2385 = vmatpush1.bf16.msra.mxu0 %v2124
      %2386 = vmatprep.subr.bf16.mxu0 %v2117
      %2387 = vmatpush1.bf16.msra.mxu0 %v2116
      %2388 = vmatprep.subr.bf16.mxu0 %v2237
      %2389 = vmatpush2.bf16.msra.mxu0 %v2236
      %2390 = vmatprep.subr.bf16.mxu0 %v2229
      %2391 = vmatpush2.bf16.msra.mxu0 %v2228
      %2392 = vmatprep.subr.bf16.mxu0 %v2221
      %2393 = vmatpush2.bf16.msra.mxu0 %v2220
      %2394 = vmatprep.subr.bf16.mxu0 %v2213
      %2395 = vmatpush2.bf16.msra.mxu0 %v2212
      %2396 = vmatprep.subr.bf16.mxu0 %v2205
      %2397 = vmatpush2.bf16.msra.mxu0 %v2204
      %2398 = vmatprep.subr.bf16.mxu0 %v2197
      %2399 = vmatpush2.bf16.msra.mxu0 %v2196
      %2400 = vmatprep.subr.bf16.mxu0 %v2189
      %2401 = vmatpush2.bf16.msra.mxu0 %v2188
      %2402 = vmatprep.subr.bf16.mxu0 %v2181
      %2403 = vmatpush2.bf16.msra.mxu0 %v2180
      %2404 = vmatprep.mubr.bf16.mxu0 %v1513
      %2405 = vmatmul.mubr.bf16.gmra.mxu0 %v1512
      %v2406 = vpop.f32.mrf.mxu0
      %v2407 = vadd.f32 %v1695, %v2406
      %v2408 = vpop.f32.mrf.mxu0
      %v2409 = vadd.f32 %v1699, %v2408
      %v2410 = vpop.f32.mrf.mxu0
      %v2411 = vadd.f32 %v1695, %v2410
      %v2412 = vpop.f32.mrf.mxu0
      %v2413 = vadd.f32 %v1699, %v2412
      %2414 = vmatprep.mubr.bf16.mxu0 %v1515
      %2415 = vmatmul.mubr.bf16.gmra.mxu0 %v1514
      %v2416 = vpop.f32.mrf.mxu0
      %v2417 = vadd.f32 %v1695, %v2416
      %v2418 = vpop.f32.mrf.mxu0
      %v2419 = vadd.f32 %v1699, %v2418
      %v2420 = vpop.f32.mrf.mxu0
      %v2421 = vadd.f32 %v1695, %v2420
      %v2422 = vpop.f32.mrf.mxu0
      %v2423 = vadd.f32 %v1699, %v2422
      %2424 = vmatprep.mubr.bf16.mxu0 %v1517
      %2425 = vmatmul.mubr.bf16.gmra.mxu0 %v1516
      %v2426 = vpop.f32.mrf.mxu0
      %v2427 = vadd.f32 %v1695, %v2426
      %v2428 = vpop.f32.mrf.mxu0
      %v2429 = vadd.f32 %v1699, %v2428
      %v2430 = vpop.f32.mrf.mxu0
      %v2431 = vadd.f32 %v1695, %v2430
      %v2432 = vpop.f32.mrf.mxu0
      %v2433 = vadd.f32 %v1699, %v2432
      %2434 = vmatprep.mubr.bf16.mxu0 %v1519
      %2435 = vmatmul.mubr.bf16.gmra.mxu0 %v1518
      %v2436 = vpop.f32.mrf.mxu0
      %v2437 = vadd.f32 %v1695, %v2436
      %v2438 = vpop.f32.mrf.mxu0
      %v2439 = vadd.f32 %v1699, %v2438
      %v2440 = vpop.f32.mrf.mxu0
      %v2441 = vadd.f32 %v1695, %v2440
      %v2442 = vpop.f32.mrf.mxu0
      %v2443 = vadd.f32 %v1699, %v2442
      %2444 = vmatprep.mubr.bf16.mxu0 %v1521
      %2445 = vmatmul.mubr.bf16.gmra.mxu0 %v1520
      %v2446 = vpop.f32.mrf.mxu0
      %v2447 = vadd.f32 %v1695, %v2446
      %v2448 = vpop.f32.mrf.mxu0
      %v2449 = vadd.f32 %v1699, %v2448
      %v2450 = vpop.f32.mrf.mxu0
      %v2451 = vadd.f32 %v1695, %v2450
      %v2452 = vpop.f32.mrf.mxu0
      %v2453 = vadd.f32 %v1699, %v2452
      %2454 = vmatprep.mubr.bf16.mxu0 %v1523
      %2455 = vmatmul.mubr.bf16.gmra.mxu0 %v1522
      %v2456 = vpop.f32.mrf.mxu0
      %v2457 = vadd.f32 %v1695, %v2456
      %v2458 = vpop.f32.mrf.mxu0
      %v2459 = vadd.f32 %v1699, %v2458
      %v2460 = vpop.f32.mrf.mxu0
      %v2461 = vadd.f32 %v1695, %v2460
      %v2462 = vpop.f32.mrf.mxu0
      %v2463 = vadd.f32 %v1699, %v2462
      %2464 = vmatprep.mubr.bf16.mxu0 %v1525
      %2465 = vmatmul.mubr.bf16.gmra.mxu0 %v1524
      %v2466 = vpop.f32.mrf.mxu0
      %v2467 = vadd.f32 %v1695, %v2466
      %v2468 = vpop.f32.mrf.mxu0
      %v2469 = vadd.f32 %v1699, %v2468
      %v2470 = vpop.f32.mrf.mxu0
      %v2471 = vadd.f32 %v1695, %v2470
      %v2472 = vpop.f32.mrf.mxu0
      %v2473 = vadd.f32 %v1699, %v2472
      %2474 = vmatprep.mubr.bf16.mxu0 %v1527
      %2475 = vmatmul.mubr.bf16.gmra.mxu0 %v1526
      %v2476 = vpop.f32.mrf.mxu0
      %v2477 = vadd.f32 %v1695, %v2476
      %v2478 = vpop.f32.mrf.mxu0
      %v2479 = vadd.f32 %v1699, %v2478
      %v2480 = vpop.f32.mrf.mxu0
      %v2481 = vadd.f32 %v1695, %v2480
      %v2482 = vpop.f32.mrf.mxu0
      %v2483 = vadd.f32 %v1699, %v2482
      %2484 = vmatprep.mubr.bf16.mxu0 %v1529
      %2485 = vmatmul.mubr.bf16.gmra.mxu0 %v1528
      %v2486 = vpop.f32.mrf.mxu0
      %v2487 = vadd.f32 %v1695, %v2486
      %v2488 = vpop.f32.mrf.mxu0
      %v2489 = vadd.f32 %v1699, %v2488
      %v2490 = vpop.f32.mrf.mxu0
      %v2491 = vadd.f32 %v1695, %v2490
      %v2492 = vpop.f32.mrf.mxu0
      %v2493 = vadd.f32 %v1699, %v2492
      %2494 = vmatprep.mubr.bf16.mxu0 %v1531
      %2495 = vmatmul.mubr.bf16.gmra.mxu0 %v1530
      %v2496 = vpop.f32.mrf.mxu0
      %v2497 = vadd.f32 %v1695, %v2496
      %v2498 = vpop.f32.mrf.mxu0
      %v2499 = vadd.f32 %v1699, %v2498
      %v2500 = vpop.f32.mrf.mxu0
      %v2501 = vadd.f32 %v1695, %v2500
      %v2502 = vpop.f32.mrf.mxu0
      %v2503 = vadd.f32 %v1699, %v2502
      %2504 = vmatprep.mubr.bf16.mxu0 %v1533
      %2505 = vmatmul.mubr.bf16.gmra.mxu0 %v1532
      %v2506 = vpop.f32.mrf.mxu0
      %v2507 = vadd.f32 %v1695, %v2506
      %v2508 = vpop.f32.mrf.mxu0
      %v2509 = vadd.f32 %v1699, %v2508
      %v2510 = vpop.f32.mrf.mxu0
      %v2511 = vadd.f32 %v1695, %v2510
      %v2512 = vpop.f32.mrf.mxu0
      %v2513 = vadd.f32 %v1699, %v2512
      %2514 = vmatprep.mubr.bf16.mxu0 %v1535
      %2515 = vmatmul.mubr.bf16.gmra.mxu0 %v1534
      %v2516 = vpop.f32.mrf.mxu0
      %v2517 = vadd.f32 %v1695, %v2516
      %v2518 = vpop.f32.mrf.mxu0
      %v2519 = vadd.f32 %v1699, %v2518
      %v2520 = vpop.f32.mrf.mxu0
      %v2521 = vadd.f32 %v1695, %v2520
      %v2522 = vpop.f32.mrf.mxu0
      %v2523 = vadd.f32 %v1699, %v2522
      %2524 = vmatprep.mubr.bf16.mxu0 %v1537
      %2525 = vmatmul.mubr.bf16.gmra.mxu0 %v1536
      %v2526 = vpop.f32.mrf.mxu0
      %v2527 = vadd.f32 %v1695, %v2526
      %v2528 = vpop.f32.mrf.mxu0
      %v2529 = vadd.f32 %v1699, %v2528
      %v2530 = vpop.f32.mrf.mxu0
      %v2531 = vadd.f32 %v1695, %v2530
      %v2532 = vpop.f32.mrf.mxu0
      %v2533 = vadd.f32 %v1699, %v2532
      %2534 = vmatprep.mubr.bf16.mxu0 %v1539
      %2535 = vmatmul.mubr.bf16.gmra.mxu0 %v1538
      %v2536 = vpop.f32.mrf.mxu0
      %v2537 = vadd.f32 %v1695, %v2536
      %v2538 = vpop.f32.mrf.mxu0
      %v2539 = vadd.f32 %v1699, %v2538
      %v2540 = vpop.f32.mrf.mxu0
      %v2541 = vadd.f32 %v1695, %v2540
      %v2542 = vpop.f32.mrf.mxu0
      %v2543 = vadd.f32 %v1699, %v2542
      %2544 = vmatprep.mubr.bf16.mxu0 %v1541
      %2545 = vmatmul.mubr.bf16.gmra.mxu0 %v1540
      %v2546 = vpop.f32.mrf.mxu0
      %v2547 = vadd.f32 %v1695, %v2546
      %v2548 = vpop.f32.mrf.mxu0
      %v2549 = vadd.f32 %v1699, %v2548
      %v2550 = vpop.f32.mrf.mxu0
      %v2551 = vadd.f32 %v1695, %v2550
      %v2552 = vpop.f32.mrf.mxu0
      %v2553 = vadd.f32 %v1699, %v2552
      %2554 = vmatprep.mubr.bf16.mxu0 %v1543
      %2555 = vmatmul.mubr.bf16.gmra.mxu0 %v1542
      %v2556 = vpop.f32.mrf.mxu0
      %v2557 = vadd.f32 %v1695, %v2556
      %v2558 = vpop.f32.mrf.mxu0
      %v2559 = vadd.f32 %v1699, %v2558
      %v2560 = vpop.f32.mrf.mxu0
      %v2561 = vadd.f32 %v1695, %v2560
      %v2562 = vpop.f32.mrf.mxu0
      %v2563 = vadd.f32 %v1699, %v2562
      %2564 = vmatprep.mubr.bf16.mxu0 %v1545
      %2565 = vmatmul.mubr.bf16.gmra.mxu0 %v1544
      %v2566 = vpop.f32.mrf.mxu0
      %v2567 = vadd.f32 %v1695, %v2566
      %v2568 = vpop.f32.mrf.mxu0
      %v2569 = vadd.f32 %v1699, %v2568
      %v2570 = vpop.f32.mrf.mxu0
      %v2571 = vadd.f32 %v1695, %v2570
      %v2572 = vpop.f32.mrf.mxu0
      %v2573 = vadd.f32 %v1699, %v2572
      %2574 = vmatprep.mubr.bf16.mxu0 %v1547
      %2575 = vmatmul.mubr.bf16.gmra.mxu0 %v1546
      %v2576 = vpop.f32.mrf.mxu0
      %v2577 = vadd.f32 %v1695, %v2576
      %v2578 = vpop.f32.mrf.mxu0
      %v2579 = vadd.f32 %v1699, %v2578
      %v2580 = vpop.f32.mrf.mxu0
      %v2581 = vadd.f32 %v1695, %v2580
      %v2582 = vpop.f32.mrf.mxu0
      %v2583 = vadd.f32 %v1699, %v2582
      %2584 = vmatprep.mubr.bf16.mxu0 %v1549
      %2585 = vmatmul.mubr.bf16.gmra.mxu0 %v1548
      %v2586 = vpop.f32.mrf.mxu0
      %v2587 = vadd.f32 %v1695, %v2586
      %v2588 = vpop.f32.mrf.mxu0
      %v2589 = vadd.f32 %v1699, %v2588
      %v2590 = vpop.f32.mrf.mxu0
      %v2591 = vadd.f32 %v1695, %v2590
      %v2592 = vpop.f32.mrf.mxu0
      %v2593 = vadd.f32 %v1699, %v2592
      %2594 = vmatprep.mubr.bf16.mxu0 %v1551
      %2595 = vmatmul.mubr.bf16.gmra.mxu0 %v1550
      %v2596 = vpop.f32.mrf.mxu0
      %v2597 = vadd.f32 %v1695, %v2596
      %v2598 = vpop.f32.mrf.mxu0
      %v2599 = vadd.f32 %v1699, %v2598
      %v2600 = vpop.f32.mrf.mxu0
      %v2601 = vadd.f32 %v1695, %v2600
      %v2602 = vpop.f32.mrf.mxu0
      %v2603 = vadd.f32 %v1699, %v2602
      %2604 = vmatprep.mubr.bf16.mxu0 %v1553
      %2605 = vmatmul.mubr.bf16.gmra.mxu0 %v1552
      %v2606 = vpop.f32.mrf.mxu0
      %v2607 = vadd.f32 %v1695, %v2606
      %v2608 = vpop.f32.mrf.mxu0
      %v2609 = vadd.f32 %v1699, %v2608
      %v2610 = vpop.f32.mrf.mxu0
      %v2611 = vadd.f32 %v1695, %v2610
      %v2612 = vpop.f32.mrf.mxu0
      %v2613 = vadd.f32 %v1699, %v2612
      %2614 = vmatprep.mubr.bf16.mxu0 %v1555
      %2615 = vmatmul.mubr.bf16.gmra.mxu0 %v1554
      %v2616 = vpop.f32.mrf.mxu0
      %v2617 = vadd.f32 %v1695, %v2616
      %v2618 = vpop.f32.mrf.mxu0
      %v2619 = vadd.f32 %v1699, %v2618
      %v2620 = vpop.f32.mrf.mxu0
      %v2621 = vadd.f32 %v1695, %v2620
      %v2622 = vpop.f32.mrf.mxu0
      %v2623 = vadd.f32 %v1699, %v2622
      %2624 = vmatprep.mubr.bf16.mxu0 %v1557
      %2625 = vmatmul.mubr.bf16.gmra.mxu0 %v1556
      %v2626 = vpop.f32.mrf.mxu0
      %v2627 = vadd.f32 %v1695, %v2626
      %v2628 = vpop.f32.mrf.mxu0
      %v2629 = vadd.f32 %v1699, %v2628
      %v2630 = vpop.f32.mrf.mxu0
      %v2631 = vadd.f32 %v1695, %v2630
      %v2632 = vpop.f32.mrf.mxu0
      %v2633 = vadd.f32 %v1699, %v2632
      %2634 = vmatprep.mubr.bf16.mxu0 %v1559
      %2635 = vmatmul.mubr.bf16.gmra.mxu0 %v1558
      %v2636 = vpop.f32.mrf.mxu0
      %v2637 = vadd.f32 %v1695, %v2636
      %v2638 = vpop.f32.mrf.mxu0
      %v2639 = vadd.f32 %v1699, %v2638
      %v2640 = vpop.f32.mrf.mxu0
      %v2641 = vadd.f32 %v1695, %v2640
      %v2642 = vpop.f32.mrf.mxu0
      %v2643 = vadd.f32 %v1699, %v2642
      %2644 = vmatprep.mubr.bf16.mxu0 %v1561
      %2645 = vmatmul.mubr.bf16.gmra.mxu0 %v1560
      %v2646 = vpop.f32.mrf.mxu0
      %v2647 = vadd.f32 %v1695, %v2646
      %v2648 = vpop.f32.mrf.mxu0
      %v2649 = vadd.f32 %v1699, %v2648
      %v2650 = vpop.f32.mrf.mxu0
      %v2651 = vadd.f32 %v1695, %v2650
      %v2652 = vpop.f32.mrf.mxu0
      %v2653 = vadd.f32 %v1699, %v2652
      %2654 = vdwg.mxu0
      %2655 = vmatprep.subr.bf16.mxu0 %v2175
      %2656 = vmatpush1.bf16.msra.mxu0 %v2174
      %2657 = vmatprep.subr.bf16.mxu0 %v2167
      %2658 = vmatpush1.bf16.msra.mxu0 %v2166
      %2659 = vmatprep.subr.bf16.mxu0 %v2159
      %2660 = vmatpush1.bf16.msra.mxu0 %v2158
      %2661 = vmatprep.subr.bf16.mxu0 %v2151
      %2662 = vmatpush1.bf16.msra.mxu0 %v2150
      %2663 = vmatprep.subr.bf16.mxu0 %v2143
      %2664 = vmatpush1.bf16.msra.mxu0 %v2142
      %2665 = vmatprep.subr.bf16.mxu0 %v2135
      %2666 = vmatpush1.bf16.msra.mxu0 %v2134
      %2667 = vmatprep.subr.bf16.mxu0 %v2127
      %2668 = vmatpush1.bf16.msra.mxu0 %v2126
      %2669 = vmatprep.subr.bf16.mxu0 %v2119
      %2670 = vmatpush1.bf16.msra.mxu0 %v2118
      %2671 = vmatprep.subr.bf16.mxu0 %v2239
      %2672 = vmatpush2.bf16.msra.mxu0 %v2238
      %2673 = vmatprep.subr.bf16.mxu0 %v2231
      %2674 = vmatpush2.bf16.msra.mxu0 %v2230
      %2675 = vmatprep.subr.bf16.mxu0 %v2223
      %2676 = vmatpush2.bf16.msra.mxu0 %v2222
      %2677 = vmatprep.subr.bf16.mxu0 %v2215
      %2678 = vmatpush2.bf16.msra.mxu0 %v2214
      %2679 = vmatprep.subr.bf16.mxu0 %v2207
      %2680 = vmatpush2.bf16.msra.mxu0 %v2206
      %2681 = vmatprep.subr.bf16.mxu0 %v2199
      %2682 = vmatpush2.bf16.msra.mxu0 %v2198
      %2683 = vmatprep.subr.bf16.mxu0 %v2191
      %2684 = vmatpush2.bf16.msra.mxu0 %v2190
      %2685 = vmatprep.subr.bf16.mxu0 %v2183
      %2686 = vmatpush2.bf16.msra.mxu0 %v2182
      %2687 = vmatprep.mubr.bf16.mxu0 %v1513
      %2688 = vmatmul.mubr.bf16.gmra.mxu0 %v1512
      %v2689 = vpop.f32.mrf.mxu0
      %v2690 = vadd.f32 %v1703, %v2689
      %v2691 = vpop.f32.mrf.mxu0
      %v2692 = vadd.f32 %v1707, %v2691
      %v2693 = vpop.f32.mrf.mxu0
      %v2694 = vadd.f32 %v1703, %v2693
      %v2695 = vpop.f32.mrf.mxu0
      %v2696 = vadd.f32 %v1707, %v2695
      %2697 = vmatprep.mubr.bf16.mxu0 %v1515
      %2698 = vmatmul.mubr.bf16.gmra.mxu0 %v1514
      %v2699 = vpop.f32.mrf.mxu0
      %v2700 = vadd.f32 %v1703, %v2699
      %v2701 = vpop.f32.mrf.mxu0
      %v2702 = vadd.f32 %v1707, %v2701
      %v2703 = vpop.f32.mrf.mxu0
      %v2704 = vadd.f32 %v1703, %v2703
      %v2705 = vpop.f32.mrf.mxu0
      %v2706 = vadd.f32 %v1707, %v2705
      %2707 = vmatprep.mubr.bf16.mxu0 %v1517
      %2708 = vmatmul.mubr.bf16.gmra.mxu0 %v1516
      %v2709 = vpop.f32.mrf.mxu0
      %v2710 = vadd.f32 %v1703, %v2709
      %v2711 = vpop.f32.mrf.mxu0
      %v2712 = vadd.f32 %v1707, %v2711
      %v2713 = vpop.f32.mrf.mxu0
      %v2714 = vadd.f32 %v1703, %v2713
      %v2715 = vpop.f32.mrf.mxu0
      %v2716 = vadd.f32 %v1707, %v2715
      %2717 = vmatprep.mubr.bf16.mxu0 %v1519
      %2718 = vmatmul.mubr.bf16.gmra.mxu0 %v1518
      %v2719 = vpop.f32.mrf.mxu0
      %v2720 = vadd.f32 %v1703, %v2719
      %v2721 = vpop.f32.mrf.mxu0
      %v2722 = vadd.f32 %v1707, %v2721
      %v2723 = vpop.f32.mrf.mxu0
      %v2724 = vadd.f32 %v1703, %v2723
      %v2725 = vpop.f32.mrf.mxu0
      %v2726 = vadd.f32 %v1707, %v2725
      %2727 = vmatprep.mubr.bf16.mxu0 %v1521
      %2728 = vmatmul.mubr.bf16.gmra.mxu0 %v1520
      %v2729 = vpop.f32.mrf.mxu0
      %v2730 = vadd.f32 %v1703, %v2729
      %v2731 = vpop.f32.mrf.mxu0
      %v2732 = vadd.f32 %v1707, %v2731
      %v2733 = vpop.f32.mrf.mxu0
      %v2734 = vadd.f32 %v1703, %v2733
      %v2735 = vpop.f32.mrf.mxu0
      %v2736 = vadd.f32 %v1707, %v2735
      %2737 = vmatprep.mubr.bf16.mxu0 %v1523
      %2738 = vmatmul.mubr.bf16.gmra.mxu0 %v1522
      %v2739 = vpop.f32.mrf.mxu0
      %v2740 = vadd.f32 %v1703, %v2739
      %v2741 = vpop.f32.mrf.mxu0
      %v2742 = vadd.f32 %v1707, %v2741
      %v2743 = vpop.f32.mrf.mxu0
      %v2744 = vadd.f32 %v1703, %v2743
      %v2745 = vpop.f32.mrf.mxu0
      %v2746 = vadd.f32 %v1707, %v2745
      %2747 = vmatprep.mubr.bf16.mxu0 %v1525
      %2748 = vmatmul.mubr.bf16.gmra.mxu0 %v1524
      %v2749 = vpop.f32.mrf.mxu0
      %v2750 = vadd.f32 %v1703, %v2749
      %v2751 = vpop.f32.mrf.mxu0
      %v2752 = vadd.f32 %v1707, %v2751
      %v2753 = vpop.f32.mrf.mxu0
      %v2754 = vadd.f32 %v1703, %v2753
      %v2755 = vpop.f32.mrf.mxu0
      %v2756 = vadd.f32 %v1707, %v2755
      %2757 = vmatprep.mubr.bf16.mxu0 %v1527
      %2758 = vmatmul.mubr.bf16.gmra.mxu0 %v1526
      %v2759 = vpop.f32.mrf.mxu0
      %v2760 = vadd.f32 %v1703, %v2759
      %v2761 = vpop.f32.mrf.mxu0
      %v2762 = vadd.f32 %v1707, %v2761
      %v2763 = vpop.f32.mrf.mxu0
      %v2764 = vadd.f32 %v1703, %v2763
      %v2765 = vpop.f32.mrf.mxu0
      %v2766 = vadd.f32 %v1707, %v2765
      %2767 = vmatprep.mubr.bf16.mxu0 %v1529
      %2768 = vmatmul.mubr.bf16.gmra.mxu0 %v1528
      %v2769 = vpop.f32.mrf.mxu0
      %v2770 = vadd.f32 %v1703, %v2769
      %v2771 = vpop.f32.mrf.mxu0
      %v2772 = vadd.f32 %v1707, %v2771
      %v2773 = vpop.f32.mrf.mxu0
      %v2774 = vadd.f32 %v1703, %v2773
      %v2775 = vpop.f32.mrf.mxu0
      %v2776 = vadd.f32 %v1707, %v2775
      %2777 = vmatprep.mubr.bf16.mxu0 %v1531
      %2778 = vmatmul.mubr.bf16.gmra.mxu0 %v1530
      %v2779 = vpop.f32.mrf.mxu0
      %v2780 = vadd.f32 %v1703, %v2779
      %v2781 = vpop.f32.mrf.mxu0
      %v2782 = vadd.f32 %v1707, %v2781
      %v2783 = vpop.f32.mrf.mxu0
      %v2784 = vadd.f32 %v1703, %v2783
      %v2785 = vpop.f32.mrf.mxu0
      %v2786 = vadd.f32 %v1707, %v2785
      %2787 = vmatprep.mubr.bf16.mxu0 %v1533
      %2788 = vmatmul.mubr.bf16.gmra.mxu0 %v1532
      %v2789 = vpop.f32.mrf.mxu0
      %v2790 = vadd.f32 %v1703, %v2789
      %v2791 = vpop.f32.mrf.mxu0
      %v2792 = vadd.f32 %v1707, %v2791
      %v2793 = vpop.f32.mrf.mxu0
      %v2794 = vadd.f32 %v1703, %v2793
      %v2795 = vpop.f32.mrf.mxu0
      %v2796 = vadd.f32 %v1707, %v2795
      %2797 = vmatprep.mubr.bf16.mxu0 %v1535
      %2798 = vmatmul.mubr.bf16.gmra.mxu0 %v1534
      %v2799 = vpop.f32.mrf.mxu0
      %v2800 = vadd.f32 %v1703, %v2799
      %v2801 = vpop.f32.mrf.mxu0
      %v2802 = vadd.f32 %v1707, %v2801
      %v2803 = vpop.f32.mrf.mxu0
      %v2804 = vadd.f32 %v1703, %v2803
      %v2805 = vpop.f32.mrf.mxu0
      %v2806 = vadd.f32 %v1707, %v2805
      %2807 = vmatprep.mubr.bf16.mxu0 %v1537
      %2808 = vmatmul.mubr.bf16.gmra.mxu0 %v1536
      %v2809 = vpop.f32.mrf.mxu0
      %v2810 = vadd.f32 %v1703, %v2809
      %v2811 = vpop.f32.mrf.mxu0
      %v2812 = vadd.f32 %v1707, %v2811
      %v2813 = vpop.f32.mrf.mxu0
      %v2814 = vadd.f32 %v1703, %v2813
      %v2815 = vpop.f32.mrf.mxu0
      %v2816 = vadd.f32 %v1707, %v2815
      %2817 = vmatprep.mubr.bf16.mxu0 %v1539
      %2818 = vmatmul.mubr.bf16.gmra.mxu0 %v1538
      %v2819 = vpop.f32.mrf.mxu0
      %v2820 = vadd.f32 %v1703, %v2819
      %v2821 = vpop.f32.mrf.mxu0
      %v2822 = vadd.f32 %v1707, %v2821
      %v2823 = vpop.f32.mrf.mxu0
      %v2824 = vadd.f32 %v1703, %v2823
      %v2825 = vpop.f32.mrf.mxu0
      %v2826 = vadd.f32 %v1707, %v2825
      %2827 = vmatprep.mubr.bf16.mxu0 %v1541
      %2828 = vmatmul.mubr.bf16.gmra.mxu0 %v1540
      %v2829 = vpop.f32.mrf.mxu0
      %v2830 = vadd.f32 %v1703, %v2829
      %v2831 = vpop.f32.mrf.mxu0
      %v2832 = vadd.f32 %v1707, %v2831
      %v2833 = vpop.f32.mrf.mxu0
      %v2834 = vadd.f32 %v1703, %v2833
      %v2835 = vpop.f32.mrf.mxu0
      %v2836 = vadd.f32 %v1707, %v2835
      %2837 = vmatprep.mubr.bf16.mxu0 %v1543
      %2838 = vmatmul.mubr.bf16.gmra.mxu0 %v1542
      %v2839 = vpop.f32.mrf.mxu0
      %v2840 = vadd.f32 %v1703, %v2839
      %v2841 = vpop.f32.mrf.mxu0
      %v2842 = vadd.f32 %v1707, %v2841
      %v2843 = vpop.f32.mrf.mxu0
      %v2844 = vadd.f32 %v1703, %v2843
      %v2845 = vpop.f32.mrf.mxu0
      %v2846 = vadd.f32 %v1707, %v2845
      %2847 = vmatprep.mubr.bf16.mxu0 %v1545
      %2848 = vmatmul.mubr.bf16.gmra.mxu0 %v1544
      %v2849 = vpop.f32.mrf.mxu0
      %v2850 = vadd.f32 %v1703, %v2849
      %v2851 = vpop.f32.mrf.mxu0
      %v2852 = vadd.f32 %v1707, %v2851
      %v2853 = vpop.f32.mrf.mxu0
      %v2854 = vadd.f32 %v1703, %v2853
      %v2855 = vpop.f32.mrf.mxu0
      %v2856 = vadd.f32 %v1707, %v2855
      %2857 = vmatprep.mubr.bf16.mxu0 %v1547
      %2858 = vmatmul.mubr.bf16.gmra.mxu0 %v1546
      %v2859 = vpop.f32.mrf.mxu0
      %v2860 = vadd.f32 %v1703, %v2859
      %v2861 = vpop.f32.mrf.mxu0
      %v2862 = vadd.f32 %v1707, %v2861
      %v2863 = vpop.f32.mrf.mxu0
      %v2864 = vadd.f32 %v1703, %v2863
      %v2865 = vpop.f32.mrf.mxu0
      %v2866 = vadd.f32 %v1707, %v2865
      %2867 = vmatprep.mubr.bf16.mxu0 %v1549
      %2868 = vmatmul.mubr.bf16.gmra.mxu0 %v1548
      %v2869 = vpop.f32.mrf.mxu0
      %v2870 = vadd.f32 %v1703, %v2869
      %v2871 = vpop.f32.mrf.mxu0
      %v2872 = vadd.f32 %v1707, %v2871
      %v2873 = vpop.f32.mrf.mxu0
      %v2874 = vadd.f32 %v1703, %v2873
      %v2875 = vpop.f32.mrf.mxu0
      %v2876 = vadd.f32 %v1707, %v2875
      %2877 = vmatprep.mubr.bf16.mxu0 %v1551
      %2878 = vmatmul.mubr.bf16.gmra.mxu0 %v1550
      %v2879 = vpop.f32.mrf.mxu0
      %v2880 = vadd.f32 %v1703, %v2879
      %v2881 = vpop.f32.mrf.mxu0
      %v2882 = vadd.f32 %v1707, %v2881
      %v2883 = vpop.f32.mrf.mxu0
      %v2884 = vadd.f32 %v1703, %v2883
      %v2885 = vpop.f32.mrf.mxu0
      %v2886 = vadd.f32 %v1707, %v2885
      %2887 = vmatprep.mubr.bf16.mxu0 %v1553
      %2888 = vmatmul.mubr.bf16.gmra.mxu0 %v1552
      %v2889 = vpop.f32.mrf.mxu0
      %v2890 = vadd.f32 %v1703, %v2889
      %v2891 = vpop.f32.mrf.mxu0
      %v2892 = vadd.f32 %v1707, %v2891
      %v2893 = vpop.f32.mrf.mxu0
      %v2894 = vadd.f32 %v1703, %v2893
      %v2895 = vpop.f32.mrf.mxu0
      %v2896 = vadd.f32 %v1707, %v2895
      %2897 = vmatprep.mubr.bf16.mxu0 %v1555
      %2898 = vmatmul.mubr.bf16.gmra.mxu0 %v1554
      %v2899 = vpop.f32.mrf.mxu0
      %v2900 = vadd.f32 %v1703, %v2899
      %v2901 = vpop.f32.mrf.mxu0
      %v2902 = vadd.f32 %v1707, %v2901
      %v2903 = vpop.f32.mrf.mxu0
      %v2904 = vadd.f32 %v1703, %v2903
      %v2905 = vpop.f32.mrf.mxu0
      %v2906 = vadd.f32 %v1707, %v2905
      %2907 = vmatprep.mubr.bf16.mxu0 %v1557
      %2908 = vmatmul.mubr.bf16.gmra.mxu0 %v1556
      %v2909 = vpop.f32.mrf.mxu0
      %v2910 = vadd.f32 %v1703, %v2909
      %v2911 = vpop.f32.mrf.mxu0
      %v2912 = vadd.f32 %v1707, %v2911
      %v2913 = vpop.f32.mrf.mxu0
      %v2914 = vadd.f32 %v1703, %v2913
      %v2915 = vpop.f32.mrf.mxu0
      %v2916 = vadd.f32 %v1707, %v2915
      %2917 = vmatprep.mubr.bf16.mxu0 %v1559
      %2918 = vmatmul.mubr.bf16.gmra.mxu0 %v1558
      %v2919 = vpop.f32.mrf.mxu0
      %v2920 = vadd.f32 %v1703, %v2919
      %v2921 = vpop.f32.mrf.mxu0
      %v2922 = vadd.f32 %v1707, %v2921
      %v2923 = vpop.f32.mrf.mxu0
      %v2924 = vadd.f32 %v1703, %v2923
      %v2925 = vpop.f32.mrf.mxu0
      %v2926 = vadd.f32 %v1707, %v2925
      %2927 = vmatprep.mubr.bf16.mxu0 %v1561
      %2928 = vmatmul.mubr.bf16.gmra.mxu0 %v1560
      %v2929 = vpop.f32.mrf.mxu0
      %v2930 = vadd.f32 %v1703, %v2929
      %v2931 = vpop.f32.mrf.mxu0
      %v2932 = vadd.f32 %v1707, %v2931
      %v2933 = vpop.f32.mrf.mxu0
      %v2934 = vadd.f32 %v1703, %v2933
      %v2935 = vpop.f32.mrf.mxu0
      %v2936 = vadd.f32 %v1707, %v2935
      %2937 = vdwg.mxu0
      %2938 = vmatprep.subr.bf16.mxu0 %v2177
      %2939 = vmatpush1.bf16.msra.mxu0 %v2176
      %2940 = vmatprep.subr.bf16.mxu0 %v2169
      %2941 = vmatpush1.bf16.msra.mxu0 %v2168
      %2942 = vmatprep.subr.bf16.mxu0 %v2161
      %2943 = vmatpush1.bf16.msra.mxu0 %v2160
      %2944 = vmatprep.subr.bf16.mxu0 %v2153
      %2945 = vmatpush1.bf16.msra.mxu0 %v2152
      %2946 = vmatprep.subr.bf16.mxu0 %v2145
      %2947 = vmatpush1.bf16.msra.mxu0 %v2144
      %2948 = vmatprep.subr.bf16.mxu0 %v2137
      %2949 = vmatpush1.bf16.msra.mxu0 %v2136
      %2950 = vmatprep.subr.bf16.mxu0 %v2129
      %2951 = vmatpush1.bf16.msra.mxu0 %v2128
      %2952 = vmatprep.subr.bf16.mxu0 %v2121
      %2953 = vmatpush1.bf16.msra.mxu0 %v2120
      %2954 = vmatprep.subr.bf16.mxu0 %v2241
      %2955 = vmatpush2.bf16.msra.mxu0 %v2240
      %2956 = vmatprep.subr.bf16.mxu0 %v2233
      %2957 = vmatpush2.bf16.msra.mxu0 %v2232
      %2958 = vmatprep.subr.bf16.mxu0 %v2225
      %2959 = vmatpush2.bf16.msra.mxu0 %v2224
      %2960 = vmatprep.subr.bf16.mxu0 %v2217
      %2961 = vmatpush2.bf16.msra.mxu0 %v2216
      %2962 = vmatprep.subr.bf16.mxu0 %v2209
      %2963 = vmatpush2.bf16.msra.mxu0 %v2208
      %2964 = vmatprep.subr.bf16.mxu0 %v2201
      %2965 = vmatpush2.bf16.msra.mxu0 %v2200
      %2966 = vmatprep.subr.bf16.mxu0 %v2193
      %2967 = vmatpush2.bf16.msra.mxu0 %v2192
      %2968 = vmatprep.subr.bf16.mxu0 %v2185
      %2969 = vmatpush2.bf16.msra.mxu0 %v2184
      %2970 = vmatprep.mubr.bf16.mxu0 %v1513
      %2971 = vmatmul.mubr.bf16.gmra.mxu0 %v1512
      %v2972 = vpop.f32.mrf.mxu0
      %v2973 = vadd.f32 %v1711, %v2972
      %v2974 = vpop.f32.mrf.mxu0
      %v2975 = vadd.f32 %v1715, %v2974
      %v2976 = vpop.f32.mrf.mxu0
      %v2977 = vadd.f32 %v1711, %v2976
      %v2978 = vpop.f32.mrf.mxu0
      %v2979 = vadd.f32 %v1715, %v2978
      %2980 = vmatprep.mubr.bf16.mxu0 %v1515
      %2981 = vmatmul.mubr.bf16.gmra.mxu0 %v1514
      %v2982 = vpop.f32.mrf.mxu0
      %v2983 = vadd.f32 %v1711, %v2982
      %v2984 = vpop.f32.mrf.mxu0
      %v2985 = vadd.f32 %v1715, %v2984
      %v2986 = vpop.f32.mrf.mxu0
      %v2987 = vadd.f32 %v1711, %v2986
      %v2988 = vpop.f32.mrf.mxu0
      %v2989 = vadd.f32 %v1715, %v2988
      %2990 = vmatprep.mubr.bf16.mxu0 %v1517
      %2991 = vmatmul.mubr.bf16.gmra.mxu0 %v1516
      %v2992 = vpop.f32.mrf.mxu0
      %v2993 = vadd.f32 %v1711, %v2992
      %v2994 = vpop.f32.mrf.mxu0
      %v2995 = vadd.f32 %v1715, %v2994
      %v2996 = vpop.f32.mrf.mxu0
      %v2997 = vadd.f32 %v1711, %v2996
      %v2998 = vpop.f32.mrf.mxu0
      %v2999 = vadd.f32 %v1715, %v2998
      %3000 = vmatprep.mubr.bf16.mxu0 %v1519
      %3001 = vmatmul.mubr.bf16.gmra.mxu0 %v1518
      %v3002 = vpop.f32.mrf.mxu0
      %v3003 = vadd.f32 %v1711, %v3002
      %v3004 = vpop.f32.mrf.mxu0
      %v3005 = vadd.f32 %v1715, %v3004
      %v3006 = vpop.f32.mrf.mxu0
      %v3007 = vadd.f32 %v1711, %v3006
      %v3008 = vpop.f32.mrf.mxu0
      %v3009 = vadd.f32 %v1715, %v3008
      %3010 = vmatprep.mubr.bf16.mxu0 %v1521
      %3011 = vmatmul.mubr.bf16.gmra.mxu0 %v1520
      %v3012 = vpop.f32.mrf.mxu0
      %v3013 = vadd.f32 %v1711, %v3012
      %v3014 = vpop.f32.mrf.mxu0
      %v3015 = vadd.f32 %v1715, %v3014
      %v3016 = vpop.f32.mrf.mxu0
      %v3017 = vadd.f32 %v1711, %v3016
      %v3018 = vpop.f32.mrf.mxu0
      %v3019 = vadd.f32 %v1715, %v3018
      %3020 = vmatprep.mubr.bf16.mxu0 %v1523
      %3021 = vmatmul.mubr.bf16.gmra.mxu0 %v1522
      %v3022 = vpop.f32.mrf.mxu0
      %v3023 = vadd.f32 %v1711, %v3022
      %v3024 = vpop.f32.mrf.mxu0
      %v3025 = vadd.f32 %v1715, %v3024
      %v3026 = vpop.f32.mrf.mxu0
      %v3027 = vadd.f32 %v1711, %v3026
      %v3028 = vpop.f32.mrf.mxu0
      %v3029 = vadd.f32 %v1715, %v3028
      %3030 = vmatprep.mubr.bf16.mxu0 %v1525
      %3031 = vmatmul.mubr.bf16.gmra.mxu0 %v1524
      %v3032 = vpop.f32.mrf.mxu0
      %v3033 = vadd.f32 %v1711, %v3032
      %v3034 = vpop.f32.mrf.mxu0
      %v3035 = vadd.f32 %v1715, %v3034
      %v3036 = vpop.f32.mrf.mxu0
      %v3037 = vadd.f32 %v1711, %v3036
      %v3038 = vpop.f32.mrf.mxu0
      %v3039 = vadd.f32 %v1715, %v3038
      %3040 = vmatprep.mubr.bf16.mxu0 %v1527
      %3041 = vmatmul.mubr.bf16.gmra.mxu0 %v1526
      %v3042 = vpop.f32.mrf.mxu0
      %v3043 = vadd.f32 %v1711, %v3042
      %v3044 = vpop.f32.mrf.mxu0
      %v3045 = vadd.f32 %v1715, %v3044
      %v3046 = vpop.f32.mrf.mxu0
      %v3047 = vadd.f32 %v1711, %v3046
      %v3048 = vpop.f32.mrf.mxu0
      %v3049 = vadd.f32 %v1715, %v3048
      %3050 = vmatprep.mubr.bf16.mxu0 %v1529
      %3051 = vmatmul.mubr.bf16.gmra.mxu0 %v1528
      %v3052 = vpop.f32.mrf.mxu0
      %v3053 = vadd.f32 %v1711, %v3052
      %v3054 = vpop.f32.mrf.mxu0
      %v3055 = vadd.f32 %v1715, %v3054
      %v3056 = vpop.f32.mrf.mxu0
      %v3057 = vadd.f32 %v1711, %v3056
      %v3058 = vpop.f32.mrf.mxu0
      %v3059 = vadd.f32 %v1715, %v3058
      %3060 = vmatprep.mubr.bf16.mxu0 %v1531
      %3061 = vmatmul.mubr.bf16.gmra.mxu0 %v1530
      %v3062 = vpop.f32.mrf.mxu0
      %v3063 = vadd.f32 %v1711, %v3062
      %v3064 = vpop.f32.mrf.mxu0
      %v3065 = vadd.f32 %v1715, %v3064
      %v3066 = vpop.f32.mrf.mxu0
      %v3067 = vadd.f32 %v1711, %v3066
      %v3068 = vpop.f32.mrf.mxu0
      %v3069 = vadd.f32 %v1715, %v3068
      %3070 = vmatprep.mubr.bf16.mxu0 %v1533
      %3071 = vmatmul.mubr.bf16.gmra.mxu0 %v1532
      %v3072 = vpop.f32.mrf.mxu0
      %v3073 = vadd.f32 %v1711, %v3072
      %v3074 = vpop.f32.mrf.mxu0
      %v3075 = vadd.f32 %v1715, %v3074
      %v3076 = vpop.f32.mrf.mxu0
      %v3077 = vadd.f32 %v1711, %v3076
      %v3078 = vpop.f32.mrf.mxu0
      %v3079 = vadd.f32 %v1715, %v3078
      %3080 = vmatprep.mubr.bf16.mxu0 %v1535
      %3081 = vmatmul.mubr.bf16.gmra.mxu0 %v1534
      %v3082 = vpop.f32.mrf.mxu0
      %v3083 = vadd.f32 %v1711, %v3082
      %v3084 = vpop.f32.mrf.mxu0
      %v3085 = vadd.f32 %v1715, %v3084
      %v3086 = vpop.f32.mrf.mxu0
      %v3087 = vadd.f32 %v1711, %v3086
      %v3088 = vpop.f32.mrf.mxu0
      %v3089 = vadd.f32 %v1715, %v3088
      %3090 = vmatprep.mubr.bf16.mxu0 %v1537
      %3091 = vmatmul.mubr.bf16.gmra.mxu0 %v1536
      %v3092 = vpop.f32.mrf.mxu0
      %v3093 = vadd.f32 %v1711, %v3092
      %v3094 = vpop.f32.mrf.mxu0
      %v3095 = vadd.f32 %v1715, %v3094
      %v3096 = vpop.f32.mrf.mxu0
      %v3097 = vadd.f32 %v1711, %v3096
      %v3098 = vpop.f32.mrf.mxu0
      %v3099 = vadd.f32 %v1715, %v3098
      %3100 = vmatprep.mubr.bf16.mxu0 %v1539
      %3101 = vmatmul.mubr.bf16.gmra.mxu0 %v1538
      %v3102 = vpop.f32.mrf.mxu0
      %v3103 = vadd.f32 %v1711, %v3102
      %v3104 = vpop.f32.mrf.mxu0
      %v3105 = vadd.f32 %v1715, %v3104
      %v3106 = vpop.f32.mrf.mxu0
      %v3107 = vadd.f32 %v1711, %v3106
      %v3108 = vpop.f32.mrf.mxu0
      %v3109 = vadd.f32 %v1715, %v3108
      %3110 = vmatprep.mubr.bf16.mxu0 %v1541
      %3111 = vmatmul.mubr.bf16.gmra.mxu0 %v1540
      %v3112 = vpop.f32.mrf.mxu0
      %v3113 = vadd.f32 %v1711, %v3112
      %v3114 = vpop.f32.mrf.mxu0
      %v3115 = vadd.f32 %v1715, %v3114
      %v3116 = vpop.f32.mrf.mxu0
      %v3117 = vadd.f32 %v1711, %v3116
      %v3118 = vpop.f32.mrf.mxu0
      %v3119 = vadd.f32 %v1715, %v3118
      %3120 = vmatprep.mubr.bf16.mxu0 %v1543
      %3121 = vmatmul.mubr.bf16.gmra.mxu0 %v1542
      %v3122 = vpop.f32.mrf.mxu0
      %v3123 = vadd.f32 %v1711, %v3122
      %v3124 = vpop.f32.mrf.mxu0
      %v3125 = vadd.f32 %v1715, %v3124
      %v3126 = vpop.f32.mrf.mxu0
      %v3127 = vadd.f32 %v1711, %v3126
      %v3128 = vpop.f32.mrf.mxu0
      %v3129 = vadd.f32 %v1715, %v3128
      %3130 = vmatprep.mubr.bf16.mxu0 %v1545
      %3131 = vmatmul.mubr.bf16.gmra.mxu0 %v1544
      %v3132 = vpop.f32.mrf.mxu0
      %v3133 = vadd.f32 %v1711, %v3132
      %v3134 = vpop.f32.mrf.mxu0
      %v3135 = vadd.f32 %v1715, %v3134
      %v3136 = vpop.f32.mrf.mxu0
      %v3137 = vadd.f32 %v1711, %v3136
      %v3138 = vpop.f32.mrf.mxu0
      %v3139 = vadd.f32 %v1715, %v3138
      %3140 = vmatprep.mubr.bf16.mxu0 %v1547
      %3141 = vmatmul.mubr.bf16.gmra.mxu0 %v1546
      %v3142 = vpop.f32.mrf.mxu0
      %v3143 = vadd.f32 %v1711, %v3142
      %v3144 = vpop.f32.mrf.mxu0
      %v3145 = vadd.f32 %v1715, %v3144
      %v3146 = vpop.f32.mrf.mxu0
      %v3147 = vadd.f32 %v1711, %v3146
      %v3148 = vpop.f32.mrf.mxu0
      %v3149 = vadd.f32 %v1715, %v3148
      %3150 = vmatprep.mubr.bf16.mxu0 %v1549
      %3151 = vmatmul.mubr.bf16.gmra.mxu0 %v1548
      %v3152 = vpop.f32.mrf.mxu0
      %v3153 = vadd.f32 %v1711, %v3152
      %v3154 = vpop.f32.mrf.mxu0
      %v3155 = vadd.f32 %v1715, %v3154
      %v3156 = vpop.f32.mrf.mxu0
      %v3157 = vadd.f32 %v1711, %v3156
      %v3158 = vpop.f32.mrf.mxu0
      %v3159 = vadd.f32 %v1715, %v3158
      %3160 = vmatprep.mubr.bf16.mxu0 %v1551
      %3161 = vmatmul.mubr.bf16.gmra.mxu0 %v1550
      %v3162 = vpop.f32.mrf.mxu0
      %v3163 = vadd.f32 %v1711, %v3162
      %v3164 = vpop.f32.mrf.mxu0
      %v3165 = vadd.f32 %v1715, %v3164
      %v3166 = vpop.f32.mrf.mxu0
      %v3167 = vadd.f32 %v1711, %v3166
      %v3168 = vpop.f32.mrf.mxu0
      %v3169 = vadd.f32 %v1715, %v3168
      %3170 = vmatprep.mubr.bf16.mxu0 %v1553
      %3171 = vmatmul.mubr.bf16.gmra.mxu0 %v1552
      %v3172 = vpop.f32.mrf.mxu0
      %v3173 = vadd.f32 %v1711, %v3172
      %v3174 = vpop.f32.mrf.mxu0
      %v3175 = vadd.f32 %v1715, %v3174
      %v3176 = vpop.f32.mrf.mxu0
      %v3177 = vadd.f32 %v1711, %v3176
      %v3178 = vpop.f32.mrf.mxu0
      %v3179 = vadd.f32 %v1715, %v3178
      %3180 = vmatprep.mubr.bf16.mxu0 %v1555
      %3181 = vmatmul.mubr.bf16.gmra.mxu0 %v1554
      %v3182 = vpop.f32.mrf.mxu0
      %v3183 = vadd.f32 %v1711, %v3182
      %v3184 = vpop.f32.mrf.mxu0
      %v3185 = vadd.f32 %v1715, %v3184
      %v3186 = vpop.f32.mrf.mxu0
      %v3187 = vadd.f32 %v1711, %v3186
      %v3188 = vpop.f32.mrf.mxu0
      %v3189 = vadd.f32 %v1715, %v3188
      %3190 = vmatprep.mubr.bf16.mxu0 %v1557
      %3191 = vmatmul.mubr.bf16.gmra.mxu0 %v1556
      %v3192 = vpop.f32.mrf.mxu0
      %v3193 = vadd.f32 %v1711, %v3192
      %v3194 = vpop.f32.mrf.mxu0
      %v3195 = vadd.f32 %v1715, %v3194
      %v3196 = vpop.f32.mrf.mxu0
      %v3197 = vadd.f32 %v1711, %v3196
      %v3198 = vpop.f32.mrf.mxu0
      %v3199 = vadd.f32 %v1715, %v3198
      %3200 = vmatprep.mubr.bf16.mxu0 %v1559
      %3201 = vmatmul.mubr.bf16.gmra.mxu0 %v1558
      %v3202 = vpop.f32.mrf.mxu0
      %v3203 = vadd.f32 %v1711, %v3202
      %v3204 = vpop.f32.mrf.mxu0
      %v3205 = vadd.f32 %v1715, %v3204
      %v3206 = vpop.f32.mrf.mxu0
      %v3207 = vadd.f32 %v1711, %v3206
      %v3208 = vpop.f32.mrf.mxu0
      %v3209 = vadd.f32 %v1715, %v3208
      %3210 = vmatprep.mubr.bf16.mxu0 %v1561
      %3211 = vmatmul.mubr.bf16.gmra.mxu0 %v1560
      %v3212 = vpop.f32.mrf.mxu0
      %v3213 = vadd.f32 %v1711, %v3212
      %v3214 = vpop.f32.mrf.mxu0
      %v3215 = vadd.f32 %v1715, %v3214
      %v3216 = vpop.f32.mrf.mxu0
      %v3217 = vadd.f32 %v1711, %v3216
      %v3218 = vpop.f32.mrf.mxu0
      %v3219 = vadd.f32 %v1715, %v3218
      %3220 = vdwg.mxu0
      %3221 = vmatprep.subr.bf16.mxu0 %v2179
      %3222 = vmatpush1.bf16.msra.mxu0 %v2178
      %3223 = vmatprep.subr.bf16.mxu0 %v2171
      %3224 = vmatpush1.bf16.msra.mxu0 %v2170
      %3225 = vmatprep.subr.bf16.mxu0 %v2163
      %3226 = vmatpush1.bf16.msra.mxu0 %v2162
      %3227 = vmatprep.subr.bf16.mxu0 %v2155
      %3228 = vmatpush1.bf16.msra.mxu0 %v2154
      %3229 = vmatprep.subr.bf16.mxu0 %v2147
      %3230 = vmatpush1.bf16.msra.mxu0 %v2146
      %3231 = vmatprep.subr.bf16.mxu0 %v2139
      %3232 = vmatpush1.bf16.msra.mxu0 %v2138
      %3233 = vmatprep.subr.bf16.mxu0 %v2131
      %3234 = vmatpush1.bf16.msra.mxu0 %v2130
      %3235 = vmatprep.subr.bf16.mxu0 %v2123
      %3236 = vmatpush1.bf16.msra.mxu0 %v2122
      %3237 = vmatprep.subr.bf16.mxu0 %v2243
      %3238 = vmatpush2.bf16.msra.mxu0 %v2242
      %3239 = vmatprep.subr.bf16.mxu0 %v2235
      %3240 = vmatpush2.bf16.msra.mxu0 %v2234
      %3241 = vmatprep.subr.bf16.mxu0 %v2227
      %3242 = vmatpush2.bf16.msra.mxu0 %v2226
      %3243 = vmatprep.subr.bf16.mxu0 %v2219
      %3244 = vmatpush2.bf16.msra.mxu0 %v2218
      %3245 = vmatprep.subr.bf16.mxu0 %v2211
      %3246 = vmatpush2.bf16.msra.mxu0 %v2210
      %3247 = vmatprep.subr.bf16.mxu0 %v2203
      %3248 = vmatpush2.bf16.msra.mxu0 %v2202
      %3249 = vmatprep.subr.bf16.mxu0 %v2195
      %3250 = vmatpush2.bf16.msra.mxu0 %v2194
      %3251 = vmatprep.subr.bf16.mxu0 %v2187
      %3252 = vmatpush2.bf16.msra.mxu0 %v2186
      %3253 = vmatprep.mubr.bf16.mxu0 %v1513
      %3254 = vmatmul.mubr.bf16.gmra.mxu0 %v1512
      %v3255 = vpop.f32.mrf.mxu0
      %v3256 = vadd.f32 %v1719, %v3255
      %v3257 = vpop.f32.mrf.mxu0
      %v3258 = vadd.f32 %v1723, %v3257
      %v3259 = vpop.f32.mrf.mxu0
      %v3260 = vadd.f32 %v1719, %v3259
      %v3261 = vpop.f32.mrf.mxu0
      %v3262 = vadd.f32 %v1723, %v3261
      %3263 = vmatprep.mubr.bf16.mxu0 %v1515
      %3264 = vmatmul.mubr.bf16.gmra.mxu0 %v1514
      %v3265 = vpop.f32.mrf.mxu0
      %v3266 = vadd.f32 %v1719, %v3265
      %v3267 = vpop.f32.mrf.mxu0
      %v3268 = vadd.f32 %v1723, %v3267
      %v3269 = vpop.f32.mrf.mxu0
      %v3270 = vadd.f32 %v1719, %v3269
      %v3271 = vpop.f32.mrf.mxu0
      %v3272 = vadd.f32 %v1723, %v3271
      %3273 = vmatprep.mubr.bf16.mxu0 %v1517
      %3274 = vmatmul.mubr.bf16.gmra.mxu0 %v1516
      %v3275 = vpop.f32.mrf.mxu0
      %v3276 = vadd.f32 %v1719, %v3275
      %v3277 = vpop.f32.mrf.mxu0
      %v3278 = vadd.f32 %v1723, %v3277
      %v3279 = vpop.f32.mrf.mxu0
      %v3280 = vadd.f32 %v1719, %v3279
      %v3281 = vpop.f32.mrf.mxu0
      %v3282 = vadd.f32 %v1723, %v3281
      %3283 = vmatprep.mubr.bf16.mxu0 %v1519
      %3284 = vmatmul.mubr.bf16.gmra.mxu0 %v1518
      %v3285 = vpop.f32.mrf.mxu0
      %v3286 = vadd.f32 %v1719, %v3285
      %v3287 = vpop.f32.mrf.mxu0
      %v3288 = vadd.f32 %v1723, %v3287
      %v3289 = vpop.f32.mrf.mxu0
      %v3290 = vadd.f32 %v1719, %v3289
      %v3291 = vpop.f32.mrf.mxu0
      %v3292 = vadd.f32 %v1723, %v3291
      %3293 = vmatprep.mubr.bf16.mxu0 %v1521
      %3294 = vmatmul.mubr.bf16.gmra.mxu0 %v1520
      %v3295 = vpop.f32.mrf.mxu0
      %v3296 = vadd.f32 %v1719, %v3295
      %v3297 = vpop.f32.mrf.mxu0
      %v3298 = vadd.f32 %v1723, %v3297
      %v3299 = vpop.f32.mrf.mxu0
      %v3300 = vadd.f32 %v1719, %v3299
      %v3301 = vpop.f32.mrf.mxu0
      %v3302 = vadd.f32 %v1723, %v3301
      %3303 = vmatprep.mubr.bf16.mxu0 %v1523
      %3304 = vmatmul.mubr.bf16.gmra.mxu0 %v1522
      %v3305 = vpop.f32.mrf.mxu0
      %v3306 = vadd.f32 %v1719, %v3305
      %v3307 = vpop.f32.mrf.mxu0
      %v3308 = vadd.f32 %v1723, %v3307
      %v3309 = vpop.f32.mrf.mxu0
      %v3310 = vadd.f32 %v1719, %v3309
      %v3311 = vpop.f32.mrf.mxu0
      %v3312 = vadd.f32 %v1723, %v3311
      %3313 = vmatprep.mubr.bf16.mxu0 %v1525
      %3314 = vmatmul.mubr.bf16.gmra.mxu0 %v1524
      %v3315 = vpop.f32.mrf.mxu0
      %v3316 = vadd.f32 %v1719, %v3315
      %v3317 = vpop.f32.mrf.mxu0
      %v3318 = vadd.f32 %v1723, %v3317
      %v3319 = vpop.f32.mrf.mxu0
      %v3320 = vadd.f32 %v1719, %v3319
      %v3321 = vpop.f32.mrf.mxu0
      %v3322 = vadd.f32 %v1723, %v3321
      %3323 = vmatprep.mubr.bf16.mxu0 %v1527
      %3324 = vmatmul.mubr.bf16.gmra.mxu0 %v1526
      %v3325 = vpop.f32.mrf.mxu0
      %v3326 = vadd.f32 %v1719, %v3325
      %v3327 = vpop.f32.mrf.mxu0
      %v3328 = vadd.f32 %v1723, %v3327
      %v3329 = vpop.f32.mrf.mxu0
      %v3330 = vadd.f32 %v1719, %v3329
      %v3331 = vpop.f32.mrf.mxu0
      %v3332 = vadd.f32 %v1723, %v3331
      %3333 = vmatprep.mubr.bf16.mxu0 %v1529
      %3334 = vmatmul.mubr.bf16.gmra.mxu0 %v1528
      %v3335 = vpop.f32.mrf.mxu0
      %v3336 = vadd.f32 %v1719, %v3335
      %v3337 = vpop.f32.mrf.mxu0
      %v3338 = vadd.f32 %v1723, %v3337
      %v3339 = vpop.f32.mrf.mxu0
      %v3340 = vadd.f32 %v1719, %v3339
      %v3341 = vpop.f32.mrf.mxu0
      %v3342 = vadd.f32 %v1723, %v3341
      %3343 = vmatprep.mubr.bf16.mxu0 %v1531
      %3344 = vmatmul.mubr.bf16.gmra.mxu0 %v1530
      %v3345 = vpop.f32.mrf.mxu0
      %v3346 = vadd.f32 %v1719, %v3345
      %v3347 = vpop.f32.mrf.mxu0
      %v3348 = vadd.f32 %v1723, %v3347
      %v3349 = vpop.f32.mrf.mxu0
      %v3350 = vadd.f32 %v1719, %v3349
      %v3351 = vpop.f32.mrf.mxu0
      %v3352 = vadd.f32 %v1723, %v3351
      %3353 = vmatprep.mubr.bf16.mxu0 %v1533
      %3354 = vmatmul.mubr.bf16.gmra.mxu0 %v1532
      %v3355 = vpop.f32.mrf.mxu0
      %v3356 = vadd.f32 %v1719, %v3355
      %v3357 = vpop.f32.mrf.mxu0
      %v3358 = vadd.f32 %v1723, %v3357
      %v3359 = vpop.f32.mrf.mxu0
      %v3360 = vadd.f32 %v1719, %v3359
      %v3361 = vpop.f32.mrf.mxu0
      %v3362 = vadd.f32 %v1723, %v3361
      %3363 = vmatprep.mubr.bf16.mxu0 %v1535
      %3364 = vmatmul.mubr.bf16.gmra.mxu0 %v1534
      %v3365 = vpop.f32.mrf.mxu0
      %v3366 = vadd.f32 %v1719, %v3365
      %v3367 = vpop.f32.mrf.mxu0
      %v3368 = vadd.f32 %v1723, %v3367
      %v3369 = vpop.f32.mrf.mxu0
      %v3370 = vadd.f32 %v1719, %v3369
      %v3371 = vpop.f32.mrf.mxu0
      %v3372 = vadd.f32 %v1723, %v3371
      %3373 = vmatprep.mubr.bf16.mxu0 %v1537
      %3374 = vmatmul.mubr.bf16.gmra.mxu0 %v1536
      %v3375 = vpop.f32.mrf.mxu0
      %v3376 = vadd.f32 %v1719, %v3375
      %v3377 = vpop.f32.mrf.mxu0
      %v3378 = vadd.f32 %v1723, %v3377
      %v3379 = vpop.f32.mrf.mxu0
      %v3380 = vadd.f32 %v1719, %v3379
      %v3381 = vpop.f32.mrf.mxu0
      %v3382 = vadd.f32 %v1723, %v3381
      %3383 = vmatprep.mubr.bf16.mxu0 %v1539
      %3384 = vmatmul.mubr.bf16.gmra.mxu0 %v1538
      %v3385 = vpop.f32.mrf.mxu0
      %v3386 = vadd.f32 %v1719, %v3385
      %v3387 = vpop.f32.mrf.mxu0
      %v3388 = vadd.f32 %v1723, %v3387
      %v3389 = vpop.f32.mrf.mxu0
      %v3390 = vadd.f32 %v1719, %v3389
      %v3391 = vpop.f32.mrf.mxu0
      %v3392 = vadd.f32 %v1723, %v3391
      %3393 = vmatprep.mubr.bf16.mxu0 %v1541
      %3394 = vmatmul.mubr.bf16.gmra.mxu0 %v1540
      %v3395 = vpop.f32.mrf.mxu0
      %v3396 = vadd.f32 %v1719, %v3395
      %v3397 = vpop.f32.mrf.mxu0
      %v3398 = vadd.f32 %v1723, %v3397
      %v3399 = vpop.f32.mrf.mxu0
      %v3400 = vadd.f32 %v1719, %v3399
      %v3401 = vpop.f32.mrf.mxu0
      %v3402 = vadd.f32 %v1723, %v3401
      %3403 = vmatprep.mubr.bf16.mxu0 %v1543
      %3404 = vmatmul.mubr.bf16.gmra.mxu0 %v1542
      %v3405 = vpop.f32.mrf.mxu0
      %v3406 = vadd.f32 %v1719, %v3405
      %v3407 = vpop.f32.mrf.mxu0
      %v3408 = vadd.f32 %v1723, %v3407
      %v3409 = vpop.f32.mrf.mxu0
      %v3410 = vadd.f32 %v1719, %v3409
      %v3411 = vpop.f32.mrf.mxu0
      %v3412 = vadd.f32 %v1723, %v3411
      %3413 = vmatprep.mubr.bf16.mxu0 %v1545
      %3414 = vmatmul.mubr.bf16.gmra.mxu0 %v1544
      %v3415 = vpop.f32.mrf.mxu0
      %v3416 = vadd.f32 %v1719, %v3415
      %v3417 = vpop.f32.mrf.mxu0
      %v3418 = vadd.f32 %v1723, %v3417
      %v3419 = vpop.f32.mrf.mxu0
      %v3420 = vadd.f32 %v1719, %v3419
      %v3421 = vpop.f32.mrf.mxu0
      %v3422 = vadd.f32 %v1723, %v3421
      %3423 = vmatprep.mubr.bf16.mxu0 %v1547
      %3424 = vmatmul.mubr.bf16.gmra.mxu0 %v1546
      %v3425 = vpop.f32.mrf.mxu0
      %v3426 = vadd.f32 %v1719, %v3425
      %v3427 = vpop.f32.mrf.mxu0
      %v3428 = vadd.f32 %v1723, %v3427
      %v3429 = vpop.f32.mrf.mxu0
      %v3430 = vadd.f32 %v1719, %v3429
      %v3431 = vpop.f32.mrf.mxu0
      %v3432 = vadd.f32 %v1723, %v3431
      %3433 = vmatprep.mubr.bf16.mxu0 %v1549
      %3434 = vmatmul.mubr.bf16.gmra.mxu0 %v1548
      %v3435 = vpop.f32.mrf.mxu0
      %v3436 = vadd.f32 %v1719, %v3435
      %v3437 = vpop.f32.mrf.mxu0
      %v3438 = vadd.f32 %v1723, %v3437
      %v3439 = vpop.f32.mrf.mxu0
      %v3440 = vadd.f32 %v1719, %v3439
      %v3441 = vpop.f32.mrf.mxu0
      %v3442 = vadd.f32 %v1723, %v3441
      %3443 = vmatprep.mubr.bf16.mxu0 %v1551
      %3444 = vmatmul.mubr.bf16.gmra.mxu0 %v1550
      %v3445 = vpop.f32.mrf.mxu0
      %v3446 = vadd.f32 %v1719, %v3445
      %v3447 = vpop.f32.mrf.mxu0
      %v3448 = vadd.f32 %v1723, %v3447
      %v3449 = vpop.f32.mrf.mxu0
      %v3450 = vadd.f32 %v1719, %v3449
      %v3451 = vpop.f32.mrf.mxu0
      %v3452 = vadd.f32 %v1723, %v3451
      %3453 = vmatprep.mubr.bf16.mxu0 %v1553
      %3454 = vmatmul.mubr.bf16.gmra.mxu0 %v1552
      %v3455 = vpop.f32.mrf.mxu0
      %v3456 = vadd.f32 %v1719, %v3455
      %v3457 = vpop.f32.mrf.mxu0
      %v3458 = vadd.f32 %v1723, %v3457
      %v3459 = vpop.f32.mrf.mxu0
      %v3460 = vadd.f32 %v1719, %v3459
      %v3461 = vpop.f32.mrf.mxu0
      %v3462 = vadd.f32 %v1723, %v3461
      %3463 = vmatprep.mubr.bf16.mxu0 %v1555
      %3464 = vmatmul.mubr.bf16.gmra.mxu0 %v1554
      %v3465 = vpop.f32.mrf.mxu0
      %v3466 = vadd.f32 %v1719, %v3465
      %v3467 = vpop.f32.mrf.mxu0
      %v3468 = vadd.f32 %v1723, %v3467
      %v3469 = vpop.f32.mrf.mxu0
      %v3470 = vadd.f32 %v1719, %v3469
      %v3471 = vpop.f32.mrf.mxu0
      %v3472 = vadd.f32 %v1723, %v3471
      %3473 = vmatprep.mubr.bf16.mxu0 %v1557
      %3474 = vmatmul.mubr.bf16.gmra.mxu0 %v1556
      %v3475 = vpop.f32.mrf.mxu0
      %v3476 = vadd.f32 %v1719, %v3475
      %v3477 = vpop.f32.mrf.mxu0
      %v3478 = vadd.f32 %v1723, %v3477
      %v3479 = vpop.f32.mrf.mxu0
      %v3480 = vadd.f32 %v1719, %v3479
      %v3481 = vpop.f32.mrf.mxu0
      %v3482 = vadd.f32 %v1723, %v3481
      %3483 = vmatprep.mubr.bf16.mxu0 %v1559
      %3484 = vmatmul.mubr.bf16.gmra.mxu0 %v1558
      %v3485 = vpop.f32.mrf.mxu0
      %v3486 = vadd.f32 %v1719, %v3485
      %v3487 = vpop.f32.mrf.mxu0
      %v3488 = vadd.f32 %v1723, %v3487
      %v3489 = vpop.f32.mrf.mxu0
      %v3490 = vadd.f32 %v1719, %v3489
      %v3491 = vpop.f32.mrf.mxu0
      %v3492 = vadd.f32 %v1723, %v3491
      %3493 = vmatprep.mubr.bf16.mxu0 %v1561
      %3494 = vmatmul.mubr.bf16.gmra.mxu0 %v1560
      %v3495 = vpop.f32.mrf.mxu0
      %v3496 = vadd.f32 %v1719, %v3495
      %v3497 = vpop.f32.mrf.mxu0
      %v3498 = vadd.f32 %v1723, %v3497
      %v3499 = vpop.f32.mrf.mxu0
      %v3500 = vadd.f32 %v1719, %v3499
      %v3501 = vpop.f32.mrf.mxu0
      %v3502 = vadd.f32 %v1723, %v3501
      %3503 = vdwg.mxu0
      %v3504 = vmul.f32 %v2407, 0.5
      %v3505 = vmul.f32 %v2409, 0.5
      %v3506 = vmul.f32 %v2690, 0.5
      %v3507 = vmul.f32 %v2692, 0.5
      %v3508 = vmul.f32 %v2973, 0.5
      %v3509 = vmul.f32 %v2975, 0.5
      %v3510 = vmul.f32 %v3256, 0.5
      %v3511 = vmul.f32 %v3258, 0.5
      %v3512 = vmul.f32 %v2411, 0.5
      %v3513 = vmul.f32 %v2413, 0.5
      %v3514 = vmul.f32 %v2694, 0.5
      %v3515 = vmul.f32 %v2696, 0.5
      %v3516 = vmul.f32 %v2977, 0.5
      %v3517 = vmul.f32 %v2979, 0.5
      %v3518 = vmul.f32 %v3260, 0.5
      %v3519 = vmul.f32 %v3262, 0.5
      %v3520 = vmul.f32 %v2417, 0.5
      %v3521 = vmul.f32 %v2419, 0.5
      %v3522 = vmul.f32 %v2700, 0.5
      %v3523 = vmul.f32 %v2702, 0.5
      %v3524 = vmul.f32 %v2983, 0.5
      %v3525 = vmul.f32 %v2985, 0.5
      %v3526 = vmul.f32 %v3266, 0.5
      %v3527 = vmul.f32 %v3268, 0.5
      %v3528 = vmul.f32 %v2421, 0.5
      %v3529 = vmul.f32 %v2423, 0.5
      %v3530 = vmul.f32 %v2704, 0.5
      %v3531 = vmul.f32 %v2706, 0.5
      %v3532 = vmul.f32 %v2987, 0.5
      %v3533 = vmul.f32 %v2989, 0.5
      %v3534 = vmul.f32 %v3270, 0.5
      %v3535 = vmul.f32 %v3272, 0.5
      %v3536 = vmul.f32 %v2427, 0.5
      %v3537 = vmul.f32 %v2429, 0.5
      %v3538 = vmul.f32 %v2710, 0.5
      %v3539 = vmul.f32 %v2712, 0.5
      %v3540 = vmul.f32 %v2993, 0.5
      %v3541 = vmul.f32 %v2995, 0.5
      %v3542 = vmul.f32 %v3276, 0.5
      %v3543 = vmul.f32 %v3278, 0.5
      %v3544 = vmul.f32 %v2431, 0.5
      %v3545 = vmul.f32 %v2433, 0.5
      %v3546 = vmul.f32 %v2714, 0.5
      %v3547 = vmul.f32 %v2716, 0.5
      %v3548 = vmul.f32 %v2997, 0.5
      %v3549 = vmul.f32 %v2999, 0.5
      %v3550 = vmul.f32 %v3280, 0.5
      %v3551 = vmul.f32 %v3282, 0.5
      %v3552 = vmul.f32 %v2437, 0.5
      %v3553 = vmul.f32 %v2439, 0.5
      %v3554 = vmul.f32 %v2720, 0.5
      %v3555 = vmul.f32 %v2722, 0.5
      %v3556 = vmul.f32 %v3003, 0.5
      %v3557 = vmul.f32 %v3005, 0.5
      %v3558 = vmul.f32 %v3286, 0.5
      %v3559 = vmul.f32 %v3288, 0.5
      %v3560 = vmul.f32 %v2441, 0.5
      %v3561 = vmul.f32 %v2443, 0.5
      %v3562 = vmul.f32 %v2724, 0.5
      %v3563 = vmul.f32 %v2726, 0.5
      %v3564 = vmul.f32 %v3007, 0.5
      %v3565 = vmul.f32 %v3009, 0.5
      %v3566 = vmul.f32 %v3290, 0.5
      %v3567 = vmul.f32 %v3292, 0.5
      %v3568 = vmul.f32 %v2447, 0.5
      %v3569 = vmul.f32 %v2449, 0.5
      %v3570 = vmul.f32 %v2730, 0.5
      %v3571 = vmul.f32 %v2732, 0.5
      %v3572 = vmul.f32 %v3013, 0.5
      %v3573 = vmul.f32 %v3015, 0.5
      %v3574 = vmul.f32 %v3296, 0.5
      %v3575 = vmul.f32 %v3298, 0.5
      %v3576 = vmul.f32 %v2451, 0.5
      %v3577 = vmul.f32 %v2453, 0.5
      %v3578 = vmul.f32 %v2734, 0.5
      %v3579 = vmul.f32 %v2736, 0.5
      %v3580 = vmul.f32 %v3017, 0.5
      %v3581 = vmul.f32 %v3019, 0.5
      %v3582 = vmul.f32 %v3300, 0.5
      %v3583 = vmul.f32 %v3302, 0.5
      %v3584 = vmul.f32 %v2457, 0.5
      %v3585 = vmul.f32 %v2459, 0.5
      %v3586 = vmul.f32 %v2740, 0.5
      %v3587 = vmul.f32 %v2742, 0.5
      %v3588 = vmul.f32 %v3023, 0.5
      %v3589 = vmul.f32 %v3025, 0.5
      %v3590 = vmul.f32 %v3306, 0.5
      %v3591 = vmul.f32 %v3308, 0.5
      %v3592 = vmul.f32 %v2461, 0.5
      %v3593 = vmul.f32 %v2463, 0.5
      %v3594 = vmul.f32 %v2744, 0.5
      %v3595 = vmul.f32 %v2746, 0.5
      %v3596 = vmul.f32 %v3027, 0.5
      %v3597 = vmul.f32 %v3029, 0.5
      %v3598 = vmul.f32 %v3310, 0.5
      %v3599 = vmul.f32 %v3312, 0.5
      %v3600 = vmul.f32 %v2467, 0.5
      %v3601 = vmul.f32 %v2469, 0.5
      %v3602 = vmul.f32 %v2750, 0.5
      %v3603 = vmul.f32 %v2752, 0.5
      %v3604 = vmul.f32 %v3033, 0.5
      %v3605 = vmul.f32 %v3035, 0.5
      %v3606 = vmul.f32 %v3316, 0.5
      %v3607 = vmul.f32 %v3318, 0.5
      %v3608 = vmul.f32 %v2471, 0.5
      %v3609 = vmul.f32 %v2473, 0.5
      %v3610 = vmul.f32 %v2754, 0.5
      %v3611 = vmul.f32 %v2756, 0.5
      %v3612 = vmul.f32 %v3037, 0.5
      %v3613 = vmul.f32 %v3039, 0.5
      %v3614 = vmul.f32 %v3320, 0.5
      %v3615 = vmul.f32 %v3322, 0.5
      %v3616 = vmul.f32 %v2477, 0.5
      %v3617 = vmul.f32 %v2479, 0.5
      %v3618 = vmul.f32 %v2760, 0.5
      %v3619 = vmul.f32 %v2762, 0.5
      %v3620 = vmul.f32 %v3043, 0.5
      %v3621 = vmul.f32 %v3045, 0.5
      %v3622 = vmul.f32 %v3326, 0.5
      %v3623 = vmul.f32 %v3328, 0.5
      %v3624 = vmul.f32 %v2481, 0.5
      %v3625 = vmul.f32 %v2483, 0.5
      %v3626 = vmul.f32 %v2764, 0.5
      %v3627 = vmul.f32 %v2766, 0.5
      %v3628 = vmul.f32 %v3047, 0.5
      %v3629 = vmul.f32 %v3049, 0.5
      %v3630 = vmul.f32 %v3330, 0.5
      %v3631 = vmul.f32 %v3332, 0.5
      %v3632 = vmul.f32 %v2487, 0.5
      %v3633 = vmul.f32 %v2489, 0.5
      %v3634 = vmul.f32 %v2770, 0.5
      %v3635 = vmul.f32 %v2772, 0.5
      %v3636 = vmul.f32 %v3053, 0.5
      %v3637 = vmul.f32 %v3055, 0.5
      %v3638 = vmul.f32 %v3336, 0.5
      %v3639 = vmul.f32 %v3338, 0.5
      %v3640 = vmul.f32 %v2491, 0.5
      %v3641 = vmul.f32 %v2493, 0.5
      %v3642 = vmul.f32 %v2774, 0.5
      %v3643 = vmul.f32 %v2776, 0.5
      %v3644 = vmul.f32 %v3057, 0.5
      %v3645 = vmul.f32 %v3059, 0.5
      %v3646 = vmul.f32 %v3340, 0.5
      %v3647 = vmul.f32 %v3342, 0.5
      %v3648 = vmul.f32 %v2497, 0.5
      %v3649 = vmul.f32 %v2499, 0.5
      %v3650 = vmul.f32 %v2780, 0.5
      %v3651 = vmul.f32 %v2782, 0.5
      %v3652 = vmul.f32 %v3063, 0.5
      %v3653 = vmul.f32 %v3065, 0.5
      %v3654 = vmul.f32 %v3346, 0.5
      %v3655 = vmul.f32 %v3348, 0.5
      %v3656 = vmul.f32 %v2501, 0.5
      %v3657 = vmul.f32 %v2503, 0.5
      %v3658 = vmul.f32 %v2784, 0.5
      %v3659 = vmul.f32 %v2786, 0.5
      %v3660 = vmul.f32 %v3067, 0.5
      %v3661 = vmul.f32 %v3069, 0.5
      %v3662 = vmul.f32 %v3350, 0.5
      %v3663 = vmul.f32 %v3352, 0.5
      %v3664 = vmul.f32 %v2507, 0.5
      %v3665 = vmul.f32 %v2509, 0.5
      %v3666 = vmul.f32 %v2790, 0.5
      %v3667 = vmul.f32 %v2792, 0.5
      %v3668 = vmul.f32 %v3073, 0.5
      %v3669 = vmul.f32 %v3075, 0.5
      %v3670 = vmul.f32 %v3356, 0.5
      %v3671 = vmul.f32 %v3358, 0.5
      %v3672 = vmul.f32 %v2511, 0.5
      %v3673 = vmul.f32 %v2513, 0.5
      %v3674 = vmul.f32 %v2794, 0.5
      %v3675 = vmul.f32 %v2796, 0.5
      %v3676 = vmul.f32 %v3077, 0.5
      %v3677 = vmul.f32 %v3079, 0.5
      %v3678 = vmul.f32 %v3360, 0.5
      %v3679 = vmul.f32 %v3362, 0.5
      %v3680 = vmul.f32 %v2517, 0.5
      %v3681 = vmul.f32 %v2519, 0.5
      %v3682 = vmul.f32 %v2800, 0.5
      %v3683 = vmul.f32 %v2802, 0.5
      %v3684 = vmul.f32 %v3083, 0.5
      %v3685 = vmul.f32 %v3085, 0.5
      %v3686 = vmul.f32 %v3366, 0.5
      %v3687 = vmul.f32 %v3368, 0.5
      %v3688 = vmul.f32 %v2521, 0.5
      %v3689 = vmul.f32 %v2523, 0.5
      %v3690 = vmul.f32 %v2804, 0.5
      %v3691 = vmul.f32 %v2806, 0.5
      %v3692 = vmul.f32 %v3087, 0.5
      %v3693 = vmul.f32 %v3089, 0.5
      %v3694 = vmul.f32 %v3370, 0.5
      %v3695 = vmul.f32 %v3372, 0.5
      %v3696 = vmul.f32 %v2527, 0.5
      %v3697 = vmul.f32 %v2529, 0.5
      %v3698 = vmul.f32 %v2810, 0.5
      %v3699 = vmul.f32 %v2812, 0.5
      %v3700 = vmul.f32 %v3093, 0.5
      %v3701 = vmul.f32 %v3095, 0.5
      %v3702 = vmul.f32 %v3376, 0.5
      %v3703 = vmul.f32 %v3378, 0.5
      %v3704 = vmul.f32 %v2531, 0.5
      %v3705 = vmul.f32 %v2533, 0.5
      %v3706 = vmul.f32 %v2814, 0.5
      %v3707 = vmul.f32 %v2816, 0.5
      %v3708 = vmul.f32 %v3097, 0.5
      %v3709 = vmul.f32 %v3099, 0.5
      %v3710 = vmul.f32 %v3380, 0.5
      %v3711 = vmul.f32 %v3382, 0.5
      %v3712 = vmul.f32 %v2537, 0.5
      %v3713 = vmul.f32 %v2539, 0.5
      %v3714 = vmul.f32 %v2820, 0.5
      %v3715 = vmul.f32 %v2822, 0.5
      %v3716 = vmul.f32 %v3103, 0.5
      %v3717 = vmul.f32 %v3105, 0.5
      %v3718 = vmul.f32 %v3386, 0.5
      %v3719 = vmul.f32 %v3388, 0.5
      %v3720 = vmul.f32 %v2541, 0.5
      %v3721 = vmul.f32 %v2543, 0.5
      %v3722 = vmul.f32 %v2824, 0.5
      %v3723 = vmul.f32 %v2826, 0.5
      %v3724 = vmul.f32 %v3107, 0.5
      %v3725 = vmul.f32 %v3109, 0.5
      %v3726 = vmul.f32 %v3390, 0.5
      %v3727 = vmul.f32 %v3392, 0.5
      %v3728 = vmul.f32 %v2547, 0.5
      %v3729 = vmul.f32 %v2549, 0.5
      %v3730 = vmul.f32 %v2830, 0.5
      %v3731 = vmul.f32 %v2832, 0.5
      %v3732 = vmul.f32 %v3113, 0.5
      %v3733 = vmul.f32 %v3115, 0.5
      %v3734 = vmul.f32 %v3396, 0.5
      %v3735 = vmul.f32 %v3398, 0.5
      %v3736 = vmul.f32 %v2551, 0.5
      %v3737 = vmul.f32 %v2553, 0.5
      %v3738 = vmul.f32 %v2834, 0.5
      %v3739 = vmul.f32 %v2836, 0.5
      %v3740 = vmul.f32 %v3117, 0.5
      %v3741 = vmul.f32 %v3119, 0.5
      %v3742 = vmul.f32 %v3400, 0.5
      %v3743 = vmul.f32 %v3402, 0.5
      %v3744 = vmul.f32 %v2557, 0.5
      %v3745 = vmul.f32 %v2559, 0.5
      %v3746 = vmul.f32 %v2840, 0.5
      %v3747 = vmul.f32 %v2842, 0.5
      %v3748 = vmul.f32 %v3123, 0.5
      %v3749 = vmul.f32 %v3125, 0.5
      %v3750 = vmul.f32 %v3406, 0.5
      %v3751 = vmul.f32 %v3408, 0.5
      %v3752 = vmul.f32 %v2561, 0.5
      %v3753 = vmul.f32 %v2563, 0.5
      %v3754 = vmul.f32 %v2844, 0.5
      %v3755 = vmul.f32 %v2846, 0.5
      %v3756 = vmul.f32 %v3127, 0.5
      %v3757 = vmul.f32 %v3129, 0.5
      %v3758 = vmul.f32 %v3410, 0.5
      %v3759 = vmul.f32 %v3412, 0.5
      %v3760 = vmul.f32 %v2567, 0.5
      %v3761 = vmul.f32 %v2569, 0.5
      %v3762 = vmul.f32 %v2850, 0.5
      %v3763 = vmul.f32 %v2852, 0.5
      %v3764 = vmul.f32 %v3133, 0.5
      %v3765 = vmul.f32 %v3135, 0.5
      %v3766 = vmul.f32 %v3416, 0.5
      %v3767 = vmul.f32 %v3418, 0.5
      %v3768 = vmul.f32 %v2571, 0.5
      %v3769 = vmul.f32 %v2573, 0.5
      %v3770 = vmul.f32 %v2854, 0.5
      %v3771 = vmul.f32 %v2856, 0.5
      %v3772 = vmul.f32 %v3137, 0.5
      %v3773 = vmul.f32 %v3139, 0.5
      %v3774 = vmul.f32 %v3420, 0.5
      %v3775 = vmul.f32 %v3422, 0.5
      %v3776 = vmul.f32 %v2577, 0.5
      %v3777 = vmul.f32 %v2579, 0.5
      %v3778 = vmul.f32 %v2860, 0.5
      %v3779 = vmul.f32 %v2862, 0.5
      %v3780 = vmul.f32 %v3143, 0.5
      %v3781 = vmul.f32 %v3145, 0.5
      %v3782 = vmul.f32 %v3426, 0.5
      %v3783 = vmul.f32 %v3428, 0.5
      %v3784 = vmul.f32 %v2581, 0.5
      %v3785 = vmul.f32 %v2583, 0.5
      %v3786 = vmul.f32 %v2864, 0.5
      %v3787 = vmul.f32 %v2866, 0.5
      %v3788 = vmul.f32 %v3147, 0.5
      %v3789 = vmul.f32 %v3149, 0.5
      %v3790 = vmul.f32 %v3430, 0.5
      %v3791 = vmul.f32 %v3432, 0.5
      %v3792 = vmul.f32 %v2587, 0.5
      %v3793 = vmul.f32 %v2589, 0.5
      %v3794 = vmul.f32 %v2870, 0.5
      %v3795 = vmul.f32 %v2872, 0.5
      %v3796 = vmul.f32 %v3153, 0.5
      %v3797 = vmul.f32 %v3155, 0.5
      %v3798 = vmul.f32 %v3436, 0.5
      %v3799 = vmul.f32 %v3438, 0.5
      %v3800 = vmul.f32 %v2591, 0.5
      %v3801 = vmul.f32 %v2593, 0.5
      %v3802 = vmul.f32 %v2874, 0.5
      %v3803 = vmul.f32 %v2876, 0.5
      %v3804 = vmul.f32 %v3157, 0.5
      %v3805 = vmul.f32 %v3159, 0.5
      %v3806 = vmul.f32 %v3440, 0.5
      %v3807 = vmul.f32 %v3442, 0.5
      %v3808 = vmul.f32 %v2597, 0.5
      %v3809 = vmul.f32 %v2599, 0.5
      %v3810 = vmul.f32 %v2880, 0.5
      %v3811 = vmul.f32 %v2882, 0.5
      %v3812 = vmul.f32 %v3163, 0.5
      %v3813 = vmul.f32 %v3165, 0.5
      %v3814 = vmul.f32 %v3446, 0.5
      %v3815 = vmul.f32 %v3448, 0.5
      %v3816 = vmul.f32 %v2601, 0.5
      %v3817 = vmul.f32 %v2603, 0.5
      %v3818 = vmul.f32 %v2884, 0.5
      %v3819 = vmul.f32 %v2886, 0.5
      %v3820 = vmul.f32 %v3167, 0.5
      %v3821 = vmul.f32 %v3169, 0.5
      %v3822 = vmul.f32 %v3450, 0.5
      %v3823 = vmul.f32 %v3452, 0.5
      %v3824 = vmul.f32 %v2607, 0.5
      %v3825 = vmul.f32 %v2609, 0.5
      %v3826 = vmul.f32 %v2890, 0.5
      %v3827 = vmul.f32 %v2892, 0.5
      %v3828 = vmul.f32 %v3173, 0.5
      %v3829 = vmul.f32 %v3175, 0.5
      %v3830 = vmul.f32 %v3456, 0.5
      %v3831 = vmul.f32 %v3458, 0.5
      %v3832 = vmul.f32 %v2611, 0.5
      %v3833 = vmul.f32 %v2613, 0.5
      %v3834 = vmul.f32 %v2894, 0.5
      %v3835 = vmul.f32 %v2896, 0.5
      %v3836 = vmul.f32 %v3177, 0.5
      %v3837 = vmul.f32 %v3179, 0.5
      %v3838 = vmul.f32 %v3460, 0.5
      %v3839 = vmul.f32 %v3462, 0.5
      %v3840 = vmul.f32 %v2617, 0.5
      %v3841 = vmul.f32 %v2619, 0.5
      %v3842 = vmul.f32 %v2900, 0.5
      %v3843 = vmul.f32 %v2902, 0.5
      %v3844 = vmul.f32 %v3183, 0.5
      %v3845 = vmul.f32 %v3185, 0.5
      %v3846 = vmul.f32 %v3466, 0.5
      %v3847 = vmul.f32 %v3468, 0.5
      %v3848 = vmul.f32 %v2621, 0.5
      %v3849 = vmul.f32 %v2623, 0.5
      %v3850 = vmul.f32 %v2904, 0.5
      %v3851 = vmul.f32 %v2906, 0.5
      %v3852 = vmul.f32 %v3187, 0.5
      %v3853 = vmul.f32 %v3189, 0.5
      %v3854 = vmul.f32 %v3470, 0.5
      %v3855 = vmul.f32 %v3472, 0.5
      %v3856 = vmul.f32 %v2627, 0.5
      %v3857 = vmul.f32 %v2629, 0.5
      %v3858 = vmul.f32 %v2910, 0.5
      %v3859 = vmul.f32 %v2912, 0.5
      %v3860 = vmul.f32 %v3193, 0.5
      %v3861 = vmul.f32 %v3195, 0.5
      %v3862 = vmul.f32 %v3476, 0.5
      %v3863 = vmul.f32 %v3478, 0.5
      %v3864 = vmul.f32 %v2631, 0.5
      %v3865 = vmul.f32 %v2633, 0.5
      %v3866 = vmul.f32 %v2914, 0.5
      %v3867 = vmul.f32 %v2916, 0.5
      %v3868 = vmul.f32 %v3197, 0.5
      %v3869 = vmul.f32 %v3199, 0.5
      %v3870 = vmul.f32 %v3480, 0.5
      %v3871 = vmul.f32 %v3482, 0.5
      %v3872 = vmul.f32 %v2637, 0.5
      %v3873 = vmul.f32 %v2639, 0.5
      %v3874 = vmul.f32 %v2920, 0.5
      %v3875 = vmul.f32 %v2922, 0.5
      %v3876 = vmul.f32 %v3203, 0.5
      %v3877 = vmul.f32 %v3205, 0.5
      %v3878 = vmul.f32 %v3486, 0.5
      %v3879 = vmul.f32 %v3488, 0.5
      %v3880 = vmul.f32 %v2641, 0.5
      %v3881 = vmul.f32 %v2643, 0.5
      %v3882 = vmul.f32 %v2924, 0.5
      %v3883 = vmul.f32 %v2926, 0.5
      %v3884 = vmul.f32 %v3207, 0.5
      %v3885 = vmul.f32 %v3209, 0.5
      %v3886 = vmul.f32 %v3490, 0.5
      %v3887 = vmul.f32 %v3492, 0.5
      %v3888 = vmul.f32 %v2647, 0.5
      %v3889 = vmul.f32 %v2649, 0.5
      %v3890 = vmul.f32 %v2930, 0.5
      %v3891 = vmul.f32 %v2932, 0.5
      %v3892 = vmul.f32 %v3213, 0.5
      %v3893 = vmul.f32 %v3215, 0.5
      %v3894 = vmul.f32 %v3496, 0.5
      %v3895 = vmul.f32 %v3498, 0.5
      %v3896 = vmul.f32 %v2651, 0.5
      %v3897 = vmul.f32 %v2653, 0.5
      %v3898 = vmul.f32 %v2934, 0.5
      %v3899 = vmul.f32 %v2936, 0.5
      %v3900 = vmul.f32 %v3217, 0.5
      %v3901 = vmul.f32 %v3219, 0.5
      %v3902 = vmul.f32 %v3500, 0.5
      %v3903 = vmul.f32 %v3502, 0.5
      %v3904 = vmul.f32 %v2407, 0.70710677
      %v3905 = vmul.f32 %v2409, 0.70710677
      %v3906 = vmul.f32 %v2690, 0.70710677
      %v3907 = vmul.f32 %v2692, 0.70710677
      %v3908 = vmul.f32 %v2973, 0.70710677
      %v3909 = vmul.f32 %v2975, 0.70710677
      %v3910 = vmul.f32 %v3256, 0.70710677
      %v3911 = vmul.f32 %v3258, 0.70710677
      %v3912 = vmul.f32 %v2411, 0.70710677
      %v3913 = vmul.f32 %v2413, 0.70710677
      %v3914 = vmul.f32 %v2694, 0.70710677
      %v3915 = vmul.f32 %v2696, 0.70710677
      %v3916 = vmul.f32 %v2977, 0.70710677
      %v3917 = vmul.f32 %v2979, 0.70710677
      %v3918 = vmul.f32 %v3260, 0.70710677
      %v3919 = vmul.f32 %v3262, 0.70710677
      %v3920 = vmul.f32 %v2417, 0.70710677
      %v3921 = vmul.f32 %v2419, 0.70710677
      %v3922 = vmul.f32 %v2700, 0.70710677
      %v3923 = vmul.f32 %v2702, 0.70710677
      %v3924 = vmul.f32 %v2983, 0.70710677
      %v3925 = vmul.f32 %v2985, 0.70710677
      %v3926 = vmul.f32 %v3266, 0.70710677
      %v3927 = vmul.f32 %v3268, 0.70710677
      %v3928 = vmul.f32 %v2421, 0.70710677
      %v3929 = vmul.f32 %v2423, 0.70710677
      %v3930 = vmul.f32 %v2704, 0.70710677
      %v3931 = vmul.f32 %v2706, 0.70710677
      %v3932 = vmul.f32 %v2987, 0.70710677
      %v3933 = vmul.f32 %v2989, 0.70710677
      %v3934 = vmul.f32 %v3270, 0.70710677
      %v3935 = vmul.f32 %v3272, 0.70710677
      %v3936 = vmul.f32 %v2427, 0.70710677
      %v3937 = vmul.f32 %v2429, 0.70710677
      %v3938 = vmul.f32 %v2710, 0.70710677
      %v3939 = vmul.f32 %v2712, 0.70710677
      %v3940 = vmul.f32 %v2993, 0.70710677
      %v3941 = vmul.f32 %v2995, 0.70710677
      %v3942 = vmul.f32 %v3276, 0.70710677
      %v3943 = vmul.f32 %v3278, 0.70710677
      %v3944 = vmul.f32 %v2431, 0.70710677
      %v3945 = vmul.f32 %v2433, 0.70710677
      %v3946 = vmul.f32 %v2714, 0.70710677
      %v3947 = vmul.f32 %v2716, 0.70710677
      %v3948 = vmul.f32 %v2997, 0.70710677
      %v3949 = vmul.f32 %v2999, 0.70710677
      %v3950 = vmul.f32 %v3280, 0.70710677
      %v3951 = vmul.f32 %v3282, 0.70710677
      %v3952 = vmul.f32 %v2437, 0.70710677
      %v3953 = vmul.f32 %v2439, 0.70710677
      %v3954 = vmul.f32 %v2720, 0.70710677
      %v3955 = vmul.f32 %v2722, 0.70710677
      %v3956 = vmul.f32 %v3003, 0.70710677
      %v3957 = vmul.f32 %v3005, 0.70710677
      %v3958 = vmul.f32 %v3286, 0.70710677
      %v3959 = vmul.f32 %v3288, 0.70710677
      %v3960 = vmul.f32 %v2441, 0.70710677
      %v3961 = vmul.f32 %v2443, 0.70710677
      %v3962 = vmul.f32 %v2724, 0.70710677
      %v3963 = vmul.f32 %v2726, 0.70710677
      %v3964 = vmul.f32 %v3007, 0.70710677
      %v3965 = vmul.f32 %v3009, 0.70710677
      %v3966 = vmul.f32 %v3290, 0.70710677
      %v3967 = vmul.f32 %v3292, 0.70710677
      %v3968 = vmul.f32 %v2447, 0.70710677
      %v3969 = vmul.f32 %v2449, 0.70710677
      %v3970 = vmul.f32 %v2730, 0.70710677
      %v3971 = vmul.f32 %v2732, 0.70710677
      %v3972 = vmul.f32 %v3013, 0.70710677
      %v3973 = vmul.f32 %v3015, 0.70710677
      %v3974 = vmul.f32 %v3296, 0.70710677
      %v3975 = vmul.f32 %v3298, 0.70710677
      %v3976 = vmul.f32 %v2451, 0.70710677
      %v3977 = vmul.f32 %v2453, 0.70710677
      %v3978 = vmul.f32 %v2734, 0.70710677
      %v3979 = vmul.f32 %v2736, 0.70710677
      %v3980 = vmul.f32 %v3017, 0.70710677
      %v3981 = vmul.f32 %v3019, 0.70710677
      %v3982 = vmul.f32 %v3300, 0.70710677
      %v3983 = vmul.f32 %v3302, 0.70710677
      %v3984 = vmul.f32 %v2457, 0.70710677
      %v3985 = vmul.f32 %v2459, 0.70710677
      %v3986 = vmul.f32 %v2740, 0.70710677
      %v3987 = vmul.f32 %v2742, 0.70710677
      %v3988 = vmul.f32 %v3023, 0.70710677
      %v3989 = vmul.f32 %v3025, 0.70710677
      %v3990 = vmul.f32 %v3306, 0.70710677
      %v3991 = vmul.f32 %v3308, 0.70710677
      %v3992 = vmul.f32 %v2461, 0.70710677
      %v3993 = vmul.f32 %v2463, 0.70710677
      %v3994 = vmul.f32 %v2744, 0.70710677
      %v3995 = vmul.f32 %v2746, 0.70710677
      %v3996 = vmul.f32 %v3027, 0.70710677
      %v3997 = vmul.f32 %v3029, 0.70710677
      %v3998 = vmul.f32 %v3310, 0.70710677
      %v3999 = vmul.f32 %v3312, 0.70710677
      %v4000 = vmul.f32 %v2467, 0.70710677
      %v4001 = vmul.f32 %v2469, 0.70710677
      %v4002 = vmul.f32 %v2750, 0.70710677
      %v4003 = vmul.f32 %v2752, 0.70710677
      %v4004 = vmul.f32 %v3033, 0.70710677
      %v4005 = vmul.f32 %v3035, 0.70710677
      %v4006 = vmul.f32 %v3316, 0.70710677
      %v4007 = vmul.f32 %v3318, 0.70710677
      %v4008 = vmul.f32 %v2471, 0.70710677
      %v4009 = vmul.f32 %v2473, 0.70710677
      %v4010 = vmul.f32 %v2754, 0.70710677
      %v4011 = vmul.f32 %v2756, 0.70710677
      %v4012 = vmul.f32 %v3037, 0.70710677
      %v4013 = vmul.f32 %v3039, 0.70710677
      %v4014 = vmul.f32 %v3320, 0.70710677
      %v4015 = vmul.f32 %v3322, 0.70710677
      %v4016 = vmul.f32 %v2477, 0.70710677
      %v4017 = vmul.f32 %v2479, 0.70710677
      %v4018 = vmul.f32 %v2760, 0.70710677
      %v4019 = vmul.f32 %v2762, 0.70710677
      %v4020 = vmul.f32 %v3043, 0.70710677
      %v4021 = vmul.f32 %v3045, 0.70710677
      %v4022 = vmul.f32 %v3326, 0.70710677
      %v4023 = vmul.f32 %v3328, 0.70710677
      %v4024 = vmul.f32 %v2481, 0.70710677
      %v4025 = vmul.f32 %v2483, 0.70710677
      %v4026 = vmul.f32 %v2764, 0.70710677
      %v4027 = vmul.f32 %v2766, 0.70710677
      %v4028 = vmul.f32 %v3047, 0.70710677
      %v4029 = vmul.f32 %v3049, 0.70710677
      %v4030 = vmul.f32 %v3330, 0.70710677
      %v4031 = vmul.f32 %v3332, 0.70710677
      %v4032 = vmul.f32 %v2487, 0.70710677
      %v4033 = vmul.f32 %v2489, 0.70710677
      %v4034 = vmul.f32 %v2770, 0.70710677
      %v4035 = vmul.f32 %v2772, 0.70710677
      %v4036 = vmul.f32 %v3053, 0.70710677
      %v4037 = vmul.f32 %v3055, 0.70710677
      %v4038 = vmul.f32 %v3336, 0.70710677
      %v4039 = vmul.f32 %v3338, 0.70710677
      %v4040 = vmul.f32 %v2491, 0.70710677
      %v4041 = vmul.f32 %v2493, 0.70710677
      %v4042 = vmul.f32 %v2774, 0.70710677
      %v4043 = vmul.f32 %v2776, 0.70710677
      %v4044 = vmul.f32 %v3057, 0.70710677
      %v4045 = vmul.f32 %v3059, 0.70710677
      %v4046 = vmul.f32 %v3340, 0.70710677
      %v4047 = vmul.f32 %v3342, 0.70710677
      %v4048 = vmul.f32 %v2497, 0.70710677
      %v4049 = vmul.f32 %v2499, 0.70710677
      %v4050 = vmul.f32 %v2780, 0.70710677
      %v4051 = vmul.f32 %v2782, 0.70710677
      %v4052 = vmul.f32 %v3063, 0.70710677
      %v4053 = vmul.f32 %v3065, 0.70710677
      %v4054 = vmul.f32 %v3346, 0.70710677
      %v4055 = vmul.f32 %v3348, 0.70710677
      %v4056 = vmul.f32 %v2501, 0.70710677
      %v4057 = vmul.f32 %v2503, 0.70710677
      %v4058 = vmul.f32 %v2784, 0.70710677
      %v4059 = vmul.f32 %v2786, 0.70710677
      %v4060 = vmul.f32 %v3067, 0.70710677
      %v4061 = vmul.f32 %v3069, 0.70710677
      %v4062 = vmul.f32 %v3350, 0.70710677
      %v4063 = vmul.f32 %v3352, 0.70710677
      %v4064 = vmul.f32 %v2507, 0.70710677
      %v4065 = vmul.f32 %v2509, 0.70710677
      %v4066 = vmul.f32 %v2790, 0.70710677
      %v4067 = vmul.f32 %v2792, 0.70710677
      %v4068 = vmul.f32 %v3073, 0.70710677
      %v4069 = vmul.f32 %v3075, 0.70710677
      %v4070 = vmul.f32 %v3356, 0.70710677
      %v4071 = vmul.f32 %v3358, 0.70710677
      %v4072 = vmul.f32 %v2511, 0.70710677
      %v4073 = vmul.f32 %v2513, 0.70710677
      %v4074 = vmul.f32 %v2794, 0.70710677
      %v4075 = vmul.f32 %v2796, 0.70710677
      %v4076 = vmul.f32 %v3077, 0.70710677
      %v4077 = vmul.f32 %v3079, 0.70710677
      %v4078 = vmul.f32 %v3360, 0.70710677
      %v4079 = vmul.f32 %v3362, 0.70710677
      %v4080 = vmul.f32 %v2517, 0.70710677
      %v4081 = vmul.f32 %v2519, 0.70710677
      %v4082 = vmul.f32 %v2800, 0.70710677
      %v4083 = vmul.f32 %v2802, 0.70710677
      %v4084 = vmul.f32 %v3083, 0.70710677
      %v4085 = vmul.f32 %v3085, 0.70710677
      %v4086 = vmul.f32 %v3366, 0.70710677
      %v4087 = vmul.f32 %v3368, 0.70710677
      %v4088 = vmul.f32 %v2521, 0.70710677
      %v4089 = vmul.f32 %v2523, 0.70710677
      %v4090 = vmul.f32 %v2804, 0.70710677
      %v4091 = vmul.f32 %v2806, 0.70710677
      %v4092 = vmul.f32 %v3087, 0.70710677
      %v4093 = vmul.f32 %v3089, 0.70710677
      %v4094 = vmul.f32 %v3370, 0.70710677
      %v4095 = vmul.f32 %v3372, 0.70710677
      %v4096 = vmul.f32 %v2527, 0.70710677
      %v4097 = vmul.f32 %v2529, 0.70710677
      %v4098 = vmul.f32 %v2810, 0.70710677
      %v4099 = vmul.f32 %v2812, 0.70710677
      %v4100 = vmul.f32 %v3093, 0.70710677
      %v4101 = vmul.f32 %v3095, 0.70710677
      %v4102 = vmul.f32 %v3376, 0.70710677
      %v4103 = vmul.f32 %v3378, 0.70710677
      %v4104 = vmul.f32 %v2531, 0.70710677
      %v4105 = vmul.f32 %v2533, 0.70710677
      %v4106 = vmul.f32 %v2814, 0.70710677
      %v4107 = vmul.f32 %v2816, 0.70710677
      %v4108 = vmul.f32 %v3097, 0.70710677
      %v4109 = vmul.f32 %v3099, 0.70710677
      %v4110 = vmul.f32 %v3380, 0.70710677
      %v4111 = vmul.f32 %v3382, 0.70710677
      %v4112 = vmul.f32 %v2537, 0.70710677
      %v4113 = vmul.f32 %v2539, 0.70710677
      %v4114 = vmul.f32 %v2820, 0.70710677
      %v4115 = vmul.f32 %v2822, 0.70710677
      %v4116 = vmul.f32 %v3103, 0.70710677
      %v4117 = vmul.f32 %v3105, 0.70710677
      %v4118 = vmul.f32 %v3386, 0.70710677
      %v4119 = vmul.f32 %v3388, 0.70710677
      %v4120 = vmul.f32 %v2541, 0.70710677
      %v4121 = vmul.f32 %v2543, 0.70710677
      %v4122 = vmul.f32 %v2824, 0.70710677
      %v4123 = vmul.f32 %v2826, 0.70710677
      %v4124 = vmul.f32 %v3107, 0.70710677
      %v4125 = vmul.f32 %v3109, 0.70710677
      %v4126 = vmul.f32 %v3390, 0.70710677
      %v4127 = vmul.f32 %v3392, 0.70710677
      %v4128 = vmul.f32 %v2547, 0.70710677
      %v4129 = vmul.f32 %v2549, 0.70710677
      %v4130 = vmul.f32 %v2830, 0.70710677
      %v4131 = vmul.f32 %v2832, 0.70710677
      %v4132 = vmul.f32 %v3113, 0.70710677
      %v4133 = vmul.f32 %v3115, 0.70710677
      %v4134 = vmul.f32 %v3396, 0.70710677
      %v4135 = vmul.f32 %v3398, 0.70710677
      %v4136 = vmul.f32 %v2551, 0.70710677
      %v4137 = vmul.f32 %v2553, 0.70710677
      %v4138 = vmul.f32 %v2834, 0.70710677
      %v4139 = vmul.f32 %v2836, 0.70710677
      %v4140 = vmul.f32 %v3117, 0.70710677
      %v4141 = vmul.f32 %v3119, 0.70710677
      %v4142 = vmul.f32 %v3400, 0.70710677
      %v4143 = vmul.f32 %v3402, 0.70710677
      %v4144 = vmul.f32 %v2557, 0.70710677
      %v4145 = vmul.f32 %v2559, 0.70710677
      %v4146 = vmul.f32 %v2840, 0.70710677
      %v4147 = vmul.f32 %v2842, 0.70710677
      %v4148 = vmul.f32 %v3123, 0.70710677
      %v4149 = vmul.f32 %v3125, 0.70710677
      %v4150 = vmul.f32 %v3406, 0.70710677
      %v4151 = vmul.f32 %v3408, 0.70710677
      %v4152 = vmul.f32 %v2561, 0.70710677
      %v4153 = vmul.f32 %v2563, 0.70710677
      %v4154 = vmul.f32 %v2844, 0.70710677
      %v4155 = vmul.f32 %v2846, 0.70710677
      %v4156 = vmul.f32 %v3127, 0.70710677
      %v4157 = vmul.f32 %v3129, 0.70710677
      %v4158 = vmul.f32 %v3410, 0.70710677
      %v4159 = vmul.f32 %v3412, 0.70710677
      %v4160 = vmul.f32 %v2567, 0.70710677
      %v4161 = vmul.f32 %v2569, 0.70710677
      %v4162 = vmul.f32 %v2850, 0.70710677
      %v4163 = vmul.f32 %v2852, 0.70710677
      %v4164 = vmul.f32 %v3133, 0.70710677
      %v4165 = vmul.f32 %v3135, 0.70710677
      %v4166 = vmul.f32 %v3416, 0.70710677
      %v4167 = vmul.f32 %v3418, 0.70710677
      %v4168 = vmul.f32 %v2571, 0.70710677
      %v4169 = vmul.f32 %v2573, 0.70710677
      %v4170 = vmul.f32 %v2854, 0.70710677
      %v4171 = vmul.f32 %v2856, 0.70710677
      %v4172 = vmul.f32 %v3137, 0.70710677
      %v4173 = vmul.f32 %v3139, 0.70710677
      %v4174 = vmul.f32 %v3420, 0.70710677
      %v4175 = vmul.f32 %v3422, 0.70710677
      %v4176 = vmul.f32 %v2577, 0.70710677
      %v4177 = vmul.f32 %v2579, 0.70710677
      %v4178 = vmul.f32 %v2860, 0.70710677
      %v4179 = vmul.f32 %v2862, 0.70710677
      %v4180 = vmul.f32 %v3143, 0.70710677
      %v4181 = vmul.f32 %v3145, 0.70710677
      %v4182 = vmul.f32 %v3426, 0.70710677
      %v4183 = vmul.f32 %v3428, 0.70710677
      %v4184 = vmul.f32 %v2581, 0.70710677
      %v4185 = vmul.f32 %v2583, 0.70710677
      %v4186 = vmul.f32 %v2864, 0.70710677
      %v4187 = vmul.f32 %v2866, 0.70710677
      %v4188 = vmul.f32 %v3147, 0.70710677
      %v4189 = vmul.f32 %v3149, 0.70710677
      %v4190 = vmul.f32 %v3430, 0.70710677
      %v4191 = vmul.f32 %v3432, 0.70710677
      %v4192 = vmul.f32 %v2587, 0.70710677
      %v4193 = vmul.f32 %v2589, 0.70710677
      %v4194 = vmul.f32 %v2870, 0.70710677
      %v4195 = vmul.f32 %v2872, 0.70710677
      %v4196 = vmul.f32 %v3153, 0.70710677
      %v4197 = vmul.f32 %v3155, 0.70710677
      %v4198 = vmul.f32 %v3436, 0.70710677
      %v4199 = vmul.f32 %v3438, 0.70710677
      %v4200 = vmul.f32 %v2591, 0.70710677
      %v4201 = vmul.f32 %v2593, 0.70710677
      %v4202 = vmul.f32 %v2874, 0.70710677
      %v4203 = vmul.f32 %v2876, 0.70710677
      %v4204 = vmul.f32 %v3157, 0.70710677
      %v4205 = vmul.f32 %v3159, 0.70710677
      %v4206 = vmul.f32 %v3440, 0.70710677
      %v4207 = vmul.f32 %v3442, 0.70710677
      %v4208 = vmul.f32 %v2597, 0.70710677
      %v4209 = vmul.f32 %v2599, 0.70710677
      %v4210 = vmul.f32 %v2880, 0.70710677
      %v4211 = vmul.f32 %v2882, 0.70710677
      %v4212 = vmul.f32 %v3163, 0.70710677
      %v4213 = vmul.f32 %v3165, 0.70710677
      %v4214 = vmul.f32 %v3446, 0.70710677
      %v4215 = vmul.f32 %v3448, 0.70710677
      %v4216 = vmul.f32 %v2601, 0.70710677
      %v4217 = vmul.f32 %v2603, 0.70710677
      %v4218 = vmul.f32 %v2884, 0.70710677
      %v4219 = vmul.f32 %v2886, 0.70710677
      %v4220 = vmul.f32 %v3167, 0.70710677
      %v4221 = vmul.f32 %v3169, 0.70710677
      %v4222 = vmul.f32 %v3450, 0.70710677
      %v4223 = vmul.f32 %v3452, 0.70710677
      %v4224 = vmul.f32 %v2607, 0.70710677
      %v4225 = vmul.f32 %v2609, 0.70710677
      %v4226 = vmul.f32 %v2890, 0.70710677
      %v4227 = vmul.f32 %v2892, 0.70710677
      %v4228 = vmul.f32 %v3173, 0.70710677
      %v4229 = vmul.f32 %v3175, 0.70710677
      %v4230 = vmul.f32 %v3456, 0.70710677
      %v4231 = vmul.f32 %v3458, 0.70710677
      %v4232 = vmul.f32 %v2611, 0.70710677
      %v4233 = vmul.f32 %v2613, 0.70710677
      %v4234 = vmul.f32 %v2894, 0.70710677
      %v4235 = vmul.f32 %v2896, 0.70710677
      %v4236 = vmul.f32 %v3177, 0.70710677
      %v4237 = vmul.f32 %v3179, 0.70710677
      %v4238 = vmul.f32 %v3460, 0.70710677
      %v4239 = vmul.f32 %v3462, 0.70710677
      %v4240 = vmul.f32 %v2617, 0.70710677
      %v4241 = vmul.f32 %v2619, 0.70710677
      %v4242 = vmul.f32 %v2900, 0.70710677
      %v4243 = vmul.f32 %v2902, 0.70710677
      %v4244 = vmul.f32 %v3183, 0.70710677
      %v4245 = vmul.f32 %v3185, 0.70710677
      %v4246 = vmul.f32 %v3466, 0.70710677
      %v4247 = vmul.f32 %v3468, 0.70710677
      %v4248 = vmul.f32 %v2621, 0.70710677
      %v4249 = vmul.f32 %v2623, 0.70710677
      %v4250 = vmul.f32 %v2904, 0.70710677
      %v4251 = vmul.f32 %v2906, 0.70710677
      %v4252 = vmul.f32 %v3187, 0.70710677
      %v4253 = vmul.f32 %v3189, 0.70710677
      %v4254 = vmul.f32 %v3470, 0.70710677
      %v4255 = vmul.f32 %v3472, 0.70710677
      %v4256 = vmul.f32 %v2627, 0.70710677
      %v4257 = vmul.f32 %v2629, 0.70710677
      %v4258 = vmul.f32 %v2910, 0.70710677
      %v4259 = vmul.f32 %v2912, 0.70710677
      %v4260 = vmul.f32 %v3193, 0.70710677
      %v4261 = vmul.f32 %v3195, 0.70710677
      %v4262 = vmul.f32 %v3476, 0.70710677
      %v4263 = vmul.f32 %v3478, 0.70710677
      %v4264 = vmul.f32 %v2631, 0.70710677
      %v4265 = vmul.f32 %v2633, 0.70710677
      %v4266 = vmul.f32 %v2914, 0.70710677
      %v4267 = vmul.f32 %v2916, 0.70710677
      %v4268 = vmul.f32 %v3197, 0.70710677
      %v4269 = vmul.f32 %v3199, 0.70710677
      %v4270 = vmul.f32 %v3480, 0.70710677
      %v4271 = vmul.f32 %v3482, 0.70710677
      %v4272 = vmul.f32 %v2637, 0.70710677
      %v4273 = vmul.f32 %v2639, 0.70710677
      %v4274 = vmul.f32 %v2920, 0.70710677
      %v4275 = vmul.f32 %v2922, 0.70710677
      %v4276 = vmul.f32 %v3203, 0.70710677
      %v4277 = vmul.f32 %v3205, 0.70710677
      %v4278 = vmul.f32 %v3486, 0.70710677
      %v4279 = vmul.f32 %v3488, 0.70710677
      %v4280 = vmul.f32 %v2641, 0.70710677
      %v4281 = vmul.f32 %v2643, 0.70710677
      %v4282 = vmul.f32 %v2924, 0.70710677
      %v4283 = vmul.f32 %v2926, 0.70710677
      %v4284 = vmul.f32 %v3207, 0.70710677
      %v4285 = vmul.f32 %v3209, 0.70710677
      %v4286 = vmul.f32 %v3490, 0.70710677
      %v4287 = vmul.f32 %v3492, 0.70710677
      %v4288 = vmul.f32 %v2647, 0.70710677
      %v4289 = vmul.f32 %v2649, 0.70710677
      %v4290 = vmul.f32 %v2930, 0.70710677
      %v4291 = vmul.f32 %v2932, 0.70710677
      %v4292 = vmul.f32 %v3213, 0.70710677
      %v4293 = vmul.f32 %v3215, 0.70710677
      %v4294 = vmul.f32 %v3496, 0.70710677
      %v4295 = vmul.f32 %v3498, 0.70710677
      %v4296 = vmul.f32 %v2651, 0.70710677
      %v4297 = vmul.f32 %v2653, 0.70710677
      %v4298 = vmul.f32 %v2934, 0.70710677
      %v4299 = vmul.f32 %v2936, 0.70710677
      %v4300 = vmul.f32 %v3217, 0.70710677
      %v4301 = vmul.f32 %v3219, 0.70710677
      %v4302 = vmul.f32 %v3500, 0.70710677
      %v4303 = vmul.f32 %v3502, 0.70710677
      %v4304 = verf.f32.pop %v3904
      %v4305 = verf.f32.pop %v3905
      %v4306 = verf.f32.pop %v3906
      %v4307 = verf.f32.pop %v3907
      %v4308 = verf.f32.pop %v3908
      %v4309 = verf.f32.pop %v3909
      %v4310 = verf.f32.pop %v3910
      %v4311 = verf.f32.pop %v3911
      %v4312 = verf.f32.pop %v3912
      %v4313 = verf.f32.pop %v3913
      %v4314 = verf.f32.pop %v3914
      %v4315 = verf.f32.pop %v3915
      %v4316 = verf.f32.pop %v3916
      %v4317 = verf.f32.pop %v3917
      %v4318 = verf.f32.pop %v3918
      %v4319 = verf.f32.pop %v3919
      %v4320 = verf.f32.pop %v3920
      %v4321 = verf.f32.pop %v3921
      %v4322 = verf.f32.pop %v3922
      %v4323 = verf.f32.pop %v3923
      %v4324 = verf.f32.pop %v3924
      %v4325 = verf.f32.pop %v3925
      %v4326 = verf.f32.pop %v3926
      %v4327 = verf.f32.pop %v3927
      %v4328 = verf.f32.pop %v3928
      %v4329 = verf.f32.pop %v3929
      %v4330 = verf.f32.pop %v3930
      %v4331 = verf.f32.pop %v3931
      %v4332 = verf.f32.pop %v3932
      %v4333 = verf.f32.pop %v3933
      %v4334 = verf.f32.pop %v3934
      %v4335 = verf.f32.pop %v3935
      %v4336 = verf.f32.pop %v3936
      %v4337 = verf.f32.pop %v3937
      %v4338 = verf.f32.pop %v3938
      %v4339 = verf.f32.pop %v3939
      %v4340 = verf.f32.pop %v3940
      %v4341 = verf.f32.pop %v3941
      %v4342 = verf.f32.pop %v3942
      %v4343 = verf.f32.pop %v3943
      %v4344 = verf.f32.pop %v3944
      %v4345 = verf.f32.pop %v3945
      %v4346 = verf.f32.pop %v3946
      %v4347 = verf.f32.pop %v3947
      %v4348 = verf.f32.pop %v3948
      %v4349 = verf.f32.pop %v3949
      %v4350 = verf.f32.pop %v3950
      %v4351 = verf.f32.pop %v3951
      %v4352 = verf.f32.pop %v3952
      %v4353 = verf.f32.pop %v3953
      %v4354 = verf.f32.pop %v3954
      %v4355 = verf.f32.pop %v3955
      %v4356 = verf.f32.pop %v3956
      %v4357 = verf.f32.pop %v3957
      %v4358 = verf.f32.pop %v3958
      %v4359 = verf.f32.pop %v3959
      %v4360 = verf.f32.pop %v3960
      %v4361 = verf.f32.pop %v3961
      %v4362 = verf.f32.pop %v3962
      %v4363 = verf.f32.pop %v3963
      %v4364 = verf.f32.pop %v3964
      %v4365 = verf.f32.pop %v3965
      %v4366 = verf.f32.pop %v3966
      %v4367 = verf.f32.pop %v3967
      %v4368 = verf.f32.pop %v3968
      %v4369 = verf.f32.pop %v3969
      %v4370 = verf.f32.pop %v3970
      %v4371 = verf.f32.pop %v3971
      %v4372 = verf.f32.pop %v3972
      %v4373 = verf.f32.pop %v3973
      %v4374 = verf.f32.pop %v3974
      %v4375 = verf.f32.pop %v3975
      %v4376 = verf.f32.pop %v3976
      %v4377 = verf.f32.pop %v3977
      %v4378 = verf.f32.pop %v3978
      %v4379 = verf.f32.pop %v3979
      %v4380 = verf.f32.pop %v3980
      %v4381 = verf.f32.pop %v3981
      %v4382 = verf.f32.pop %v3982
      %v4383 = verf.f32.pop %v3983
      %v4384 = verf.f32.pop %v3984
      %v4385 = verf.f32.pop %v3985
      %v4386 = verf.f32.pop %v3986
      %v4387 = verf.f32.pop %v3987
      %v4388 = verf.f32.pop %v3988
      %v4389 = verf.f32.pop %v3989
      %v4390 = verf.f32.pop %v3990
      %v4391 = verf.f32.pop %v3991
      %v4392 = verf.f32.pop %v3992
      %v4393 = verf.f32.pop %v3993
      %v4394 = verf.f32.pop %v3994
      %v4395 = verf.f32.pop %v3995
      %v4396 = verf.f32.pop %v3996
      %v4397 = verf.f32.pop %v3997
      %v4398 = verf.f32.pop %v3998
      %v4399 = verf.f32.pop %v3999
      %v4400 = verf.f32.pop %v4000
      %v4401 = verf.f32.pop %v4001
      %v4402 = verf.f32.pop %v4002
      %v4403 = verf.f32.pop %v4003
      %v4404 = verf.f32.pop %v4004
      %v4405 = verf.f32.pop %v4005
      %v4406 = verf.f32.pop %v4006
      %v4407 = verf.f32.pop %v4007
      %v4408 = verf.f32.pop %v4008
      %v4409 = verf.f32.pop %v4009
      %v4410 = verf.f32.pop %v4010
      %v4411 = verf.f32.pop %v4011
      %v4412 = verf.f32.pop %v4012
      %v4413 = verf.f32.pop %v4013
      %v4414 = verf.f32.pop %v4014
      %v4415 = verf.f32.pop %v4015
      %v4416 = verf.f32.pop %v4016
      %v4417 = verf.f32.pop %v4017
      %v4418 = verf.f32.pop %v4018
      %v4419 = verf.f32.pop %v4019
      %v4420 = verf.f32.pop %v4020
      %v4421 = verf.f32.pop %v4021
      %v4422 = verf.f32.pop %v4022
      %v4423 = verf.f32.pop %v4023
      %v4424 = verf.f32.pop %v4024
      %v4425 = verf.f32.pop %v4025
      %v4426 = verf.f32.pop %v4026
      %v4427 = verf.f32.pop %v4027
      %v4428 = verf.f32.pop %v4028
      %v4429 = verf.f32.pop %v4029
      %v4430 = verf.f32.pop %v4030
      %v4431 = verf.f32.pop %v4031
      %v4432 = verf.f32.pop %v4032
      %v4433 = verf.f32.pop %v4033
      %v4434 = verf.f32.pop %v4034
      %v4435 = verf.f32.pop %v4035
      %v4436 = verf.f32.pop %v4036
      %v4437 = verf.f32.pop %v4037
      %v4438 = verf.f32.pop %v4038
      %v4439 = verf.f32.pop %v4039
      %v4440 = verf.f32.pop %v4040
      %v4441 = verf.f32.pop %v4041
      %v4442 = verf.f32.pop %v4042
      %v4443 = verf.f32.pop %v4043
      %v4444 = verf.f32.pop %v4044
      %v4445 = verf.f32.pop %v4045
      %v4446 = verf.f32.pop %v4046
      %v4447 = verf.f32.pop %v4047
      %v4448 = verf.f32.pop %v4048
      %v4449 = verf.f32.pop %v4049
      %v4450 = verf.f32.pop %v4050
      %v4451 = verf.f32.pop %v4051
      %v4452 = verf.f32.pop %v4052
      %v4453 = verf.f32.pop %v4053
      %v4454 = verf.f32.pop %v4054
      %v4455 = verf.f32.pop %v4055
      %v4456 = verf.f32.pop %v4056
      %v4457 = verf.f32.pop %v4057
      %v4458 = verf.f32.pop %v4058
      %v4459 = verf.f32.pop %v4059
      %v4460 = verf.f32.pop %v4060
      %v4461 = verf.f32.pop %v4061
      %v4462 = verf.f32.pop %v4062
      %v4463 = verf.f32.pop %v4063
      %v4464 = verf.f32.pop %v4064
      %v4465 = verf.f32.pop %v4065
      %v4466 = verf.f32.pop %v4066
      %v4467 = verf.f32.pop %v4067
      %v4468 = verf.f32.pop %v4068
      %v4469 = verf.f32.pop %v4069
      %v4470 = verf.f32.pop %v4070
      %v4471 = verf.f32.pop %v4071
      %v4472 = verf.f32.pop %v4072
      %v4473 = verf.f32.pop %v4073
      %v4474 = verf.f32.pop %v4074
      %v4475 = verf.f32.pop %v4075
      %v4476 = verf.f32.pop %v4076
      %v4477 = verf.f32.pop %v4077
      %v4478 = verf.f32.pop %v4078
      %v4479 = verf.f32.pop %v4079
      %v4480 = verf.f32.pop %v4080
      %v4481 = verf.f32.pop %v4081
      %v4482 = verf.f32.pop %v4082
      %v4483 = verf.f32.pop %v4083
      %v4484 = verf.f32.pop %v4084
      %v4485 = verf.f32.pop %v4085
      %v4486 = verf.f32.pop %v4086
      %v4487 = verf.f32.pop %v4087
      %v4488 = verf.f32.pop %v4088
      %v4489 = verf.f32.pop %v4089
      %v4490 = verf.f32.pop %v4090
      %v4491 = verf.f32.pop %v4091
      %v4492 = verf.f32.pop %v4092
      %v4493 = verf.f32.pop %v4093
      %v4494 = verf.f32.pop %v4094
      %v4495 = verf.f32.pop %v4095
      %v4496 = verf.f32.pop %v4096
      %v4497 = verf.f32.pop %v4097
      %v4498 = verf.f32.pop %v4098
      %v4499 = verf.f32.pop %v4099
      %v4500 = verf.f32.pop %v4100
      %v4501 = verf.f32.pop %v4101
      %v4502 = verf.f32.pop %v4102
      %v4503 = verf.f32.pop %v4103
      %v4504 = verf.f32.pop %v4104
      %v4505 = verf.f32.pop %v4105
      %v4506 = verf.f32.pop %v4106
      %v4507 = verf.f32.pop %v4107
      %v4508 = verf.f32.pop %v4108
      %v4509 = verf.f32.pop %v4109
      %v4510 = verf.f32.pop %v4110
      %v4511 = verf.f32.pop %v4111
      %v4512 = verf.f32.pop %v4112
      %v4513 = verf.f32.pop %v4113
      %v4514 = verf.f32.pop %v4114
      %v4515 = verf.f32.pop %v4115
      %v4516 = verf.f32.pop %v4116
      %v4517 = verf.f32.pop %v4117
      %v4518 = verf.f32.pop %v4118
      %v4519 = verf.f32.pop %v4119
      %v4520 = verf.f32.pop %v4120
      %v4521 = verf.f32.pop %v4121
      %v4522 = verf.f32.pop %v4122
      %v4523 = verf.f32.pop %v4123
      %v4524 = verf.f32.pop %v4124
      %v4525 = verf.f32.pop %v4125
      %v4526 = verf.f32.pop %v4126
      %v4527 = verf.f32.pop %v4127
      %v4528 = verf.f32.pop %v4128
      %v4529 = verf.f32.pop %v4129
      %v4530 = verf.f32.pop %v4130
      %v4531 = verf.f32.pop %v4131
      %v4532 = verf.f32.pop %v4132
      %v4533 = verf.f32.pop %v4133
      %v4534 = verf.f32.pop %v4134
      %v4535 = verf.f32.pop %v4135
      %v4536 = verf.f32.pop %v4136
      %v4537 = verf.f32.pop %v4137
      %v4538 = verf.f32.pop %v4138
      %v4539 = verf.f32.pop %v4139
      %v4540 = verf.f32.pop %v4140
      %v4541 = verf.f32.pop %v4141
      %v4542 = verf.f32.pop %v4142
      %v4543 = verf.f32.pop %v4143
      %v4544 = verf.f32.pop %v4144
      %v4545 = verf.f32.pop %v4145
      %v4546 = verf.f32.pop %v4146
      %v4547 = verf.f32.pop %v4147
      %v4548 = verf.f32.pop %v4148
      %v4549 = verf.f32.pop %v4149
      %v4550 = verf.f32.pop %v4150
      %v4551 = verf.f32.pop %v4151
      %v4552 = verf.f32.pop %v4152
      %v4553 = verf.f32.pop %v4153
      %v4554 = verf.f32.pop %v4154
      %v4555 = verf.f32.pop %v4155
      %v4556 = verf.f32.pop %v4156
      %v4557 = verf.f32.pop %v4157
      %v4558 = verf.f32.pop %v4158
      %v4559 = verf.f32.pop %v4159
      %v4560 = verf.f32.pop %v4160
      %v4561 = verf.f32.pop %v4161
      %v4562 = verf.f32.pop %v4162
      %v4563 = verf.f32.pop %v4163
      %v4564 = verf.f32.pop %v4164
      %v4565 = verf.f32.pop %v4165
      %v4566 = verf.f32.pop %v4166
      %v4567 = verf.f32.pop %v4167
      %v4568 = verf.f32.pop %v4168
      %v4569 = verf.f32.pop %v4169
      %v4570 = verf.f32.pop %v4170
      %v4571 = verf.f32.pop %v4171
      %v4572 = verf.f32.pop %v4172
      %v4573 = verf.f32.pop %v4173
      %v4574 = verf.f32.pop %v4174
      %v4575 = verf.f32.pop %v4175
      %v4576 = verf.f32.pop %v4176
      %v4577 = verf.f32.pop %v4177
      %v4578 = verf.f32.pop %v4178
      %v4579 = verf.f32.pop %v4179
      %v4580 = verf.f32.pop %v4180
      %v4581 = verf.f32.pop %v4181
      %v4582 = verf.f32.pop %v4182
      %v4583 = verf.f32.pop %v4183
      %v4584 = verf.f32.pop %v4184
      %v4585 = verf.f32.pop %v4185
      %v4586 = verf.f32.pop %v4186
      %v4587 = verf.f32.pop %v4187
      %v4588 = verf.f32.pop %v4188
      %v4589 = verf.f32.pop %v4189
      %v4590 = verf.f32.pop %v4190
      %v4591 = verf.f32.pop %v4191
      %v4592 = verf.f32.pop %v4192
      %v4593 = verf.f32.pop %v4193
      %v4594 = verf.f32.pop %v4194
      %v4595 = verf.f32.pop %v4195
      %v4596 = verf.f32.pop %v4196
      %v4597 = verf.f32.pop %v4197
      %v4598 = verf.f32.pop %v4198
      %v4599 = verf.f32.pop %v4199
      %v4600 = verf.f32.pop %v4200
      %v4601 = verf.f32.pop %v4201
      %v4602 = verf.f32.pop %v4202
      %v4603 = verf.f32.pop %v4203
      %v4604 = verf.f32.pop %v4204
      %v4605 = verf.f32.pop %v4205
      %v4606 = verf.f32.pop %v4206
      %v4607 = verf.f32.pop %v4207
      %v4608 = verf.f32.pop %v4208
      %v4609 = verf.f32.pop %v4209
      %v4610 = verf.f32.pop %v4210
      %v4611 = verf.f32.pop %v4211
      %v4612 = verf.f32.pop %v4212
      %v4613 = verf.f32.pop %v4213
      %v4614 = verf.f32.pop %v4214
      %v4615 = verf.f32.pop %v4215
      %v4616 = verf.f32.pop %v4216
      %v4617 = verf.f32.pop %v4217
      %v4618 = verf.f32.pop %v4218
      %v4619 = verf.f32.pop %v4219
      %v4620 = verf.f32.pop %v4220
      %v4621 = verf.f32.pop %v4221
      %v4622 = verf.f32.pop %v4222
      %v4623 = verf.f32.pop %v4223
      %v4624 = verf.f32.pop %v4224
      %v4625 = verf.f32.pop %v4225
      %v4626 = verf.f32.pop %v4226
      %v4627 = verf.f32.pop %v4227
      %v4628 = verf.f32.pop %v4228
      %v4629 = verf.f32.pop %v4229
      %v4630 = verf.f32.pop %v4230
      %v4631 = verf.f32.pop %v4231
      %v4632 = verf.f32.pop %v4232
      %v4633 = verf.f32.pop %v4233
      %v4634 = verf.f32.pop %v4234
      %v4635 = verf.f32.pop %v4235
      %v4636 = verf.f32.pop %v4236
      %v4637 = verf.f32.pop %v4237
      %v4638 = verf.f32.pop %v4238
      %v4639 = verf.f32.pop %v4239
      %v4640 = verf.f32.pop %v4240
      %v4641 = verf.f32.pop %v4241
      %v4642 = verf.f32.pop %v4242
      %v4643 = verf.f32.pop %v4243
      %v4644 = verf.f32.pop %v4244
      %v4645 = verf.f32.pop %v4245
      %v4646 = verf.f32.pop %v4246
      %v4647 = verf.f32.pop %v4247
      %v4648 = verf.f32.pop %v4248
      %v4649 = verf.f32.pop %v4249
      %v4650 = verf.f32.pop %v4250
      %v4651 = verf.f32.pop %v4251
      %v4652 = verf.f32.pop %v4252
      %v4653 = verf.f32.pop %v4253
      %v4654 = verf.f32.pop %v4254
      %v4655 = verf.f32.pop %v4255
      %v4656 = verf.f32.pop %v4256
      %v4657 = verf.f32.pop %v4257
      %v4658 = verf.f32.pop %v4258
      %v4659 = verf.f32.pop %v4259
      %v4660 = verf.f32.pop %v4260
      %v4661 = verf.f32.pop %v4261
      %v4662 = verf.f32.pop %v4262
      %v4663 = verf.f32.pop %v4263
      %v4664 = verf.f32.pop %v4264
      %v4665 = verf.f32.pop %v4265
      %v4666 = verf.f32.pop %v4266
      %v4667 = verf.f32.pop %v4267
      %v4668 = verf.f32.pop %v4268
      %v4669 = verf.f32.pop %v4269
      %v4670 = verf.f32.pop %v4270
      %v4671 = verf.f32.pop %v4271
      %v4672 = verf.f32.pop %v4272
      %v4673 = verf.f32.pop %v4273
      %v4674 = verf.f32.pop %v4274
      %v4675 = verf.f32.pop %v4275
      %v4676 = verf.f32.pop %v4276
      %v4677 = verf.f32.pop %v4277
      %v4678 = verf.f32.pop %v4278
      %v4679 = verf.f32.pop %v4279
      %v4680 = verf.f32.pop %v4280
      %v4681 = verf.f32.pop %v4281
      %v4682 = verf.f32.pop %v4282
      %v4683 = verf.f32.pop %v4283
      %v4684 = verf.f32.pop %v4284
      %v4685 = verf.f32.pop %v4285
      %v4686 = verf.f32.pop %v4286
      %v4687 = verf.f32.pop %v4287
      %v4688 = verf.f32.pop %v4288
      %v4689 = verf.f32.pop %v4289
      %v4690 = verf.f32.pop %v4290
      %v4691 = verf.f32.pop %v4291
      %v4692 = verf.f32.pop %v4292
      %v4693 = verf.f32.pop %v4293
      %v4694 = verf.f32.pop %v4294
      %v4695 = verf.f32.pop %v4295
      %v4696 = verf.f32.pop %v4296
      %v4697 = verf.f32.pop %v4297
      %v4698 = verf.f32.pop %v4298
      %v4699 = verf.f32.pop %v4299
      %v4700 = verf.f32.pop %v4300
      %v4701 = verf.f32.pop %v4301
      %v4702 = verf.f32.pop %v4302
      %v4703 = verf.f32.pop %v4303
      %v4704 = vadd.f32 %v4304, 1.0
      %v4705 = vadd.f32 %v4305, 1.0
      %v4706 = vadd.f32 %v4306, 1.0
      %v4707 = vadd.f32 %v4307, 1.0
      %v4708 = vadd.f32 %v4308, 1.0
      %v4709 = vadd.f32 %v4309, 1.0
      %v4710 = vadd.f32 %v4310, 1.0
      %v4711 = vadd.f32 %v4311, 1.0
      %v4712 = vadd.f32 %v4312, 1.0
      %v4713 = vadd.f32 %v4313, 1.0
      %v4714 = vadd.f32 %v4314, 1.0
      %v4715 = vadd.f32 %v4315, 1.0
      %v4716 = vadd.f32 %v4316, 1.0
      %v4717 = vadd.f32 %v4317, 1.0
      %v4718 = vadd.f32 %v4318, 1.0
      %v4719 = vadd.f32 %v4319, 1.0
      %v4720 = vadd.f32 %v4320, 1.0
      %v4721 = vadd.f32 %v4321, 1.0
      %v4722 = vadd.f32 %v4322, 1.0
      %v4723 = vadd.f32 %v4323, 1.0
      %v4724 = vadd.f32 %v4324, 1.0
      %v4725 = vadd.f32 %v4325, 1.0
      %v4726 = vadd.f32 %v4326, 1.0
      %v4727 = vadd.f32 %v4327, 1.0
      %v4728 = vadd.f32 %v4328, 1.0
      %v4729 = vadd.f32 %v4329, 1.0
      %v4730 = vadd.f32 %v4330, 1.0
      %v4731 = vadd.f32 %v4331, 1.0
      %v4732 = vadd.f32 %v4332, 1.0
      %v4733 = vadd.f32 %v4333, 1.0
      %v4734 = vadd.f32 %v4334, 1.0
      %v4735 = vadd.f32 %v4335, 1.0
      %v4736 = vadd.f32 %v4336, 1.0
      %v4737 = vadd.f32 %v4337, 1.0
      %v4738 = vadd.f32 %v4338, 1.0
      %v4739 = vadd.f32 %v4339, 1.0
      %v4740 = vadd.f32 %v4340, 1.0
      %v4741 = vadd.f32 %v4341, 1.0
      %v4742 = vadd.f32 %v4342, 1.0
      %v4743 = vadd.f32 %v4343, 1.0
      %v4744 = vadd.f32 %v4344, 1.0
      %v4745 = vadd.f32 %v4345, 1.0
      %v4746 = vadd.f32 %v4346, 1.0
      %v4747 = vadd.f32 %v4347, 1.0
      %v4748 = vadd.f32 %v4348, 1.0
      %v4749 = vadd.f32 %v4349, 1.0
      %v4750 = vadd.f32 %v4350, 1.0
      %v4751 = vadd.f32 %v4351, 1.0
      %v4752 = vadd.f32 %v4352, 1.0
      %v4753 = vadd.f32 %v4353, 1.0
      %v4754 = vadd.f32 %v4354, 1.0
      %v4755 = vadd.f32 %v4355, 1.0
      %v4756 = vadd.f32 %v4356, 1.0
      %v4757 = vadd.f32 %v4357, 1.0
      %v4758 = vadd.f32 %v4358, 1.0
      %v4759 = vadd.f32 %v4359, 1.0
      %v4760 = vadd.f32 %v4360, 1.0
      %v4761 = vadd.f32 %v4361, 1.0
      %v4762 = vadd.f32 %v4362, 1.0
      %v4763 = vadd.f32 %v4363, 1.0
      %v4764 = vadd.f32 %v4364, 1.0
      %v4765 = vadd.f32 %v4365, 1.0
      %v4766 = vadd.f32 %v4366, 1.0
      %v4767 = vadd.f32 %v4367, 1.0
      %v4768 = vadd.f32 %v4368, 1.0
      %v4769 = vadd.f32 %v4369, 1.0
      %v4770 = vadd.f32 %v4370, 1.0
      %v4771 = vadd.f32 %v4371, 1.0
      %v4772 = vadd.f32 %v4372, 1.0
      %v4773 = vadd.f32 %v4373, 1.0
      %v4774 = vadd.f32 %v4374, 1.0
      %v4775 = vadd.f32 %v4375, 1.0
      %v4776 = vadd.f32 %v4376, 1.0
      %v4777 = vadd.f32 %v4377, 1.0
      %v4778 = vadd.f32 %v4378, 1.0
      %v4779 = vadd.f32 %v4379, 1.0
      %v4780 = vadd.f32 %v4380, 1.0
      %v4781 = vadd.f32 %v4381, 1.0
      %v4782 = vadd.f32 %v4382, 1.0
      %v4783 = vadd.f32 %v4383, 1.0
      %v4784 = vadd.f32 %v4384, 1.0
      %v4785 = vadd.f32 %v4385, 1.0
      %v4786 = vadd.f32 %v4386, 1.0
      %v4787 = vadd.f32 %v4387, 1.0
      %v4788 = vadd.f32 %v4388, 1.0
      %v4789 = vadd.f32 %v4389, 1.0
      %v4790 = vadd.f32 %v4390, 1.0
      %v4791 = vadd.f32 %v4391, 1.0
      %v4792 = vadd.f32 %v4392, 1.0
      %v4793 = vadd.f32 %v4393, 1.0
      %v4794 = vadd.f32 %v4394, 1.0
      %v4795 = vadd.f32 %v4395, 1.0
      %v4796 = vadd.f32 %v4396, 1.0
      %v4797 = vadd.f32 %v4397, 1.0
      %v4798 = vadd.f32 %v4398, 1.0
      %v4799 = vadd.f32 %v4399, 1.0
      %v4800 = vadd.f32 %v4400, 1.0
      %v4801 = vadd.f32 %v4401, 1.0
      %v4802 = vadd.f32 %v4402, 1.0
      %v4803 = vadd.f32 %v4403, 1.0
      %v4804 = vadd.f32 %v4404, 1.0
      %v4805 = vadd.f32 %v4405, 1.0
      %v4806 = vadd.f32 %v4406, 1.0
      %v4807 = vadd.f32 %v4407, 1.0
      %v4808 = vadd.f32 %v4408, 1.0
      %v4809 = vadd.f32 %v4409, 1.0
      %v4810 = vadd.f32 %v4410, 1.0
      %v4811 = vadd.f32 %v4411, 1.0
      %v4812 = vadd.f32 %v4412, 1.0
      %v4813 = vadd.f32 %v4413, 1.0
      %v4814 = vadd.f32 %v4414, 1.0
      %v4815 = vadd.f32 %v4415, 1.0
      %v4816 = vadd.f32 %v4416, 1.0
      %v4817 = vadd.f32 %v4417, 1.0
      %v4818 = vadd.f32 %v4418, 1.0
      %v4819 = vadd.f32 %v4419, 1.0
      %v4820 = vadd.f32 %v4420, 1.0
      %v4821 = vadd.f32 %v4421, 1.0
      %v4822 = vadd.f32 %v4422, 1.0
      %v4823 = vadd.f32 %v4423, 1.0
      %v4824 = vadd.f32 %v4424, 1.0
      %v4825 = vadd.f32 %v4425, 1.0
      %v4826 = vadd.f32 %v4426, 1.0
      %v4827 = vadd.f32 %v4427, 1.0
      %v4828 = vadd.f32 %v4428, 1.0
      %v4829 = vadd.f32 %v4429, 1.0
      %v4830 = vadd.f32 %v4430, 1.0
      %v4831 = vadd.f32 %v4431, 1.0
      %v4832 = vadd.f32 %v4432, 1.0
      %v4833 = vadd.f32 %v4433, 1.0
      %v4834 = vadd.f32 %v4434, 1.0
      %v4835 = vadd.f32 %v4435, 1.0
      %v4836 = vadd.f32 %v4436, 1.0
      %v4837 = vadd.f32 %v4437, 1.0
      %v4838 = vadd.f32 %v4438, 1.0
      %v4839 = vadd.f32 %v4439, 1.0
      %v4840 = vadd.f32 %v4440, 1.0
      %v4841 = vadd.f32 %v4441, 1.0
      %v4842 = vadd.f32 %v4442, 1.0
      %v4843 = vadd.f32 %v4443, 1.0
      %v4844 = vadd.f32 %v4444, 1.0
      %v4845 = vadd.f32 %v4445, 1.0
      %v4846 = vadd.f32 %v4446, 1.0
      %v4847 = vadd.f32 %v4447, 1.0
      %v4848 = vadd.f32 %v4448, 1.0
      %v4849 = vadd.f32 %v4449, 1.0
      %v4850 = vadd.f32 %v4450, 1.0
      %v4851 = vadd.f32 %v4451, 1.0
      %v4852 = vadd.f32 %v4452, 1.0
      %v4853 = vadd.f32 %v4453, 1.0
      %v4854 = vadd.f32 %v4454, 1.0
      %v4855 = vadd.f32 %v4455, 1.0
      %v4856 = vadd.f32 %v4456, 1.0
      %v4857 = vadd.f32 %v4457, 1.0
      %v4858 = vadd.f32 %v4458, 1.0
      %v4859 = vadd.f32 %v4459, 1.0
      %v4860 = vadd.f32 %v4460, 1.0
      %v4861 = vadd.f32 %v4461, 1.0
      %v4862 = vadd.f32 %v4462, 1.0
      %v4863 = vadd.f32 %v4463, 1.0
      %v4864 = vadd.f32 %v4464, 1.0
      %v4865 = vadd.f32 %v4465, 1.0
      %v4866 = vadd.f32 %v4466, 1.0
      %v4867 = vadd.f32 %v4467, 1.0
      %v4868 = vadd.f32 %v4468, 1.0
      %v4869 = vadd.f32 %v4469, 1.0
      %v4870 = vadd.f32 %v4470, 1.0
      %v4871 = vadd.f32 %v4471, 1.0
      %v4872 = vadd.f32 %v4472, 1.0
      %v4873 = vadd.f32 %v4473, 1.0
      %v4874 = vadd.f32 %v4474, 1.0
      %v4875 = vadd.f32 %v4475, 1.0
      %v4876 = vadd.f32 %v4476, 1.0
      %v4877 = vadd.f32 %v4477, 1.0
      %v4878 = vadd.f32 %v4478, 1.0
      %v4879 = vadd.f32 %v4479, 1.0
      %v4880 = vadd.f32 %v4480, 1.0
      %v4881 = vadd.f32 %v4481, 1.0
      %v4882 = vadd.f32 %v4482, 1.0
      %v4883 = vadd.f32 %v4483, 1.0
      %v4884 = vadd.f32 %v4484, 1.0
      %v4885 = vadd.f32 %v4485, 1.0
      %v4886 = vadd.f32 %v4486, 1.0
      %v4887 = vadd.f32 %v4487, 1.0
      %v4888 = vadd.f32 %v4488, 1.0
      %v4889 = vadd.f32 %v4489, 1.0
      %v4890 = vadd.f32 %v4490, 1.0
      %v4891 = vadd.f32 %v4491, 1.0
      %v4892 = vadd.f32 %v4492, 1.0
      %v4893 = vadd.f32 %v4493, 1.0
      %v4894 = vadd.f32 %v4494, 1.0
      %v4895 = vadd.f32 %v4495, 1.0
      %v4896 = vadd.f32 %v4496, 1.0
      %v4897 = vadd.f32 %v4497, 1.0
      %v4898 = vadd.f32 %v4498, 1.0
      %v4899 = vadd.f32 %v4499, 1.0
      %v4900 = vadd.f32 %v4500, 1.0
      %v4901 = vadd.f32 %v4501, 1.0
      %v4902 = vadd.f32 %v4502, 1.0
      %v4903 = vadd.f32 %v4503, 1.0
      %v4904 = vadd.f32 %v4504, 1.0
      %v4905 = vadd.f32 %v4505, 1.0
      %v4906 = vadd.f32 %v4506, 1.0
      %v4907 = vadd.f32 %v4507, 1.0
      %v4908 = vadd.f32 %v4508, 1.0
      %v4909 = vadd.f32 %v4509, 1.0
      %v4910 = vadd.f32 %v4510, 1.0
      %v4911 = vadd.f32 %v4511, 1.0
      %v4912 = vadd.f32 %v4512, 1.0
      %v4913 = vadd.f32 %v4513, 1.0
      %v4914 = vadd.f32 %v4514, 1.0
      %v4915 = vadd.f32 %v4515, 1.0
      %v4916 = vadd.f32 %v4516, 1.0
      %v4917 = vadd.f32 %v4517, 1.0
      %v4918 = vadd.f32 %v4518, 1.0
      %v4919 = vadd.f32 %v4519, 1.0
      %v4920 = vadd.f32 %v4520, 1.0
      %v4921 = vadd.f32 %v4521, 1.0
      %v4922 = vadd.f32 %v4522, 1.0
      %v4923 = vadd.f32 %v4523, 1.0
      %v4924 = vadd.f32 %v4524, 1.0
      %v4925 = vadd.f32 %v4525, 1.0
      %v4926 = vadd.f32 %v4526, 1.0
      %v4927 = vadd.f32 %v4527, 1.0
      %v4928 = vadd.f32 %v4528, 1.0
      %v4929 = vadd.f32 %v4529, 1.0
      %v4930 = vadd.f32 %v4530, 1.0
      %v4931 = vadd.f32 %v4531, 1.0
      %v4932 = vadd.f32 %v4532, 1.0
      %v4933 = vadd.f32 %v4533, 1.0
      %v4934 = vadd.f32 %v4534, 1.0
      %v4935 = vadd.f32 %v4535, 1.0
      %v4936 = vadd.f32 %v4536, 1.0
      %v4937 = vadd.f32 %v4537, 1.0
      %v4938 = vadd.f32 %v4538, 1.0
      %v4939 = vadd.f32 %v4539, 1.0
      %v4940 = vadd.f32 %v4540, 1.0
      %v4941 = vadd.f32 %v4541, 1.0
      %v4942 = vadd.f32 %v4542, 1.0
      %v4943 = vadd.f32 %v4543, 1.0
      %v4944 = vadd.f32 %v4544, 1.0
      %v4945 = vadd.f32 %v4545, 1.0
      %v4946 = vadd.f32 %v4546, 1.0
      %v4947 = vadd.f32 %v4547, 1.0
      %v4948 = vadd.f32 %v4548, 1.0
      %v4949 = vadd.f32 %v4549, 1.0
      %v4950 = vadd.f32 %v4550, 1.0
      %v4951 = vadd.f32 %v4551, 1.0
      %v4952 = vadd.f32 %v4552, 1.0
      %v4953 = vadd.f32 %v4553, 1.0
      %v4954 = vadd.f32 %v4554, 1.0
      %v4955 = vadd.f32 %v4555, 1.0
      %v4956 = vadd.f32 %v4556, 1.0
      %v4957 = vadd.f32 %v4557, 1.0
      %v4958 = vadd.f32 %v4558, 1.0
      %v4959 = vadd.f32 %v4559, 1.0
      %v4960 = vadd.f32 %v4560, 1.0
      %v4961 = vadd.f32 %v4561, 1.0
      %v4962 = vadd.f32 %v4562, 1.0
      %v4963 = vadd.f32 %v4563, 1.0
      %v4964 = vadd.f32 %v4564, 1.0
      %v4965 = vadd.f32 %v4565, 1.0
      %v4966 = vadd.f32 %v4566, 1.0
      %v4967 = vadd.f32 %v4567, 1.0
      %v4968 = vadd.f32 %v4568, 1.0
      %v4969 = vadd.f32 %v4569, 1.0
      %v4970 = vadd.f32 %v4570, 1.0
      %v4971 = vadd.f32 %v4571, 1.0
      %v4972 = vadd.f32 %v4572, 1.0
      %v4973 = vadd.f32 %v4573, 1.0
      %v4974 = vadd.f32 %v4574, 1.0
      %v4975 = vadd.f32 %v4575, 1.0
      %v4976 = vadd.f32 %v4576, 1.0
      %v4977 = vadd.f32 %v4577, 1.0
      %v4978 = vadd.f32 %v4578, 1.0
      %v4979 = vadd.f32 %v4579, 1.0
      %v4980 = vadd.f32 %v4580, 1.0
      %v4981 = vadd.f32 %v4581, 1.0
      %v4982 = vadd.f32 %v4582, 1.0
      %v4983 = vadd.f32 %v4583, 1.0
      %v4984 = vadd.f32 %v4584, 1.0
      %v4985 = vadd.f32 %v4585, 1.0
      %v4986 = vadd.f32 %v4586, 1.0
      %v4987 = vadd.f32 %v4587, 1.0
      %v4988 = vadd.f32 %v4588, 1.0
      %v4989 = vadd.f32 %v4589, 1.0
      %v4990 = vadd.f32 %v4590, 1.0
      %v4991 = vadd.f32 %v4591, 1.0
      %v4992 = vadd.f32 %v4592, 1.0
      %v4993 = vadd.f32 %v4593, 1.0
      %v4994 = vadd.f32 %v4594, 1.0
      %v4995 = vadd.f32 %v4595, 1.0
      %v4996 = vadd.f32 %v4596, 1.0
      %v4997 = vadd.f32 %v4597, 1.0
      %v4998 = vadd.f32 %v4598, 1.0
      %v4999 = vadd.f32 %v4599, 1.0
      %v5000 = vadd.f32 %v4600, 1.0
      %v5001 = vadd.f32 %v4601, 1.0
      %v5002 = vadd.f32 %v4602, 1.0
      %v5003 = vadd.f32 %v4603, 1.0
      %v5004 = vadd.f32 %v4604, 1.0
      %v5005 = vadd.f32 %v4605, 1.0
      %v5006 = vadd.f32 %v4606, 1.0
      %v5007 = vadd.f32 %v4607, 1.0
      %v5008 = vadd.f32 %v4608, 1.0
      %v5009 = vadd.f32 %v4609, 1.0
      %v5010 = vadd.f32 %v4610, 1.0
      %v5011 = vadd.f32 %v4611, 1.0
      %v5012 = vadd.f32 %v4612, 1.0
      %v5013 = vadd.f32 %v4613, 1.0
      %v5014 = vadd.f32 %v4614, 1.0
      %v5015 = vadd.f32 %v4615, 1.0
      %v5016 = vadd.f32 %v4616, 1.0
      %v5017 = vadd.f32 %v4617, 1.0
      %v5018 = vadd.f32 %v4618, 1.0
      %v5019 = vadd.f32 %v4619, 1.0
      %v5020 = vadd.f32 %v4620, 1.0
      %v5021 = vadd.f32 %v4621, 1.0
      %v5022 = vadd.f32 %v4622, 1.0
      %v5023 = vadd.f32 %v4623, 1.0
      %v5024 = vadd.f32 %v4624, 1.0
      %v5025 = vadd.f32 %v4625, 1.0
      %v5026 = vadd.f32 %v4626, 1.0
      %v5027 = vadd.f32 %v4627, 1.0
      %v5028 = vadd.f32 %v4628, 1.0
      %v5029 = vadd.f32 %v4629, 1.0
      %v5030 = vadd.f32 %v4630, 1.0
      %v5031 = vadd.f32 %v4631, 1.0
      %v5032 = vadd.f32 %v4632, 1.0
      %v5033 = vadd.f32 %v4633, 1.0
      %v5034 = vadd.f32 %v4634, 1.0
      %v5035 = vadd.f32 %v4635, 1.0
      %v5036 = vadd.f32 %v4636, 1.0
      %v5037 = vadd.f32 %v4637, 1.0
      %v5038 = vadd.f32 %v4638, 1.0
      %v5039 = vadd.f32 %v4639, 1.0
      %v5040 = vadd.f32 %v4640, 1.0
      %v5041 = vadd.f32 %v4641, 1.0
      %v5042 = vadd.f32 %v4642, 1.0
      %v5043 = vadd.f32 %v4643, 1.0
      %v5044 = vadd.f32 %v4644, 1.0
      %v5045 = vadd.f32 %v4645, 1.0
      %v5046 = vadd.f32 %v4646, 1.0
      %v5047 = vadd.f32 %v4647, 1.0
      %v5048 = vadd.f32 %v4648, 1.0
      %v5049 = vadd.f32 %v4649, 1.0
      %v5050 = vadd.f32 %v4650, 1.0
      %v5051 = vadd.f32 %v4651, 1.0
      %v5052 = vadd.f32 %v4652, 1.0
      %v5053 = vadd.f32 %v4653, 1.0
      %v5054 = vadd.f32 %v4654, 1.0
      %v5055 = vadd.f32 %v4655, 1.0
      %v5056 = vadd.f32 %v4656, 1.0
      %v5057 = vadd.f32 %v4657, 1.0
      %v5058 = vadd.f32 %v4658, 1.0
      %v5059 = vadd.f32 %v4659, 1.0
      %v5060 = vadd.f32 %v4660, 1.0
      %v5061 = vadd.f32 %v4661, 1.0
      %v5062 = vadd.f32 %v4662, 1.0
      %v5063 = vadd.f32 %v4663, 1.0
      %v5064 = vadd.f32 %v4664, 1.0
      %v5065 = vadd.f32 %v4665, 1.0
      %v5066 = vadd.f32 %v4666, 1.0
      %v5067 = vadd.f32 %v4667, 1.0
      %v5068 = vadd.f32 %v4668, 1.0
      %v5069 = vadd.f32 %v4669, 1.0
      %v5070 = vadd.f32 %v4670, 1.0
      %v5071 = vadd.f32 %v4671, 1.0
      %v5072 = vadd.f32 %v4672, 1.0
      %v5073 = vadd.f32 %v4673, 1.0
      %v5074 = vadd.f32 %v4674, 1.0
      %v5075 = vadd.f32 %v4675, 1.0
      %v5076 = vadd.f32 %v4676, 1.0
      %v5077 = vadd.f32 %v4677, 1.0
      %v5078 = vadd.f32 %v4678, 1.0
      %v5079 = vadd.f32 %v4679, 1.0
      %v5080 = vadd.f32 %v4680, 1.0
      %v5081 = vadd.f32 %v4681, 1.0
      %v5082 = vadd.f32 %v4682, 1.0
      %v5083 = vadd.f32 %v4683, 1.0
      %v5084 = vadd.f32 %v4684, 1.0
      %v5085 = vadd.f32 %v4685, 1.0
      %v5086 = vadd.f32 %v4686, 1.0
      %v5087 = vadd.f32 %v4687, 1.0
      %v5088 = vadd.f32 %v4688, 1.0
      %v5089 = vadd.f32 %v4689, 1.0
      %v5090 = vadd.f32 %v4690, 1.0
      %v5091 = vadd.f32 %v4691, 1.0
      %v5092 = vadd.f32 %v4692, 1.0
      %v5093 = vadd.f32 %v4693, 1.0
      %v5094 = vadd.f32 %v4694, 1.0
      %v5095 = vadd.f32 %v4695, 1.0
      %v5096 = vadd.f32 %v4696, 1.0
      %v5097 = vadd.f32 %v4697, 1.0
      %v5098 = vadd.f32 %v4698, 1.0
      %v5099 = vadd.f32 %v4699, 1.0
      %v5100 = vadd.f32 %v4700, 1.0
      %v5101 = vadd.f32 %v4701, 1.0
      %v5102 = vadd.f32 %v4702, 1.0
      %v5103 = vadd.f32 %v4703, 1.0
      %v5104 = vmul.f32 %v3504, %v4704
      %v5105 = vmul.f32 %v3505, %v4705
      %v5106 = vmul.f32 %v3506, %v4706
      %v5107 = vmul.f32 %v3507, %v4707
      %v5108 = vmul.f32 %v3508, %v4708
      %v5109 = vmul.f32 %v3509, %v4709
      %v5110 = vmul.f32 %v3510, %v4710
      %v5111 = vmul.f32 %v3511, %v4711
      %v5112 = vmul.f32 %v3512, %v4712
      %v5113 = vmul.f32 %v3513, %v4713
      %v5114 = vmul.f32 %v3514, %v4714
      %v5115 = vmul.f32 %v3515, %v4715
      %v5116 = vmul.f32 %v3516, %v4716
      %v5117 = vmul.f32 %v3517, %v4717
      %v5118 = vmul.f32 %v3518, %v4718
      %v5119 = vmul.f32 %v3519, %v4719
      %v5120 = vmul.f32 %v3520, %v4720
      %v5121 = vmul.f32 %v3521, %v4721
      %v5122 = vmul.f32 %v3522, %v4722
      %v5123 = vmul.f32 %v3523, %v4723
      %v5124 = vmul.f32 %v3524, %v4724
      %v5125 = vmul.f32 %v3525, %v4725
      %v5126 = vmul.f32 %v3526, %v4726
      %v5127 = vmul.f32 %v3527, %v4727
      %v5128 = vmul.f32 %v3528, %v4728
      %v5129 = vmul.f32 %v3529, %v4729
      %v5130 = vmul.f32 %v3530, %v4730
      %v5131 = vmul.f32 %v3531, %v4731
      %v5132 = vmul.f32 %v3532, %v4732
      %v5133 = vmul.f32 %v3533, %v4733
      %v5134 = vmul.f32 %v3534, %v4734
      %v5135 = vmul.f32 %v3535, %v4735
      %v5136 = vmul.f32 %v3536, %v4736
      %v5137 = vmul.f32 %v3537, %v4737
      %v5138 = vmul.f32 %v3538, %v4738
      %v5139 = vmul.f32 %v3539, %v4739
      %v5140 = vmul.f32 %v3540, %v4740
      %v5141 = vmul.f32 %v3541, %v4741
      %v5142 = vmul.f32 %v3542, %v4742
      %v5143 = vmul.f32 %v3543, %v4743
      %v5144 = vmul.f32 %v3544, %v4744
      %v5145 = vmul.f32 %v3545, %v4745
      %v5146 = vmul.f32 %v3546, %v4746
      %v5147 = vmul.f32 %v3547, %v4747
      %v5148 = vmul.f32 %v3548, %v4748
      %v5149 = vmul.f32 %v3549, %v4749
      %v5150 = vmul.f32 %v3550, %v4750
      %v5151 = vmul.f32 %v3551, %v4751
      %v5152 = vmul.f32 %v3552, %v4752
      %v5153 = vmul.f32 %v3553, %v4753
      %v5154 = vmul.f32 %v3554, %v4754
      %v5155 = vmul.f32 %v3555, %v4755
      %v5156 = vmul.f32 %v3556, %v4756
      %v5157 = vmul.f32 %v3557, %v4757
      %v5158 = vmul.f32 %v3558, %v4758
      %v5159 = vmul.f32 %v3559, %v4759
      %v5160 = vmul.f32 %v3560, %v4760
      %v5161 = vmul.f32 %v3561, %v4761
      %v5162 = vmul.f32 %v3562, %v4762
      %v5163 = vmul.f32 %v3563, %v4763
      %v5164 = vmul.f32 %v3564, %v4764
      %v5165 = vmul.f32 %v3565, %v4765
      %v5166 = vmul.f32 %v3566, %v4766
      %v5167 = vmul.f32 %v3567, %v4767
      %v5168 = vmul.f32 %v3568, %v4768
      %v5169 = vmul.f32 %v3569, %v4769
      %v5170 = vmul.f32 %v3570, %v4770
      %v5171 = vmul.f32 %v3571, %v4771
      %v5172 = vmul.f32 %v3572, %v4772
      %v5173 = vmul.f32 %v3573, %v4773
      %v5174 = vmul.f32 %v3574, %v4774
      %v5175 = vmul.f32 %v3575, %v4775
      %v5176 = vmul.f32 %v3576, %v4776
      %v5177 = vmul.f32 %v3577, %v4777
      %v5178 = vmul.f32 %v3578, %v4778
      %v5179 = vmul.f32 %v3579, %v4779
      %v5180 = vmul.f32 %v3580, %v4780
      %v5181 = vmul.f32 %v3581, %v4781
      %v5182 = vmul.f32 %v3582, %v4782
      %v5183 = vmul.f32 %v3583, %v4783
      %v5184 = vmul.f32 %v3584, %v4784
      %v5185 = vmul.f32 %v3585, %v4785
      %v5186 = vmul.f32 %v3586, %v4786
      %v5187 = vmul.f32 %v3587, %v4787
      %v5188 = vmul.f32 %v3588, %v4788
      %v5189 = vmul.f32 %v3589, %v4789
      %v5190 = vmul.f32 %v3590, %v4790
      %v5191 = vmul.f32 %v3591, %v4791
      %v5192 = vmul.f32 %v3592, %v4792
      %v5193 = vmul.f32 %v3593, %v4793
      %v5194 = vmul.f32 %v3594, %v4794
      %v5195 = vmul.f32 %v3595, %v4795
      %v5196 = vmul.f32 %v3596, %v4796
      %v5197 = vmul.f32 %v3597, %v4797
      %v5198 = vmul.f32 %v3598, %v4798
      %v5199 = vmul.f32 %v3599, %v4799
      %v5200 = vmul.f32 %v3600, %v4800
      %v5201 = vmul.f32 %v3601, %v4801
      %v5202 = vmul.f32 %v3602, %v4802
      %v5203 = vmul.f32 %v3603, %v4803
      %v5204 = vmul.f32 %v3604, %v4804
      %v5205 = vmul.f32 %v3605, %v4805
      %v5206 = vmul.f32 %v3606, %v4806
      %v5207 = vmul.f32 %v3607, %v4807
      %v5208 = vmul.f32 %v3608, %v4808
      %v5209 = vmul.f32 %v3609, %v4809
      %v5210 = vmul.f32 %v3610, %v4810
      %v5211 = vmul.f32 %v3611, %v4811
      %v5212 = vmul.f32 %v3612, %v4812
      %v5213 = vmul.f32 %v3613, %v4813
      %v5214 = vmul.f32 %v3614, %v4814
      %v5215 = vmul.f32 %v3615, %v4815
      %v5216 = vmul.f32 %v3616, %v4816
      %v5217 = vmul.f32 %v3617, %v4817
      %v5218 = vmul.f32 %v3618, %v4818
      %v5219 = vmul.f32 %v3619, %v4819
      %v5220 = vmul.f32 %v3620, %v4820
      %v5221 = vmul.f32 %v3621, %v4821
      %v5222 = vmul.f32 %v3622, %v4822
      %v5223 = vmul.f32 %v3623, %v4823
      %v5224 = vmul.f32 %v3624, %v4824
      %v5225 = vmul.f32 %v3625, %v4825
      %v5226 = vmul.f32 %v3626, %v4826
      %v5227 = vmul.f32 %v3627, %v4827
      %v5228 = vmul.f32 %v3628, %v4828
      %v5229 = vmul.f32 %v3629, %v4829
      %v5230 = vmul.f32 %v3630, %v4830
      %v5231 = vmul.f32 %v3631, %v4831
      %v5232 = vmul.f32 %v3632, %v4832
      %v5233 = vmul.f32 %v3633, %v4833
      %v5234 = vmul.f32 %v3634, %v4834
      %v5235 = vmul.f32 %v3635, %v4835
      %v5236 = vmul.f32 %v3636, %v4836
      %v5237 = vmul.f32 %v3637, %v4837
      %v5238 = vmul.f32 %v3638, %v4838
      %v5239 = vmul.f32 %v3639, %v4839
      %v5240 = vmul.f32 %v3640, %v4840
      %v5241 = vmul.f32 %v3641, %v4841
      %v5242 = vmul.f32 %v3642, %v4842
      %v5243 = vmul.f32 %v3643, %v4843
      %v5244 = vmul.f32 %v3644, %v4844
      %v5245 = vmul.f32 %v3645, %v4845
      %v5246 = vmul.f32 %v3646, %v4846
      %v5247 = vmul.f32 %v3647, %v4847
      %v5248 = vmul.f32 %v3648, %v4848
      %v5249 = vmul.f32 %v3649, %v4849
      %v5250 = vmul.f32 %v3650, %v4850
      %v5251 = vmul.f32 %v3651, %v4851
      %v5252 = vmul.f32 %v3652, %v4852
      %v5253 = vmul.f32 %v3653, %v4853
      %v5254 = vmul.f32 %v3654, %v4854
      %v5255 = vmul.f32 %v3655, %v4855
      %v5256 = vmul.f32 %v3656, %v4856
      %v5257 = vmul.f32 %v3657, %v4857
      %v5258 = vmul.f32 %v3658, %v4858
      %v5259 = vmul.f32 %v3659, %v4859
      %v5260 = vmul.f32 %v3660, %v4860
      %v5261 = vmul.f32 %v3661, %v4861
      %v5262 = vmul.f32 %v3662, %v4862
      %v5263 = vmul.f32 %v3663, %v4863
      %v5264 = vmul.f32 %v3664, %v4864
      %v5265 = vmul.f32 %v3665, %v4865
      %v5266 = vmul.f32 %v3666, %v4866
      %v5267 = vmul.f32 %v3667, %v4867
      %v5268 = vmul.f32 %v3668, %v4868
      %v5269 = vmul.f32 %v3669, %v4869
      %v5270 = vmul.f32 %v3670, %v4870
      %v5271 = vmul.f32 %v3671, %v4871
      %v5272 = vmul.f32 %v3672, %v4872
      %v5273 = vmul.f32 %v3673, %v4873
      %v5274 = vmul.f32 %v3674, %v4874
      %v5275 = vmul.f32 %v3675, %v4875
      %v5276 = vmul.f32 %v3676, %v4876
      %v5277 = vmul.f32 %v3677, %v4877
      %v5278 = vmul.f32 %v3678, %v4878
      %v5279 = vmul.f32 %v3679, %v4879
      %v5280 = vmul.f32 %v3680, %v4880
      %v5281 = vmul.f32 %v3681, %v4881
      %v5282 = vmul.f32 %v3682, %v4882
      %v5283 = vmul.f32 %v3683, %v4883
      %v5284 = vmul.f32 %v3684, %v4884
      %v5285 = vmul.f32 %v3685, %v4885
      %v5286 = vmul.f32 %v3686, %v4886
      %v5287 = vmul.f32 %v3687, %v4887
      %v5288 = vmul.f32 %v3688, %v4888
      %v5289 = vmul.f32 %v3689, %v4889
      %v5290 = vmul.f32 %v3690, %v4890
      %v5291 = vmul.f32 %v3691, %v4891
      %v5292 = vmul.f32 %v3692, %v4892
      %v5293 = vmul.f32 %v3693, %v4893
      %v5294 = vmul.f32 %v3694, %v4894
      %v5295 = vmul.f32 %v3695, %v4895
      %v5296 = vmul.f32 %v3696, %v4896
      %v5297 = vmul.f32 %v3697, %v4897
      %v5298 = vmul.f32 %v3698, %v4898
      %v5299 = vmul.f32 %v3699, %v4899
      %v5300 = vmul.f32 %v3700, %v4900
      %v5301 = vmul.f32 %v3701, %v4901
      %v5302 = vmul.f32 %v3702, %v4902
      %v5303 = vmul.f32 %v3703, %v4903
      %v5304 = vmul.f32 %v3704, %v4904
      %v5305 = vmul.f32 %v3705, %v4905
      %v5306 = vmul.f32 %v3706, %v4906
      %v5307 = vmul.f32 %v3707, %v4907
      %v5308 = vmul.f32 %v3708, %v4908
      %v5309 = vmul.f32 %v3709, %v4909
      %v5310 = vmul.f32 %v3710, %v4910
      %v5311 = vmul.f32 %v3711, %v4911
      %v5312 = vmul.f32 %v3712, %v4912
      %v5313 = vmul.f32 %v3713, %v4913
      %v5314 = vmul.f32 %v3714, %v4914
      %v5315 = vmul.f32 %v3715, %v4915
      %v5316 = vmul.f32 %v3716, %v4916
      %v5317 = vmul.f32 %v3717, %v4917
      %v5318 = vmul.f32 %v3718, %v4918
      %v5319 = vmul.f32 %v3719, %v4919
      %v5320 = vmul.f32 %v3720, %v4920
      %v5321 = vmul.f32 %v3721, %v4921
      %v5322 = vmul.f32 %v3722, %v4922
      %v5323 = vmul.f32 %v3723, %v4923
      %v5324 = vmul.f32 %v3724, %v4924
      %v5325 = vmul.f32 %v3725, %v4925
      %v5326 = vmul.f32 %v3726, %v4926
      %v5327 = vmul.f32 %v3727, %v4927
      %v5328 = vmul.f32 %v3728, %v4928
      %v5329 = vmul.f32 %v3729, %v4929
      %v5330 = vmul.f32 %v3730, %v4930
      %v5331 = vmul.f32 %v3731, %v4931
      %v5332 = vmul.f32 %v3732, %v4932
      %v5333 = vmul.f32 %v3733, %v4933
      %v5334 = vmul.f32 %v3734, %v4934
      %v5335 = vmul.f32 %v3735, %v4935
      %v5336 = vmul.f32 %v3736, %v4936
      %v5337 = vmul.f32 %v3737, %v4937
      %v5338 = vmul.f32 %v3738, %v4938
      %v5339 = vmul.f32 %v3739, %v4939
      %v5340 = vmul.f32 %v3740, %v4940
      %v5341 = vmul.f32 %v3741, %v4941
      %v5342 = vmul.f32 %v3742, %v4942
      %v5343 = vmul.f32 %v3743, %v4943
      %v5344 = vmul.f32 %v3744, %v4944
      %v5345 = vmul.f32 %v3745, %v4945
      %v5346 = vmul.f32 %v3746, %v4946
      %v5347 = vmul.f32 %v3747, %v4947
      %v5348 = vmul.f32 %v3748, %v4948
      %v5349 = vmul.f32 %v3749, %v4949
      %v5350 = vmul.f32 %v3750, %v4950
      %v5351 = vmul.f32 %v3751, %v4951
      %v5352 = vmul.f32 %v3752, %v4952
      %v5353 = vmul.f32 %v3753, %v4953
      %v5354 = vmul.f32 %v3754, %v4954
      %v5355 = vmul.f32 %v3755, %v4955
      %v5356 = vmul.f32 %v3756, %v4956
      %v5357 = vmul.f32 %v3757, %v4957
      %v5358 = vmul.f32 %v3758, %v4958
      %v5359 = vmul.f32 %v3759, %v4959
      %v5360 = vmul.f32 %v3760, %v4960
      %v5361 = vmul.f32 %v3761, %v4961
      %v5362 = vmul.f32 %v3762, %v4962
      %v5363 = vmul.f32 %v3763, %v4963
      %v5364 = vmul.f32 %v3764, %v4964
      %v5365 = vmul.f32 %v3765, %v4965
      %v5366 = vmul.f32 %v3766, %v4966
      %v5367 = vmul.f32 %v3767, %v4967
      %v5368 = vmul.f32 %v3768, %v4968
      %v5369 = vmul.f32 %v3769, %v4969
      %v5370 = vmul.f32 %v3770, %v4970
      %v5371 = vmul.f32 %v3771, %v4971
      %v5372 = vmul.f32 %v3772, %v4972
      %v5373 = vmul.f32 %v3773, %v4973
      %v5374 = vmul.f32 %v3774, %v4974
      %v5375 = vmul.f32 %v3775, %v4975
      %v5376 = vmul.f32 %v3776, %v4976
      %v5377 = vmul.f32 %v3777, %v4977
      %v5378 = vmul.f32 %v3778, %v4978
      %v5379 = vmul.f32 %v3779, %v4979
      %v5380 = vmul.f32 %v3780, %v4980
      %v5381 = vmul.f32 %v3781, %v4981
      %v5382 = vmul.f32 %v3782, %v4982
      %v5383 = vmul.f32 %v3783, %v4983
      %v5384 = vmul.f32 %v3784, %v4984
      %v5385 = vmul.f32 %v3785, %v4985
      %v5386 = vmul.f32 %v3786, %v4986
      %v5387 = vmul.f32 %v3787, %v4987
      %v5388 = vmul.f32 %v3788, %v4988
      %v5389 = vmul.f32 %v3789, %v4989
      %v5390 = vmul.f32 %v3790, %v4990
      %v5391 = vmul.f32 %v3791, %v4991
      %v5392 = vmul.f32 %v3792, %v4992
      %v5393 = vmul.f32 %v3793, %v4993
      %v5394 = vmul.f32 %v3794, %v4994
      %v5395 = vmul.f32 %v3795, %v4995
      %v5396 = vmul.f32 %v3796, %v4996
      %v5397 = vmul.f32 %v3797, %v4997
      %v5398 = vmul.f32 %v3798, %v4998
      %v5399 = vmul.f32 %v3799, %v4999
      %v5400 = vmul.f32 %v3800, %v5000
      %v5401 = vmul.f32 %v3801, %v5001
      %v5402 = vmul.f32 %v3802, %v5002
      %v5403 = vmul.f32 %v3803, %v5003
      %v5404 = vmul.f32 %v3804, %v5004
      %v5405 = vmul.f32 %v3805, %v5005
      %v5406 = vmul.f32 %v3806, %v5006
      %v5407 = vmul.f32 %v3807, %v5007
      %v5408 = vmul.f32 %v3808, %v5008
      %v5409 = vmul.f32 %v3809, %v5009
      %v5410 = vmul.f32 %v3810, %v5010
      %v5411 = vmul.f32 %v3811, %v5011
      %v5412 = vmul.f32 %v3812, %v5012
      %v5413 = vmul.f32 %v3813, %v5013
      %v5414 = vmul.f32 %v3814, %v5014
      %v5415 = vmul.f32 %v3815, %v5015
      %v5416 = vmul.f32 %v3816, %v5016
      %v5417 = vmul.f32 %v3817, %v5017
      %v5418 = vmul.f32 %v3818, %v5018
      %v5419 = vmul.f32 %v3819, %v5019
      %v5420 = vmul.f32 %v3820, %v5020
      %v5421 = vmul.f32 %v3821, %v5021
      %v5422 = vmul.f32 %v3822, %v5022
      %v5423 = vmul.f32 %v3823, %v5023
      %v5424 = vmul.f32 %v3824, %v5024
      %v5425 = vmul.f32 %v3825, %v5025
      %v5426 = vmul.f32 %v3826, %v5026
      %v5427 = vmul.f32 %v3827, %v5027
      %v5428 = vmul.f32 %v3828, %v5028
      %v5429 = vmul.f32 %v3829, %v5029
      %v5430 = vmul.f32 %v3830, %v5030
      %v5431 = vmul.f32 %v3831, %v5031
      %v5432 = vmul.f32 %v3832, %v5032
      %v5433 = vmul.f32 %v3833, %v5033
      %v5434 = vmul.f32 %v3834, %v5034
      %v5435 = vmul.f32 %v3835, %v5035
      %v5436 = vmul.f32 %v3836, %v5036
      %v5437 = vmul.f32 %v3837, %v5037
      %v5438 = vmul.f32 %v3838, %v5038
      %v5439 = vmul.f32 %v3839, %v5039
      %v5440 = vmul.f32 %v3840, %v5040
      %v5441 = vmul.f32 %v3841, %v5041
      %v5442 = vmul.f32 %v3842, %v5042
      %v5443 = vmul.f32 %v3843, %v5043
      %v5444 = vmul.f32 %v3844, %v5044
      %v5445 = vmul.f32 %v3845, %v5045
      %v5446 = vmul.f32 %v3846, %v5046
      %v5447 = vmul.f32 %v3847, %v5047
      %v5448 = vmul.f32 %v3848, %v5048
      %v5449 = vmul.f32 %v3849, %v5049
      %v5450 = vmul.f32 %v3850, %v5050
      %v5451 = vmul.f32 %v3851, %v5051
      %v5452 = vmul.f32 %v3852, %v5052
      %v5453 = vmul.f32 %v3853, %v5053
      %v5454 = vmul.f32 %v3854, %v5054
      %v5455 = vmul.f32 %v3855, %v5055
      %v5456 = vmul.f32 %v3856, %v5056
      %v5457 = vmul.f32 %v3857, %v5057
      %v5458 = vmul.f32 %v3858, %v5058
      %v5459 = vmul.f32 %v3859, %v5059
      %v5460 = vmul.f32 %v3860, %v5060
      %v5461 = vmul.f32 %v3861, %v5061
      %v5462 = vmul.f32 %v3862, %v5062
      %v5463 = vmul.f32 %v3863, %v5063
      %v5464 = vmul.f32 %v3864, %v5064
      %v5465 = vmul.f32 %v3865, %v5065
      %v5466 = vmul.f32 %v3866, %v5066
      %v5467 = vmul.f32 %v3867, %v5067
      %v5468 = vmul.f32 %v3868, %v5068
      %v5469 = vmul.f32 %v3869, %v5069
      %v5470 = vmul.f32 %v3870, %v5070
      %v5471 = vmul.f32 %v3871, %v5071
      %v5472 = vmul.f32 %v3872, %v5072
      %v5473 = vmul.f32 %v3873, %v5073
      %v5474 = vmul.f32 %v3874, %v5074
      %v5475 = vmul.f32 %v3875, %v5075
      %v5476 = vmul.f32 %v3876, %v5076
      %v5477 = vmul.f32 %v3877, %v5077
      %v5478 = vmul.f32 %v3878, %v5078
      %v5479 = vmul.f32 %v3879, %v5079
      %v5480 = vmul.f32 %v3880, %v5080
      %v5481 = vmul.f32 %v3881, %v5081
      %v5482 = vmul.f32 %v3882, %v5082
      %v5483 = vmul.f32 %v3883, %v5083
      %v5484 = vmul.f32 %v3884, %v5084
      %v5485 = vmul.f32 %v3885, %v5085
      %v5486 = vmul.f32 %v3886, %v5086
      %v5487 = vmul.f32 %v3887, %v5087
      %v5488 = vmul.f32 %v3888, %v5088
      %v5489 = vmul.f32 %v3889, %v5089
      %v5490 = vmul.f32 %v3890, %v5090
      %v5491 = vmul.f32 %v3891, %v5091
      %v5492 = vmul.f32 %v3892, %v5092
      %v5493 = vmul.f32 %v3893, %v5093
      %v5494 = vmul.f32 %v3894, %v5094
      %v5495 = vmul.f32 %v3895, %v5095
      %v5496 = vmul.f32 %v3896, %v5096
      %v5497 = vmul.f32 %v3897, %v5097
      %v5498 = vmul.f32 %v3898, %v5098
      %v5499 = vmul.f32 %v3899, %v5099
      %v5500 = vmul.f32 %v3900, %v5100
      %v5501 = vmul.f32 %v3901, %v5101
      %v5502 = vmul.f32 %v3902, %v5102
      %v5503 = vmul.f32 %v3903, %v5103
      %v5504 = vpack.c.bf16 %v5112, %v5104
      %v5505 = vpack.c.bf16 %v5113, %v5105
      %v5506 = vpack.c.bf16 %v5114, %v5106
      %v5507 = vpack.c.bf16 %v5115, %v5107
      %v5508 = vpack.c.bf16 %v5116, %v5108
      %v5509 = vpack.c.bf16 %v5117, %v5109
      %v5510 = vpack.c.bf16 %v5118, %v5110
      %v5511 = vpack.c.bf16 %v5119, %v5111
      %v5512 = vpack.c.bf16 %v5128, %v5120
      %v5513 = vpack.c.bf16 %v5129, %v5121
      %v5514 = vpack.c.bf16 %v5130, %v5122
      %v5515 = vpack.c.bf16 %v5131, %v5123
      %v5516 = vpack.c.bf16 %v5132, %v5124
      %v5517 = vpack.c.bf16 %v5133, %v5125
      %v5518 = vpack.c.bf16 %v5134, %v5126
      %v5519 = vpack.c.bf16 %v5135, %v5127
      %v5520 = vpack.c.bf16 %v5144, %v5136
      %v5521 = vpack.c.bf16 %v5145, %v5137
      %v5522 = vpack.c.bf16 %v5146, %v5138
      %v5523 = vpack.c.bf16 %v5147, %v5139
      %v5524 = vpack.c.bf16 %v5148, %v5140
      %v5525 = vpack.c.bf16 %v5149, %v5141
      %v5526 = vpack.c.bf16 %v5150, %v5142
      %v5527 = vpack.c.bf16 %v5151, %v5143
      %v5528 = vpack.c.bf16 %v5160, %v5152
      %v5529 = vpack.c.bf16 %v5161, %v5153
      %v5530 = vpack.c.bf16 %v5162, %v5154
      %v5531 = vpack.c.bf16 %v5163, %v5155
      %v5532 = vpack.c.bf16 %v5164, %v5156
      %v5533 = vpack.c.bf16 %v5165, %v5157
      %v5534 = vpack.c.bf16 %v5166, %v5158
      %v5535 = vpack.c.bf16 %v5167, %v5159
      %v5536 = vpack.c.bf16 %v5176, %v5168
      %v5537 = vpack.c.bf16 %v5177, %v5169
      %v5538 = vpack.c.bf16 %v5178, %v5170
      %v5539 = vpack.c.bf16 %v5179, %v5171
      %v5540 = vpack.c.bf16 %v5180, %v5172
      %v5541 = vpack.c.bf16 %v5181, %v5173
      %v5542 = vpack.c.bf16 %v5182, %v5174
      %v5543 = vpack.c.bf16 %v5183, %v5175
      %v5544 = vpack.c.bf16 %v5192, %v5184
      %v5545 = vpack.c.bf16 %v5193, %v5185
      %v5546 = vpack.c.bf16 %v5194, %v5186
      %v5547 = vpack.c.bf16 %v5195, %v5187
      %v5548 = vpack.c.bf16 %v5196, %v5188
      %v5549 = vpack.c.bf16 %v5197, %v5189
      %v5550 = vpack.c.bf16 %v5198, %v5190
      %v5551 = vpack.c.bf16 %v5199, %v5191
      %v5552 = vpack.c.bf16 %v5208, %v5200
      %v5553 = vpack.c.bf16 %v5209, %v5201
      %v5554 = vpack.c.bf16 %v5210, %v5202
      %v5555 = vpack.c.bf16 %v5211, %v5203
      %v5556 = vpack.c.bf16 %v5212, %v5204
      %v5557 = vpack.c.bf16 %v5213, %v5205
      %v5558 = vpack.c.bf16 %v5214, %v5206
      %v5559 = vpack.c.bf16 %v5215, %v5207
      %v5560 = vpack.c.bf16 %v5224, %v5216
      %v5561 = vpack.c.bf16 %v5225, %v5217
      %v5562 = vpack.c.bf16 %v5226, %v5218
      %v5563 = vpack.c.bf16 %v5227, %v5219
      %v5564 = vpack.c.bf16 %v5228, %v5220
      %v5565 = vpack.c.bf16 %v5229, %v5221
      %v5566 = vpack.c.bf16 %v5230, %v5222
      %v5567 = vpack.c.bf16 %v5231, %v5223
      %v5568 = vpack.c.bf16 %v5240, %v5232
      %v5569 = vpack.c.bf16 %v5241, %v5233
      %v5570 = vpack.c.bf16 %v5242, %v5234
      %v5571 = vpack.c.bf16 %v5243, %v5235
      %v5572 = vpack.c.bf16 %v5244, %v5236
      %v5573 = vpack.c.bf16 %v5245, %v5237
      %v5574 = vpack.c.bf16 %v5246, %v5238
      %v5575 = vpack.c.bf16 %v5247, %v5239
      %v5576 = vpack.c.bf16 %v5256, %v5248
      %v5577 = vpack.c.bf16 %v5257, %v5249
      %v5578 = vpack.c.bf16 %v5258, %v5250
      %v5579 = vpack.c.bf16 %v5259, %v5251
      %v5580 = vpack.c.bf16 %v5260, %v5252
      %v5581 = vpack.c.bf16 %v5261, %v5253
      %v5582 = vpack.c.bf16 %v5262, %v5254
      %v5583 = vpack.c.bf16 %v5263, %v5255
      %v5584 = vpack.c.bf16 %v5272, %v5264
      %v5585 = vpack.c.bf16 %v5273, %v5265
      %v5586 = vpack.c.bf16 %v5274, %v5266
      %v5587 = vpack.c.bf16 %v5275, %v5267
      %v5588 = vpack.c.bf16 %v5276, %v5268
      %v5589 = vpack.c.bf16 %v5277, %v5269
      %v5590 = vpack.c.bf16 %v5278, %v5270
      %v5591 = vpack.c.bf16 %v5279, %v5271
      %v5592 = vpack.c.bf16 %v5288, %v5280
      %v5593 = vpack.c.bf16 %v5289, %v5281
      %v5594 = vpack.c.bf16 %v5290, %v5282
      %v5595 = vpack.c.bf16 %v5291, %v5283
      %v5596 = vpack.c.bf16 %v5292, %v5284
      %v5597 = vpack.c.bf16 %v5293, %v5285
      %v5598 = vpack.c.bf16 %v5294, %v5286
      %v5599 = vpack.c.bf16 %v5295, %v5287
      %v5600 = vpack.c.bf16 %v5304, %v5296
      %v5601 = vpack.c.bf16 %v5305, %v5297
      %v5602 = vpack.c.bf16 %v5306, %v5298
      %v5603 = vpack.c.bf16 %v5307, %v5299
      %v5604 = vpack.c.bf16 %v5308, %v5300
      %v5605 = vpack.c.bf16 %v5309, %v5301
      %v5606 = vpack.c.bf16 %v5310, %v5302
      %v5607 = vpack.c.bf16 %v5311, %v5303
      %v5608 = vpack.c.bf16 %v5320, %v5312
      %v5609 = vpack.c.bf16 %v5321, %v5313
      %v5610 = vpack.c.bf16 %v5322, %v5314
      %v5611 = vpack.c.bf16 %v5323, %v5315
      %v5612 = vpack.c.bf16 %v5324, %v5316
      %v5613 = vpack.c.bf16 %v5325, %v5317
      %v5614 = vpack.c.bf16 %v5326, %v5318
      %v5615 = vpack.c.bf16 %v5327, %v5319
      %v5616 = vpack.c.bf16 %v5336, %v5328
      %v5617 = vpack.c.bf16 %v5337, %v5329
      %v5618 = vpack.c.bf16 %v5338, %v5330
      %v5619 = vpack.c.bf16 %v5339, %v5331
      %v5620 = vpack.c.bf16 %v5340, %v5332
      %v5621 = vpack.c.bf16 %v5341, %v5333
      %v5622 = vpack.c.bf16 %v5342, %v5334
      %v5623 = vpack.c.bf16 %v5343, %v5335
      %v5624 = vpack.c.bf16 %v5352, %v5344
      %v5625 = vpack.c.bf16 %v5353, %v5345
      %v5626 = vpack.c.bf16 %v5354, %v5346
      %v5627 = vpack.c.bf16 %v5355, %v5347
      %v5628 = vpack.c.bf16 %v5356, %v5348
      %v5629 = vpack.c.bf16 %v5357, %v5349
      %v5630 = vpack.c.bf16 %v5358, %v5350
      %v5631 = vpack.c.bf16 %v5359, %v5351
      %v5632 = vpack.c.bf16 %v5368, %v5360
      %v5633 = vpack.c.bf16 %v5369, %v5361
      %v5634 = vpack.c.bf16 %v5370, %v5362
      %v5635 = vpack.c.bf16 %v5371, %v5363
      %v5636 = vpack.c.bf16 %v5372, %v5364
      %v5637 = vpack.c.bf16 %v5373, %v5365
      %v5638 = vpack.c.bf16 %v5374, %v5366
      %v5639 = vpack.c.bf16 %v5375, %v5367
      %v5640 = vpack.c.bf16 %v5384, %v5376
      %v5641 = vpack.c.bf16 %v5385, %v5377
      %v5642 = vpack.c.bf16 %v5386, %v5378
      %v5643 = vpack.c.bf16 %v5387, %v5379
      %v5644 = vpack.c.bf16 %v5388, %v5380
      %v5645 = vpack.c.bf16 %v5389, %v5381
      %v5646 = vpack.c.bf16 %v5390, %v5382
      %v5647 = vpack.c.bf16 %v5391, %v5383
      %v5648 = vpack.c.bf16 %v5400, %v5392
      %v5649 = vpack.c.bf16 %v5401, %v5393
      %v5650 = vpack.c.bf16 %v5402, %v5394
      %v5651 = vpack.c.bf16 %v5403, %v5395
      %v5652 = vpack.c.bf16 %v5404, %v5396
      %v5653 = vpack.c.bf16 %v5405, %v5397
      %v5654 = vpack.c.bf16 %v5406, %v5398
      %v5655 = vpack.c.bf16 %v5407, %v5399
      %v5656 = vpack.c.bf16 %v5416, %v5408
      %v5657 = vpack.c.bf16 %v5417, %v5409
      %v5658 = vpack.c.bf16 %v5418, %v5410
      %v5659 = vpack.c.bf16 %v5419, %v5411
      %v5660 = vpack.c.bf16 %v5420, %v5412
      %v5661 = vpack.c.bf16 %v5421, %v5413
      %v5662 = vpack.c.bf16 %v5422, %v5414
      %v5663 = vpack.c.bf16 %v5423, %v5415
      %v5664 = vpack.c.bf16 %v5432, %v5424
      %v5665 = vpack.c.bf16 %v5433, %v5425
      %v5666 = vpack.c.bf16 %v5434, %v5426
      %v5667 = vpack.c.bf16 %v5435, %v5427
      %v5668 = vpack.c.bf16 %v5436, %v5428
      %v5669 = vpack.c.bf16 %v5437, %v5429
      %v5670 = vpack.c.bf16 %v5438, %v5430
      %v5671 = vpack.c.bf16 %v5439, %v5431
      %v5672 = vpack.c.bf16 %v5448, %v5440
      %v5673 = vpack.c.bf16 %v5449, %v5441
      %v5674 = vpack.c.bf16 %v5450, %v5442
      %v5675 = vpack.c.bf16 %v5451, %v5443
      %v5676 = vpack.c.bf16 %v5452, %v5444
      %v5677 = vpack.c.bf16 %v5453, %v5445
      %v5678 = vpack.c.bf16 %v5454, %v5446
      %v5679 = vpack.c.bf16 %v5455, %v5447
      %v5680 = vpack.c.bf16 %v5464, %v5456
      %v5681 = vpack.c.bf16 %v5465, %v5457
      %v5682 = vpack.c.bf16 %v5466, %v5458
      %v5683 = vpack.c.bf16 %v5467, %v5459
      %v5684 = vpack.c.bf16 %v5468, %v5460
      %v5685 = vpack.c.bf16 %v5469, %v5461
      %v5686 = vpack.c.bf16 %v5470, %v5462
      %v5687 = vpack.c.bf16 %v5471, %v5463
      %v5688 = vpack.c.bf16 %v5480, %v5472
      %v5689 = vpack.c.bf16 %v5481, %v5473
      %v5690 = vpack.c.bf16 %v5482, %v5474
      %v5691 = vpack.c.bf16 %v5483, %v5475
      %v5692 = vpack.c.bf16 %v5484, %v5476
      %v5693 = vpack.c.bf16 %v5485, %v5477
      %v5694 = vpack.c.bf16 %v5486, %v5478
      %v5695 = vpack.c.bf16 %v5487, %v5479
      %v5696 = vpack.c.bf16 %v5496, %v5488
      %v5697 = vpack.c.bf16 %v5497, %v5489
      %v5698 = vpack.c.bf16 %v5498, %v5490
      %v5699 = vpack.c.bf16 %v5499, %v5491
      %v5700 = vpack.c.bf16 %v5500, %v5492
      %v5701 = vpack.c.bf16 %v5501, %v5493
      %v5702 = vpack.c.bf16 %v5502, %v5494
      %v5703 = vpack.c.bf16 %v5503, %v5495
      %v5704 = vld [vmem:[%s5] sm:$0xff]
      %v5705 = vld [vmem:[%s5 + $0x8] sm:$0xff]
      %v5706 = vld [vmem:[%s5 + $0x10] sm:$0xff]
      %v5707 = vld [vmem:[%s5 + $0x18] sm:$0xff]
      %v5708 = vld [vmem:[%s5 + $0x20] sm:$0xff]
      %v5709 = vld [vmem:[%s5 + $0x28] sm:$0xff]
      %v5710 = vld [vmem:[%s5 + $0x30] sm:$0xff]
      %v5711 = vld [vmem:[%s5 + $0x38] sm:$0xff]
      %v5712 = vld [vmem:[%s5 + $0x40] sm:$0xff]
      %v5713 = vld [vmem:[%s5 + $0x48] sm:$0xff]
      %v5714 = vld [vmem:[%s5 + $0x50] sm:$0xff]
      %v5715 = vld [vmem:[%s5 + $0x58] sm:$0xff]
      %v5716 = vld [vmem:[%s5 + $0x60] sm:$0xff]
      %v5717 = vld [vmem:[%s5 + $0x68] sm:$0xff]
      %v5718 = vld [vmem:[%s5 + $0x70] sm:$0xff]
      %v5719 = vld [vmem:[%s5 + $0x78] sm:$0xff]
      %v5720 = vld [vmem:[%s5 + $0x80] sm:$0xff]
      %v5721 = vld [vmem:[%s5 + $0x88] sm:$0xff]
      %v5722 = vld [vmem:[%s5 + $0x90] sm:$0xff]
      %v5723 = vld [vmem:[%s5 + $0x98] sm:$0xff]
      %v5724 = vld [vmem:[%s5 + $0xa0] sm:$0xff]
      %v5725 = vld [vmem:[%s5 + $0xa8] sm:$0xff]
      %v5726 = vld [vmem:[%s5 + $0xb0] sm:$0xff]
      %v5727 = vld [vmem:[%s5 + $0xb8] sm:$0xff]
      %v5728 = vld [vmem:[%s5 + $0xc0] sm:$0xff]
      %v5729 = vld [vmem:[%s5 + $0xc8] sm:$0xff]
      %v5730 = vld [vmem:[%s5 + $0xd0] sm:$0xff]
      %v5731 = vld [vmem:[%s5 + $0xd8] sm:$0xff]
      %v5732 = vld [vmem:[%s5 + $0xe0] sm:$0xff]
      %v5733 = vld [vmem:[%s5 + $0xe8] sm:$0xff]
      %v5734 = vld [vmem:[%s5 + $0xf0] sm:$0xff]
      %v5735 = vld [vmem:[%s5 + $0xf8] sm:$0xff]
      %v5736 = vld [vmem:[%s5 + $0x100] sm:$0xff]
      %v5737 = vld [vmem:[%s5 + $0x108] sm:$0xff]
      %v5738 = vld [vmem:[%s5 + $0x110] sm:$0xff]
      %v5739 = vld [vmem:[%s5 + $0x118] sm:$0xff]
      %v5740 = vld [vmem:[%s5 + $0x120] sm:$0xff]
      %v5741 = vld [vmem:[%s5 + $0x128] sm:$0xff]
      %v5742 = vld [vmem:[%s5 + $0x130] sm:$0xff]
      %v5743 = vld [vmem:[%s5 + $0x138] sm:$0xff]
      %v5744 = vld [vmem:[%s5 + $0x140] sm:$0xff]
      %v5745 = vld [vmem:[%s5 + $0x148] sm:$0xff]
      %v5746 = vld [vmem:[%s5 + $0x150] sm:$0xff]
      %v5747 = vld [vmem:[%s5 + $0x158] sm:$0xff]
      %v5748 = vld [vmem:[%s5 + $0x160] sm:$0xff]
      %v5749 = vld [vmem:[%s5 + $0x168] sm:$0xff]
      %v5750 = vld [vmem:[%s5 + $0x170] sm:$0xff]
      %v5751 = vld [vmem:[%s5 + $0x178] sm:$0xff]
      %v5752 = vld [vmem:[%s5 + $0x180] sm:$0xff]
      %v5753 = vld [vmem:[%s5 + $0x188] sm:$0xff]
      %v5754 = vld [vmem:[%s5 + $0x190] sm:$0xff]
      %v5755 = vld [vmem:[%s5 + $0x198] sm:$0xff]
      %v5756 = vld [vmem:[%s5 + $0x1a0] sm:$0xff]
      %v5757 = vld [vmem:[%s5 + $0x1a8] sm:$0xff]
      %v5758 = vld [vmem:[%s5 + $0x1b0] sm:$0xff]
      %v5759 = vld [vmem:[%s5 + $0x1b8] sm:$0xff]
      %v5760 = vld [vmem:[%s5 + $0x1c0] sm:$0xff]
      %v5761 = vld [vmem:[%s5 + $0x1c8] sm:$0xff]
      %v5762 = vld [vmem:[%s5 + $0x1d0] sm:$0xff]
      %v5763 = vld [vmem:[%s5 + $0x1d8] sm:$0xff]
      %v5764 = vld [vmem:[%s5 + $0x1e0] sm:$0xff]
      %v5765 = vld [vmem:[%s5 + $0x1e8] sm:$0xff]
      %v5766 = vld [vmem:[%s5 + $0x1f0] sm:$0xff]
      %v5767 = vld [vmem:[%s5 + $0x1f8] sm:$0xff]
      %v5768 = vld [vmem:[%s5 + $0x200] sm:$0xff]
      %v5769 = vld [vmem:[%s5 + $0x208] sm:$0xff]
      %v5770 = vld [vmem:[%s5 + $0x210] sm:$0xff]
      %v5771 = vld [vmem:[%s5 + $0x218] sm:$0xff]
      %v5772 = vld [vmem:[%s5 + $0x220] sm:$0xff]
      %v5773 = vld [vmem:[%s5 + $0x228] sm:$0xff]
      %v5774 = vld [vmem:[%s5 + $0x230] sm:$0xff]
      %v5775 = vld [vmem:[%s5 + $0x238] sm:$0xff]
      %v5776 = vld [vmem:[%s5 + $0x240] sm:$0xff]
      %v5777 = vld [vmem:[%s5 + $0x248] sm:$0xff]
      %v5778 = vld [vmem:[%s5 + $0x250] sm:$0xff]
      %v5779 = vld [vmem:[%s5 + $0x258] sm:$0xff]
      %v5780 = vld [vmem:[%s5 + $0x260] sm:$0xff]
      %v5781 = vld [vmem:[%s5 + $0x268] sm:$0xff]
      %v5782 = vld [vmem:[%s5 + $0x270] sm:$0xff]
      %v5783 = vld [vmem:[%s5 + $0x278] sm:$0xff]
      %v5784 = vld [vmem:[%s5 + $0x280] sm:$0xff]
      %v5785 = vld [vmem:[%s5 + $0x288] sm:$0xff]
      %v5786 = vld [vmem:[%s5 + $0x290] sm:$0xff]
      %v5787 = vld [vmem:[%s5 + $0x298] sm:$0xff]
      %v5788 = vld [vmem:[%s5 + $0x2a0] sm:$0xff]
      %v5789 = vld [vmem:[%s5 + $0x2a8] sm:$0xff]
      %v5790 = vld [vmem:[%s5 + $0x2b0] sm:$0xff]
      %v5791 = vld [vmem:[%s5 + $0x2b8] sm:$0xff]
      %v5792 = vld [vmem:[%s5 + $0x2c0] sm:$0xff]
      %v5793 = vld [vmem:[%s5 + $0x2c8] sm:$0xff]
      %v5794 = vld [vmem:[%s5 + $0x2d0] sm:$0xff]
      %v5795 = vld [vmem:[%s5 + $0x2d8] sm:$0xff]
      %v5796 = vld [vmem:[%s5 + $0x2e0] sm:$0xff]
      %v5797 = vld [vmem:[%s5 + $0x2e8] sm:$0xff]
      %v5798 = vld [vmem:[%s5 + $0x2f0] sm:$0xff]
      %v5799 = vld [vmem:[%s5 + $0x2f8] sm:$0xff]
      %v5800 = vld [vmem:[%s5 + $0x300] sm:$0xff]
      %v5801 = vld [vmem:[%s5 + $0x308] sm:$0xff]
      %v5802 = vld [vmem:[%s5 + $0x310] sm:$0xff]
      %v5803 = vld [vmem:[%s5 + $0x318] sm:$0xff]
      %v5804 = vld [vmem:[%s5 + $0x320] sm:$0xff]
      %v5805 = vld [vmem:[%s5 + $0x328] sm:$0xff]
      %v5806 = vld [vmem:[%s5 + $0x330] sm:$0xff]
      %v5807 = vld [vmem:[%s5 + $0x338] sm:$0xff]
      %v5808 = vld [vmem:[%s5 + $0x340] sm:$0xff]
      %v5809 = vld [vmem:[%s5 + $0x348] sm:$0xff]
      %v5810 = vld [vmem:[%s5 + $0x350] sm:$0xff]
      %v5811 = vld [vmem:[%s5 + $0x358] sm:$0xff]
      %v5812 = vld [vmem:[%s5 + $0x360] sm:$0xff]
      %v5813 = vld [vmem:[%s5 + $0x368] sm:$0xff]
      %v5814 = vld [vmem:[%s5 + $0x370] sm:$0xff]
      %v5815 = vld [vmem:[%s5 + $0x378] sm:$0xff]
      %v5816 = vld [vmem:[%s5 + $0x380] sm:$0xff]
      %v5817 = vld [vmem:[%s5 + $0x388] sm:$0xff]
      %v5818 = vld [vmem:[%s5 + $0x390] sm:$0xff]
      %v5819 = vld [vmem:[%s5 + $0x398] sm:$0xff]
      %v5820 = vld [vmem:[%s5 + $0x3a0] sm:$0xff]
      %v5821 = vld [vmem:[%s5 + $0x3a8] sm:$0xff]
      %v5822 = vld [vmem:[%s5 + $0x3b0] sm:$0xff]
      %v5823 = vld [vmem:[%s5 + $0x3b8] sm:$0xff]
      %v5824 = vld [vmem:[%s5 + $0x3c0] sm:$0xff]
      %v5825 = vld [vmem:[%s5 + $0x3c8] sm:$0xff]
      %v5826 = vld [vmem:[%s5 + $0x3d0] sm:$0xff]
      %v5827 = vld [vmem:[%s5 + $0x3d8] sm:$0xff]
      %v5828 = vld [vmem:[%s5 + $0x3e0] sm:$0xff]
      %v5829 = vld [vmem:[%s5 + $0x3e8] sm:$0xff]
      %v5830 = vld [vmem:[%s5 + $0x3f0] sm:$0xff]
      %v5831 = vld [vmem:[%s5 + $0x3f8] sm:$0xff]
      %v5832 = vld [vmem:[%s6] sm:$0x3]
      %v5834 = vlaneseq
      %v5835 = vshrl.u32 %v5834, 7
      %v5836 = vsub.s32 0, %v5835
      %v5837 = vrot.slane %v5832, %v5836
      %v5838 = vlaneseq
      %v5839 = vshrl.u32 %v5838, 7
      %v5840 = vsub.s32 1, %v5839
      %v5841 = vrot.slane %v5832, %v5840
      %v5972 = vunpack.c.l.b16 %v5704
      %v5973 = vunpack.c.h.b16 %v5704
      %v5974 = vunpack.c.l.b16 %v5705
      %v5975 = vunpack.c.h.b16 %v5705
      %v5976 = vunpack.c.l.b16 %v5706
      %v5977 = vunpack.c.h.b16 %v5706
      %v5978 = vunpack.c.l.b16 %v5707
      %v5979 = vunpack.c.h.b16 %v5707
      %v5980 = vunpack.c.l.b16 %v5708
      %v5981 = vunpack.c.h.b16 %v5708
      %v5982 = vunpack.c.l.b16 %v5709
      %v5983 = vunpack.c.h.b16 %v5709
      %v5984 = vunpack.c.l.b16 %v5710
      %v5985 = vunpack.c.h.b16 %v5710
      %v5986 = vunpack.c.l.b16 %v5711
      %v5987 = vunpack.c.h.b16 %v5711
      %v5988 = vunpack.c.l.b16 %v5712
      %v5989 = vunpack.c.h.b16 %v5712
      %v5990 = vunpack.c.l.b16 %v5713
      %v5991 = vunpack.c.h.b16 %v5713
      %v5992 = vunpack.c.l.b16 %v5714
      %v5993 = vunpack.c.h.b16 %v5714
      %v5994 = vunpack.c.l.b16 %v5715
      %v5995 = vunpack.c.h.b16 %v5715
      %v5996 = vunpack.c.l.b16 %v5716
      %v5997 = vunpack.c.h.b16 %v5716
      %v5998 = vunpack.c.l.b16 %v5717
      %v5999 = vunpack.c.h.b16 %v5717
      %v6000 = vunpack.c.l.b16 %v5718
      %v6001 = vunpack.c.h.b16 %v5718
      %v6002 = vunpack.c.l.b16 %v5719
      %v6003 = vunpack.c.h.b16 %v5719
      %v6004 = vunpack.c.l.b16 %v5720
      %v6005 = vunpack.c.h.b16 %v5720
      %v6006 = vunpack.c.l.b16 %v5721
      %v6007 = vunpack.c.h.b16 %v5721
      %v6008 = vunpack.c.l.b16 %v5722
      %v6009 = vunpack.c.h.b16 %v5722
      %v6010 = vunpack.c.l.b16 %v5723
      %v6011 = vunpack.c.h.b16 %v5723
      %v6012 = vunpack.c.l.b16 %v5724
      %v6013 = vunpack.c.h.b16 %v5724
      %v6014 = vunpack.c.l.b16 %v5725
      %v6015 = vunpack.c.h.b16 %v5725
      %v6016 = vunpack.c.l.b16 %v5726
      %v6017 = vunpack.c.h.b16 %v5726
      %v6018 = vunpack.c.l.b16 %v5727
      %v6019 = vunpack.c.h.b16 %v5727
      %v6020 = vunpack.c.l.b16 %v5728
      %v6021 = vunpack.c.h.b16 %v5728
      %v6022 = vunpack.c.l.b16 %v5729
      %v6023 = vunpack.c.h.b16 %v5729
      %v6024 = vunpack.c.l.b16 %v5730
      %v6025 = vunpack.c.h.b16 %v5730
      %v6026 = vunpack.c.l.b16 %v5731
      %v6027 = vunpack.c.h.b16 %v5731
      %v6028 = vunpack.c.l.b16 %v5732
      %v6029 = vunpack.c.h.b16 %v5732
      %v6030 = vunpack.c.l.b16 %v5733
      %v6031 = vunpack.c.h.b16 %v5733
      %v6032 = vunpack.c.l.b16 %v5734
      %v6033 = vunpack.c.h.b16 %v5734
      %v6034 = vunpack.c.l.b16 %v5735
      %v6035 = vunpack.c.h.b16 %v5735
      %v6036 = vunpack.c.l.b16 %v5736
      %v6037 = vunpack.c.h.b16 %v5736
      %v6038 = vunpack.c.l.b16 %v5737
      %v6039 = vunpack.c.h.b16 %v5737
      %v6040 = vunpack.c.l.b16 %v5738
      %v6041 = vunpack.c.h.b16 %v5738
      %v6042 = vunpack.c.l.b16 %v5739
      %v6043 = vunpack.c.h.b16 %v5739
      %v6044 = vunpack.c.l.b16 %v5740
      %v6045 = vunpack.c.h.b16 %v5740
      %v6046 = vunpack.c.l.b16 %v5741
      %v6047 = vunpack.c.h.b16 %v5741
      %v6048 = vunpack.c.l.b16 %v5742
      %v6049 = vunpack.c.h.b16 %v5742
      %v6050 = vunpack.c.l.b16 %v5743
      %v6051 = vunpack.c.h.b16 %v5743
      %v6052 = vunpack.c.l.b16 %v5744
      %v6053 = vunpack.c.h.b16 %v5744
      %v6054 = vunpack.c.l.b16 %v5745
      %v6055 = vunpack.c.h.b16 %v5745
      %v6056 = vunpack.c.l.b16 %v5746
      %v6057 = vunpack.c.h.b16 %v5746
      %v6058 = vunpack.c.l.b16 %v5747
      %v6059 = vunpack.c.h.b16 %v5747
      %v6060 = vunpack.c.l.b16 %v5748
      %v6061 = vunpack.c.h.b16 %v5748
      %v6062 = vunpack.c.l.b16 %v5749
      %v6063 = vunpack.c.h.b16 %v5749
      %v6064 = vunpack.c.l.b16 %v5750
      %v6065 = vunpack.c.h.b16 %v5750
      %v6066 = vunpack.c.l.b16 %v5751
      %v6067 = vunpack.c.h.b16 %v5751
      %v6068 = vunpack.c.l.b16 %v5752
      %v6069 = vunpack.c.h.b16 %v5752
      %v6070 = vunpack.c.l.b16 %v5753
      %v6071 = vunpack.c.h.b16 %v5753
      %v6072 = vunpack.c.l.b16 %v5754
      %v6073 = vunpack.c.h.b16 %v5754
      %v6074 = vunpack.c.l.b16 %v5755
      %v6075 = vunpack.c.h.b16 %v5755
      %v6076 = vunpack.c.l.b16 %v5756
      %v6077 = vunpack.c.h.b16 %v5756
      %v6078 = vunpack.c.l.b16 %v5757
      %v6079 = vunpack.c.h.b16 %v5757
      %v6080 = vunpack.c.l.b16 %v5758
      %v6081 = vunpack.c.h.b16 %v5758
      %v6082 = vunpack.c.l.b16 %v5759
      %v6083 = vunpack.c.h.b16 %v5759
      %v6084 = vunpack.c.l.b16 %v5760
      %v6085 = vunpack.c.h.b16 %v5760
      %v6086 = vunpack.c.l.b16 %v5761
      %v6087 = vunpack.c.h.b16 %v5761
      %v6088 = vunpack.c.l.b16 %v5762
      %v6089 = vunpack.c.h.b16 %v5762
      %v6090 = vunpack.c.l.b16 %v5763
      %v6091 = vunpack.c.h.b16 %v5763
      %v6092 = vunpack.c.l.b16 %v5764
      %v6093 = vunpack.c.h.b16 %v5764
      %v6094 = vunpack.c.l.b16 %v5765
      %v6095 = vunpack.c.h.b16 %v5765
      %v6096 = vunpack.c.l.b16 %v5766
      %v6097 = vunpack.c.h.b16 %v5766
      %v6098 = vunpack.c.l.b16 %v5767
      %v6099 = vunpack.c.h.b16 %v5767
      %v6100 = vunpack.c.l.b16 %v5768
      %v6101 = vunpack.c.h.b16 %v5768
      %v6102 = vunpack.c.l.b16 %v5769
      %v6103 = vunpack.c.h.b16 %v5769
      %v6104 = vunpack.c.l.b16 %v5770
      %v6105 = vunpack.c.h.b16 %v5770
      %v6106 = vunpack.c.l.b16 %v5771
      %v6107 = vunpack.c.h.b16 %v5771
      %v6108 = vunpack.c.l.b16 %v5772
      %v6109 = vunpack.c.h.b16 %v5772
      %v6110 = vunpack.c.l.b16 %v5773
      %v6111 = vunpack.c.h.b16 %v5773
      %v6112 = vunpack.c.l.b16 %v5774
      %v6113 = vunpack.c.h.b16 %v5774
      %v6114 = vunpack.c.l.b16 %v5775
      %v6115 = vunpack.c.h.b16 %v5775
      %v6116 = vunpack.c.l.b16 %v5776
      %v6117 = vunpack.c.h.b16 %v5776
      %v6118 = vunpack.c.l.b16 %v5777
      %v6119 = vunpack.c.h.b16 %v5777
      %v6120 = vunpack.c.l.b16 %v5778
      %v6121 = vunpack.c.h.b16 %v5778
      %v6122 = vunpack.c.l.b16 %v5779
      %v6123 = vunpack.c.h.b16 %v5779
      %v6124 = vunpack.c.l.b16 %v5780
      %v6125 = vunpack.c.h.b16 %v5780
      %v6126 = vunpack.c.l.b16 %v5781
      %v6127 = vunpack.c.h.b16 %v5781
      %v6128 = vunpack.c.l.b16 %v5782
      %v6129 = vunpack.c.h.b16 %v5782
      %v6130 = vunpack.c.l.b16 %v5783
      %v6131 = vunpack.c.h.b16 %v5783
      %v6132 = vunpack.c.l.b16 %v5784
      %v6133 = vunpack.c.h.b16 %v5784
      %v6134 = vunpack.c.l.b16 %v5785
      %v6135 = vunpack.c.h.b16 %v5785
      %v6136 = vunpack.c.l.b16 %v5786
      %v6137 = vunpack.c.h.b16 %v5786
      %v6138 = vunpack.c.l.b16 %v5787
      %v6139 = vunpack.c.h.b16 %v5787
      %v6140 = vunpack.c.l.b16 %v5788
      %v6141 = vunpack.c.h.b16 %v5788
      %v6142 = vunpack.c.l.b16 %v5789
      %v6143 = vunpack.c.h.b16 %v5789
      %v6144 = vunpack.c.l.b16 %v5790
      %v6145 = vunpack.c.h.b16 %v5790
      %v6146 = vunpack.c.l.b16 %v5791
      %v6147 = vunpack.c.h.b16 %v5791
      %v6148 = vunpack.c.l.b16 %v5792
      %v6149 = vunpack.c.h.b16 %v5792
      %v6150 = vunpack.c.l.b16 %v5793
      %v6151 = vunpack.c.h.b16 %v5793
      %v6152 = vunpack.c.l.b16 %v5794
      %v6153 = vunpack.c.h.b16 %v5794
      %v6154 = vunpack.c.l.b16 %v5795
      %v6155 = vunpack.c.h.b16 %v5795
      %v6156 = vunpack.c.l.b16 %v5796
      %v6157 = vunpack.c.h.b16 %v5796
      %v6158 = vunpack.c.l.b16 %v5797
      %v6159 = vunpack.c.h.b16 %v5797
      %v6160 = vunpack.c.l.b16 %v5798
      %v6161 = vunpack.c.h.b16 %v5798
      %v6162 = vunpack.c.l.b16 %v5799
      %v6163 = vunpack.c.h.b16 %v5799
      %v6164 = vunpack.c.l.b16 %v5800
      %v6165 = vunpack.c.h.b16 %v5800
      %v6166 = vunpack.c.l.b16 %v5801
      %v6167 = vunpack.c.h.b16 %v5801
      %v6168 = vunpack.c.l.b16 %v5802
      %v6169 = vunpack.c.h.b16 %v5802
      %v6170 = vunpack.c.l.b16 %v5803
      %v6171 = vunpack.c.h.b16 %v5803
      %v6172 = vunpack.c.l.b16 %v5804
      %v6173 = vunpack.c.h.b16 %v5804
      %v6174 = vunpack.c.l.b16 %v5805
      %v6175 = vunpack.c.h.b16 %v5805
      %v6176 = vunpack.c.l.b16 %v5806
      %v6177 = vunpack.c.h.b16 %v5806
      %v6178 = vunpack.c.l.b16 %v5807
      %v6179 = vunpack.c.h.b16 %v5807
      %v6180 = vunpack.c.l.b16 %v5808
      %v6181 = vunpack.c.h.b16 %v5808
      %v6182 = vunpack.c.l.b16 %v5809
      %v6183 = vunpack.c.h.b16 %v5809
      %v6184 = vunpack.c.l.b16 %v5810
      %v6185 = vunpack.c.h.b16 %v5810
      %v6186 = vunpack.c.l.b16 %v5811
      %v6187 = vunpack.c.h.b16 %v5811
      %v6188 = vunpack.c.l.b16 %v5812
      %v6189 = vunpack.c.h.b16 %v5812
      %v6190 = vunpack.c.l.b16 %v5813
      %v6191 = vunpack.c.h.b16 %v5813
      %v6192 = vunpack.c.l.b16 %v5814
      %v6193 = vunpack.c.h.b16 %v5814
      %v6194 = vunpack.c.l.b16 %v5815
      %v6195 = vunpack.c.h.b16 %v5815
      %v6196 = vunpack.c.l.b16 %v5816
      %v6197 = vunpack.c.h.b16 %v5816
      %v6198 = vunpack.c.l.b16 %v5817
      %v6199 = vunpack.c.h.b16 %v5817
      %v6200 = vunpack.c.l.b16 %v5818
      %v6201 = vunpack.c.h.b16 %v5818
      %v6202 = vunpack.c.l.b16 %v5819
      %v6203 = vunpack.c.h.b16 %v5819
      %v6204 = vunpack.c.l.b16 %v5820
      %v6205 = vunpack.c.h.b16 %v5820
      %v6206 = vunpack.c.l.b16 %v5821
      %v6207 = vunpack.c.h.b16 %v5821
      %v6208 = vunpack.c.l.b16 %v5822
      %v6209 = vunpack.c.h.b16 %v5822
      %v6210 = vunpack.c.l.b16 %v5823
      %v6211 = vunpack.c.h.b16 %v5823
      %v6212 = vunpack.c.l.b16 %v5824
      %v6213 = vunpack.c.h.b16 %v5824
      %v6214 = vunpack.c.l.b16 %v5825
      %v6215 = vunpack.c.h.b16 %v5825
      %v6216 = vunpack.c.l.b16 %v5826
      %v6217 = vunpack.c.h.b16 %v5826
      %v6218 = vunpack.c.l.b16 %v5827
      %v6219 = vunpack.c.h.b16 %v5827
      %v6220 = vunpack.c.l.b16 %v5828
      %v6221 = vunpack.c.h.b16 %v5828
      %v6222 = vunpack.c.l.b16 %v5829
      %v6223 = vunpack.c.h.b16 %v5829
      %v6224 = vunpack.c.l.b16 %v5830
      %v6225 = vunpack.c.h.b16 %v5830
      %v6226 = vunpack.c.l.b16 %v5831
      %v6227 = vunpack.c.h.b16 %v5831
      %v6228 = vpack.c.b16 %v5974, %v5972
      %v6229 = vpack.c.b16 %v5975, %v5973
      %v6230 = vpack.c.b16 %v5978, %v5976
      %v6231 = vpack.c.b16 %v5979, %v5977
      %v6232 = vpack.c.b16 %v5982, %v5980
      %v6233 = vpack.c.b16 %v5983, %v5981
      %v6234 = vpack.c.b16 %v5986, %v5984
      %v6235 = vpack.c.b16 %v5987, %v5985
      %v6236 = vpack.c.b16 %v5990, %v5988
      %v6237 = vpack.c.b16 %v5991, %v5989
      %v6238 = vpack.c.b16 %v5994, %v5992
      %v6239 = vpack.c.b16 %v5995, %v5993
      %v6240 = vpack.c.b16 %v5998, %v5996
      %v6241 = vpack.c.b16 %v5999, %v5997
      %v6242 = vpack.c.b16 %v6002, %v6000
      %v6243 = vpack.c.b16 %v6003, %v6001
      %v6244 = vpack.c.b16 %v6006, %v6004
      %v6245 = vpack.c.b16 %v6007, %v6005
      %v6246 = vpack.c.b16 %v6010, %v6008
      %v6247 = vpack.c.b16 %v6011, %v6009
      %v6248 = vpack.c.b16 %v6014, %v6012
      %v6249 = vpack.c.b16 %v6015, %v6013
      %v6250 = vpack.c.b16 %v6018, %v6016
      %v6251 = vpack.c.b16 %v6019, %v6017
      %v6252 = vpack.c.b16 %v6022, %v6020
      %v6253 = vpack.c.b16 %v6023, %v6021
      %v6254 = vpack.c.b16 %v6026, %v6024
      %v6255 = vpack.c.b16 %v6027, %v6025
      %v6256 = vpack.c.b16 %v6030, %v6028
      %v6257 = vpack.c.b16 %v6031, %v6029
      %v6258 = vpack.c.b16 %v6034, %v6032
      %v6259 = vpack.c.b16 %v6035, %v6033
      %v6260 = vpack.c.b16 %v6038, %v6036
      %v6261 = vpack.c.b16 %v6039, %v6037
      %v6262 = vpack.c.b16 %v6042, %v6040
      %v6263 = vpack.c.b16 %v6043, %v6041
      %v6264 = vpack.c.b16 %v6046, %v6044
      %v6265 = vpack.c.b16 %v6047, %v6045
      %v6266 = vpack.c.b16 %v6050, %v6048
      %v6267 = vpack.c.b16 %v6051, %v6049
      %v6268 = vpack.c.b16 %v6054, %v6052
      %v6269 = vpack.c.b16 %v6055, %v6053
      %v6270 = vpack.c.b16 %v6058, %v6056
      %v6271 = vpack.c.b16 %v6059, %v6057
      %v6272 = vpack.c.b16 %v6062, %v6060
      %v6273 = vpack.c.b16 %v6063, %v6061
      %v6274 = vpack.c.b16 %v6066, %v6064
      %v6275 = vpack.c.b16 %v6067, %v6065
      %v6276 = vpack.c.b16 %v6070, %v6068
      %v6277 = vpack.c.b16 %v6071, %v6069
      %v6278 = vpack.c.b16 %v6074, %v6072
      %v6279 = vpack.c.b16 %v6075, %v6073
      %v6280 = vpack.c.b16 %v6078, %v6076
      %v6281 = vpack.c.b16 %v6079, %v6077
      %v6282 = vpack.c.b16 %v6082, %v6080
      %v6283 = vpack.c.b16 %v6083, %v6081
      %v6284 = vpack.c.b16 %v6086, %v6084
      %v6285 = vpack.c.b16 %v6087, %v6085
      %v6286 = vpack.c.b16 %v6090, %v6088
      %v6287 = vpack.c.b16 %v6091, %v6089
      %v6288 = vpack.c.b16 %v6094, %v6092
      %v6289 = vpack.c.b16 %v6095, %v6093
      %v6290 = vpack.c.b16 %v6098, %v6096
      %v6291 = vpack.c.b16 %v6099, %v6097
      %v6292 = vpack.c.b16 %v6102, %v6100
      %v6293 = vpack.c.b16 %v6103, %v6101
      %v6294 = vpack.c.b16 %v6106, %v6104
      %v6295 = vpack.c.b16 %v6107, %v6105
      %v6296 = vpack.c.b16 %v6110, %v6108
      %v6297 = vpack.c.b16 %v6111, %v6109
      %v6298 = vpack.c.b16 %v6114, %v6112
      %v6299 = vpack.c.b16 %v6115, %v6113
      %v6300 = vpack.c.b16 %v6118, %v6116
      %v6301 = vpack.c.b16 %v6119, %v6117
      %v6302 = vpack.c.b16 %v6122, %v6120
      %v6303 = vpack.c.b16 %v6123, %v6121
      %v6304 = vpack.c.b16 %v6126, %v6124
      %v6305 = vpack.c.b16 %v6127, %v6125
      %v6306 = vpack.c.b16 %v6130, %v6128
      %v6307 = vpack.c.b16 %v6131, %v6129
      %v6308 = vpack.c.b16 %v6134, %v6132
      %v6309 = vpack.c.b16 %v6135, %v6133
      %v6310 = vpack.c.b16 %v6138, %v6136
      %v6311 = vpack.c.b16 %v6139, %v6137
      %v6312 = vpack.c.b16 %v6142, %v6140
      %v6313 = vpack.c.b16 %v6143, %v6141
      %v6314 = vpack.c.b16 %v6146, %v6144
      %v6315 = vpack.c.b16 %v6147, %v6145
      %v6316 = vpack.c.b16 %v6150, %v6148
      %v6317 = vpack.c.b16 %v6151, %v6149
      %v6318 = vpack.c.b16 %v6154, %v6152
      %v6319 = vpack.c.b16 %v6155, %v6153
      %v6320 = vpack.c.b16 %v6158, %v6156
      %v6321 = vpack.c.b16 %v6159, %v6157
      %v6322 = vpack.c.b16 %v6162, %v6160
      %v6323 = vpack.c.b16 %v6163, %v6161
      %v6324 = vpack.c.b16 %v6166, %v6164
      %v6325 = vpack.c.b16 %v6167, %v6165
      %v6326 = vpack.c.b16 %v6170, %v6168
      %v6327 = vpack.c.b16 %v6171, %v6169
      %v6328 = vpack.c.b16 %v6174, %v6172
      %v6329 = vpack.c.b16 %v6175, %v6173
      %v6330 = vpack.c.b16 %v6178, %v6176
      %v6331 = vpack.c.b16 %v6179, %v6177
      %v6332 = vpack.c.b16 %v6182, %v6180
      %v6333 = vpack.c.b16 %v6183, %v6181
      %v6334 = vpack.c.b16 %v6186, %v6184
      %v6335 = vpack.c.b16 %v6187, %v6185
      %v6336 = vpack.c.b16 %v6190, %v6188
      %v6337 = vpack.c.b16 %v6191, %v6189
      %v6338 = vpack.c.b16 %v6194, %v6192
      %v6339 = vpack.c.b16 %v6195, %v6193
      %v6340 = vpack.c.b16 %v6198, %v6196
      %v6341 = vpack.c.b16 %v6199, %v6197
      %v6342 = vpack.c.b16 %v6202, %v6200
      %v6343 = vpack.c.b16 %v6203, %v6201
      %v6344 = vpack.c.b16 %v6206, %v6204
      %v6345 = vpack.c.b16 %v6207, %v6205
      %v6346 = vpack.c.b16 %v6210, %v6208
      %v6347 = vpack.c.b16 %v6211, %v6209
      %v6348 = vpack.c.b16 %v6214, %v6212
      %v6349 = vpack.c.b16 %v6215, %v6213
      %v6350 = vpack.c.b16 %v6218, %v6216
      %v6351 = vpack.c.b16 %v6219, %v6217
      %v6352 = vpack.c.b16 %v6222, %v6220
      %v6353 = vpack.c.b16 %v6223, %v6221
      %v6354 = vpack.c.b16 %v6226, %v6224
      %v6355 = vpack.c.b16 %v6227, %v6225
      %6484 = vmatprep.subr.bf16.mxu0 %v6243
      %6485 = vmatpush1.bf16.msra.mxu0 %v6242
      %6486 = vmatprep.subr.bf16.mxu0 %v6241
      %6487 = vmatpush1.bf16.msra.mxu0 %v6240
      %6488 = vmatprep.subr.bf16.mxu0 %v6239
      %6489 = vmatpush1.bf16.msra.mxu0 %v6238
      %6490 = vmatprep.subr.bf16.mxu0 %v6237
      %6491 = vmatpush1.bf16.msra.mxu0 %v6236
      %6492 = vmatprep.subr.bf16.mxu0 %v6235
      %6493 = vmatpush1.bf16.msra.mxu0 %v6234
      %6494 = vmatprep.subr.bf16.mxu0 %v6233
      %6495 = vmatpush1.bf16.msra.mxu0 %v6232
      %6496 = vmatprep.subr.bf16.mxu0 %v6231
      %6497 = vmatpush1.bf16.msra.mxu0 %v6230
      %6498 = vmatprep.subr.bf16.mxu0 %v6229
      %6499 = vmatpush1.bf16.msra.mxu0 %v6228
      %6500 = vmatprep.subr.bf16.mxu0 %v6259
      %6501 = vmatpush2.bf16.msra.mxu0 %v6258
      %6502 = vmatprep.subr.bf16.mxu0 %v6257
      %6503 = vmatpush2.bf16.msra.mxu0 %v6256
      %6504 = vmatprep.subr.bf16.mxu0 %v6255
      %6505 = vmatpush2.bf16.msra.mxu0 %v6254
      %6506 = vmatprep.subr.bf16.mxu0 %v6253
      %6507 = vmatpush2.bf16.msra.mxu0 %v6252
      %6508 = vmatprep.subr.bf16.mxu0 %v6251
      %6509 = vmatpush2.bf16.msra.mxu0 %v6250
      %6510 = vmatprep.subr.bf16.mxu0 %v6249
      %6511 = vmatpush2.bf16.msra.mxu0 %v6248
      %6512 = vmatprep.subr.bf16.mxu0 %v6247
      %6513 = vmatpush2.bf16.msra.mxu0 %v6246
      %6514 = vmatprep.subr.bf16.mxu0 %v6245
      %6515 = vmatpush2.bf16.msra.mxu0 %v6244
      %6516 = vmatprep.mubr.bf16.mxu0 %v5505
      %6517 = vmatmul.mubr.bf16.gmra.mxu0 %v5504
      %v6518 = vpop.f32.mrf.mxu0
      %v6519 = vadd.f32 %v5837, %v6518
      %v6520 = vpop.f32.mrf.mxu0
      %v6521 = vadd.f32 %v5841, %v6520
      %v6522 = vpop.f32.mrf.mxu0
      %v6523 = vadd.f32 %v5837, %v6522
      %v6524 = vpop.f32.mrf.mxu0
      %v6525 = vadd.f32 %v5841, %v6524
      %6526 = vmatprep.mubr.bf16.mxu0 %v5513
      %6527 = vmatmul.mubr.bf16.gmra.mxu0 %v5512
      %v6528 = vpop.f32.mrf.mxu0
      %v6529 = vadd.f32 %v5837, %v6528
      %v6530 = vpop.f32.mrf.mxu0
      %v6531 = vadd.f32 %v5841, %v6530
      %v6532 = vpop.f32.mrf.mxu0
      %v6533 = vadd.f32 %v5837, %v6532
      %v6534 = vpop.f32.mrf.mxu0
      %v6535 = vadd.f32 %v5841, %v6534
      %6536 = vmatprep.mubr.bf16.mxu0 %v5521
      %6537 = vmatmul.mubr.bf16.gmra.mxu0 %v5520
      %v6538 = vpop.f32.mrf.mxu0
      %v6539 = vadd.f32 %v5837, %v6538
      %v6540 = vpop.f32.mrf.mxu0
      %v6541 = vadd.f32 %v5841, %v6540
      %v6542 = vpop.f32.mrf.mxu0
      %v6543 = vadd.f32 %v5837, %v6542
      %v6544 = vpop.f32.mrf.mxu0
      %v6545 = vadd.f32 %v5841, %v6544
      %6546 = vmatprep.mubr.bf16.mxu0 %v5529
      %6547 = vmatmul.mubr.bf16.gmra.mxu0 %v5528
      %v6548 = vpop.f32.mrf.mxu0
      %v6549 = vadd.f32 %v5837, %v6548
      %v6550 = vpop.f32.mrf.mxu0
      %v6551 = vadd.f32 %v5841, %v6550
      %v6552 = vpop.f32.mrf.mxu0
      %v6553 = vadd.f32 %v5837, %v6552
      %v6554 = vpop.f32.mrf.mxu0
      %v6555 = vadd.f32 %v5841, %v6554
      %6556 = vmatprep.mubr.bf16.mxu0 %v5537
      %6557 = vmatmul.mubr.bf16.gmra.mxu0 %v5536
      %v6558 = vpop.f32.mrf.mxu0
      %v6559 = vadd.f32 %v5837, %v6558
      %v6560 = vpop.f32.mrf.mxu0
      %v6561 = vadd.f32 %v5841, %v6560
      %v6562 = vpop.f32.mrf.mxu0
      %v6563 = vadd.f32 %v5837, %v6562
      %v6564 = vpop.f32.mrf.mxu0
      %v6565 = vadd.f32 %v5841, %v6564
      %6566 = vmatprep.mubr.bf16.mxu0 %v5545
      %6567 = vmatmul.mubr.bf16.gmra.mxu0 %v5544
      %v6568 = vpop.f32.mrf.mxu0
      %v6569 = vadd.f32 %v5837, %v6568
      %v6570 = vpop.f32.mrf.mxu0
      %v6571 = vadd.f32 %v5841, %v6570
      %v6572 = vpop.f32.mrf.mxu0
      %v6573 = vadd.f32 %v5837, %v6572
      %v6574 = vpop.f32.mrf.mxu0
      %v6575 = vadd.f32 %v5841, %v6574
      %6576 = vmatprep.mubr.bf16.mxu0 %v5553
      %6577 = vmatmul.mubr.bf16.gmra.mxu0 %v5552
      %v6578 = vpop.f32.mrf.mxu0
      %v6579 = vadd.f32 %v5837, %v6578
      %v6580 = vpop.f32.mrf.mxu0
      %v6581 = vadd.f32 %v5841, %v6580
      %v6582 = vpop.f32.mrf.mxu0
      %v6583 = vadd.f32 %v5837, %v6582
      %v6584 = vpop.f32.mrf.mxu0
      %v6585 = vadd.f32 %v5841, %v6584
      %6586 = vmatprep.mubr.bf16.mxu0 %v5561
      %6587 = vmatmul.mubr.bf16.gmra.mxu0 %v5560
      %v6588 = vpop.f32.mrf.mxu0
      %v6589 = vadd.f32 %v5837, %v6588
      %v6590 = vpop.f32.mrf.mxu0
      %v6591 = vadd.f32 %v5841, %v6590
      %v6592 = vpop.f32.mrf.mxu0
      %v6593 = vadd.f32 %v5837, %v6592
      %v6594 = vpop.f32.mrf.mxu0
      %v6595 = vadd.f32 %v5841, %v6594
      %6596 = vmatprep.mubr.bf16.mxu0 %v5569
      %6597 = vmatmul.mubr.bf16.gmra.mxu0 %v5568
      %v6598 = vpop.f32.mrf.mxu0
      %v6599 = vadd.f32 %v5837, %v6598
      %v6600 = vpop.f32.mrf.mxu0
      %v6601 = vadd.f32 %v5841, %v6600
      %v6602 = vpop.f32.mrf.mxu0
      %v6603 = vadd.f32 %v5837, %v6602
      %v6604 = vpop.f32.mrf.mxu0
      %v6605 = vadd.f32 %v5841, %v6604
      %6606 = vmatprep.mubr.bf16.mxu0 %v5577
      %6607 = vmatmul.mubr.bf16.gmra.mxu0 %v5576
      %v6608 = vpop.f32.mrf.mxu0
      %v6609 = vadd.f32 %v5837, %v6608
      %v6610 = vpop.f32.mrf.mxu0
      %v6611 = vadd.f32 %v5841, %v6610
      %v6612 = vpop.f32.mrf.mxu0
      %v6613 = vadd.f32 %v5837, %v6612
      %v6614 = vpop.f32.mrf.mxu0
      %v6615 = vadd.f32 %v5841, %v6614
      %6616 = vmatprep.mubr.bf16.mxu0 %v5585
      %6617 = vmatmul.mubr.bf16.gmra.mxu0 %v5584
      %v6618 = vpop.f32.mrf.mxu0
      %v6619 = vadd.f32 %v5837, %v6618
      %v6620 = vpop.f32.mrf.mxu0
      %v6621 = vadd.f32 %v5841, %v6620
      %v6622 = vpop.f32.mrf.mxu0
      %v6623 = vadd.f32 %v5837, %v6622
      %v6624 = vpop.f32.mrf.mxu0
      %v6625 = vadd.f32 %v5841, %v6624
      %6626 = vmatprep.mubr.bf16.mxu0 %v5593
      %6627 = vmatmul.mubr.bf16.gmra.mxu0 %v5592
      %v6628 = vpop.f32.mrf.mxu0
      %v6629 = vadd.f32 %v5837, %v6628
      %v6630 = vpop.f32.mrf.mxu0
      %v6631 = vadd.f32 %v5841, %v6630
      %v6632 = vpop.f32.mrf.mxu0
      %v6633 = vadd.f32 %v5837, %v6632
      %v6634 = vpop.f32.mrf.mxu0
      %v6635 = vadd.f32 %v5841, %v6634
      %6636 = vmatprep.mubr.bf16.mxu0 %v5601
      %6637 = vmatmul.mubr.bf16.gmra.mxu0 %v5600
      %v6638 = vpop.f32.mrf.mxu0
      %v6639 = vadd.f32 %v5837, %v6638
      %v6640 = vpop.f32.mrf.mxu0
      %v6641 = vadd.f32 %v5841, %v6640
      %v6642 = vpop.f32.mrf.mxu0
      %v6643 = vadd.f32 %v5837, %v6642
      %v6644 = vpop.f32.mrf.mxu0
      %v6645 = vadd.f32 %v5841, %v6644
      %6646 = vmatprep.mubr.bf16.mxu0 %v5609
      %6647 = vmatmul.mubr.bf16.gmra.mxu0 %v5608
      %v6648 = vpop.f32.mrf.mxu0
      %v6649 = vadd.f32 %v5837, %v6648
      %v6650 = vpop.f32.mrf.mxu0
      %v6651 = vadd.f32 %v5841, %v6650
      %v6652 = vpop.f32.mrf.mxu0
      %v6653 = vadd.f32 %v5837, %v6652
      %v6654 = vpop.f32.mrf.mxu0
      %v6655 = vadd.f32 %v5841, %v6654
      %6656 = vmatprep.mubr.bf16.mxu0 %v5617
      %6657 = vmatmul.mubr.bf16.gmra.mxu0 %v5616
      %v6658 = vpop.f32.mrf.mxu0
      %v6659 = vadd.f32 %v5837, %v6658
      %v6660 = vpop.f32.mrf.mxu0
      %v6661 = vadd.f32 %v5841, %v6660
      %v6662 = vpop.f32.mrf.mxu0
      %v6663 = vadd.f32 %v5837, %v6662
      %v6664 = vpop.f32.mrf.mxu0
      %v6665 = vadd.f32 %v5841, %v6664
      %6666 = vmatprep.mubr.bf16.mxu0 %v5625
      %6667 = vmatmul.mubr.bf16.gmra.mxu0 %v5624
      %v6668 = vpop.f32.mrf.mxu0
      %v6669 = vadd.f32 %v5837, %v6668
      %v6670 = vpop.f32.mrf.mxu0
      %v6671 = vadd.f32 %v5841, %v6670
      %v6672 = vpop.f32.mrf.mxu0
      %v6673 = vadd.f32 %v5837, %v6672
      %v6674 = vpop.f32.mrf.mxu0
      %v6675 = vadd.f32 %v5841, %v6674
      %6676 = vmatprep.mubr.bf16.mxu0 %v5633
      %6677 = vmatmul.mubr.bf16.gmra.mxu0 %v5632
      %v6678 = vpop.f32.mrf.mxu0
      %v6679 = vadd.f32 %v5837, %v6678
      %v6680 = vpop.f32.mrf.mxu0
      %v6681 = vadd.f32 %v5841, %v6680
      %v6682 = vpop.f32.mrf.mxu0
      %v6683 = vadd.f32 %v5837, %v6682
      %v6684 = vpop.f32.mrf.mxu0
      %v6685 = vadd.f32 %v5841, %v6684
      %6686 = vmatprep.mubr.bf16.mxu0 %v5641
      %6687 = vmatmul.mubr.bf16.gmra.mxu0 %v5640
      %v6688 = vpop.f32.mrf.mxu0
      %v6689 = vadd.f32 %v5837, %v6688
      %v6690 = vpop.f32.mrf.mxu0
      %v6691 = vadd.f32 %v5841, %v6690
      %v6692 = vpop.f32.mrf.mxu0
      %v6693 = vadd.f32 %v5837, %v6692
      %v6694 = vpop.f32.mrf.mxu0
      %v6695 = vadd.f32 %v5841, %v6694
      %6696 = vmatprep.mubr.bf16.mxu0 %v5649
      %6697 = vmatmul.mubr.bf16.gmra.mxu0 %v5648
      %v6698 = vpop.f32.mrf.mxu0
      %v6699 = vadd.f32 %v5837, %v6698
      %v6700 = vpop.f32.mrf.mxu0
      %v6701 = vadd.f32 %v5841, %v6700
      %v6702 = vpop.f32.mrf.mxu0
      %v6703 = vadd.f32 %v5837, %v6702
      %v6704 = vpop.f32.mrf.mxu0
      %v6705 = vadd.f32 %v5841, %v6704
      %6706 = vmatprep.mubr.bf16.mxu0 %v5657
      %6707 = vmatmul.mubr.bf16.gmra.mxu0 %v5656
      %v6708 = vpop.f32.mrf.mxu0
      %v6709 = vadd.f32 %v5837, %v6708
      %v6710 = vpop.f32.mrf.mxu0
      %v6711 = vadd.f32 %v5841, %v6710
      %v6712 = vpop.f32.mrf.mxu0
      %v6713 = vadd.f32 %v5837, %v6712
      %v6714 = vpop.f32.mrf.mxu0
      %v6715 = vadd.f32 %v5841, %v6714
      %6716 = vmatprep.mubr.bf16.mxu0 %v5665
      %6717 = vmatmul.mubr.bf16.gmra.mxu0 %v5664
      %v6718 = vpop.f32.mrf.mxu0
      %v6719 = vadd.f32 %v5837, %v6718
      %v6720 = vpop.f32.mrf.mxu0
      %v6721 = vadd.f32 %v5841, %v6720
      %v6722 = vpop.f32.mrf.mxu0
      %v6723 = vadd.f32 %v5837, %v6722
      %v6724 = vpop.f32.mrf.mxu0
      %v6725 = vadd.f32 %v5841, %v6724
      %6726 = vmatprep.mubr.bf16.mxu0 %v5673
      %6727 = vmatmul.mubr.bf16.gmra.mxu0 %v5672
      %v6728 = vpop.f32.mrf.mxu0
      %v6729 = vadd.f32 %v5837, %v6728
      %v6730 = vpop.f32.mrf.mxu0
      %v6731 = vadd.f32 %v5841, %v6730
      %v6732 = vpop.f32.mrf.mxu0
      %v6733 = vadd.f32 %v5837, %v6732
      %v6734 = vpop.f32.mrf.mxu0
      %v6735 = vadd.f32 %v5841, %v6734
      %6736 = vmatprep.mubr.bf16.mxu0 %v5681
      %6737 = vmatmul.mubr.bf16.gmra.mxu0 %v5680
      %v6738 = vpop.f32.mrf.mxu0
      %v6739 = vadd.f32 %v5837, %v6738
      %v6740 = vpop.f32.mrf.mxu0
      %v6741 = vadd.f32 %v5841, %v6740
      %v6742 = vpop.f32.mrf.mxu0
      %v6743 = vadd.f32 %v5837, %v6742
      %v6744 = vpop.f32.mrf.mxu0
      %v6745 = vadd.f32 %v5841, %v6744
      %6746 = vmatprep.mubr.bf16.mxu0 %v5689
      %6747 = vmatmul.mubr.bf16.gmra.mxu0 %v5688
      %v6748 = vpop.f32.mrf.mxu0
      %v6749 = vadd.f32 %v5837, %v6748
      %v6750 = vpop.f32.mrf.mxu0
      %v6751 = vadd.f32 %v5841, %v6750
      %v6752 = vpop.f32.mrf.mxu0
      %v6753 = vadd.f32 %v5837, %v6752
      %v6754 = vpop.f32.mrf.mxu0
      %v6755 = vadd.f32 %v5841, %v6754
      %6756 = vmatprep.mubr.bf16.mxu0 %v5697
      %6757 = vmatmul.mubr.bf16.gmra.mxu0 %v5696
      %v6758 = vpop.f32.mrf.mxu0
      %v6759 = vadd.f32 %v5837, %v6758
      %v6760 = vpop.f32.mrf.mxu0
      %v6761 = vadd.f32 %v5841, %v6760
      %v6762 = vpop.f32.mrf.mxu0
      %v6763 = vadd.f32 %v5837, %v6762
      %v6764 = vpop.f32.mrf.mxu0
      %v6765 = vadd.f32 %v5841, %v6764
      %6766 = vdwg.mxu0
      %6767 = vmatprep.subr.bf16.mxu0 %v6275
      %6768 = vmatpush1.bf16.msra.mxu0 %v6274
      %6769 = vmatprep.subr.bf16.mxu0 %v6273
      %6770 = vmatpush1.bf16.msra.mxu0 %v6272
      %6771 = vmatprep.subr.bf16.mxu0 %v6271
      %6772 = vmatpush1.bf16.msra.mxu0 %v6270
      %6773 = vmatprep.subr.bf16.mxu0 %v6269
      %6774 = vmatpush1.bf16.msra.mxu0 %v6268
      %6775 = vmatprep.subr.bf16.mxu0 %v6267
      %6776 = vmatpush1.bf16.msra.mxu0 %v6266
      %6777 = vmatprep.subr.bf16.mxu0 %v6265
      %6778 = vmatpush1.bf16.msra.mxu0 %v6264
      %6779 = vmatprep.subr.bf16.mxu0 %v6263
      %6780 = vmatpush1.bf16.msra.mxu0 %v6262
      %6781 = vmatprep.subr.bf16.mxu0 %v6261
      %6782 = vmatpush1.bf16.msra.mxu0 %v6260
      %6783 = vmatprep.subr.bf16.mxu0 %v6291
      %6784 = vmatpush2.bf16.msra.mxu0 %v6290
      %6785 = vmatprep.subr.bf16.mxu0 %v6289
      %6786 = vmatpush2.bf16.msra.mxu0 %v6288
      %6787 = vmatprep.subr.bf16.mxu0 %v6287
      %6788 = vmatpush2.bf16.msra.mxu0 %v6286
      %6789 = vmatprep.subr.bf16.mxu0 %v6285
      %6790 = vmatpush2.bf16.msra.mxu0 %v6284
      %6791 = vmatprep.subr.bf16.mxu0 %v6283
      %6792 = vmatpush2.bf16.msra.mxu0 %v6282
      %6793 = vmatprep.subr.bf16.mxu0 %v6281
      %6794 = vmatpush2.bf16.msra.mxu0 %v6280
      %6795 = vmatprep.subr.bf16.mxu0 %v6279
      %6796 = vmatpush2.bf16.msra.mxu0 %v6278
      %6797 = vmatprep.subr.bf16.mxu0 %v6277
      %6798 = vmatpush2.bf16.msra.mxu0 %v6276
      %6799 = vmatprep.mubr.bf16.mxu0 %v5507
      %6800 = vmatmul.mubr.bf16.gmra.mxu0 %v5506
      %v6801 = vpop.f32.mrf.mxu0
      %v6802 = vadd.f32 %v6519, %v6801
      %v6803 = vpop.f32.mrf.mxu0
      %v6804 = vadd.f32 %v6521, %v6803
      %v6805 = vpop.f32.mrf.mxu0
      %v6806 = vadd.f32 %v6523, %v6805
      %v6807 = vpop.f32.mrf.mxu0
      %v6808 = vadd.f32 %v6525, %v6807
      %6809 = vmatprep.mubr.bf16.mxu0 %v5515
      %6810 = vmatmul.mubr.bf16.gmra.mxu0 %v5514
      %v6811 = vpop.f32.mrf.mxu0
      %v6812 = vadd.f32 %v6529, %v6811
      %v6813 = vpop.f32.mrf.mxu0
      %v6814 = vadd.f32 %v6531, %v6813
      %v6815 = vpop.f32.mrf.mxu0
      %v6816 = vadd.f32 %v6533, %v6815
      %v6817 = vpop.f32.mrf.mxu0
      %v6818 = vadd.f32 %v6535, %v6817
      %6819 = vmatprep.mubr.bf16.mxu0 %v5523
      %6820 = vmatmul.mubr.bf16.gmra.mxu0 %v5522
      %v6821 = vpop.f32.mrf.mxu0
      %v6822 = vadd.f32 %v6539, %v6821
      %v6823 = vpop.f32.mrf.mxu0
      %v6824 = vadd.f32 %v6541, %v6823
      %v6825 = vpop.f32.mrf.mxu0
      %v6826 = vadd.f32 %v6543, %v6825
      %v6827 = vpop.f32.mrf.mxu0
      %v6828 = vadd.f32 %v6545, %v6827
      %6829 = vmatprep.mubr.bf16.mxu0 %v5531
      %6830 = vmatmul.mubr.bf16.gmra.mxu0 %v5530
      %v6831 = vpop.f32.mrf.mxu0
      %v6832 = vadd.f32 %v6549, %v6831
      %v6833 = vpop.f32.mrf.mxu0
      %v6834 = vadd.f32 %v6551, %v6833
      %v6835 = vpop.f32.mrf.mxu0
      %v6836 = vadd.f32 %v6553, %v6835
      %v6837 = vpop.f32.mrf.mxu0
      %v6838 = vadd.f32 %v6555, %v6837
      %6839 = vmatprep.mubr.bf16.mxu0 %v5539
      %6840 = vmatmul.mubr.bf16.gmra.mxu0 %v5538
      %v6841 = vpop.f32.mrf.mxu0
      %v6842 = vadd.f32 %v6559, %v6841
      %v6843 = vpop.f32.mrf.mxu0
      %v6844 = vadd.f32 %v6561, %v6843
      %v6845 = vpop.f32.mrf.mxu0
      %v6846 = vadd.f32 %v6563, %v6845
      %v6847 = vpop.f32.mrf.mxu0
      %v6848 = vadd.f32 %v6565, %v6847
      %6849 = vmatprep.mubr.bf16.mxu0 %v5547
      %6850 = vmatmul.mubr.bf16.gmra.mxu0 %v5546
      %v6851 = vpop.f32.mrf.mxu0
      %v6852 = vadd.f32 %v6569, %v6851
      %v6853 = vpop.f32.mrf.mxu0
      %v6854 = vadd.f32 %v6571, %v6853
      %v6855 = vpop.f32.mrf.mxu0
      %v6856 = vadd.f32 %v6573, %v6855
      %v6857 = vpop.f32.mrf.mxu0
      %v6858 = vadd.f32 %v6575, %v6857
      %6859 = vmatprep.mubr.bf16.mxu0 %v5555
      %6860 = vmatmul.mubr.bf16.gmra.mxu0 %v5554
      %v6861 = vpop.f32.mrf.mxu0
      %v6862 = vadd.f32 %v6579, %v6861
      %v6863 = vpop.f32.mrf.mxu0
      %v6864 = vadd.f32 %v6581, %v6863
      %v6865 = vpop.f32.mrf.mxu0
      %v6866 = vadd.f32 %v6583, %v6865
      %v6867 = vpop.f32.mrf.mxu0
      %v6868 = vadd.f32 %v6585, %v6867
      %6869 = vmatprep.mubr.bf16.mxu0 %v5563
      %6870 = vmatmul.mubr.bf16.gmra.mxu0 %v5562
      %v6871 = vpop.f32.mrf.mxu0
      %v6872 = vadd.f32 %v6589, %v6871
      %v6873 = vpop.f32.mrf.mxu0
      %v6874 = vadd.f32 %v6591, %v6873
      %v6875 = vpop.f32.mrf.mxu0
      %v6876 = vadd.f32 %v6593, %v6875
      %v6877 = vpop.f32.mrf.mxu0
      %v6878 = vadd.f32 %v6595, %v6877
      %6879 = vmatprep.mubr.bf16.mxu0 %v5571
      %6880 = vmatmul.mubr.bf16.gmra.mxu0 %v5570
      %v6881 = vpop.f32.mrf.mxu0
      %v6882 = vadd.f32 %v6599, %v6881
      %v6883 = vpop.f32.mrf.mxu0
      %v6884 = vadd.f32 %v6601, %v6883
      %v6885 = vpop.f32.mrf.mxu0
      %v6886 = vadd.f32 %v6603, %v6885
      %v6887 = vpop.f32.mrf.mxu0
      %v6888 = vadd.f32 %v6605, %v6887
      %6889 = vmatprep.mubr.bf16.mxu0 %v5579
      %6890 = vmatmul.mubr.bf16.gmra.mxu0 %v5578
      %v6891 = vpop.f32.mrf.mxu0
      %v6892 = vadd.f32 %v6609, %v6891
      %v6893 = vpop.f32.mrf.mxu0
      %v6894 = vadd.f32 %v6611, %v6893
      %v6895 = vpop.f32.mrf.mxu0
      %v6896 = vadd.f32 %v6613, %v6895
      %v6897 = vpop.f32.mrf.mxu0
      %v6898 = vadd.f32 %v6615, %v6897
      %6899 = vmatprep.mubr.bf16.mxu0 %v5587
      %6900 = vmatmul.mubr.bf16.gmra.mxu0 %v5586
      %v6901 = vpop.f32.mrf.mxu0
      %v6902 = vadd.f32 %v6619, %v6901
      %v6903 = vpop.f32.mrf.mxu0
      %v6904 = vadd.f32 %v6621, %v6903
      %v6905 = vpop.f32.mrf.mxu0
      %v6906 = vadd.f32 %v6623, %v6905
      %v6907 = vpop.f32.mrf.mxu0
      %v6908 = vadd.f32 %v6625, %v6907
      %6909 = vmatprep.mubr.bf16.mxu0 %v5595
      %6910 = vmatmul.mubr.bf16.gmra.mxu0 %v5594
      %v6911 = vpop.f32.mrf.mxu0
      %v6912 = vadd.f32 %v6629, %v6911
      %v6913 = vpop.f32.mrf.mxu0
      %v6914 = vadd.f32 %v6631, %v6913
      %v6915 = vpop.f32.mrf.mxu0
      %v6916 = vadd.f32 %v6633, %v6915
      %v6917 = vpop.f32.mrf.mxu0
      %v6918 = vadd.f32 %v6635, %v6917
      %6919 = vmatprep.mubr.bf16.mxu0 %v5603
      %6920 = vmatmul.mubr.bf16.gmra.mxu0 %v5602
      %v6921 = vpop.f32.mrf.mxu0
      %v6922 = vadd.f32 %v6639, %v6921
      %v6923 = vpop.f32.mrf.mxu0
      %v6924 = vadd.f32 %v6641, %v6923
      %v6925 = vpop.f32.mrf.mxu0
      %v6926 = vadd.f32 %v6643, %v6925
      %v6927 = vpop.f32.mrf.mxu0
      %v6928 = vadd.f32 %v6645, %v6927
      %6929 = vmatprep.mubr.bf16.mxu0 %v5611
      %6930 = vmatmul.mubr.bf16.gmra.mxu0 %v5610
      %v6931 = vpop.f32.mrf.mxu0
      %v6932 = vadd.f32 %v6649, %v6931
      %v6933 = vpop.f32.mrf.mxu0
      %v6934 = vadd.f32 %v6651, %v6933
      %v6935 = vpop.f32.mrf.mxu0
      %v6936 = vadd.f32 %v6653, %v6935
      %v6937 = vpop.f32.mrf.mxu0
      %v6938 = vadd.f32 %v6655, %v6937
      %6939 = vmatprep.mubr.bf16.mxu0 %v5619
      %6940 = vmatmul.mubr.bf16.gmra.mxu0 %v5618
      %v6941 = vpop.f32.mrf.mxu0
      %v6942 = vadd.f32 %v6659, %v6941
      %v6943 = vpop.f32.mrf.mxu0
      %v6944 = vadd.f32 %v6661, %v6943
      %v6945 = vpop.f32.mrf.mxu0
      %v6946 = vadd.f32 %v6663, %v6945
      %v6947 = vpop.f32.mrf.mxu0
      %v6948 = vadd.f32 %v6665, %v6947
      %6949 = vmatprep.mubr.bf16.mxu0 %v5627
      %6950 = vmatmul.mubr.bf16.gmra.mxu0 %v5626
      %v6951 = vpop.f32.mrf.mxu0
      %v6952 = vadd.f32 %v6669, %v6951
      %v6953 = vpop.f32.mrf.mxu0
      %v6954 = vadd.f32 %v6671, %v6953
      %v6955 = vpop.f32.mrf.mxu0
      %v6956 = vadd.f32 %v6673, %v6955
      %v6957 = vpop.f32.mrf.mxu0
      %v6958 = vadd.f32 %v6675, %v6957
      %6959 = vmatprep.mubr.bf16.mxu0 %v5635
      %6960 = vmatmul.mubr.bf16.gmra.mxu0 %v5634
      %v6961 = vpop.f32.mrf.mxu0
      %v6962 = vadd.f32 %v6679, %v6961
      %v6963 = vpop.f32.mrf.mxu0
      %v6964 = vadd.f32 %v6681, %v6963
      %v6965 = vpop.f32.mrf.mxu0
      %v6966 = vadd.f32 %v6683, %v6965
      %v6967 = vpop.f32.mrf.mxu0
      %v6968 = vadd.f32 %v6685, %v6967
      %6969 = vmatprep.mubr.bf16.mxu0 %v5643
      %6970 = vmatmul.mubr.bf16.gmra.mxu0 %v5642
      %v6971 = vpop.f32.mrf.mxu0
      %v6972 = vadd.f32 %v6689, %v6971
      %v6973 = vpop.f32.mrf.mxu0
      %v6974 = vadd.f32 %v6691, %v6973
      %v6975 = vpop.f32.mrf.mxu0
      %v6976 = vadd.f32 %v6693, %v6975
      %v6977 = vpop.f32.mrf.mxu0
      %v6978 = vadd.f32 %v6695, %v6977
      %6979 = vmatprep.mubr.bf16.mxu0 %v5651
      %6980 = vmatmul.mubr.bf16.gmra.mxu0 %v5650
      %v6981 = vpop.f32.mrf.mxu0
      %v6982 = vadd.f32 %v6699, %v6981
      %v6983 = vpop.f32.mrf.mxu0
      %v6984 = vadd.f32 %v6701, %v6983
      %v6985 = vpop.f32.mrf.mxu0
      %v6986 = vadd.f32 %v6703, %v6985
      %v6987 = vpop.f32.mrf.mxu0
      %v6988 = vadd.f32 %v6705, %v6987
      %6989 = vmatprep.mubr.bf16.mxu0 %v5659
      %6990 = vmatmul.mubr.bf16.gmra.mxu0 %v5658
      %v6991 = vpop.f32.mrf.mxu0
      %v6992 = vadd.f32 %v6709, %v6991
      %v6993 = vpop.f32.mrf.mxu0
      %v6994 = vadd.f32 %v6711, %v6993
      %v6995 = vpop.f32.mrf.mxu0
      %v6996 = vadd.f32 %v6713, %v6995
      %v6997 = vpop.f32.mrf.mxu0
      %v6998 = vadd.f32 %v6715, %v6997
      %6999 = vmatprep.mubr.bf16.mxu0 %v5667
      %7000 = vmatmul.mubr.bf16.gmra.mxu0 %v5666
      %v7001 = vpop.f32.mrf.mxu0
      %v7002 = vadd.f32 %v6719, %v7001
      %v7003 = vpop.f32.mrf.mxu0
      %v7004 = vadd.f32 %v6721, %v7003
      %v7005 = vpop.f32.mrf.mxu0
      %v7006 = vadd.f32 %v6723, %v7005
      %v7007 = vpop.f32.mrf.mxu0
      %v7008 = vadd.f32 %v6725, %v7007
      %7009 = vmatprep.mubr.bf16.mxu0 %v5675
      %7010 = vmatmul.mubr.bf16.gmra.mxu0 %v5674
      %v7011 = vpop.f32.mrf.mxu0
      %v7012 = vadd.f32 %v6729, %v7011
      %v7013 = vpop.f32.mrf.mxu0
      %v7014 = vadd.f32 %v6731, %v7013
      %v7015 = vpop.f32.mrf.mxu0
      %v7016 = vadd.f32 %v6733, %v7015
      %v7017 = vpop.f32.mrf.mxu0
      %v7018 = vadd.f32 %v6735, %v7017
      %7019 = vmatprep.mubr.bf16.mxu0 %v5683
      %7020 = vmatmul.mubr.bf16.gmra.mxu0 %v5682
      %v7021 = vpop.f32.mrf.mxu0
      %v7022 = vadd.f32 %v6739, %v7021
      %v7023 = vpop.f32.mrf.mxu0
      %v7024 = vadd.f32 %v6741, %v7023
      %v7025 = vpop.f32.mrf.mxu0
      %v7026 = vadd.f32 %v6743, %v7025
      %v7027 = vpop.f32.mrf.mxu0
      %v7028 = vadd.f32 %v6745, %v7027
      %7029 = vmatprep.mubr.bf16.mxu0 %v5691
      %7030 = vmatmul.mubr.bf16.gmra.mxu0 %v5690
      %v7031 = vpop.f32.mrf.mxu0
      %v7032 = vadd.f32 %v6749, %v7031
      %v7033 = vpop.f32.mrf.mxu0
      %v7034 = vadd.f32 %v6751, %v7033
      %v7035 = vpop.f32.mrf.mxu0
      %v7036 = vadd.f32 %v6753, %v7035
      %v7037 = vpop.f32.mrf.mxu0
      %v7038 = vadd.f32 %v6755, %v7037
      %7039 = vmatprep.mubr.bf16.mxu0 %v5699
      %7040 = vmatmul.mubr.bf16.gmra.mxu0 %v5698
      %v7041 = vpop.f32.mrf.mxu0
      %v7042 = vadd.f32 %v6759, %v7041
      %v7043 = vpop.f32.mrf.mxu0
      %v7044 = vadd.f32 %v6761, %v7043
      %v7045 = vpop.f32.mrf.mxu0
      %v7046 = vadd.f32 %v6763, %v7045
      %v7047 = vpop.f32.mrf.mxu0
      %v7048 = vadd.f32 %v6765, %v7047
      %7049 = vdwg.mxu0
      %7050 = vmatprep.subr.bf16.mxu0 %v6307
      %7051 = vmatpush1.bf16.msra.mxu0 %v6306
      %7052 = vmatprep.subr.bf16.mxu0 %v6305
      %7053 = vmatpush1.bf16.msra.mxu0 %v6304
      %7054 = vmatprep.subr.bf16.mxu0 %v6303
      %7055 = vmatpush1.bf16.msra.mxu0 %v6302
      %7056 = vmatprep.subr.bf16.mxu0 %v6301
      %7057 = vmatpush1.bf16.msra.mxu0 %v6300
      %7058 = vmatprep.subr.bf16.mxu0 %v6299
      %7059 = vmatpush1.bf16.msra.mxu0 %v6298
      %7060 = vmatprep.subr.bf16.mxu0 %v6297
      %7061 = vmatpush1.bf16.msra.mxu0 %v6296
      %7062 = vmatprep.subr.bf16.mxu0 %v6295
      %7063 = vmatpush1.bf16.msra.mxu0 %v6294
      %7064 = vmatprep.subr.bf16.mxu0 %v6293
      %7065 = vmatpush1.bf16.msra.mxu0 %v6292
      %7066 = vmatprep.subr.bf16.mxu0 %v6323
      %7067 = vmatpush2.bf16.msra.mxu0 %v6322
      %7068 = vmatprep.subr.bf16.mxu0 %v6321
      %7069 = vmatpush2.bf16.msra.mxu0 %v6320
      %7070 = vmatprep.subr.bf16.mxu0 %v6319
      %7071 = vmatpush2.bf16.msra.mxu0 %v6318
      %7072 = vmatprep.subr.bf16.mxu0 %v6317
      %7073 = vmatpush2.bf16.msra.mxu0 %v6316
      %7074 = vmatprep.subr.bf16.mxu0 %v6315
      %7075 = vmatpush2.bf16.msra.mxu0 %v6314
      %7076 = vmatprep.subr.bf16.mxu0 %v6313
      %7077 = vmatpush2.bf16.msra.mxu0 %v6312
      %7078 = vmatprep.subr.bf16.mxu0 %v6311
      %7079 = vmatpush2.bf16.msra.mxu0 %v6310
      %7080 = vmatprep.subr.bf16.mxu0 %v6309
      %7081 = vmatpush2.bf16.msra.mxu0 %v6308
      %7082 = vmatprep.mubr.bf16.mxu0 %v5509
      %7083 = vmatmul.mubr.bf16.gmra.mxu0 %v5508
      %v7084 = vpop.f32.mrf.mxu0
      %v7085 = vadd.f32 %v6802, %v7084
      %v7086 = vpop.f32.mrf.mxu0
      %v7087 = vadd.f32 %v6804, %v7086
      %v7088 = vpop.f32.mrf.mxu0
      %v7089 = vadd.f32 %v6806, %v7088
      %v7090 = vpop.f32.mrf.mxu0
      %v7091 = vadd.f32 %v6808, %v7090
      %7092 = vmatprep.mubr.bf16.mxu0 %v5517
      %7093 = vmatmul.mubr.bf16.gmra.mxu0 %v5516
      %v7094 = vpop.f32.mrf.mxu0
      %v7095 = vadd.f32 %v6812, %v7094
      %v7096 = vpop.f32.mrf.mxu0
      %v7097 = vadd.f32 %v6814, %v7096
      %v7098 = vpop.f32.mrf.mxu0
      %v7099 = vadd.f32 %v6816, %v7098
      %v7100 = vpop.f32.mrf.mxu0
      %v7101 = vadd.f32 %v6818, %v7100
      %7102 = vmatprep.mubr.bf16.mxu0 %v5525
      %7103 = vmatmul.mubr.bf16.gmra.mxu0 %v5524
      %v7104 = vpop.f32.mrf.mxu0
      %v7105 = vadd.f32 %v6822, %v7104
      %v7106 = vpop.f32.mrf.mxu0
      %v7107 = vadd.f32 %v6824, %v7106
      %v7108 = vpop.f32.mrf.mxu0
      %v7109 = vadd.f32 %v6826, %v7108
      %v7110 = vpop.f32.mrf.mxu0
      %v7111 = vadd.f32 %v6828, %v7110
      %7112 = vmatprep.mubr.bf16.mxu0 %v5533
      %7113 = vmatmul.mubr.bf16.gmra.mxu0 %v5532
      %v7114 = vpop.f32.mrf.mxu0
      %v7115 = vadd.f32 %v6832, %v7114
      %v7116 = vpop.f32.mrf.mxu0
      %v7117 = vadd.f32 %v6834, %v7116
      %v7118 = vpop.f32.mrf.mxu0
      %v7119 = vadd.f32 %v6836, %v7118
      %v7120 = vpop.f32.mrf.mxu0
      %v7121 = vadd.f32 %v6838, %v7120
      %7122 = vmatprep.mubr.bf16.mxu0 %v5541
      %7123 = vmatmul.mubr.bf16.gmra.mxu0 %v5540
      %v7124 = vpop.f32.mrf.mxu0
      %v7125 = vadd.f32 %v6842, %v7124
      %v7126 = vpop.f32.mrf.mxu0
      %v7127 = vadd.f32 %v6844, %v7126
      %v7128 = vpop.f32.mrf.mxu0
      %v7129 = vadd.f32 %v6846, %v7128
      %v7130 = vpop.f32.mrf.mxu0
      %v7131 = vadd.f32 %v6848, %v7130
      %7132 = vmatprep.mubr.bf16.mxu0 %v5549
      %7133 = vmatmul.mubr.bf16.gmra.mxu0 %v5548
      %v7134 = vpop.f32.mrf.mxu0
      %v7135 = vadd.f32 %v6852, %v7134
      %v7136 = vpop.f32.mrf.mxu0
      %v7137 = vadd.f32 %v6854, %v7136
      %v7138 = vpop.f32.mrf.mxu0
      %v7139 = vadd.f32 %v6856, %v7138
      %v7140 = vpop.f32.mrf.mxu0
      %v7141 = vadd.f32 %v6858, %v7140
      %7142 = vmatprep.mubr.bf16.mxu0 %v5557
      %7143 = vmatmul.mubr.bf16.gmra.mxu0 %v5556
      %v7144 = vpop.f32.mrf.mxu0
      %v7145 = vadd.f32 %v6862, %v7144
      %v7146 = vpop.f32.mrf.mxu0
      %v7147 = vadd.f32 %v6864, %v7146
      %v7148 = vpop.f32.mrf.mxu0
      %v7149 = vadd.f32 %v6866, %v7148
      %v7150 = vpop.f32.mrf.mxu0
      %v7151 = vadd.f32 %v6868, %v7150
      %7152 = vmatprep.mubr.bf16.mxu0 %v5565
      %7153 = vmatmul.mubr.bf16.gmra.mxu0 %v5564
      %v7154 = vpop.f32.mrf.mxu0
      %v7155 = vadd.f32 %v6872, %v7154
      %v7156 = vpop.f32.mrf.mxu0
      %v7157 = vadd.f32 %v6874, %v7156
      %v7158 = vpop.f32.mrf.mxu0
      %v7159 = vadd.f32 %v6876, %v7158
      %v7160 = vpop.f32.mrf.mxu0
      %v7161 = vadd.f32 %v6878, %v7160
      %7162 = vmatprep.mubr.bf16.mxu0 %v5573
      %7163 = vmatmul.mubr.bf16.gmra.mxu0 %v5572
      %v7164 = vpop.f32.mrf.mxu0
      %v7165 = vadd.f32 %v6882, %v7164
      %v7166 = vpop.f32.mrf.mxu0
      %v7167 = vadd.f32 %v6884, %v7166
      %v7168 = vpop.f32.mrf.mxu0
      %v7169 = vadd.f32 %v6886, %v7168
      %v7170 = vpop.f32.mrf.mxu0
      %v7171 = vadd.f32 %v6888, %v7170
      %7172 = vmatprep.mubr.bf16.mxu0 %v5581
      %7173 = vmatmul.mubr.bf16.gmra.mxu0 %v5580
      %v7174 = vpop.f32.mrf.mxu0
      %v7175 = vadd.f32 %v6892, %v7174
      %v7176 = vpop.f32.mrf.mxu0
      %v7177 = vadd.f32 %v6894, %v7176
      %v7178 = vpop.f32.mrf.mxu0
      %v7179 = vadd.f32 %v6896, %v7178
      %v7180 = vpop.f32.mrf.mxu0
      %v7181 = vadd.f32 %v6898, %v7180
      %7182 = vmatprep.mubr.bf16.mxu0 %v5589
      %7183 = vmatmul.mubr.bf16.gmra.mxu0 %v5588
      %v7184 = vpop.f32.mrf.mxu0
      %v7185 = vadd.f32 %v6902, %v7184
      %v7186 = vpop.f32.mrf.mxu0
      %v7187 = vadd.f32 %v6904, %v7186
      %v7188 = vpop.f32.mrf.mxu0
      %v7189 = vadd.f32 %v6906, %v7188
      %v7190 = vpop.f32.mrf.mxu0
      %v7191 = vadd.f32 %v6908, %v7190
      %7192 = vmatprep.mubr.bf16.mxu0 %v5597
      %7193 = vmatmul.mubr.bf16.gmra.mxu0 %v5596
      %v7194 = vpop.f32.mrf.mxu0
      %v7195 = vadd.f32 %v6912, %v7194
      %v7196 = vpop.f32.mrf.mxu0
      %v7197 = vadd.f32 %v6914, %v7196
      %v7198 = vpop.f32.mrf.mxu0
      %v7199 = vadd.f32 %v6916, %v7198
      %v7200 = vpop.f32.mrf.mxu0
      %v7201 = vadd.f32 %v6918, %v7200
      %7202 = vmatprep.mubr.bf16.mxu0 %v5605
      %7203 = vmatmul.mubr.bf16.gmra.mxu0 %v5604
      %v7204 = vpop.f32.mrf.mxu0
      %v7205 = vadd.f32 %v6922, %v7204
      %v7206 = vpop.f32.mrf.mxu0
      %v7207 = vadd.f32 %v6924, %v7206
      %v7208 = vpop.f32.mrf.mxu0
      %v7209 = vadd.f32 %v6926, %v7208
      %v7210 = vpop.f32.mrf.mxu0
      %v7211 = vadd.f32 %v6928, %v7210
      %7212 = vmatprep.mubr.bf16.mxu0 %v5613
      %7213 = vmatmul.mubr.bf16.gmra.mxu0 %v5612
      %v7214 = vpop.f32.mrf.mxu0
      %v7215 = vadd.f32 %v6932, %v7214
      %v7216 = vpop.f32.mrf.mxu0
      %v7217 = vadd.f32 %v6934, %v7216
      %v7218 = vpop.f32.mrf.mxu0
      %v7219 = vadd.f32 %v6936, %v7218
      %v7220 = vpop.f32.mrf.mxu0
      %v7221 = vadd.f32 %v6938, %v7220
      %7222 = vmatprep.mubr.bf16.mxu0 %v5621
      %7223 = vmatmul.mubr.bf16.gmra.mxu0 %v5620
      %v7224 = vpop.f32.mrf.mxu0
      %v7225 = vadd.f32 %v6942, %v7224
      %v7226 = vpop.f32.mrf.mxu0
      %v7227 = vadd.f32 %v6944, %v7226
      %v7228 = vpop.f32.mrf.mxu0
      %v7229 = vadd.f32 %v6946, %v7228
      %v7230 = vpop.f32.mrf.mxu0
      %v7231 = vadd.f32 %v6948, %v7230
      %7232 = vmatprep.mubr.bf16.mxu0 %v5629
      %7233 = vmatmul.mubr.bf16.gmra.mxu0 %v5628
      %v7234 = vpop.f32.mrf.mxu0
      %v7235 = vadd.f32 %v6952, %v7234
      %v7236 = vpop.f32.mrf.mxu0
      %v7237 = vadd.f32 %v6954, %v7236
      %v7238 = vpop.f32.mrf.mxu0
      %v7239 = vadd.f32 %v6956, %v7238
      %v7240 = vpop.f32.mrf.mxu0
      %v7241 = vadd.f32 %v6958, %v7240
      %7242 = vmatprep.mubr.bf16.mxu0 %v5637
      %7243 = vmatmul.mubr.bf16.gmra.mxu0 %v5636
      %v7244 = vpop.f32.mrf.mxu0
      %v7245 = vadd.f32 %v6962, %v7244
      %v7246 = vpop.f32.mrf.mxu0
      %v7247 = vadd.f32 %v6964, %v7246
      %v7248 = vpop.f32.mrf.mxu0
      %v7249 = vadd.f32 %v6966, %v7248
      %v7250 = vpop.f32.mrf.mxu0
      %v7251 = vadd.f32 %v6968, %v7250
      %7252 = vmatprep.mubr.bf16.mxu0 %v5645
      %7253 = vmatmul.mubr.bf16.gmra.mxu0 %v5644
      %v7254 = vpop.f32.mrf.mxu0
      %v7255 = vadd.f32 %v6972, %v7254
      %v7256 = vpop.f32.mrf.mxu0
      %v7257 = vadd.f32 %v6974, %v7256
      %v7258 = vpop.f32.mrf.mxu0
      %v7259 = vadd.f32 %v6976, %v7258
      %v7260 = vpop.f32.mrf.mxu0
      %v7261 = vadd.f32 %v6978, %v7260
      %7262 = vmatprep.mubr.bf16.mxu0 %v5653
      %7263 = vmatmul.mubr.bf16.gmra.mxu0 %v5652
      %v7264 = vpop.f32.mrf.mxu0
      %v7265 = vadd.f32 %v6982, %v7264
      %v7266 = vpop.f32.mrf.mxu0
      %v7267 = vadd.f32 %v6984, %v7266
      %v7268 = vpop.f32.mrf.mxu0
      %v7269 = vadd.f32 %v6986, %v7268
      %v7270 = vpop.f32.mrf.mxu0
      %v7271 = vadd.f32 %v6988, %v7270
      %7272 = vmatprep.mubr.bf16.mxu0 %v5661
      %7273 = vmatmul.mubr.bf16.gmra.mxu0 %v5660
      %v7274 = vpop.f32.mrf.mxu0
      %v7275 = vadd.f32 %v6992, %v7274
      %v7276 = vpop.f32.mrf.mxu0
      %v7277 = vadd.f32 %v6994, %v7276
      %v7278 = vpop.f32.mrf.mxu0
      %v7279 = vadd.f32 %v6996, %v7278
      %v7280 = vpop.f32.mrf.mxu0
      %v7281 = vadd.f32 %v6998, %v7280
      %7282 = vmatprep.mubr.bf16.mxu0 %v5669
      %7283 = vmatmul.mubr.bf16.gmra.mxu0 %v5668
      %v7284 = vpop.f32.mrf.mxu0
      %v7285 = vadd.f32 %v7002, %v7284
      %v7286 = vpop.f32.mrf.mxu0
      %v7287 = vadd.f32 %v7004, %v7286
      %v7288 = vpop.f32.mrf.mxu0
      %v7289 = vadd.f32 %v7006, %v7288
      %v7290 = vpop.f32.mrf.mxu0
      %v7291 = vadd.f32 %v7008, %v7290
      %7292 = vmatprep.mubr.bf16.mxu0 %v5677
      %7293 = vmatmul.mubr.bf16.gmra.mxu0 %v5676
      %v7294 = vpop.f32.mrf.mxu0
      %v7295 = vadd.f32 %v7012, %v7294
      %v7296 = vpop.f32.mrf.mxu0
      %v7297 = vadd.f32 %v7014, %v7296
      %v7298 = vpop.f32.mrf.mxu0
      %v7299 = vadd.f32 %v7016, %v7298
      %v7300 = vpop.f32.mrf.mxu0
      %v7301 = vadd.f32 %v7018, %v7300
      %7302 = vmatprep.mubr.bf16.mxu0 %v5685
      %7303 = vmatmul.mubr.bf16.gmra.mxu0 %v5684
      %v7304 = vpop.f32.mrf.mxu0
      %v7305 = vadd.f32 %v7022, %v7304
      %v7306 = vpop.f32.mrf.mxu0
      %v7307 = vadd.f32 %v7024, %v7306
      %v7308 = vpop.f32.mrf.mxu0
      %v7309 = vadd.f32 %v7026, %v7308
      %v7310 = vpop.f32.mrf.mxu0
      %v7311 = vadd.f32 %v7028, %v7310
      %7312 = vmatprep.mubr.bf16.mxu0 %v5693
      %7313 = vmatmul.mubr.bf16.gmra.mxu0 %v5692
      %v7314 = vpop.f32.mrf.mxu0
      %v7315 = vadd.f32 %v7032, %v7314
      %v7316 = vpop.f32.mrf.mxu0
      %v7317 = vadd.f32 %v7034, %v7316
      %v7318 = vpop.f32.mrf.mxu0
      %v7319 = vadd.f32 %v7036, %v7318
      %v7320 = vpop.f32.mrf.mxu0
      %v7321 = vadd.f32 %v7038, %v7320
      %7322 = vmatprep.mubr.bf16.mxu0 %v5701
      %7323 = vmatmul.mubr.bf16.gmra.mxu0 %v5700
      %v7324 = vpop.f32.mrf.mxu0
      %v7325 = vadd.f32 %v7042, %v7324
      %v7326 = vpop.f32.mrf.mxu0
      %v7327 = vadd.f32 %v7044, %v7326
      %v7328 = vpop.f32.mrf.mxu0
      %v7329 = vadd.f32 %v7046, %v7328
      %v7330 = vpop.f32.mrf.mxu0
      %v7331 = vadd.f32 %v7048, %v7330
      %7332 = vdwg.mxu0
      %7333 = vmatprep.subr.bf16.mxu0 %v6339
      %7334 = vmatpush1.bf16.msra.mxu0 %v6338
      %7335 = vmatprep.subr.bf16.mxu0 %v6337
      %7336 = vmatpush1.bf16.msra.mxu0 %v6336
      %7337 = vmatprep.subr.bf16.mxu0 %v6335
      %7338 = vmatpush1.bf16.msra.mxu0 %v6334
      %7339 = vmatprep.subr.bf16.mxu0 %v6333
      %7340 = vmatpush1.bf16.msra.mxu0 %v6332
      %7341 = vmatprep.subr.bf16.mxu0 %v6331
      %7342 = vmatpush1.bf16.msra.mxu0 %v6330
      %7343 = vmatprep.subr.bf16.mxu0 %v6329
      %7344 = vmatpush1.bf16.msra.mxu0 %v6328
      %7345 = vmatprep.subr.bf16.mxu0 %v6327
      %7346 = vmatpush1.bf16.msra.mxu0 %v6326
      %7347 = vmatprep.subr.bf16.mxu0 %v6325
      %7348 = vmatpush1.bf16.msra.mxu0 %v6324
      %7349 = vmatprep.subr.bf16.mxu0 %v6355
      %7350 = vmatpush2.bf16.msra.mxu0 %v6354
      %7351 = vmatprep.subr.bf16.mxu0 %v6353
      %7352 = vmatpush2.bf16.msra.mxu0 %v6352
      %7353 = vmatprep.subr.bf16.mxu0 %v6351
      %7354 = vmatpush2.bf16.msra.mxu0 %v6350
      %7355 = vmatprep.subr.bf16.mxu0 %v6349
      %7356 = vmatpush2.bf16.msra.mxu0 %v6348
      %7357 = vmatprep.subr.bf16.mxu0 %v6347
      %7358 = vmatpush2.bf16.msra.mxu0 %v6346
      %7359 = vmatprep.subr.bf16.mxu0 %v6345
      %7360 = vmatpush2.bf16.msra.mxu0 %v6344
      %7361 = vmatprep.subr.bf16.mxu0 %v6343
      %7362 = vmatpush2.bf16.msra.mxu0 %v6342
      %7363 = vmatprep.subr.bf16.mxu0 %v6341
      %7364 = vmatpush2.bf16.msra.mxu0 %v6340
      %7365 = vmatprep.mubr.bf16.mxu0 %v5511
      %7366 = vmatmul.mubr.bf16.gmra.mxu0 %v5510
      %v7367 = vpop.f32.mrf.mxu0
      %v7368 = vadd.f32 %v7085, %v7367
      %v7369 = vpop.f32.mrf.mxu0
      %v7370 = vadd.f32 %v7087, %v7369
      %v7371 = vpop.f32.mrf.mxu0
      %v7372 = vadd.f32 %v7089, %v7371
      %v7373 = vpop.f32.mrf.mxu0
      %v7374 = vadd.f32 %v7091, %v7373
      %7375 = vmatprep.mubr.bf16.mxu0 %v5519
      %7376 = vmatmul.mubr.bf16.gmra.mxu0 %v5518
      %v7377 = vpop.f32.mrf.mxu0
      %v7378 = vadd.f32 %v7095, %v7377
      %v7379 = vpop.f32.mrf.mxu0
      %v7380 = vadd.f32 %v7097, %v7379
      %v7381 = vpop.f32.mrf.mxu0
      %v7382 = vadd.f32 %v7099, %v7381
      %v7383 = vpop.f32.mrf.mxu0
      %v7384 = vadd.f32 %v7101, %v7383
      %7385 = vmatprep.mubr.bf16.mxu0 %v5527
      %7386 = vmatmul.mubr.bf16.gmra.mxu0 %v5526
      %v7387 = vpop.f32.mrf.mxu0
      %v7388 = vadd.f32 %v7105, %v7387
      %v7389 = vpop.f32.mrf.mxu0
      %v7390 = vadd.f32 %v7107, %v7389
      %v7391 = vpop.f32.mrf.mxu0
      %v7392 = vadd.f32 %v7109, %v7391
      %v7393 = vpop.f32.mrf.mxu0
      %v7394 = vadd.f32 %v7111, %v7393
      %7395 = vmatprep.mubr.bf16.mxu0 %v5535
      %7396 = vmatmul.mubr.bf16.gmra.mxu0 %v5534
      %v7397 = vpop.f32.mrf.mxu0
      %v7398 = vadd.f32 %v7115, %v7397
      %v7399 = vpop.f32.mrf.mxu0
      %v7400 = vadd.f32 %v7117, %v7399
      %v7401 = vpop.f32.mrf.mxu0
      %v7402 = vadd.f32 %v7119, %v7401
      %v7403 = vpop.f32.mrf.mxu0
      %v7404 = vadd.f32 %v7121, %v7403
      %7405 = vmatprep.mubr.bf16.mxu0 %v5543
      %7406 = vmatmul.mubr.bf16.gmra.mxu0 %v5542
      %v7407 = vpop.f32.mrf.mxu0
      %v7408 = vadd.f32 %v7125, %v7407
      %v7409 = vpop.f32.mrf.mxu0
      %v7410 = vadd.f32 %v7127, %v7409
      %v7411 = vpop.f32.mrf.mxu0
      %v7412 = vadd.f32 %v7129, %v7411
      %v7413 = vpop.f32.mrf.mxu0
      %v7414 = vadd.f32 %v7131, %v7413
      %7415 = vmatprep.mubr.bf16.mxu0 %v5551
      %7416 = vmatmul.mubr.bf16.gmra.mxu0 %v5550
      %v7417 = vpop.f32.mrf.mxu0
      %v7418 = vadd.f32 %v7135, %v7417
      %v7419 = vpop.f32.mrf.mxu0
      %v7420 = vadd.f32 %v7137, %v7419
      %v7421 = vpop.f32.mrf.mxu0
      %v7422 = vadd.f32 %v7139, %v7421
      %v7423 = vpop.f32.mrf.mxu0
      %v7424 = vadd.f32 %v7141, %v7423
      %7425 = vmatprep.mubr.bf16.mxu0 %v5559
      %7426 = vmatmul.mubr.bf16.gmra.mxu0 %v5558
      %v7427 = vpop.f32.mrf.mxu0
      %v7428 = vadd.f32 %v7145, %v7427
      %v7429 = vpop.f32.mrf.mxu0
      %v7430 = vadd.f32 %v7147, %v7429
      %v7431 = vpop.f32.mrf.mxu0
      %v7432 = vadd.f32 %v7149, %v7431
      %v7433 = vpop.f32.mrf.mxu0
      %v7434 = vadd.f32 %v7151, %v7433
      %7435 = vmatprep.mubr.bf16.mxu0 %v5567
      %7436 = vmatmul.mubr.bf16.gmra.mxu0 %v5566
      %v7437 = vpop.f32.mrf.mxu0
      %v7438 = vadd.f32 %v7155, %v7437
      %v7439 = vpop.f32.mrf.mxu0
      %v7440 = vadd.f32 %v7157, %v7439
      %v7441 = vpop.f32.mrf.mxu0
      %v7442 = vadd.f32 %v7159, %v7441
      %v7443 = vpop.f32.mrf.mxu0
      %v7444 = vadd.f32 %v7161, %v7443
      %7445 = vmatprep.mubr.bf16.mxu0 %v5575
      %7446 = vmatmul.mubr.bf16.gmra.mxu0 %v5574
      %v7447 = vpop.f32.mrf.mxu0
      %v7448 = vadd.f32 %v7165, %v7447
      %v7449 = vpop.f32.mrf.mxu0
      %v7450 = vadd.f32 %v7167, %v7449
      %v7451 = vpop.f32.mrf.mxu0
      %v7452 = vadd.f32 %v7169, %v7451
      %v7453 = vpop.f32.mrf.mxu0
      %v7454 = vadd.f32 %v7171, %v7453
      %7455 = vmatprep.mubr.bf16.mxu0 %v5583
      %7456 = vmatmul.mubr.bf16.gmra.mxu0 %v5582
      %v7457 = vpop.f32.mrf.mxu0
      %v7458 = vadd.f32 %v7175, %v7457
      %v7459 = vpop.f32.mrf.mxu0
      %v7460 = vadd.f32 %v7177, %v7459
      %v7461 = vpop.f32.mrf.mxu0
      %v7462 = vadd.f32 %v7179, %v7461
      %v7463 = vpop.f32.mrf.mxu0
      %v7464 = vadd.f32 %v7181, %v7463
      %7465 = vmatprep.mubr.bf16.mxu0 %v5591
      %7466 = vmatmul.mubr.bf16.gmra.mxu0 %v5590
      %v7467 = vpop.f32.mrf.mxu0
      %v7468 = vadd.f32 %v7185, %v7467
      %v7469 = vpop.f32.mrf.mxu0
      %v7470 = vadd.f32 %v7187, %v7469
      %v7471 = vpop.f32.mrf.mxu0
      %v7472 = vadd.f32 %v7189, %v7471
      %v7473 = vpop.f32.mrf.mxu0
      %v7474 = vadd.f32 %v7191, %v7473
      %7475 = vmatprep.mubr.bf16.mxu0 %v5599
      %7476 = vmatmul.mubr.bf16.gmra.mxu0 %v5598
      %v7477 = vpop.f32.mrf.mxu0
      %v7478 = vadd.f32 %v7195, %v7477
      %v7479 = vpop.f32.mrf.mxu0
      %v7480 = vadd.f32 %v7197, %v7479
      %v7481 = vpop.f32.mrf.mxu0
      %v7482 = vadd.f32 %v7199, %v7481
      %v7483 = vpop.f32.mrf.mxu0
      %v7484 = vadd.f32 %v7201, %v7483
      %7485 = vmatprep.mubr.bf16.mxu0 %v5607
      %7486 = vmatmul.mubr.bf16.gmra.mxu0 %v5606
      %v7487 = vpop.f32.mrf.mxu0
      %v7488 = vadd.f32 %v7205, %v7487
      %v7489 = vpop.f32.mrf.mxu0
      %v7490 = vadd.f32 %v7207, %v7489
      %v7491 = vpop.f32.mrf.mxu0
      %v7492 = vadd.f32 %v7209, %v7491
      %v7493 = vpop.f32.mrf.mxu0
      %v7494 = vadd.f32 %v7211, %v7493
      %7495 = vmatprep.mubr.bf16.mxu0 %v5615
      %7496 = vmatmul.mubr.bf16.gmra.mxu0 %v5614
      %v7497 = vpop.f32.mrf.mxu0
      %v7498 = vadd.f32 %v7215, %v7497
      %v7499 = vpop.f32.mrf.mxu0
      %v7500 = vadd.f32 %v7217, %v7499
      %v7501 = vpop.f32.mrf.mxu0
      %v7502 = vadd.f32 %v7219, %v7501
      %v7503 = vpop.f32.mrf.mxu0
      %v7504 = vadd.f32 %v7221, %v7503
      %7505 = vmatprep.mubr.bf16.mxu0 %v5623
      %7506 = vmatmul.mubr.bf16.gmra.mxu0 %v5622
      %v7507 = vpop.f32.mrf.mxu0
      %v7508 = vadd.f32 %v7225, %v7507
      %v7509 = vpop.f32.mrf.mxu0
      %v7510 = vadd.f32 %v7227, %v7509
      %v7511 = vpop.f32.mrf.mxu0
      %v7512 = vadd.f32 %v7229, %v7511
      %v7513 = vpop.f32.mrf.mxu0
      %v7514 = vadd.f32 %v7231, %v7513
      %7515 = vmatprep.mubr.bf16.mxu0 %v5631
      %7516 = vmatmul.mubr.bf16.gmra.mxu0 %v5630
      %v7517 = vpop.f32.mrf.mxu0
      %v7518 = vadd.f32 %v7235, %v7517
      %v7519 = vpop.f32.mrf.mxu0
      %v7520 = vadd.f32 %v7237, %v7519
      %v7521 = vpop.f32.mrf.mxu0
      %v7522 = vadd.f32 %v7239, %v7521
      %v7523 = vpop.f32.mrf.mxu0
      %v7524 = vadd.f32 %v7241, %v7523
      %7525 = vmatprep.mubr.bf16.mxu0 %v5639
      %7526 = vmatmul.mubr.bf16.gmra.mxu0 %v5638
      %v7527 = vpop.f32.mrf.mxu0
      %v7528 = vadd.f32 %v7245, %v7527
      %v7529 = vpop.f32.mrf.mxu0
      %v7530 = vadd.f32 %v7247, %v7529
      %v7531 = vpop.f32.mrf.mxu0
      %v7532 = vadd.f32 %v7249, %v7531
      %v7533 = vpop.f32.mrf.mxu0
      %v7534 = vadd.f32 %v7251, %v7533
      %7535 = vmatprep.mubr.bf16.mxu0 %v5647
      %7536 = vmatmul.mubr.bf16.gmra.mxu0 %v5646
      %v7537 = vpop.f32.mrf.mxu0
      %v7538 = vadd.f32 %v7255, %v7537
      %v7539 = vpop.f32.mrf.mxu0
      %v7540 = vadd.f32 %v7257, %v7539
      %v7541 = vpop.f32.mrf.mxu0
      %v7542 = vadd.f32 %v7259, %v7541
      %v7543 = vpop.f32.mrf.mxu0
      %v7544 = vadd.f32 %v7261, %v7543
      %7545 = vmatprep.mubr.bf16.mxu0 %v5655
      %7546 = vmatmul.mubr.bf16.gmra.mxu0 %v5654
      %v7547 = vpop.f32.mrf.mxu0
      %v7548 = vadd.f32 %v7265, %v7547
      %v7549 = vpop.f32.mrf.mxu0
      %v7550 = vadd.f32 %v7267, %v7549
      %v7551 = vpop.f32.mrf.mxu0
      %v7552 = vadd.f32 %v7269, %v7551
      %v7553 = vpop.f32.mrf.mxu0
      %v7554 = vadd.f32 %v7271, %v7553
      %7555 = vmatprep.mubr.bf16.mxu0 %v5663
      %7556 = vmatmul.mubr.bf16.gmra.mxu0 %v5662
      %v7557 = vpop.f32.mrf.mxu0
      %v7558 = vadd.f32 %v7275, %v7557
      %v7559 = vpop.f32.mrf.mxu0
      %v7560 = vadd.f32 %v7277, %v7559
      %v7561 = vpop.f32.mrf.mxu0
      %v7562 = vadd.f32 %v7279, %v7561
      %v7563 = vpop.f32.mrf.mxu0
      %v7564 = vadd.f32 %v7281, %v7563
      %7565 = vmatprep.mubr.bf16.mxu0 %v5671
      %7566 = vmatmul.mubr.bf16.gmra.mxu0 %v5670
      %v7567 = vpop.f32.mrf.mxu0
      %v7568 = vadd.f32 %v7285, %v7567
      %v7569 = vpop.f32.mrf.mxu0
      %v7570 = vadd.f32 %v7287, %v7569
      %v7571 = vpop.f32.mrf.mxu0
      %v7572 = vadd.f32 %v7289, %v7571
      %v7573 = vpop.f32.mrf.mxu0
      %v7574 = vadd.f32 %v7291, %v7573
      %7575 = vmatprep.mubr.bf16.mxu0 %v5679
      %7576 = vmatmul.mubr.bf16.gmra.mxu0 %v5678
      %v7577 = vpop.f32.mrf.mxu0
      %v7578 = vadd.f32 %v7295, %v7577
      %v7579 = vpop.f32.mrf.mxu0
      %v7580 = vadd.f32 %v7297, %v7579
      %v7581 = vpop.f32.mrf.mxu0
      %v7582 = vadd.f32 %v7299, %v7581
      %v7583 = vpop.f32.mrf.mxu0
      %v7584 = vadd.f32 %v7301, %v7583
      %7585 = vmatprep.mubr.bf16.mxu0 %v5687
      %7586 = vmatmul.mubr.bf16.gmra.mxu0 %v5686
      %v7587 = vpop.f32.mrf.mxu0
      %v7588 = vadd.f32 %v7305, %v7587
      %v7589 = vpop.f32.mrf.mxu0
      %v7590 = vadd.f32 %v7307, %v7589
      %v7591 = vpop.f32.mrf.mxu0
      %v7592 = vadd.f32 %v7309, %v7591
      %v7593 = vpop.f32.mrf.mxu0
      %v7594 = vadd.f32 %v7311, %v7593
      %7595 = vmatprep.mubr.bf16.mxu0 %v5695
      %7596 = vmatmul.mubr.bf16.gmra.mxu0 %v5694
      %v7597 = vpop.f32.mrf.mxu0
      %v7598 = vadd.f32 %v7315, %v7597
      %v7599 = vpop.f32.mrf.mxu0
      %v7600 = vadd.f32 %v7317, %v7599
      %v7601 = vpop.f32.mrf.mxu0
      %v7602 = vadd.f32 %v7319, %v7601
      %v7603 = vpop.f32.mrf.mxu0
      %v7604 = vadd.f32 %v7321, %v7603
      %7605 = vmatprep.mubr.bf16.mxu0 %v5703
      %7606 = vmatmul.mubr.bf16.gmra.mxu0 %v5702
      %v7607 = vpop.f32.mrf.mxu0
      %v7608 = vadd.f32 %v7325, %v7607
      %v7609 = vpop.f32.mrf.mxu0
      %v7610 = vadd.f32 %v7327, %v7609
      %v7611 = vpop.f32.mrf.mxu0
      %v7612 = vadd.f32 %v7329, %v7611
      %v7613 = vpop.f32.mrf.mxu0
      %v7614 = vadd.f32 %v7331, %v7613
      %7615 = vdwg.mxu0
      %7616 = vst [vmem:[%s285] sm:$0xff] %v7368
      %7617 = vst [vmem:[%s285 + $0x8] sm:$0xff] %v7370
      %7618 = vst [vmem:[%s285 + $0x10] sm:$0xff] %v7372
      %7619 = vst [vmem:[%s285 + $0x18] sm:$0xff] %v7374
      %7620 = vst [vmem:[%s285 + $0x20] sm:$0xff] %v7378
      %7621 = vst [vmem:[%s285 + $0x28] sm:$0xff] %v7380
      %7622 = vst [vmem:[%s285 + $0x30] sm:$0xff] %v7382
      %7623 = vst [vmem:[%s285 + $0x38] sm:$0xff] %v7384
      %7624 = vst [vmem:[%s285 + $0x40] sm:$0xff] %v7388
      %7625 = vst [vmem:[%s285 + $0x48] sm:$0xff] %v7390
      %7626 = vst [vmem:[%s285 + $0x50] sm:$0xff] %v7392
      %7627 = vst [vmem:[%s285 + $0x58] sm:$0xff] %v7394
      %7628 = vst [vmem:[%s285 + $0x60] sm:$0xff] %v7398
      %7629 = vst [vmem:[%s285 + $0x68] sm:$0xff] %v7400
      %7630 = vst [vmem:[%s285 + $0x70] sm:$0xff] %v7402
      %7631 = vst [vmem:[%s285 + $0x78] sm:$0xff] %v7404
      %7632 = vst [vmem:[%s285 + $0x80] sm:$0xff] %v7408
      %7633 = vst [vmem:[%s285 + $0x88] sm:$0xff] %v7410
      %7634 = vst [vmem:[%s285 + $0x90] sm:$0xff] %v7412
      %7635 = vst [vmem:[%s285 + $0x98] sm:$0xff] %v7414
      %7636 = vst [vmem:[%s285 + $0xa0] sm:$0xff] %v7418
      %7637 = vst [vmem:[%s285 + $0xa8] sm:$0xff] %v7420
      %7638 = vst [vmem:[%s285 + $0xb0] sm:$0xff] %v7422
      %7639 = vst [vmem:[%s285 + $0xb8] sm:$0xff] %v7424
      %7640 = vst [vmem:[%s285 + $0xc0] sm:$0xff] %v7428
      %7641 = vst [vmem:[%s285 + $0xc8] sm:$0xff] %v7430
      %7642 = vst [vmem:[%s285 + $0xd0] sm:$0xff] %v7432
      %7643 = vst [vmem:[%s285 + $0xd8] sm:$0xff] %v7434
      %7644 = vst [vmem:[%s285 + $0xe0] sm:$0xff] %v7438
      %7645 = vst [vmem:[%s285 + $0xe8] sm:$0xff] %v7440
      %7646 = vst [vmem:[%s285 + $0xf0] sm:$0xff] %v7442
      %7647 = vst [vmem:[%s285 + $0xf8] sm:$0xff] %v7444
      %7648 = vst [vmem:[%s285 + $0x100] sm:$0xff] %v7448
      %7649 = vst [vmem:[%s285 + $0x108] sm:$0xff] %v7450
      %7650 = vst [vmem:[%s285 + $0x110] sm:$0xff] %v7452
      %7651 = vst [vmem:[%s285 + $0x118] sm:$0xff] %v7454
      %7652 = vst [vmem:[%s285 + $0x120] sm:$0xff] %v7458
      %7653 = vst [vmem:[%s285 + $0x128] sm:$0xff] %v7460
      %7654 = vst [vmem:[%s285 + $0x130] sm:$0xff] %v7462
      %7655 = vst [vmem:[%s285 + $0x138] sm:$0xff] %v7464
      %7656 = vst [vmem:[%s285 + $0x140] sm:$0xff] %v7468
      %7657 = vst [vmem:[%s285 + $0x148] sm:$0xff] %v7470
      %7658 = vst [vmem:[%s285 + $0x150] sm:$0xff] %v7472
      %7659 = vst [vmem:[%s285 + $0x158] sm:$0xff] %v7474
      %7660 = vst [vmem:[%s285 + $0x160] sm:$0xff] %v7478
      %7661 = vst [vmem:[%s285 + $0x168] sm:$0xff] %v7480
      %7662 = vst [vmem:[%s285 + $0x170] sm:$0xff] %v7482
      %7663 = vst [vmem:[%s285 + $0x178] sm:$0xff] %v7484
      %7664 = vst [vmem:[%s285 + $0x180] sm:$0xff] %v7488
      %7665 = vst [vmem:[%s285 + $0x188] sm:$0xff] %v7490
      %7666 = vst [vmem:[%s285 + $0x190] sm:$0xff] %v7492
      %7667 = vst [vmem:[%s285 + $0x198] sm:$0xff] %v7494
      %7668 = vst [vmem:[%s285 + $0x1a0] sm:$0xff] %v7498
      %7669 = vst [vmem:[%s285 + $0x1a8] sm:$0xff] %v7500
      %7670 = vst [vmem:[%s285 + $0x1b0] sm:$0xff] %v7502
      %7671 = vst [vmem:[%s285 + $0x1b8] sm:$0xff] %v7504
      %7672 = vst [vmem:[%s285 + $0x1c0] sm:$0xff] %v7508
      %7673 = vst [vmem:[%s285 + $0x1c8] sm:$0xff] %v7510
      %7674 = vst [vmem:[%s285 + $0x1d0] sm:$0xff] %v7512
      %7675 = vst [vmem:[%s285 + $0x1d8] sm:$0xff] %v7514
      %7676 = vst [vmem:[%s285 + $0x1e0] sm:$0xff] %v7518
      %7677 = vst [vmem:[%s285 + $0x1e8] sm:$0xff] %v7520
      %7678 = vst [vmem:[%s285 + $0x1f0] sm:$0xff] %v7522
      %7679 = vst [vmem:[%s285 + $0x1f8] sm:$0xff] %v7524
      %7680 = vst [vmem:[%s285 + $0x200] sm:$0xff] %v7528
      %7681 = vst [vmem:[%s285 + $0x208] sm:$0xff] %v7530
      %7682 = vst [vmem:[%s285 + $0x210] sm:$0xff] %v7532
      %7683 = vst [vmem:[%s285 + $0x218] sm:$0xff] %v7534
      %7684 = vst [vmem:[%s285 + $0x220] sm:$0xff] %v7538
      %7685 = vst [vmem:[%s285 + $0x228] sm:$0xff] %v7540
      %7686 = vst [vmem:[%s285 + $0x230] sm:$0xff] %v7542
      %7687 = vst [vmem:[%s285 + $0x238] sm:$0xff] %v7544
      %7688 = vst [vmem:[%s285 + $0x240] sm:$0xff] %v7548
      %7689 = vst [vmem:[%s285 + $0x248] sm:$0xff] %v7550
      %7690 = vst [vmem:[%s285 + $0x250] sm:$0xff] %v7552
      %7691 = vst [vmem:[%s285 + $0x258] sm:$0xff] %v7554
      %7692 = vst [vmem:[%s285 + $0x260] sm:$0xff] %v7558
      %7693 = vst [vmem:[%s285 + $0x268] sm:$0xff] %v7560
      %7694 = vst [vmem:[%s285 + $0x270] sm:$0xff] %v7562
      %7695 = vst [vmem:[%s285 + $0x278] sm:$0xff] %v7564
      %7696 = vst [vmem:[%s285 + $0x280] sm:$0xff] %v7568
      %7697 = vst [vmem:[%s285 + $0x288] sm:$0xff] %v7570
      %7698 = vst [vmem:[%s285 + $0x290] sm:$0xff] %v7572
      %7699 = vst [vmem:[%s285 + $0x298] sm:$0xff] %v7574
      %7700 = vst [vmem:[%s285 + $0x2a0] sm:$0xff] %v7578
      %7701 = vst [vmem:[%s285 + $0x2a8] sm:$0xff] %v7580
      %7702 = vst [vmem:[%s285 + $0x2b0] sm:$0xff] %v7582
      %7703 = vst [vmem:[%s285 + $0x2b8] sm:$0xff] %v7584
      %7704 = vst [vmem:[%s285 + $0x2c0] sm:$0xff] %v7588
      %7705 = vst [vmem:[%s285 + $0x2c8] sm:$0xff] %v7590
      %7706 = vst [vmem:[%s285 + $0x2d0] sm:$0xff] %v7592
      %7707 = vst [vmem:[%s285 + $0x2d8] sm:$0xff] %v7594
      %7708 = vst [vmem:[%s285 + $0x2e0] sm:$0xff] %v7598
      %7709 = vst [vmem:[%s285 + $0x2e8] sm:$0xff] %v7600
      %7710 = vst [vmem:[%s285 + $0x2f0] sm:$0xff] %v7602
      %7711 = vst [vmem:[%s285 + $0x2f8] sm:$0xff] %v7604
      %7712 = vst [vmem:[%s285 + $0x300] sm:$0xff] %v7608
      %7713 = vst [vmem:[%s285 + $0x308] sm:$0xff] %v7610
      %7714 = vst [vmem:[%s285 + $0x310] sm:$0xff] %v7612
      %7715 = vst [vmem:[%s285 + $0x318] sm:$0xff] %v7614
      %s7716 = smul.u32 50, %s18
      %p7717 = scmp.lt.s32.totalorder %s7716, 99
      %s7718 = scalar_select %p7717, %s7716, 99
      %s7719 = smul.addr %s7718, 2
      %s7720 = smul.addr %s7719, 8
      %s7721 = scalar_lea.vmem %s7, %s7720
      // Predicated region
      $region49: #{mlp_block.1} parent=47 // pred_check
        %p7722 = pneg %p188
      $region50: #{mlp_block.1} parent=47 // pred_check_branch
        %7724 = sbr.rel (%p7722) target = $region52
      $region51: #{mlp_block.1} parent=47 // pred_region
        %s7725 = smul.u32 50, %s18
      $region52: #{mlp_block.1} parent=47 // pred_fallthru
        _
    $region48: #{mlp_block.1} parent=5 // pred_fallthru
      _
    %p7726 = scmp.le.s32.totalorder 2, %s13
    // Predicated region
    $region53: #{mlp_block.1} parent=5 // pred_check
      %p7727 = pneg %p7726
    $region54: #{mlp_block.1} parent=5 // pred_check_branch
      %7729 = sbr.rel (%p7727) target = $region56
    $region55: #{mlp_block.1} parent=5 // pred_region
      %s7730 = ssub.s32 %s13, 2
      // Predicated region
      $region57: #{mlp_block.1} parent=55 // pred_check
        %p7731 = pneg %p194
      $region58: #{mlp_block.1} parent=55 // pred_check_branch
        %7733 = sbr.rel (%p7731) target = $region60
      $region59: #{mlp_block.1} parent=55 // pred_region
        %s7734 = smul.u32 50, %s19
        %p7735 = scmp.lt.s32.totalorder %s7734, 99
        %s7736 = scalar_select %p7735, %s7734, 99
        %s7737 = smul.addr %s7736, 2
        %s7738 = smul.addr %s7737, 8
        %s7739 = scalar_lea.vmem %s7, %s7738
      $region60: #{mlp_block.1} parent=55 // pred_fallthru
        _
    $region56: #{mlp_block.1} parent=5 // pred_fallthru
      _
  $region6: #{mlp_block.1} parent=0 // loop_footer
    %s17 = sadd.s32 1, %s13
  $region7: #{mlp_block.1} parent=0 // loop_footer_branch
    %12 = sbr.rel target = $region3
  $region8: #{mlp_block.1} parent=0 // loop_exit
    _

</llo_original>
